<compile_context>
chip_gen: v7x
topology: tpu7x:2x2x1
jax: 0.10.0
libtpu: 0.0.40
codegen_flags: <defaults>
</compile_context>

<pallas_src>
import jax
import jax.numpy as jnp
from jax.experimental import pallas as pl
from jax.experimental.pallas import tpu as pltpu

KSIZE = 7
PAD = KSIZE // 2
RPAD = 8          # top halo rows in scratch -> interior starts sublane-aligned


def _round_up(v, m):
    return ((v + m - 1) // m) * m


def _pick_bn(N, C, H, W, max_bn=8, vmem_budget=24 * 1024 * 1024):
    """Largest divisor BN of N that fits the VMEM budget and keeps >= 2 grid steps."""
    best = 1
    for bn in range(1, min(max_bn, N) + 1):
        if N % bn:
            continue
        if N >= 2 and N // bn < 2:
            continue                      # keep both v7x TensorCores busy
        L = bn * W
        x_blk = 2 * bn * C * _round_up(H, 8) * _round_up(W, 128) * 4   # double-buffered
        band = 2 * KSIZE * L * _round_up(L, 128) * 4
        scratch = 2 * (H + 2 * RPAD) * _round_up(L, 128) * 4
        out_blk = 2 * _round_up(H, 8) * _round_up(L, 128) * 4
        if x_blk + band + scratch + out_blk > vmem_budget:
            continue
        best = bn
    return best


def _build_band(conv_weight, BN, W):
    """(1, 2, K, K) OIHW weights -> block-diagonal band matrices (2, K, BN*W, BN*W).

    band[p, ky, b*W + (j + kx - PAD), b*W + j] = w[p, ky, kx] for in-range taps,
    so `rows @ band[p, ky]` performs the kx sweep of the 7x7 conv including the
    zero 'same' padding along W, while keeping the lane-packed images independent.
    """
    w2 = conv_weight.reshape(2, KSIZE, KSIZE).astype(jnp.float32)   # [plane, ky, kx]
    rr = jnp.arange(W).reshape(1, W, 1)
    jj = jnp.arange(W).reshape(1, 1, W)
    kk = jnp.arange(KSIZE).reshape(KSIZE, 1, 1)
    shift = (rr == jj + kk - PAD).astype(jnp.float32)               # (K, W, W)
    band_small = jnp.einsum('pyx,xrj->pyrj', w2, shift)             # (2, K, W, W)
    eye = jnp.eye(BN, dtype=jnp.float32)
    band = jnp.einsum('bc,pyrj->pybrcj', eye, band_small)           # block-diagonal
    return band.reshape(2, KSIZE, BN * W, BN * W)


def spatial_attention_kernel(band_ref, x_ref, o_ref, pad_ref):
    # band_ref: (2, K, L, L) VMEM, resident (constant block index)
    # x_ref:    (BN, C, H, W) VMEM block (BN batch images)
    # o_ref:    (1, H, L)     VMEM output block, L = BN*W (lane-packed images)
    # pad_ref:  (2, H + 2*RPAD, L) f32 VMEM scratch (avg/max planes + row halos)
    BN, C, H, W = x_ref.shape
    L = BN * W

    # Zero only the 3-row halos the conv actually reads (interior is fully
    # overwritten below). Done every step -> safe with per-core scratch on megacore.
    halo = jnp.zeros((2, PAD, L), jnp.float32)
    pad_ref[:, RPAD - PAD:RPAD, :] = halo
    pad_ref[:, RPAD + H:RPAD + H + PAD, :] = halo

    # Channel mean / max per image, packed into that image's lane slice so the
    # working layout is (H, BN*W). Interior writes start at sublane offset 8.
    for b in range(BN):
        xb = x_ref[b].astype(jnp.float32)                        # (C, H, W)
        pad_ref[0, RPAD:RPAD + H, b * W:(b + 1) * W] = jnp.mean(xb, axis=0)
        pad_ref[1, RPAD:RPAD + H, b * W:(b + 1) * W] = jnp.max(xb, axis=0)

    # 7x7 'same' conv (2 planes -> 1, no bias) as 14 banded matmuls on the MXU.
    # Only sublane-offset row reads remain (no lane-direction shifted slices).
    # Two accumulators break the serial accumulation chain.
    acc0 = jnp.zeros((H, L), jnp.float32)
    acc1 = jnp.zeros((H, L), jnp.float32)
    for p in range(2):
        for ky in range(KSIZE):
            r0 = RPAD + ky - PAD
            rows = pad_ref[p, r0:r0 + H, :]                      # (H, L)
            term = jnp.dot(rows, band_ref[p, ky],
                           precision=jax.lax.Precision.HIGHEST,
                           preferred_element_type=jnp.float32)
            if (p * KSIZE + ky) % 2 == 0:
                acc0 = acc0 + term
            else:
                acc1 = acc1 + term
    acc = acc0 + acc1

    # Sigmoid (exp goes to the EUP; divide kept exact for tight verification —
    # pl.reciprocal(..., approx=True) is a free further win once it matters).
    o_ref[0] = (1.0 / (1.0 + jnp.exp(-acc))).astype(o_ref.dtype)


def spatial_attention(x, conv_weight, *, max_bn=8):
    """x: (N, C, H, W), conv_weight: (1, 2, 7, 7) -> (N, 1, H, W)."""
    N, C, H, W = x.shape
    BN = _pick_bn(N, C, H, W, max_bn=max_bn)
    G = N // BN
    L = BN * W

    band = _build_band(conv_weight, BN, W)

    out = pl.pallas_call(
        spatial_attention_kernel,
        out_shape=jax.ShapeDtypeStruct((G, H, L), x.dtype),
        grid_spec=pltpu.PrefetchScalarGridSpec(
            num_scalar_prefetch=0,
            grid=(G,),
            in_specs=[
                pl.BlockSpec((2, KSIZE, L, L), lambda g: (0, 0, 0, 0)),   # band, resident
                pl.BlockSpec((BN, C, H, W), lambda g: (g, 0, 0, 0)),      # x batch block
            ],
            out_specs=pl.BlockSpec((1, H, L), lambda g: (g, 0, 0)),
            scratch_shapes=[pltpu.VMEM((2, H + 2 * RPAD, L), jnp.float32)],
        ),
        compiler_params=pltpu.CompilerParams(
            dimension_semantics=("parallel",),
        ),
    )(band, x)

    # Un-pack the lane-packed (G, H, BN*W) result -> (N, 1, H, W). Output-only plumbing.
    out = out.reshape(G, H, BN, W).transpose(0, 2, 1, 3).reshape(N, 1, H, W)
    return out


def reference(x, conv_weight):
    avg = jnp.mean(x, axis=1, keepdims=True)
    mx = jnp.max(x, axis=1, keepdims=True)
    cat = jnp.concatenate([avg, mx], axis=1)
    out = jax.lax.conv_general_dilated(
        cat, conv_weight, window_strides=(1, 1),
        padding=((PAD, PAD), (PAD, PAD)),
        dimension_numbers=("NCHW", "OIHW", "NCHW"),
        precision=jax.lax.Precision.HIGHEST,
    )
    return jax.nn.sigmoid(out)


if __name__ == "__main__":
    key = jax.random.PRNGKey(0)
    kx, kw, kx2 = jax.random.split(key, 3)

    # Required small config: batch=2, channels=4, spatial=16 -> BN=1, grid=(2,).
    N, C, H, W = 2, 4, 16, 16
    x = jax.random.normal(kx, (N, C, H, W), dtype=jnp.float32)
    # nn.Conv2d(2, 1, 7, bias=False) weight: (1, 2, 7, 7)
    conv_weight = 0.1 * jax.random.normal(kw, (1, 2, KSIZE, KSIZE), dtype=jnp.float32)

    sa = jax.jit(spatial_attention)

    out = jax.block_until_ready(sa(x, conv_weight))
    ref = reference(x, conv_weight)
    assert out.shape == (N, 1, H, W), out.shape
    err = float(jnp.max(jnp.abs(out - ref)))
    # Tolerance covers MXU f32 precision modes; an indexing bug would be O(0.1).
    assert err < 5e-3, f"max abs err {err}"

    # Second config exercises the batched lane-packed path: N=8 -> BN=4, grid=(2,).
    x2 = jax.random.normal(kx2, (8, C, H, W), dtype=jnp.float32)
    out2 = jax.block_until_ready(sa(x2, conv_weight))
    ref2 = reference(x2, conv_weight)
    assert out2.shape == (8, 1, H, W), out2.shape
    err2 = float(jnp.max(jnp.abs(out2 - ref2)))
    assert err2 < 5e-3, f"max abs err {err2}"

    print("KERNEL_OK")
</pallas_src>

<mosaic_0001>
module attributes {stable_mosaic.version = 11 : i64} {
  func.func @spatial_attention_kernel(%arg0: i32, %arg1: memref<2x7x16x16xf32, #tpu.memory_space<vmem>>, %arg2: memref<1x4x16x16xf32, #tpu.memory_space<vmem>>, %arg3: memref<1x16x16xf32, #tpu.memory_space<vmem>>, %arg4: memref<2x32x16xf32, #tpu.memory_space<vmem>>) attributes {dimension_semantics = [#tpu.dimension_semantics<parallel>], iteration_bounds = array<i64: 2>, scalar_prefetch = 0 : i64, scratch_operands = 1 : i64, tpu.core_type = #tpu.core_type<tc>, window_params = [{pipeline_mode = #tpu.pipeline_mode<synchronous>, transform_indices = @transform_0, window_bounds = array<i64: 2, 7, 16, 16>}, {transform_indices = @transform_1, window_bounds = array<i64: 1, 4, 16, 16>}, {transform_indices = @transform_2, window_bounds = array<i64: 1, 16, 16>}]} {
    %cst = arith.constant 0.000000e+00 : f32
    %0 = vector.broadcast %cst : f32 to vector<2x3x16xf32>
    %c0 = arith.constant 0 : index
    %c5 = arith.constant 5 : index
    %c0_0 = arith.constant 0 : index
    %1 = vector.load %arg4[%c0, %c5, %c0_0] : memref<2x32x16xf32, #tpu.memory_space<vmem>>, vector<2x3x16xf32>
    tpu.vector_store %arg4[%c0, %c5, %c0_0], %0 {strides = array<i32>} : memref<2x32x16xf32, #tpu.memory_space<vmem>>, vector<2x3x16xf32>,
    %c0_1 = arith.constant 0 : index
    %c24 = arith.constant 24 : index
    %c0_2 = arith.constant 0 : index
    %2 = vector.load %arg4[%c0_1, %c24, %c0_2] : memref<2x32x16xf32, #tpu.memory_space<vmem>>, vector<2x3x16xf32>
    tpu.vector_store %arg4[%c0_1, %c24, %c0_2], %0 {strides = array<i32>} : memref<2x32x16xf32, #tpu.memory_space<vmem>>, vector<2x3x16xf32>,
    %c0_3 = arith.constant 0 : index
    %c0_4 = arith.constant 0 : index
    %c0_5 = arith.constant 0 : index
    %c0_6 = arith.constant 0 : index
    %3 = vector.load %arg2[%c0_3, %c0_4, %c0_5, %c0_6] : memref<1x4x16x16xf32, #tpu.memory_space<vmem>>, vector<1x4x16x16xf32>
    %4 = vector.shape_cast %3 : vector<1x4x16x16xf32> to vector<4x16x16xf32>
    %cst_7 = arith.constant dense<0.000000e+00> : vector<16x16xf32>
    %5 = vector.multi_reduction <add>, %4, %cst_7 [0] : vector<4x16x16xf32> to vector<16x16xf32>
    %cst_8 = arith.constant 4.000000e+00 : f32
    %6 = vector.broadcast %cst_8 : f32 to vector<16x16xf32>
    %7 = arith.divf %5, %6 : vector<16x16xf32>
    %c0_9 = arith.constant 0 : index
    %c8 = arith.constant 8 : index
    %c0_10 = arith.constant 0 : index
    %8 = vector.load %arg4[%c0_9, %c8, %c0_10] : memref<2x32x16xf32, #tpu.memory_space<vmem>>, vector<1x16x16xf32>
    %9 = vector.shape_cast %8 : vector<1x16x16xf32> to vector<16x16xf32>
    %10 = vector.shape_cast %7 : vector<16x16xf32> to vector<1x16x16xf32>
    tpu.vector_store %arg4[%c0_9, %c8, %c0_10], %10 {strides = array<i32>} : memref<2x32x16xf32, #tpu.memory_space<vmem>>, vector<1x16x16xf32>,
    %cst_11 = arith.constant dense<0xFF800000> : vector<16x16xf32>
    %11 = vector.multi_reduction <maximumf>, %4, %cst_11 [0] : vector<4x16x16xf32> to vector<16x16xf32>
    %c1 = arith.constant 1 : index
    %c8_12 = arith.constant 8 : index
    %c0_13 = arith.constant 0 : index
    %12 = vector.load %arg4[%c1, %c8_12, %c0_13] : memref<2x32x16xf32, #tpu.memory_space<vmem>>, vector<1x16x16xf32>
    %13 = vector.shape_cast %12 : vector<1x16x16xf32> to vector<16x16xf32>
    %14 = vector.shape_cast %11 : vector<16x16xf32> to vector<1x16x16xf32>
    tpu.vector_store %arg4[%c1, %c8_12, %c0_13], %14 {strides = array<i32>} : memref<2x32x16xf32, #tpu.memory_space<vmem>>, vector<1x16x16xf32>,
    %cst_14 = arith.constant 0.000000e+00 : f32
    %15 = vector.broadcast %cst_14 : f32 to vector<16x16xf32>
    %cst_15 = arith.constant 0.000000e+00 : f32
    %16 = vector.broadcast %cst_15 : f32 to vector<16x16xf32>
    %c0_16 = arith.constant 0 : index
    %c5_17 = arith.constant 5 : index
    %c0_18 = arith.constant 0 : index
    %17 = vector.load %arg4[%c0_16, %c5_17, %c0_18] : memref<2x32x16xf32, #tpu.memory_space<vmem>>, vector<1x16x16xf32>
    %18 = vector.shape_cast %17 : vector<1x16x16xf32> to vector<16x16xf32>
    %c0_19 = arith.constant 0 : index
    %c0_20 = arith.constant 0 : index
    %c0_21 = arith.constant 0 : index
    %c0_22 = arith.constant 0 : index
    %19 = vector.load %arg1[%c0_19, %c0_20, %c0_21, %c0_22] : memref<2x7x16x16xf32, #tpu.memory_space<vmem>>, vector<1x1x16x16xf32>
    %20 = vector.shape_cast %19 : vector<1x1x16x16xf32> to vector<16x16xf32>
    %cst_23 = arith.constant dense<0.000000e+00> : vector<16x16xf32>
    %21 = tpu.matmul %18, %20, %cst_23 {dimension_numbers = #tpu.dot_dimension_numbers<[1], [0], [0], [1], [0, 0, 1, 1], [], []>, precision = #tpu.contract_precision<fp32>} : vector<16x16xf32>, vector<16x16xf32>, vector<16x16xf32> -> vector<16x16xf32>
    %22 = arith.addf %15, %21 : vector<16x16xf32>
    %c0_24 = arith.constant 0 : index
    %c6 = arith.constant 6 : index
    %c0_25 = arith.constant 0 : index
    %23 = vector.load %arg4[%c0_24, %c6, %c0_25] : memref<2x32x16xf32, #tpu.memory_space<vmem>>, vector<1x16x16xf32>
    %24 = vector.shape_cast %23 : vector<1x16x16xf32> to vector<16x16xf32>
    %c0_26 = arith.constant 0 : index
    %c1_27 = arith.constant 1 : index
    %c0_28 = arith.constant 0 : index
    %c0_29 = arith.constant 0 : index
    %25 = vector.load %arg1[%c0_26, %c1_27, %c0_28, %c0_29] : memref<2x7x16x16xf32, #tpu.memory_space<vmem>>, vector<1x1x16x16xf32>
    %26 = vector.shape_cast %25 : vector<1x1x16x16xf32> to vector<16x16xf32>
    %cst_30 = arith.constant dense<0.000000e+00> : vector<16x16xf32>
    %27 = tpu.matmul %24, %26, %cst_30 {dimension_numbers = #tpu.dot_dimension_numbers<[1], [0], [0], [1], [0, 0, 1, 1], [], []>, precision = #tpu.contract_precision<fp32>} : vector<16x16xf32>, vector<16x16xf32>, vector<16x16xf32> -> vector<16x16xf32>
    %28 = arith.addf %16, %27 : vector<16x16xf32>
    %c0_31 = arith.constant 0 : index
    %c7 = arith.constant 7 : index
    %c0_32 = arith.constant 0 : index
    %29 = vector.load %arg4[%c0_31, %c7, %c0_32] : memref<2x32x16xf32, #tpu.memory_space<vmem>>, vector<1x16x16xf32>
    %30 = vector.shape_cast %29 : vector<1x16x16xf32> to vector<16x16xf32>
    %c0_33 = arith.constant 0 : index
    %c2 = arith.constant 2 : index
    %c0_34 = arith.constant 0 : index
    %c0_35 = arith.constant 0 : index
    %31 = vector.load %arg1[%c0_33, %c2, %c0_34, %c0_35] : memref<2x7x16x16xf32, #tpu.memory_space<vmem>>, vector<1x1x16x16xf32>
    %32 = vector.shape_cast %31 : vector<1x1x16x16xf32> to vector<16x16xf32>
    %cst_36 = arith.constant dense<0.000000e+00> : vector<16x16xf32>
    %33 = tpu.matmul %30, %32, %cst_36 {dimension_numbers = #tpu.dot_dimension_numbers<[1], [0], [0], [1], [0, 0, 1, 1], [], []>, precision = #tpu.contract_precision<fp32>} : vector<16x16xf32>, vector<16x16xf32>, vector<16x16xf32> -> vector<16x16xf32>
    %34 = arith.addf %22, %33 : vector<16x16xf32>
    %c0_37 = arith.constant 0 : index
    %c8_38 = arith.constant 8 : index
    %c0_39 = arith.constant 0 : index
    %35 = vector.load %arg4[%c0_37, %c8_38, %c0_39] : memref<2x32x16xf32, #tpu.memory_space<vmem>>, vector<1x16x16xf32>
    %36 = vector.shape_cast %35 : vector<1x16x16xf32> to vector<16x16xf32>
    %c0_40 = arith.constant 0 : index
    %c3 = arith.constant 3 : index
    %c0_41 = arith.constant 0 : index
    %c0_42 = arith.constant 0 : index
    %37 = vector.load %arg1[%c0_40, %c3, %c0_41, %c0_42] : memref<2x7x16x16xf32, #tpu.memory_space<vmem>>, vector<1x1x16x16xf32>
    %38 = vector.shape_cast %37 : vector<1x1x16x16xf32> to vector<16x16xf32>
    %cst_43 = arith.constant dense<0.000000e+00> : vector<16x16xf32>
    %39 = tpu.matmul %36, %38, %cst_43 {dimension_numbers = #tpu.dot_dimension_numbers<[1], [0], [0], [1], [0, 0, 1, 1], [], []>, precision = #tpu.contract_precision<fp32>} : vector<16x16xf32>, vector<16x16xf32>, vector<16x16xf32> -> vector<16x16xf32>
    %40 = arith.addf %28, %39 : vector<16x16xf32>
    %c0_44 = arith.constant 0 : index
    %c9 = arith.constant 9 : index
    %c0_45 = arith.constant 0 : index
    %41 = vector.load %arg4[%c0_44, %c9, %c0_45] : memref<2x32x16xf32, #tpu.memory_space<vmem>>, vector<1x16x16xf32>
    %42 = vector.shape_cast %41 : vector<1x16x16xf32> to vector<16x16xf32>
    %c0_46 = arith.constant 0 : index
    %c4 = arith.constant 4 : index
    %c0_47 = arith.constant 0 : index
    %c0_48 = arith.constant 0 : index
    %43 = vector.load %arg1[%c0_46, %c4, %c0_47, %c0_48] : memref<2x7x16x16xf32, #tpu.memory_space<vmem>>, vector<1x1x16x16xf32>
    %44 = vector.shape_cast %43 : vector<1x1x16x16xf32> to vector<16x16xf32>
    %cst_49 = arith.constant dense<0.000000e+00> : vector<16x16xf32>
    %45 = tpu.matmul %42, %44, %cst_49 {dimension_numbers = #tpu.dot_dimension_numbers<[1], [0], [0], [1], [0, 0, 1, 1], [], []>, precision = #tpu.contract_precision<fp32>} : vector<16x16xf32>, vector<16x16xf32>, vector<16x16xf32> -> vector<16x16xf32>
    %46 = arith.addf %34, %45 : vector<16x16xf32>
    %c0_50 = arith.constant 0 : index
    %c10 = arith.constant 10 : index
    %c0_51 = arith.constant 0 : index
    %47 = vector.load %arg4[%c0_50, %c10, %c0_51] : memref<2x32x16xf32, #tpu.memory_space<vmem>>, vector<1x16x16xf32>
    %48 = vector.shape_cast %47 : vector<1x16x16xf32> to vector<16x16xf32>
    %c0_52 = arith.constant 0 : index
    %c5_53 = arith.constant 5 : index
    %c0_54 = arith.constant 0 : index
    %c0_55 = arith.constant 0 : index
    %49 = vector.load %arg1[%c0_52, %c5_53, %c0_54, %c0_55] : memref<2x7x16x16xf32, #tpu.memory_space<vmem>>, vector<1x1x16x16xf32>
    %50 = vector.shape_cast %49 : vector<1x1x16x16xf32> to vector<16x16xf32>
    %cst_56 = arith.constant dense<0.000000e+00> : vector<16x16xf32>
    %51 = tpu.matmul %48, %50, %cst_56 {dimension_numbers = #tpu.dot_dimension_numbers<[1], [0], [0], [1], [0, 0, 1, 1], [], []>, precision = #tpu.contract_precision<fp32>} : vector<16x16xf32>, vector<16x16xf32>, vector<16x16xf32> -> vector<16x16xf32>
    %52 = arith.addf %40, %51 : vector<16x16xf32>
    %c0_57 = arith.constant 0 : index
    %c11 = arith.constant 11 : index
    %c0_58 = arith.constant 0 : index
    %53 = vector.load %arg4[%c0_57, %c11, %c0_58] : memref<2x32x16xf32, #tpu.memory_space<vmem>>, vector<1x16x16xf32>
    %54 = vector.shape_cast %53 : vector<1x16x16xf32> to vector<16x16xf32>
    %c0_59 = arith.constant 0 : index
    %c6_60 = arith.constant 6 : index
    %c0_61 = arith.constant 0 : index
    %c0_62 = arith.constant 0 : index
    %55 = vector.load %arg1[%c0_59, %c6_60, %c0_61, %c0_62] : memref<2x7x16x16xf32, #tpu.memory_space<vmem>>, vector<1x1x16x16xf32>
    %56 = vector.shape_cast %55 : vector<1x1x16x16xf32> to vector<16x16xf32>
    %cst_63 = arith.constant dense<0.000000e+00> : vector<16x16xf32>
    %57 = tpu.matmul %54, %56, %cst_63 {dimension_numbers = #tpu.dot_dimension_numbers<[1], [0], [0], [1], [0, 0, 1, 1], [], []>, precision = #tpu.contract_precision<fp32>} : vector<16x16xf32>, vector<16x16xf32>, vector<16x16xf32> -> vector<16x16xf32>
    %58 = arith.addf %46, %57 : vector<16x16xf32>
    %c1_64 = arith.constant 1 : index
    %c5_65 = arith.constant 5 : index
    %c0_66 = arith.constant 0 : index
    %59 = vector.load %arg4[%c1_64, %c5_65, %c0_66] : memref<2x32x16xf32, #tpu.memory_space<vmem>>, vector<1x16x16xf32>
    %60 = vector.shape_cast %59 : vector<1x16x16xf32> to vector<16x16xf32>
    %c1_67 = arith.constant 1 : index
    %c0_68 = arith.constant 0 : index
    %c0_69 = arith.constant 0 : index
    %c0_70 = arith.constant 0 : index
    %61 = vector.load %arg1[%c1_67, %c0_68, %c0_69, %c0_70] : memref<2x7x16x16xf32, #tpu.memory_space<vmem>>, vector<1x1x16x16xf32>
    %62 = vector.shape_cast %61 : vector<1x1x16x16xf32> to vector<16x16xf32>
    %cst_71 = arith.constant dense<0.000000e+00> : vector<16x16xf32>
    %63 = tpu.matmul %60, %62, %cst_71 {dimension_numbers = #tpu.dot_dimension_numbers<[1], [0], [0], [1], [0, 0, 1, 1], [], []>, precision = #tpu.contract_precision<fp32>} : vector<16x16xf32>, vector<16x16xf32>, vector<16x16xf32> -> vector<16x16xf32>
    %64 = arith.addf %52, %63 : vector<16x16xf32>
    %c1_72 = arith.constant 1 : index
    %c6_73 = arith.constant 6 : index
    %c0_74 = arith.constant 0 : index
    %65 = vector.load %arg4[%c1_72, %c6_73, %c0_74] : memref<2x32x16xf32, #tpu.memory_space<vmem>>, vector<1x16x16xf32>
    %66 = vector.shape_cast %65 : vector<1x16x16xf32> to vector<16x16xf32>
    %c1_75 = arith.constant 1 : index
    %c1_76 = arith.constant 1 : index
    %c0_77 = arith.constant 0 : index
    %c0_78 = arith.constant 0 : index
    %67 = vector.load %arg1[%c1_75, %c1_76, %c0_77, %c0_78] : memref<2x7x16x16xf32, #tpu.memory_space<vmem>>, vector<1x1x16x16xf32>
    %68 = vector.shape_cast %67 : vector<1x1x16x16xf32> to vector<16x16xf32>
    %cst_79 = arith.constant dense<0.000000e+00> : vector<16x16xf32>
    %69 = tpu.matmul %66, %68, %cst_79 {dimension_numbers = #tpu.dot_dimension_numbers<[1], [0], [0], [1], [0, 0, 1, 1], [], []>, precision = #tpu.contract_precision<fp32>} : vector<16x16xf32>, vector<16x16xf32>, vector<16x16xf32> -> vector<16x16xf32>
    %70 = arith.addf %58, %69 : vector<16x16xf32>
    %c1_80 = arith.constant 1 : index
    %c7_81 = arith.constant 7 : index
    %c0_82 = arith.constant 0 : index
    %71 = vector.load %arg4[%c1_80, %c7_81, %c0_82] : memref<2x32x16xf32, #tpu.memory_space<vmem>>, vector<1x16x16xf32>
    %72 = vector.shape_cast %71 : vector<1x16x16xf32> to vector<16x16xf32>
    %c1_83 = arith.constant 1 : index
    %c2_84 = arith.constant 2 : index
    %c0_85 = arith.constant 0 : index
    %c0_86 = arith.constant 0 : index
    %73 = vector.load %arg1[%c1_83, %c2_84, %c0_85, %c0_86] : memref<2x7x16x16xf32, #tpu.memory_space<vmem>>, vector<1x1x16x16xf32>
    %74 = vector.shape_cast %73 : vector<1x1x16x16xf32> to vector<16x16xf32>
    %cst_87 = arith.constant dense<0.000000e+00> : vector<16x16xf32>
    %75 = tpu.matmul %72, %74, %cst_87 {dimension_numbers = #tpu.dot_dimension_numbers<[1], [0], [0], [1], [0, 0, 1, 1], [], []>, precision = #tpu.contract_precision<fp32>} : vector<16x16xf32>, vector<16x16xf32>, vector<16x16xf32> -> vector<16x16xf32>
    %76 = arith.addf %64, %75 : vector<16x16xf32>
    %c1_88 = arith.constant 1 : index
    %c8_89 = arith.constant 8 : index
    %c0_90 = arith.constant 0 : index
    %77 = vector.load %arg4[%c1_88, %c8_89, %c0_90] : memref<2x32x16xf32, #tpu.memory_space<vmem>>, vector<1x16x16xf32>
    %78 = vector.shape_cast %77 : vector<1x16x16xf32> to vector<16x16xf32>
    %c1_91 = arith.constant 1 : index
    %c3_92 = arith.constant 3 : index
    %c0_93 = arith.constant 0 : index
    %c0_94 = arith.constant 0 : index
    %79 = vector.load %arg1[%c1_91, %c3_92, %c0_93, %c0_94] : memref<2x7x16x16xf32, #tpu.memory_space<vmem>>, vector<1x1x16x16xf32>
    %80 = vector.shape_cast %79 : vector<1x1x16x16xf32> to vector<16x16xf32>
    %cst_95 = arith.constant dense<0.000000e+00> : vector<16x16xf32>
    %81 = tpu.matmul %78, %80, %cst_95 {dimension_numbers = #tpu.dot_dimension_numbers<[1], [0], [0], [1], [0, 0, 1, 1], [], []>, precision = #tpu.contract_precision<fp32>} : vector<16x16xf32>, vector<16x16xf32>, vector<16x16xf32> -> vector<16x16xf32>
    %82 = arith.addf %70, %81 : vector<16x16xf32>
    %c1_96 = arith.constant 1 : index
    %c9_97 = arith.constant 9 : index
    %c0_98 = arith.constant 0 : index
    %83 = vector.load %arg4[%c1_96, %c9_97, %c0_98] : memref<2x32x16xf32, #tpu.memory_space<vmem>>, vector<1x16x16xf32>
    %84 = vector.shape_cast %83 : vector<1x16x16xf32> to vector<16x16xf32>
    %c1_99 = arith.constant 1 : index
    %c4_100 = arith.constant 4 : index
    %c0_101 = arith.constant 0 : index
    %c0_102 = arith.constant 0 : index
    %85 = vector.load %arg1[%c1_99, %c4_100, %c0_101, %c0_102] : memref<2x7x16x16xf32, #tpu.memory_space<vmem>>, vector<1x1x16x16xf32>
    %86 = vector.shape_cast %85 : vector<1x1x16x16xf32> to vector<16x16xf32>
    %cst_103 = arith.constant dense<0.000000e+00> : vector<16x16xf32>
    %87 = tpu.matmul %84, %86, %cst_103 {dimension_numbers = #tpu.dot_dimension_numbers<[1], [0], [0], [1], [0, 0, 1, 1], [], []>, precision = #tpu.contract_precision<fp32>} : vector<16x16xf32>, vector<16x16xf32>, vector<16x16xf32> -> vector<16x16xf32>
    %88 = arith.addf %76, %87 : vector<16x16xf32>
    %c1_104 = arith.constant 1 : index
    %c10_105 = arith.constant 10 : index
    %c0_106 = arith.constant 0 : index
    %89 = vector.load %arg4[%c1_104, %c10_105, %c0_106] : memref<2x32x16xf32, #tpu.memory_space<vmem>>, vector<1x16x16xf32>
    %90 = vector.shape_cast %89 : vector<1x16x16xf32> to vector<16x16xf32>
    %c1_107 = arith.constant 1 : index
    %c5_108 = arith.constant 5 : index
    %c0_109 = arith.constant 0 : index
    %c0_110 = arith.constant 0 : index
    %91 = vector.load %arg1[%c1_107, %c5_108, %c0_109, %c0_110] : memref<2x7x16x16xf32, #tpu.memory_space<vmem>>, vector<1x1x16x16xf32>
    %92 = vector.shape_cast %91 : vector<1x1x16x16xf32> to vector<16x16xf32>
    %cst_111 = arith.constant dense<0.000000e+00> : vector<16x16xf32>
    %93 = tpu.matmul %90, %92, %cst_111 {dimension_numbers = #tpu.dot_dimension_numbers<[1], [0], [0], [1], [0, 0, 1, 1], [], []>, precision = #tpu.contract_precision<fp32>} : vector<16x16xf32>, vector<16x16xf32>, vector<16x16xf32> -> vector<16x16xf32>
    %94 = arith.addf %82, %93 : vector<16x16xf32>
    %c1_112 = arith.constant 1 : index
    %c11_113 = arith.constant 11 : index
    %c0_114 = arith.constant 0 : index
    %95 = vector.load %arg4[%c1_112, %c11_113, %c0_114] : memref<2x32x16xf32, #tpu.memory_space<vmem>>, vector<1x16x16xf32>
    %96 = vector.shape_cast %95 : vector<1x16x16xf32> to vector<16x16xf32>
    %c1_115 = arith.constant 1 : index
    %c6_116 = arith.constant 6 : index
    %c0_117 = arith.constant 0 : index
    %c0_118 = arith.constant 0 : index
    %97 = vector.load %arg1[%c1_115, %c6_116, %c0_117, %c0_118] : memref<2x7x16x16xf32, #tpu.memory_space<vmem>>, vector<1x1x16x16xf32>
    %98 = vector.shape_cast %97 : vector<1x1x16x16xf32> to vector<16x16xf32>
    %cst_119 = arith.constant dense<0.000000e+00> : vector<16x16xf32>
    %99 = tpu.matmul %96, %98, %cst_119 {dimension_numbers = #tpu.dot_dimension_numbers<[1], [0], [0], [1], [0, 0, 1, 1], [], []>, precision = #tpu.contract_precision<fp32>} : vector<16x16xf32>, vector<16x16xf32>, vector<16x16xf32> -> vector<16x16xf32>
    %100 = arith.addf %88, %99 : vector<16x16xf32>
    %101 = arith.addf %94, %100 : vector<16x16xf32>
    %cst_120 = arith.constant 0.000000e+00 : f32
    %102 = vector.broadcast %cst_120 : f32 to vector<16x16xf32>
    %103 = arith.subf %102, %101 : vector<16x16xf32>
    %104 = math.exp %103 : vector<16x16xf32>
    %cst_121 = arith.constant 1.000000e+00 : f32
    %105 = vector.broadcast %cst_121 : f32 to vector<16x16xf32>
    %106 = arith.addf %105, %104 : vector<16x16xf32>
    %cst_122 = arith.constant 1.000000e+00 : f32
    %107 = vector.broadcast %cst_122 : f32 to vector<16x16xf32>
    %108 = arith.divf %107, %106 : vector<16x16xf32>
    %c0_123 = arith.constant 0 : index
    %c0_124 = arith.constant 0 : index
    %c0_125 = arith.constant 0 : index
    %109 = vector.load %arg3[%c0_123, %c0_124, %c0_125] : memref<1x16x16xf32, #tpu.memory_space<vmem>>, vector<1x16x16xf32>
    %110 = vector.shape_cast %109 : vector<1x16x16xf32> to vector<16x16xf32>
    %111 = vector.shape_cast %108 : vector<16x16xf32> to vector<1x16x16xf32>
    tpu.vector_store %arg3[%c0_123, %c0_124, %c0_125], %111 {strides = array<i32>} : memref<1x16x16xf32, #tpu.memory_space<vmem>>, vector<1x16x16xf32>,
    return
  }
  func.func @transform_0(%arg0: i32) -> (i32, i32, i32, i32) {
    %c0_i32 = arith.constant 0 : i32
    %c0_i32_0 = arith.constant 0 : i32
    %c0_i32_1 = arith.constant 0 : i32
    %c0_i32_2 = arith.constant 0 : i32
    %c0_i32_3 = arith.constant 0 : i32
    return %c0_i32, %c0_i32_0, %c0_i32_1, %c0_i32_2 : i32, i32, i32, i32
  }
  func.func @transform_1(%arg0: i32) -> (i32, i32, i32, i32) {
    %c0_i32 = arith.constant 0 : i32
    %c0_i32_0 = arith.constant 0 : i32
    %c0_i32_1 = arith.constant 0 : i32
    %c0_i32_2 = arith.constant 0 : i32
    return %arg0, %c0_i32, %c0_i32_0, %c0_i32_1 : i32, i32, i32, i32
  }
  func.func @transform_2(%arg0: i32) -> (i32, i32, i32) {
    %c0_i32 = arith.constant 0 : i32
    %c0_i32_0 = arith.constant 0 : i32
    %c0_i32_1 = arith.constant 0 : i32
    return %arg0, %c0_i32, %c0_i32_0 : i32, i32, i32
  }
}

</mosaic_0001>

<llo_original>
// kernel: spatial_attention.1
$region0: #{spatial_attention.1}
  #allocation0 [shape = 'u32[]', space=smem, size = 0x4, offset = 0x4, fixed_abs, tag = 'smem constant byte address 0x4 - core index']
  #allocation1 [shape = 'u32[144,128]{1,0:T(1,128)}', space=vmem, size = 0x12000, scoped, tag = 'internal scratch']
  #allocation2 [shape = 'f32[2,32,16]{2,1,0:T(8,128)}', space=vmem, size = 0x8000, scoped, tag = 'scratch operand']
  %s0 = inlined_call_operand.vmem [shape: f32[2,7,16,16], index: 0, kind: input, shape index: {}]
  %s1 = inlined_call_operand.vmem [shape: f32[2,4,16,16], index: 1, kind: input, shape index: {}]
  %s2 = inlined_call_operand.hbm [shape: f32[2,16,16], index: 2, kind: output, shape index: {}]
  %s3 = sld [smem:[#allocation0]]
  $region41: #{spatial_attention.1} parent=0
    _
  %s5 = ssub.s32 1, %s3
  %s6 = scalar_select 0, %s5, %s3
  $region1: #{spatial_attention.1} parent=0
    #allocation3 [shape = 'u8[16384]{0}', space=vmem, size = 0x4000, scoped, tag = 'output window, operand 0']
    #allocation4 [shape = 's32[2]{0}', space=sflag, size = 0x8, scoped, tag = 'scoped memory for spatial_attention.1']
    %7 = vsyncpa [#allocation4], 0
    %s8 = scalar_lea.sflag [#allocation4], 1
    %9 = vsyncpa %s8, 0
    loop: start=0, step=1, limit=4
    $region2: #{spatial_attention.1} parent=1 // loop_pre_header
      _
    $region3: #{spatial_attention.1} parent=1 // loop_header
      %s11 = sphi 0, %s15
      %p12 = scmp.ge.s32.totalorder %s11, 4
      %s19 = sphi 0, %s19
      %s21 = sphi 0, %s19
      %s22 = sphi 0, %s21
      %s36 = sphi 0, %s22
      %s42 = sphi 0, %s44
      %s45 = sphi 0, %s42
      %s46 = sphi 0, %s45
      %s62 = sphi 0, %s46
      %s68 = sphi 0, %s70
      %s71 = sphi 0, %s68
      %s72 = sphi 0, %s71
      %s88 = sphi 0, %s72
    $region4: #{spatial_attention.1} parent=1 // loop_header_branch
      %14 = sbr.rel (%p12) target = $region8
    $region5: #{spatial_attention.1} parent=1 // loop_body
      %s16 = ssub.s32 %s11, 1
      %s17 = ssub.s32 %s11, 2
      %s18 = sadd.s32 %s11, 1
      %s20 = sadd.s32 %s19, 1
      %p23 = scmp.eq.s32.totalorder %s11, 1
      %p24 = scmp.ne.s32.totalorder %s19, %s21
      %p25 = scmp.eq.s32.totalorder %s11, 0
      %p26 = por %p24, %p25
      %p27 = scmp.ne.s32.totalorder %s19, %s21
      %p28 = scmp.eq.s32.totalorder %s16, 1
      %p29 = por %p27, %p28
      %p30 = scmp.ne.s32.totalorder %s21, %s22
      %p31 = scmp.eq.s32.totalorder %s16, 0
      %p32 = por %p30, %p31
      %p33 = scmp.ne.s32.totalorder %s21, %s22
      %p34 = scmp.eq.s32.totalorder %s17, 1
      %p35 = por %p33, %p34
      %p37 = scmp.ne.s32.totalorder %s22, %s36
      %p38 = scmp.eq.s32.totalorder %s17, 0
      %p39 = por %p37, %p38
      %s40 = ssub.s32 %s11, %s18
      %p41 = scmp.eq.s32.totalorder %s40, 0
      %s43 = sadd.s32 %s42, 1
      %s44 = scalar_select %p41, %s42, %s43
      %p47 = pneg %p41
      %p48 = scmp.eq.s32.totalorder %s11, 1
      %p49 = por %p47, %p48
      %p50 = scmp.ne.s32.totalorder %s42, %s45
      %p51 = scmp.eq.s32.totalorder %s11, 0
      %p52 = por %p50, %p51
      %p53 = scmp.ne.s32.totalorder %s42, %s45
      %p54 = scmp.eq.s32.totalorder %s16, 1
      %p55 = por %p53, %p54
      %p56 = scmp.ne.s32.totalorder %s45, %s46
      %p57 = scmp.eq.s32.totalorder %s16, 0
      %p58 = por %p56, %p57
      %p59 = scmp.ne.s32.totalorder %s45, %s46
      %p60 = scmp.eq.s32.totalorder %s17, 1
      %p61 = por %p59, %p60
      %p63 = scmp.ne.s32.totalorder %s46, %s62
      %p64 = scmp.eq.s32.totalorder %s17, 0
      %p65 = por %p63, %p64
      %s66 = ssub.s32 %s11, %s18
      %p67 = scmp.eq.s32.totalorder %s66, 0
      %s69 = sadd.s32 %s68, 1
      %s70 = scalar_select %p67, %s68, %s69
      %p73 = pneg %p67
      %p74 = scmp.eq.s32.totalorder %s11, 1
      %p75 = por %p73, %p74
      %p76 = scmp.ne.s32.totalorder %s68, %s71
      %p77 = scmp.eq.s32.totalorder %s11, 0
      %p78 = por %p76, %p77
      %p79 = scmp.ne.s32.totalorder %s68, %s71
      %p80 = scmp.eq.s32.totalorder %s16, 1
      %p81 = por %p79, %p80
      %p82 = scmp.ne.s32.totalorder %s71, %s72
      %p83 = scmp.eq.s32.totalorder %s16, 0
      %p84 = por %p82, %p83
      %p85 = scmp.ne.s32.totalorder %s71, %s72
      %p86 = scmp.eq.s32.totalorder %s17, 1
      %p87 = por %p85, %p86
      %p89 = scmp.ne.s32.totalorder %s72, %s88
      %p90 = scmp.eq.s32.totalorder %s17, 0
      %p91 = por %p89, %p90
      %p92 = scmp.le.s32.totalorder 1, %s11
      %p93 = scmp.lt.s32.totalorder %s11, 3
      %p94 = pnand %p92, %p93
      %p95 = pneg %p94
      // Predicated region
      $region9: #{spatial_attention.1} parent=5 // pred_check
        _
      $region10: #{spatial_attention.1} parent=5 // pred_check_branch
        %97 = sbr.rel (%p94) target = $region12
      $region11: #{spatial_attention.1} parent=5 // pred_region
        %s98 = ssub.s32 %s11, 1
        // Predicated region
        $region13: #{spatial_attention.1} parent=11 // pred_check
          %p99 = pneg %p32
        $region14: #{spatial_attention.1} parent=11 // pred_check_branch
          %101 = sbr.rel (%p99) target = $region16
        $region15: #{spatial_attention.1} parent=11 // pred_region
          _
        $region16: #{spatial_attention.1} parent=11 // pred_fallthru
          _
      $region12: #{spatial_attention.1} parent=5 // pred_fallthru
        _
      %p102 = scmp.lt.s32.totalorder %s11, 2
      // Predicated region
      $region17: #{spatial_attention.1} parent=5 // pred_check
        %p103 = pneg %p102
      $region18: #{spatial_attention.1} parent=5 // pred_check_branch
        %105 = sbr.rel (%p103) target = $region20
      $region19: #{spatial_attention.1} parent=5 // pred_region
        // Predicated region
        $region21: #{spatial_attention.1} parent=19 // pred_check
          %p106 = pneg %p52
        $region22: #{spatial_attention.1} parent=19 // pred_check_branch
          %108 = sbr.rel (%p106) target = $region24
        $region23: #{spatial_attention.1} parent=19 // pred_region
          %p109 = scmp.lt.s32.totalorder %s11, 1
          %s110 = scalar_select %p109, %s11, 1
          %s111 = smul.addr %s110, 8
          %s112 = smul.addr %s111, 8
          %s113 = scalar_lea.vmem %s1, %s112
        $region24: #{spatial_attention.1} parent=19 // pred_fallthru
          _
      $region20: #{spatial_attention.1} parent=5 // pred_fallthru
        _
      %p114 = scmp.le.s32.totalorder 1, %s11
      %p115 = scmp.lt.s32.totalorder %s11, 3
      %p116 = pnand %p114, %p115
      %p117 = pneg %p116
      // Predicated region
      $region25: #{spatial_attention.1} parent=5 // pred_check
        _
      $region26: #{spatial_attention.1} parent=5 // pred_check_branch
        %119 = sbr.rel (%p116) target = $region28
      $region27: #{spatial_attention.1} parent=5 // pred_region
        %s120 = ssub.s32 %s11, 1
        %p121 = pneg %p32
        %p122 = pneg %p29
        %p123 = scmp.lt.s32.totalorder %s16, 1
        %s124 = scalar_select %p123, %s16, 1
        %s125 = smul.addr %s124, 8
        %s126 = smul.addr %s125, 8
        %s127 = scalar_lea.vmem %s1, %s126
        %p128 = pneg %p58
        %p129 = pneg %p55
        %p130 = pneg %p84
        %p131 = pneg %p81
        %s132 = sand.u32 %s71, 1
        %s133 = scalar_lea.sflag [#allocation4], %s132
        %s134 = sand.u32 %s71, 1
        %s135 = smul.addr %s134, 16
        %s136 = scalar_lea.vmem [#allocation3], %s135
        %p137 = scmp.lt.s32.totalorder %s16, 1
        %s138 = scalar_select %p137, %s16, 1
        %s139 = smul.addr %s138, 8
        %s140 = smul.addr %s139, 8
        %s141 = scalar_lea.vmem %s1, %s140
        %vm142 = vcmask 124928
        %143 = vst.msk [vmem:[#allocation2 + $0x5] sm:$0x7] %vm142, 0.0
        %144 = vst.msk [vmem:[#allocation2 + $0x25] sm:$0x7] %vm142, 0.0
        %145 = vst.msk [vmem:[#allocation2 + $0x18] sm:$0x7] %vm142, 0.0
        %146 = vst.msk [vmem:[#allocation2 + $0x38] sm:$0x7] %vm142, 0.0
        %v147 = vld [vmem:[%s141] sm:$0xff]
        %v148 = vld [vmem:[%s141 + $0x8] sm:$0xff]
        %v149 = vld [vmem:[%s141 + $0x10] sm:$0xff]
        %v150 = vld [vmem:[%s141 + $0x18] sm:$0xff]
        %v151 = vld [vmem:[%s141 + $0x20] sm:$0xff]
        %v152 = vld [vmem:[%s141 + $0x28] sm:$0xff]
        %v153 = vld [vmem:[%s141 + $0x30] sm:$0xff]
        %v154 = vld [vmem:[%s141 + $0x38] sm:$0xff]
        %vm155 = vcmask 130048
        %v156 = vsel %vm155, %v147, 0.0
        %v157 = vsel %vm155, %v149, 0.0
        %v158 = vadd.f32 %v156, %v157
        %v159 = vsel %vm155, %v151, 0.0
        %v160 = vadd.f32 %v158, %v159
        %v161 = vsel %vm155, %v153, 0.0
        %v162 = vadd.f32 %v160, %v161
        %v163 = vsel %vm155, %v148, 0.0
        %v164 = vsel %vm155, %v150, 0.0
        %v165 = vadd.f32 %v163, %v164
        %v166 = vsel %vm155, %v152, 0.0
        %v167 = vadd.f32 %v165, %v166
        %v168 = vsel %vm155, %v154, 0.0
        %v169 = vadd.f32 %v167, %v168
        %v170 = vrcp.pop 4.0
        %v171 = vmul.f32 %v162, %v170
        %v172 = vmul.f32 %v169, %v170
        %173 = vst.msk [vmem:[#allocation2 + $0x8] sm:$0xff] %vm155, %v171
        %174 = vst.msk [vmem:[#allocation2 + $0x10] sm:$0xff] %vm155, %v172
        %v175 = vsel %vm155, %v147, -inf
        %v176 = vsel %vm155, %v149, -inf
        %v177 = vsel %vm155, %v151, -inf
        %v178 = vmax.f32 %v175, %v177
        %v179 = vsel %vm155, %v153, -inf
        %v180 = vmax.f32 %v176, %v179
        %v181 = vmax.f32 %v178, %v180
        %v182 = vsel %vm155, %v148, -inf
        %v183 = vsel %vm155, %v150, -inf
        %v184 = vsel %vm155, %v152, -inf
        %v185 = vmax.f32 %v182, %v184
        %v186 = vsel %vm155, %v154, -inf
        %v187 = vmax.f32 %v183, %v186
        %v188 = vmax.f32 %v185, %v187
        %s189 = scalar_lea.vmem [#allocation2], 32
        %190 = vst.msk [vmem:[%s189 + $0x8] sm:$0xff] %vm155, %v181
        %191 = vst.msk [vmem:[%s189 + $0x10] sm:$0xff] %vm155, %v188
        %v192 = vld [vmem:[#allocation2 + $0x5] sm:$0xff]
        %v193 = vld [vmem:[#allocation2 + $0xd] sm:$0xff]
        %v194 = vld [vmem:[%s0] sm:$0xff]
        %v195 = vld [vmem:[%s0 + $0x8] sm:$0xff]
        %v196 = vld [vmem:[#allocation2 + $0x6] sm:$0xff]
        %v197 = vld [vmem:[#allocation2 + $0xe] sm:$0xff]
        %s198 = scalar_lea.vmem %s0, 16
        %v199 = vld [vmem:[%s198] sm:$0xff]
        %v200 = vld [vmem:[%s198 + $0x8] sm:$0xff]
        %v201 = vld [vmem:[#allocation2 + $0x7] sm:$0xff]
        %v202 = vld [vmem:[#allocation2 + $0xf] sm:$0xff]
        %s203 = scalar_lea.vmem %s0, 32
        %v204 = vld [vmem:[%s203] sm:$0xff]
        %v205 = vld [vmem:[%s203 + $0x8] sm:$0xff]
        %v207 = vsel %vm155, %v201, 0
        %v210 = vsel %vm155, %v202, 0
        %212 = vmatprep.subr.mxu0 0.0
        %v213 = vand.u32 %v204, 4294901760
        %214 = vmatpush1.msra.mxu0 %v213
        %215 = vmatprep.subr.mxu0 0.0
        %v216 = vand.u32 %v205, 4294901760
        %217 = vmatpush1.msra.mxu0 %v216
        %218 = vmatprep.subr.mxu0 0.0
        %219 = vmatpush1.msra.mxu0 0.0
        %220 = vmatprep.subr.mxu0 0.0
        %221 = vmatpush1.msra.mxu0 0.0
        %222 = vmatprep.subr.mxu0 0.0
        %223 = vmatpush1.msra.mxu0 0.0
        %224 = vmatprep.subr.mxu0 0.0
        %225 = vmatpush1.msra.mxu0 0.0
        %226 = vmatprep.subr.mxu0 0.0
        %227 = vmatpush1.msra.mxu0 0.0
        %228 = vmatprep.subr.mxu0 0.0
        %229 = vmatpush1.msra.mxu0 0.0
        %230 = vmatprep.subr.mxu0 0.0
        %231 = vmatpush1.msra.mxu0 0.0
        %232 = vmatprep.subr.mxu0 0.0
        %233 = vmatpush1.msra.mxu0 0.0
        %234 = vmatprep.subr.mxu0 0.0
        %235 = vmatpush1.msra.mxu0 0.0
        %236 = vmatprep.subr.mxu0 0.0
        %237 = vmatpush1.msra.mxu0 0.0
        %238 = vmatprep.subr.mxu0 0.0
        %239 = vmatpush1.msra.mxu0 0.0
        %240 = vmatprep.subr.mxu0 0.0
        %241 = vmatpush1.msra.mxu0 0.0
        %242 = vmatprep.subr.mxu0 0.0
        %243 = vmatpush1.msra.mxu0 0.0
        %244 = vmatprep.subr.mxu0 0.0
        %245 = vmatpush1.msra.mxu0 0.0
        %246 = vmatprep.subr.mxu0 0.0
        %247 = vmatpush1.msra.mxu0 0.0
        %248 = vmatprep.subr.mxu0 0.0
        %249 = vmatpush1.msra.mxu0 0.0
        %250 = vmatprep.subr.mxu0 0.0
        %251 = vmatpush1.msra.mxu0 0.0
        %252 = vmatprep.subr.mxu0 0.0
        %253 = vmatpush1.msra.mxu0 0.0
        %254 = vmatprep.subr.mxu0 0.0
        %255 = vmatpush1.msra.mxu0 0.0
        %256 = vmatprep.subr.mxu0 0.0
        %257 = vmatpush1.msra.mxu0 0.0
        %258 = vmatprep.subr.mxu0 0.0
        %259 = vmatpush1.msra.mxu0 0.0
        %260 = vmatprep.subr.mxu0 0.0
        %261 = vmatpush1.msra.mxu0 0.0
        %262 = vmatprep.subr.mxu0 0.0
        %263 = vmatpush1.msra.mxu0 0.0
        %264 = vmatprep.subr.mxu0 0.0
        %265 = vmatpush1.msra.mxu0 0.0
        %266 = vmatprep.subr.mxu0 0.0
        %267 = vmatpush1.msra.mxu0 0.0
        %268 = vmatprep.subr.mxu0 0.0
        %269 = vmatpush1.msra.mxu0 0.0
        %270 = vmatprep.subr.mxu0 0.0
        %271 = vmatpush1.msra.mxu0 0.0
        %272 = vmatprep.subr.mxu0 0.0
        %273 = vmatpush1.msra.mxu0 0.0
        %274 = vmatprep.subr.mxu0 0.0
        %275 = vmatpush1.msra.mxu0 0.0
        %276 = vmatprep.subr.mxu0 0.0
        %277 = vmatpush1.msra.mxu0 0.0
        %278 = vmatprep.mubr.f32.mxu0 0.0
        %v279 = vand.u32 %v207, 4294901760
        %v280 = vsub.f32 %v207, %v279
        %v281 = vand.u32 %v280, 4294901760
        %v282 = vsub.f32 %v280, %v281
        %v283 = vand.u32 %v282, 4294901760
        %284 = vmatmul.mubr.f32.gmra.mrb[0].mxu0 %v283
        %v285 = vpop.f32.mrb[0].mxu0
        %v286 = vadd.f32 0.0, %v285
        %v287 = vpop.f32.mrb[0].mxu0
        %288 = vmatprep.mubr.f32.mxu0 0.0
        %v289 = vand.u32 %v210, 4294901760
        %v290 = vsub.f32 %v210, %v289
        %v291 = vand.u32 %v290, 4294901760
        %v292 = vsub.f32 %v290, %v291
        %v293 = vand.u32 %v292, 4294901760
        %294 = vmatmul.mubr.f32.gmra.mrb[0].mxu0 %v293
        %v295 = vpop.f32.mrb[0].mxu0
        %v296 = vadd.f32 0.0, %v295
        %v297 = vpop.f32.mrb[0].mxu0
        %298 = vdwg.mxu0
        %299 = vmatprep.subr.mxu0 0.0
        %v300 = vand.u32 %v204, 4294901760
        %v301 = vsub.f32 %v204, %v300
        %v302 = vand.u32 %v301, 4294901760
        %v303 = vsub.f32 %v301, %v302
        %v304 = vand.u32 %v303, 4294901760
        %305 = vmatpush1.msra.mxu0 %v304
        %306 = vmatprep.subr.mxu0 0.0
        %v307 = vand.u32 %v205, 4294901760
        %v308 = vsub.f32 %v205, %v307
        %v309 = vand.u32 %v308, 4294901760
        %v310 = vsub.f32 %v308, %v309
        %v311 = vand.u32 %v310, 4294901760
        %312 = vmatpush1.msra.mxu0 %v311
        %313 = vmatprep.subr.mxu0 0.0
        %314 = vmatpush1.msra.mxu0 0.0
        %315 = vmatprep.subr.mxu0 0.0
        %316 = vmatpush1.msra.mxu0 0.0
        %317 = vmatprep.subr.mxu0 0.0
        %318 = vmatpush1.msra.mxu0 0.0
        %319 = vmatprep.subr.mxu0 0.0
        %320 = vmatpush1.msra.mxu0 0.0
        %321 = vmatprep.subr.mxu0 0.0
        %322 = vmatpush1.msra.mxu0 0.0
        %323 = vmatprep.subr.mxu0 0.0
        %324 = vmatpush1.msra.mxu0 0.0
        %325 = vmatprep.subr.mxu0 0.0
        %326 = vmatpush1.msra.mxu0 0.0
        %327 = vmatprep.subr.mxu0 0.0
        %328 = vmatpush1.msra.mxu0 0.0
        %329 = vmatprep.subr.mxu0 0.0
        %330 = vmatpush1.msra.mxu0 0.0
        %331 = vmatprep.subr.mxu0 0.0
        %332 = vmatpush1.msra.mxu0 0.0
        %333 = vmatprep.subr.mxu0 0.0
        %334 = vmatpush1.msra.mxu0 0.0
        %335 = vmatprep.subr.mxu0 0.0
        %336 = vmatpush1.msra.mxu0 0.0
        %337 = vmatprep.subr.mxu0 0.0
        %338 = vmatpush1.msra.mxu0 0.0
        %339 = vmatprep.subr.mxu0 0.0
        %340 = vmatpush1.msra.mxu0 0.0
        %341 = vmatprep.subr.mxu0 0.0
        %342 = vmatpush1.msra.mxu0 0.0
        %343 = vmatprep.subr.mxu0 0.0
        %344 = vmatpush1.msra.mxu0 0.0
        %345 = vmatprep.subr.mxu0 0.0
        %346 = vmatpush1.msra.mxu0 0.0
        %347 = vmatprep.subr.mxu0 0.0
        %348 = vmatpush1.msra.mxu0 0.0
        %349 = vmatprep.subr.mxu0 0.0
        %350 = vmatpush1.msra.mxu0 0.0
        %351 = vmatprep.subr.mxu0 0.0
        %352 = vmatpush1.msra.mxu0 0.0
        %353 = vmatprep.subr.mxu0 0.0
        %354 = vmatpush1.msra.mxu0 0.0
        %355 = vmatprep.subr.mxu0 0.0
        %356 = vmatpush1.msra.mxu0 0.0
        %357 = vmatprep.subr.mxu0 0.0
        %358 = vmatpush1.msra.mxu0 0.0
        %359 = vmatprep.subr.mxu0 0.0
        %360 = vmatpush1.msra.mxu0 0.0
        %361 = vmatprep.subr.mxu0 0.0
        %362 = vmatpush1.msra.mxu0 0.0
        %363 = vmatprep.subr.mxu0 0.0
        %364 = vmatpush1.msra.mxu0 0.0
        %365 = vmatprep.subr.mxu0 0.0
        %366 = vmatpush1.msra.mxu0 0.0
        %367 = vmatprep.subr.mxu0 0.0
        %368 = vmatpush1.msra.mxu0 0.0
        %369 = vmatprep.subr.mxu0 0.0
        %370 = vmatpush1.msra.mxu0 0.0
        %371 = vmatprep.subr.mxu0 0.0
        %372 = vmatpush1.msra.mxu0 0.0
        %373 = vmatprep.mubr.f32.mxu0 0.0
        %v374 = vand.u32 %v207, 4294901760
        %375 = vmatmul.mubr.f32.gmra.mrb[0].mxu0 %v374
        %v376 = vpop.f32.mrb[0].mxu0
        %v377 = vadd.f32 %v286, %v376
        %v378 = vpop.f32.mrb[0].mxu0
        %379 = vmatprep.mubr.f32.mxu0 0.0
        %v380 = vand.u32 %v210, 4294901760
        %381 = vmatmul.mubr.f32.gmra.mrb[0].mxu0 %v380
        %v382 = vpop.f32.mrb[0].mxu0
        %v383 = vadd.f32 %v296, %v382
        %v384 = vpop.f32.mrb[0].mxu0
        %385 = vdwg.mxu0
        %386 = vmatprep.subr.mxu0 0.0
        %v387 = vand.u32 %v204, 4294901760
        %v388 = vsub.f32 %v204, %v387
        %389 = vmatpush1.msra.mxu0 %v388
        %390 = vmatprep.subr.mxu0 0.0
        %v391 = vand.u32 %v205, 4294901760
        %v392 = vsub.f32 %v205, %v391
        %393 = vmatpush1.msra.mxu0 %v392
        %394 = vmatprep.subr.mxu0 0.0
        %395 = vmatpush1.msra.mxu0 0.0
        %396 = vmatprep.subr.mxu0 0.0
        %397 = vmatpush1.msra.mxu0 0.0
        %398 = vmatprep.subr.mxu0 0.0
        %399 = vmatpush1.msra.mxu0 0.0
        %400 = vmatprep.subr.mxu0 0.0
        %401 = vmatpush1.msra.mxu0 0.0
        %402 = vmatprep.subr.mxu0 0.0
        %403 = vmatpush1.msra.mxu0 0.0
        %404 = vmatprep.subr.mxu0 0.0
        %405 = vmatpush1.msra.mxu0 0.0
        %406 = vmatprep.subr.mxu0 0.0
        %407 = vmatpush1.msra.mxu0 0.0
        %408 = vmatprep.subr.mxu0 0.0
        %409 = vmatpush1.msra.mxu0 0.0
        %410 = vmatprep.subr.mxu0 0.0
        %411 = vmatpush1.msra.mxu0 0.0
        %412 = vmatprep.subr.mxu0 0.0
        %413 = vmatpush1.msra.mxu0 0.0
        %414 = vmatprep.subr.mxu0 0.0
        %415 = vmatpush1.msra.mxu0 0.0
        %416 = vmatprep.subr.mxu0 0.0
        %417 = vmatpush1.msra.mxu0 0.0
        %418 = vmatprep.subr.mxu0 0.0
        %419 = vmatpush1.msra.mxu0 0.0
        %420 = vmatprep.subr.mxu0 0.0
        %421 = vmatpush1.msra.mxu0 0.0
        %422 = vmatprep.subr.mxu0 0.0
        %423 = vmatpush1.msra.mxu0 0.0
        %424 = vmatprep.subr.mxu0 0.0
        %425 = vmatpush1.msra.mxu0 0.0
        %426 = vmatprep.subr.mxu0 0.0
        %427 = vmatpush1.msra.mxu0 0.0
        %428 = vmatprep.subr.mxu0 0.0
        %429 = vmatpush1.msra.mxu0 0.0
        %430 = vmatprep.subr.mxu0 0.0
        %431 = vmatpush1.msra.mxu0 0.0
        %432 = vmatprep.subr.mxu0 0.0
        %433 = vmatpush1.msra.mxu0 0.0
        %434 = vmatprep.subr.mxu0 0.0
        %435 = vmatpush1.msra.mxu0 0.0
        %436 = vmatprep.subr.mxu0 0.0
        %437 = vmatpush1.msra.mxu0 0.0
        %438 = vmatprep.subr.mxu0 0.0
        %439 = vmatpush1.msra.mxu0 0.0
        %440 = vmatprep.subr.mxu0 0.0
        %441 = vmatpush1.msra.mxu0 0.0
        %442 = vmatprep.subr.mxu0 0.0
        %443 = vmatpush1.msra.mxu0 0.0
        %444 = vmatprep.subr.mxu0 0.0
        %445 = vmatpush1.msra.mxu0 0.0
        %446 = vmatprep.subr.mxu0 0.0
        %447 = vmatpush1.msra.mxu0 0.0
        %448 = vmatprep.subr.mxu0 0.0
        %449 = vmatpush1.msra.mxu0 0.0
        %450 = vmatprep.subr.mxu0 0.0
        %451 = vmatpush1.msra.mxu0 0.0
        %452 = vmatprep.subr.mxu0 0.0
        %453 = vmatpush1.msra.mxu0 0.0
        %454 = vmatprep.mubr.f32.mxu0 0.0
        %v455 = vand.u32 %v207, 4294901760
        %v456 = vsub.f32 %v207, %v455
        %457 = vmatmul.mubr.f32.gmra.mrb[0].mxu0 %v456
        %v458 = vpop.f32.mrb[0].mxu0
        %v459 = vadd.f32 %v377, %v458
        %v460 = vpop.f32.mrb[0].mxu0
        %461 = vmatprep.mubr.f32.mxu0 0.0
        %v462 = vand.u32 %v210, 4294901760
        %v463 = vsub.f32 %v210, %v462
        %464 = vmatmul.mubr.f32.gmra.mrb[0].mxu0 %v463
        %v465 = vpop.f32.mrb[0].mxu0
        %v466 = vadd.f32 %v383, %v465
        %v467 = vpop.f32.mrb[0].mxu0
        %468 = vdwg.mxu0
        %469 = vmatprep.subr.mxu0 0.0
        %v470 = vand.u32 %v204, 4294901760
        %471 = vmatpush1.msra.mxu0 %v470
        %472 = vmatprep.subr.mxu0 0.0
        %v473 = vand.u32 %v205, 4294901760
        %474 = vmatpush1.msra.mxu0 %v473
        %475 = vmatprep.subr.mxu0 0.0
        %476 = vmatpush1.msra.mxu0 0.0
        %477 = vmatprep.subr.mxu0 0.0
        %478 = vmatpush1.msra.mxu0 0.0
        %479 = vmatprep.subr.mxu0 0.0
        %480 = vmatpush1.msra.mxu0 0.0
        %481 = vmatprep.subr.mxu0 0.0
        %482 = vmatpush1.msra.mxu0 0.0
        %483 = vmatprep.subr.mxu0 0.0
        %484 = vmatpush1.msra.mxu0 0.0
        %485 = vmatprep.subr.mxu0 0.0
        %486 = vmatpush1.msra.mxu0 0.0
        %487 = vmatprep.subr.mxu0 0.0
        %488 = vmatpush1.msra.mxu0 0.0
        %489 = vmatprep.subr.mxu0 0.0
        %490 = vmatpush1.msra.mxu0 0.0
        %491 = vmatprep.subr.mxu0 0.0
        %492 = vmatpush1.msra.mxu0 0.0
        %493 = vmatprep.subr.mxu0 0.0
        %494 = vmatpush1.msra.mxu0 0.0
        %495 = vmatprep.subr.mxu0 0.0
        %496 = vmatpush1.msra.mxu0 0.0
        %497 = vmatprep.subr.mxu0 0.0
        %498 = vmatpush1.msra.mxu0 0.0
        %499 = vmatprep.subr.mxu0 0.0
        %500 = vmatpush1.msra.mxu0 0.0
        %501 = vmatprep.subr.mxu0 0.0
        %502 = vmatpush1.msra.mxu0 0.0
        %503 = vmatprep.subr.mxu0 0.0
        %504 = vmatpush1.msra.mxu0 0.0
        %505 = vmatprep.subr.mxu0 0.0
        %506 = vmatpush1.msra.mxu0 0.0
        %507 = vmatprep.subr.mxu0 0.0
        %508 = vmatpush1.msra.mxu0 0.0
        %509 = vmatprep.subr.mxu0 0.0
        %510 = vmatpush1.msra.mxu0 0.0
        %511 = vmatprep.subr.mxu0 0.0
        %512 = vmatpush1.msra.mxu0 0.0
        %513 = vmatprep.subr.mxu0 0.0
        %514 = vmatpush1.msra.mxu0 0.0
        %515 = vmatprep.subr.mxu0 0.0
        %516 = vmatpush1.msra.mxu0 0.0
        %517 = vmatprep.subr.mxu0 0.0
        %518 = vmatpush1.msra.mxu0 0.0
        %519 = vmatprep.subr.mxu0 0.0
        %520 = vmatpush1.msra.mxu0 0.0
        %521 = vmatprep.subr.mxu0 0.0
        %522 = vmatpush1.msra.mxu0 0.0
        %523 = vmatprep.subr.mxu0 0.0
        %524 = vmatpush1.msra.mxu0 0.0
        %525 = vmatprep.subr.mxu0 0.0
        %526 = vmatpush1.msra.mxu0 0.0
        %527 = vmatprep.subr.mxu0 0.0
        %528 = vmatpush1.msra.mxu0 0.0
        %529 = vmatprep.subr.mxu0 0.0
        %530 = vmatpush1.msra.mxu0 0.0
        %531 = vmatprep.subr.mxu0 0.0
        %532 = vmatpush1.msra.mxu0 0.0
        %533 = vmatprep.subr.mxu0 0.0
        %534 = vmatpush1.msra.mxu0 0.0
        %535 = vmatprep.mubr.f32.mxu0 0.0
        %v536 = vand.u32 %v207, 4294901760
        %v537 = vsub.f32 %v207, %v536
        %v538 = vand.u32 %v537, 4294901760
        %539 = vmatmul.mubr.f32.gmra.mrb[0].mxu0 %v538
        %v540 = vpop.f32.mrb[0].mxu0
        %v541 = vadd.f32 %v459, %v540
        %v542 = vpop.f32.mrb[0].mxu0
        %543 = vmatprep.mubr.f32.mxu0 0.0
        %v544 = vand.u32 %v210, 4294901760
        %v545 = vsub.f32 %v210, %v544
        %v546 = vand.u32 %v545, 4294901760
        %547 = vmatmul.mubr.f32.gmra.mrb[0].mxu0 %v546
        %v548 = vpop.f32.mrb[0].mxu0
        %v549 = vadd.f32 %v466, %v548
        %v550 = vpop.f32.mrb[0].mxu0
        %551 = vdwg.mxu0
        %552 = vmatprep.subr.mxu0 0.0
        %v553 = vand.u32 %v204, 4294901760
        %v554 = vsub.f32 %v204, %v553
        %v555 = vand.u32 %v554, 4294901760
        %556 = vmatpush1.msra.mxu0 %v555
        %557 = vmatprep.subr.mxu0 0.0
        %v558 = vand.u32 %v205, 4294901760
        %v559 = vsub.f32 %v205, %v558
        %v560 = vand.u32 %v559, 4294901760
        %561 = vmatpush1.msra.mxu0 %v560
        %562 = vmatprep.subr.mxu0 0.0
        %563 = vmatpush1.msra.mxu0 0.0
        %564 = vmatprep.subr.mxu0 0.0
        %565 = vmatpush1.msra.mxu0 0.0
        %566 = vmatprep.subr.mxu0 0.0
        %567 = vmatpush1.msra.mxu0 0.0
        %568 = vmatprep.subr.mxu0 0.0
        %569 = vmatpush1.msra.mxu0 0.0
        %570 = vmatprep.subr.mxu0 0.0
        %571 = vmatpush1.msra.mxu0 0.0
        %572 = vmatprep.subr.mxu0 0.0
        %573 = vmatpush1.msra.mxu0 0.0
        %574 = vmatprep.subr.mxu0 0.0
        %575 = vmatpush1.msra.mxu0 0.0
        %576 = vmatprep.subr.mxu0 0.0
        %577 = vmatpush1.msra.mxu0 0.0
        %578 = vmatprep.subr.mxu0 0.0
        %579 = vmatpush1.msra.mxu0 0.0
        %580 = vmatprep.subr.mxu0 0.0
        %581 = vmatpush1.msra.mxu0 0.0
        %582 = vmatprep.subr.mxu0 0.0
        %583 = vmatpush1.msra.mxu0 0.0
        %584 = vmatprep.subr.mxu0 0.0
        %585 = vmatpush1.msra.mxu0 0.0
        %586 = vmatprep.subr.mxu0 0.0
        %587 = vmatpush1.msra.mxu0 0.0
        %588 = vmatprep.subr.mxu0 0.0
        %589 = vmatpush1.msra.mxu0 0.0
        %590 = vmatprep.subr.mxu0 0.0
        %591 = vmatpush1.msra.mxu0 0.0
        %592 = vmatprep.subr.mxu0 0.0
        %593 = vmatpush1.msra.mxu0 0.0
        %594 = vmatprep.subr.mxu0 0.0
        %595 = vmatpush1.msra.mxu0 0.0
        %596 = vmatprep.subr.mxu0 0.0
        %597 = vmatpush1.msra.mxu0 0.0
        %598 = vmatprep.subr.mxu0 0.0
        %599 = vmatpush1.msra.mxu0 0.0
        %600 = vmatprep.subr.mxu0 0.0
        %601 = vmatpush1.msra.mxu0 0.0
        %602 = vmatprep.subr.mxu0 0.0
        %603 = vmatpush1.msra.mxu0 0.0
        %604 = vmatprep.subr.mxu0 0.0
        %605 = vmatpush1.msra.mxu0 0.0
        %606 = vmatprep.subr.mxu0 0.0
        %607 = vmatpush1.msra.mxu0 0.0
        %608 = vmatprep.subr.mxu0 0.0
        %609 = vmatpush1.msra.mxu0 0.0
        %610 = vmatprep.subr.mxu0 0.0
        %611 = vmatpush1.msra.mxu0 0.0
        %612 = vmatprep.subr.mxu0 0.0
        %613 = vmatpush1.msra.mxu0 0.0
        %614 = vmatprep.subr.mxu0 0.0
        %615 = vmatpush1.msra.mxu0 0.0
        %616 = vmatprep.subr.mxu0 0.0
        %617 = vmatpush1.msra.mxu0 0.0
        %618 = vmatprep.subr.mxu0 0.0
        %619 = vmatpush1.msra.mxu0 0.0
        %620 = vmatprep.subr.mxu0 0.0
        %621 = vmatpush1.msra.mxu0 0.0
        %622 = vmatprep.mubr.f32.mxu0 0.0
        %v623 = vand.u32 %v207, 4294901760
        %624 = vmatmul.mubr.f32.gmra.mrb[0].mxu0 %v623
        %v625 = vpop.f32.mrb[0].mxu0
        %v626 = vadd.f32 %v541, %v625
        %v627 = vpop.f32.mrb[0].mxu0
        %628 = vmatprep.mubr.f32.mxu0 0.0
        %v629 = vand.u32 %v210, 4294901760
        %630 = vmatmul.mubr.f32.gmra.mrb[0].mxu0 %v629
        %v631 = vpop.f32.mrb[0].mxu0
        %v632 = vadd.f32 %v549, %v631
        %v633 = vpop.f32.mrb[0].mxu0
        %634 = vdwg.mxu0
        %635 = vmatprep.subr.mxu0 0.0
        %v636 = vand.u32 %v204, 4294901760
        %637 = vmatpush1.msra.mxu0 %v636
        %638 = vmatprep.subr.mxu0 0.0
        %v639 = vand.u32 %v205, 4294901760
        %640 = vmatpush1.msra.mxu0 %v639
        %641 = vmatprep.subr.mxu0 0.0
        %642 = vmatpush1.msra.mxu0 0.0
        %643 = vmatprep.subr.mxu0 0.0
        %644 = vmatpush1.msra.mxu0 0.0
        %645 = vmatprep.subr.mxu0 0.0
        %646 = vmatpush1.msra.mxu0 0.0
        %647 = vmatprep.subr.mxu0 0.0
        %648 = vmatpush1.msra.mxu0 0.0
        %649 = vmatprep.subr.mxu0 0.0
        %650 = vmatpush1.msra.mxu0 0.0
        %651 = vmatprep.subr.mxu0 0.0
        %652 = vmatpush1.msra.mxu0 0.0
        %653 = vmatprep.subr.mxu0 0.0
        %654 = vmatpush1.msra.mxu0 0.0
        %655 = vmatprep.subr.mxu0 0.0
        %656 = vmatpush1.msra.mxu0 0.0
        %657 = vmatprep.subr.mxu0 0.0
        %658 = vmatpush1.msra.mxu0 0.0
        %659 = vmatprep.subr.mxu0 0.0
        %660 = vmatpush1.msra.mxu0 0.0
        %661 = vmatprep.subr.mxu0 0.0
        %662 = vmatpush1.msra.mxu0 0.0
        %663 = vmatprep.subr.mxu0 0.0
        %664 = vmatpush1.msra.mxu0 0.0
        %665 = vmatprep.subr.mxu0 0.0
        %666 = vmatpush1.msra.mxu0 0.0
        %667 = vmatprep.subr.mxu0 0.0
        %668 = vmatpush1.msra.mxu0 0.0
        %669 = vmatprep.subr.mxu0 0.0
        %670 = vmatpush1.msra.mxu0 0.0
        %671 = vmatprep.subr.mxu0 0.0
        %672 = vmatpush1.msra.mxu0 0.0
        %673 = vmatprep.subr.mxu0 0.0
        %674 = vmatpush1.msra.mxu0 0.0
        %675 = vmatprep.subr.mxu0 0.0
        %676 = vmatpush1.msra.mxu0 0.0
        %677 = vmatprep.subr.mxu0 0.0
        %678 = vmatpush1.msra.mxu0 0.0
        %679 = vmatprep.subr.mxu0 0.0
        %680 = vmatpush1.msra.mxu0 0.0
        %681 = vmatprep.subr.mxu0 0.0
        %682 = vmatpush1.msra.mxu0 0.0
        %683 = vmatprep.subr.mxu0 0.0
        %684 = vmatpush1.msra.mxu0 0.0
        %685 = vmatprep.subr.mxu0 0.0
        %686 = vmatpush1.msra.mxu0 0.0
        %687 = vmatprep.subr.mxu0 0.0
        %688 = vmatpush1.msra.mxu0 0.0
        %689 = vmatprep.subr.mxu0 0.0
        %690 = vmatpush1.msra.mxu0 0.0
        %691 = vmatprep.subr.mxu0 0.0
        %692 = vmatpush1.msra.mxu0 0.0
        %693 = vmatprep.subr.mxu0 0.0
        %694 = vmatpush1.msra.mxu0 0.0
        %695 = vmatprep.subr.mxu0 0.0
        %696 = vmatpush1.msra.mxu0 0.0
        %697 = vmatprep.subr.mxu0 0.0
        %698 = vmatpush1.msra.mxu0 0.0
        %699 = vmatprep.subr.mxu0 0.0
        %700 = vmatpush1.msra.mxu0 0.0
        %701 = vmatprep.mubr.f32.mxu0 0.0
        %v702 = vand.u32 %v207, 4294901760
        %703 = vmatmul.mubr.f32.gmra.mrb[0].mxu0 %v702
        %v704 = vpop.f32.mrb[0].mxu0
        %v705 = vadd.f32 %v626, %v704
        %v706 = vpop.f32.mrb[0].mxu0
        %707 = vmatprep.mubr.f32.mxu0 0.0
        %v708 = vand.u32 %v210, 4294901760
        %709 = vmatmul.mubr.f32.gmra.mrb[0].mxu0 %v708
        %v710 = vpop.f32.mrb[0].mxu0
        %v711 = vadd.f32 %v632, %v710
        %v712 = vpop.f32.mrb[0].mxu0
        %713 = vdwg.mxu0
        %v715 = vsel %vm155, %v192, 0
        %v718 = vsel %vm155, %v193, 0
        %720 = vmatprep.subr.mxu0 0.0
        %v721 = vand.u32 %v194, 4294901760
        %722 = vmatpush1.msra.mxu0 %v721
        %723 = vmatprep.subr.mxu0 0.0
        %v724 = vand.u32 %v195, 4294901760
        %725 = vmatpush1.msra.mxu0 %v724
        %726 = vmatprep.subr.mxu0 0.0
        %727 = vmatpush1.msra.mxu0 0.0
        %728 = vmatprep.subr.mxu0 0.0
        %729 = vmatpush1.msra.mxu0 0.0
        %730 = vmatprep.subr.mxu0 0.0
        %731 = vmatpush1.msra.mxu0 0.0
        %732 = vmatprep.subr.mxu0 0.0
        %733 = vmatpush1.msra.mxu0 0.0
        %734 = vmatprep.subr.mxu0 0.0
        %735 = vmatpush1.msra.mxu0 0.0
        %736 = vmatprep.subr.mxu0 0.0
        %737 = vmatpush1.msra.mxu0 0.0
        %738 = vmatprep.subr.mxu0 0.0
        %739 = vmatpush1.msra.mxu0 0.0
        %740 = vmatprep.subr.mxu0 0.0
        %741 = vmatpush1.msra.mxu0 0.0
        %742 = vmatprep.subr.mxu0 0.0
        %743 = vmatpush1.msra.mxu0 0.0
        %744 = vmatprep.subr.mxu0 0.0
        %745 = vmatpush1.msra.mxu0 0.0
        %746 = vmatprep.subr.mxu0 0.0
        %747 = vmatpush1.msra.mxu0 0.0
        %748 = vmatprep.subr.mxu0 0.0
        %749 = vmatpush1.msra.mxu0 0.0
        %750 = vmatprep.subr.mxu0 0.0
        %751 = vmatpush1.msra.mxu0 0.0
        %752 = vmatprep.subr.mxu0 0.0
        %753 = vmatpush1.msra.mxu0 0.0
        %754 = vmatprep.subr.mxu0 0.0
        %755 = vmatpush1.msra.mxu0 0.0
        %756 = vmatprep.subr.mxu0 0.0
        %757 = vmatpush1.msra.mxu0 0.0
        %758 = vmatprep.subr.mxu0 0.0
        %759 = vmatpush1.msra.mxu0 0.0
        %760 = vmatprep.subr.mxu0 0.0
        %761 = vmatpush1.msra.mxu0 0.0
        %762 = vmatprep.subr.mxu0 0.0
        %763 = vmatpush1.msra.mxu0 0.0
        %764 = vmatprep.subr.mxu0 0.0
        %765 = vmatpush1.msra.mxu0 0.0
        %766 = vmatprep.subr.mxu0 0.0
        %767 = vmatpush1.msra.mxu0 0.0
        %768 = vmatprep.subr.mxu0 0.0
        %769 = vmatpush1.msra.mxu0 0.0
        %770 = vmatprep.subr.mxu0 0.0
        %771 = vmatpush1.msra.mxu0 0.0
        %772 = vmatprep.subr.mxu0 0.0
        %773 = vmatpush1.msra.mxu0 0.0
        %774 = vmatprep.subr.mxu0 0.0
        %775 = vmatpush1.msra.mxu0 0.0
        %776 = vmatprep.subr.mxu0 0.0
        %777 = vmatpush1.msra.mxu0 0.0
        %778 = vmatprep.subr.mxu0 0.0
        %779 = vmatpush1.msra.mxu0 0.0
        %780 = vmatprep.subr.mxu0 0.0
        %781 = vmatpush1.msra.mxu0 0.0
        %782 = vmatprep.subr.mxu0 0.0
        %783 = vmatpush1.msra.mxu0 0.0
        %784 = vmatprep.subr.mxu0 0.0
        %785 = vmatpush1.msra.mxu0 0.0
        %786 = vmatprep.mubr.f32.mxu0 0.0
        %v787 = vand.u32 %v715, 4294901760
        %v788 = vsub.f32 %v715, %v787
        %v789 = vand.u32 %v788, 4294901760
        %v790 = vsub.f32 %v788, %v789
        %v791 = vand.u32 %v790, 4294901760
        %792 = vmatmul.mubr.f32.gmra.mrb[0].mxu0 %v791
        %v793 = vpop.f32.mrb[0].mxu0
        %v794 = vadd.f32 %v705, %v793
        %v795 = vpop.f32.mrb[0].mxu0
        %796 = vmatprep.mubr.f32.mxu0 0.0
        %v797 = vand.u32 %v718, 4294901760
        %v798 = vsub.f32 %v718, %v797
        %v799 = vand.u32 %v798, 4294901760
        %v800 = vsub.f32 %v798, %v799
        %v801 = vand.u32 %v800, 4294901760
        %802 = vmatmul.mubr.f32.gmra.mrb[0].mxu0 %v801
        %v803 = vpop.f32.mrb[0].mxu0
        %v804 = vadd.f32 %v711, %v803
        %v805 = vpop.f32.mrb[0].mxu0
        %806 = vdwg.mxu0
        %807 = vmatprep.subr.mxu0 0.0
        %v808 = vand.u32 %v194, 4294901760
        %v809 = vsub.f32 %v194, %v808
        %v810 = vand.u32 %v809, 4294901760
        %v811 = vsub.f32 %v809, %v810
        %v812 = vand.u32 %v811, 4294901760
        %813 = vmatpush1.msra.mxu0 %v812
        %814 = vmatprep.subr.mxu0 0.0
        %v815 = vand.u32 %v195, 4294901760
        %v816 = vsub.f32 %v195, %v815
        %v817 = vand.u32 %v816, 4294901760
        %v818 = vsub.f32 %v816, %v817
        %v819 = vand.u32 %v818, 4294901760
        %820 = vmatpush1.msra.mxu0 %v819
        %821 = vmatprep.subr.mxu0 0.0
        %822 = vmatpush1.msra.mxu0 0.0
        %823 = vmatprep.subr.mxu0 0.0
        %824 = vmatpush1.msra.mxu0 0.0
        %825 = vmatprep.subr.mxu0 0.0
        %826 = vmatpush1.msra.mxu0 0.0
        %827 = vmatprep.subr.mxu0 0.0
        %828 = vmatpush1.msra.mxu0 0.0
        %829 = vmatprep.subr.mxu0 0.0
        %830 = vmatpush1.msra.mxu0 0.0
        %831 = vmatprep.subr.mxu0 0.0
        %832 = vmatpush1.msra.mxu0 0.0
        %833 = vmatprep.subr.mxu0 0.0
        %834 = vmatpush1.msra.mxu0 0.0
        %835 = vmatprep.subr.mxu0 0.0
        %836 = vmatpush1.msra.mxu0 0.0
        %837 = vmatprep.subr.mxu0 0.0
        %838 = vmatpush1.msra.mxu0 0.0
        %839 = vmatprep.subr.mxu0 0.0
        %840 = vmatpush1.msra.mxu0 0.0
        %841 = vmatprep.subr.mxu0 0.0
        %842 = vmatpush1.msra.mxu0 0.0
        %843 = vmatprep.subr.mxu0 0.0
        %844 = vmatpush1.msra.mxu0 0.0
        %845 = vmatprep.subr.mxu0 0.0
        %846 = vmatpush1.msra.mxu0 0.0
        %847 = vmatprep.subr.mxu0 0.0
        %848 = vmatpush1.msra.mxu0 0.0
        %849 = vmatprep.subr.mxu0 0.0
        %850 = vmatpush1.msra.mxu0 0.0
        %851 = vmatprep.subr.mxu0 0.0
        %852 = vmatpush1.msra.mxu0 0.0
        %853 = vmatprep.subr.mxu0 0.0
        %854 = vmatpush1.msra.mxu0 0.0
        %855 = vmatprep.subr.mxu0 0.0
        %856 = vmatpush1.msra.mxu0 0.0
        %857 = vmatprep.subr.mxu0 0.0
        %858 = vmatpush1.msra.mxu0 0.0
        %859 = vmatprep.subr.mxu0 0.0
        %860 = vmatpush1.msra.mxu0 0.0
        %861 = vmatprep.subr.mxu0 0.0
        %862 = vmatpush1.msra.mxu0 0.0
        %863 = vmatprep.subr.mxu0 0.0
        %864 = vmatpush1.msra.mxu0 0.0
        %865 = vmatprep.subr.mxu0 0.0
        %866 = vmatpush1.msra.mxu0 0.0
        %867 = vmatprep.subr.mxu0 0.0
        %868 = vmatpush1.msra.mxu0 0.0
        %869 = vmatprep.subr.mxu0 0.0
        %870 = vmatpush1.msra.mxu0 0.0
        %871 = vmatprep.subr.mxu0 0.0
        %872 = vmatpush1.msra.mxu0 0.0
        %873 = vmatprep.subr.mxu0 0.0
        %874 = vmatpush1.msra.mxu0 0.0
        %875 = vmatprep.subr.mxu0 0.0
        %876 = vmatpush1.msra.mxu0 0.0
        %877 = vmatprep.subr.mxu0 0.0
        %878 = vmatpush1.msra.mxu0 0.0
        %879 = vmatprep.subr.mxu0 0.0
        %880 = vmatpush1.msra.mxu0 0.0
        %881 = vmatprep.mubr.f32.mxu0 0.0
        %v882 = vand.u32 %v715, 4294901760
        %883 = vmatmul.mubr.f32.gmra.mrb[0].mxu0 %v882
        %v884 = vpop.f32.mrb[0].mxu0
        %v885 = vadd.f32 %v794, %v884
        %v886 = vpop.f32.mrb[0].mxu0
        %887 = vmatprep.mubr.f32.mxu0 0.0
        %v888 = vand.u32 %v718, 4294901760
        %889 = vmatmul.mubr.f32.gmra.mrb[0].mxu0 %v888
        %v890 = vpop.f32.mrb[0].mxu0
        %v891 = vadd.f32 %v804, %v890
        %v892 = vpop.f32.mrb[0].mxu0
        %893 = vdwg.mxu0
        %894 = vmatprep.subr.mxu0 0.0
        %v895 = vand.u32 %v194, 4294901760
        %v896 = vsub.f32 %v194, %v895
        %897 = vmatpush1.msra.mxu0 %v896
        %898 = vmatprep.subr.mxu0 0.0
        %v899 = vand.u32 %v195, 4294901760
        %v900 = vsub.f32 %v195, %v899
        %901 = vmatpush1.msra.mxu0 %v900
        %902 = vmatprep.subr.mxu0 0.0
        %903 = vmatpush1.msra.mxu0 0.0
        %904 = vmatprep.subr.mxu0 0.0
        %905 = vmatpush1.msra.mxu0 0.0
        %906 = vmatprep.subr.mxu0 0.0
        %907 = vmatpush1.msra.mxu0 0.0
        %908 = vmatprep.subr.mxu0 0.0
        %909 = vmatpush1.msra.mxu0 0.0
        %910 = vmatprep.subr.mxu0 0.0
        %911 = vmatpush1.msra.mxu0 0.0
        %912 = vmatprep.subr.mxu0 0.0
        %913 = vmatpush1.msra.mxu0 0.0
        %914 = vmatprep.subr.mxu0 0.0
        %915 = vmatpush1.msra.mxu0 0.0
        %916 = vmatprep.subr.mxu0 0.0
        %917 = vmatpush1.msra.mxu0 0.0
        %918 = vmatprep.subr.mxu0 0.0
        %919 = vmatpush1.msra.mxu0 0.0
        %920 = vmatprep.subr.mxu0 0.0
        %921 = vmatpush1.msra.mxu0 0.0
        %922 = vmatprep.subr.mxu0 0.0
        %923 = vmatpush1.msra.mxu0 0.0
        %924 = vmatprep.subr.mxu0 0.0
        %925 = vmatpush1.msra.mxu0 0.0
        %926 = vmatprep.subr.mxu0 0.0
        %927 = vmatpush1.msra.mxu0 0.0
        %928 = vmatprep.subr.mxu0 0.0
        %929 = vmatpush1.msra.mxu0 0.0
        %930 = vmatprep.subr.mxu0 0.0
        %931 = vmatpush1.msra.mxu0 0.0
        %932 = vmatprep.subr.mxu0 0.0
        %933 = vmatpush1.msra.mxu0 0.0
        %934 = vmatprep.subr.mxu0 0.0
        %935 = vmatpush1.msra.mxu0 0.0
        %936 = vmatprep.subr.mxu0 0.0
        %937 = vmatpush1.msra.mxu0 0.0
        %938 = vmatprep.subr.mxu0 0.0
        %939 = vmatpush1.msra.mxu0 0.0
        %940 = vmatprep.subr.mxu0 0.0
        %941 = vmatpush1.msra.mxu0 0.0
        %942 = vmatprep.subr.mxu0 0.0
        %943 = vmatpush1.msra.mxu0 0.0
        %944 = vmatprep.subr.mxu0 0.0
        %945 = vmatpush1.msra.mxu0 0.0
        %946 = vmatprep.subr.mxu0 0.0
        %947 = vmatpush1.msra.mxu0 0.0
        %948 = vmatprep.subr.mxu0 0.0
        %949 = vmatpush1.msra.mxu0 0.0
        %950 = vmatprep.subr.mxu0 0.0
        %951 = vmatpush1.msra.mxu0 0.0
        %952 = vmatprep.subr.mxu0 0.0
        %953 = vmatpush1.msra.mxu0 0.0
        %954 = vmatprep.subr.mxu0 0.0
        %955 = vmatpush1.msra.mxu0 0.0
        %956 = vmatprep.subr.mxu0 0.0
        %957 = vmatpush1.msra.mxu0 0.0
        %958 = vmatprep.subr.mxu0 0.0
        %959 = vmatpush1.msra.mxu0 0.0
        %960 = vmatprep.subr.mxu0 0.0
        %961 = vmatpush1.msra.mxu0 0.0
        %962 = vmatprep.mubr.f32.mxu0 0.0
        %v963 = vand.u32 %v715, 4294901760
        %v964 = vsub.f32 %v715, %v963
        %965 = vmatmul.mubr.f32.gmra.mrb[0].mxu0 %v964
        %v966 = vpop.f32.mrb[0].mxu0
        %v967 = vadd.f32 %v885, %v966
        %v968 = vpop.f32.mrb[0].mxu0
        %969 = vmatprep.mubr.f32.mxu0 0.0
        %v970 = vand.u32 %v718, 4294901760
        %v971 = vsub.f32 %v718, %v970
        %972 = vmatmul.mubr.f32.gmra.mrb[0].mxu0 %v971
        %v973 = vpop.f32.mrb[0].mxu0
        %v974 = vadd.f32 %v891, %v973
        %v975 = vpop.f32.mrb[0].mxu0
        %976 = vdwg.mxu0
        %977 = vmatprep.subr.mxu0 0.0
        %v978 = vand.u32 %v194, 4294901760
        %979 = vmatpush1.msra.mxu0 %v978
        %980 = vmatprep.subr.mxu0 0.0
        %v981 = vand.u32 %v195, 4294901760
        %982 = vmatpush1.msra.mxu0 %v981
        %983 = vmatprep.subr.mxu0 0.0
        %984 = vmatpush1.msra.mxu0 0.0
        %985 = vmatprep.subr.mxu0 0.0
        %986 = vmatpush1.msra.mxu0 0.0
        %987 = vmatprep.subr.mxu0 0.0
        %988 = vmatpush1.msra.mxu0 0.0
        %989 = vmatprep.subr.mxu0 0.0
        %990 = vmatpush1.msra.mxu0 0.0
        %991 = vmatprep.subr.mxu0 0.0
        %992 = vmatpush1.msra.mxu0 0.0
        %993 = vmatprep.subr.mxu0 0.0
        %994 = vmatpush1.msra.mxu0 0.0
        %995 = vmatprep.subr.mxu0 0.0
        %996 = vmatpush1.msra.mxu0 0.0
        %997 = vmatprep.subr.mxu0 0.0
        %998 = vmatpush1.msra.mxu0 0.0
        %999 = vmatprep.subr.mxu0 0.0
        %1000 = vmatpush1.msra.mxu0 0.0
        %1001 = vmatprep.subr.mxu0 0.0
        %1002 = vmatpush1.msra.mxu0 0.0
        %1003 = vmatprep.subr.mxu0 0.0
        %1004 = vmatpush1.msra.mxu0 0.0
        %1005 = vmatprep.subr.mxu0 0.0
        %1006 = vmatpush1.msra.mxu0 0.0
        %1007 = vmatprep.subr.mxu0 0.0
        %1008 = vmatpush1.msra.mxu0 0.0
        %1009 = vmatprep.subr.mxu0 0.0
        %1010 = vmatpush1.msra.mxu0 0.0
        %1011 = vmatprep.subr.mxu0 0.0
        %1012 = vmatpush1.msra.mxu0 0.0
        %1013 = vmatprep.subr.mxu0 0.0
        %1014 = vmatpush1.msra.mxu0 0.0
        %1015 = vmatprep.subr.mxu0 0.0
        %1016 = vmatpush1.msra.mxu0 0.0
        %1017 = vmatprep.subr.mxu0 0.0
        %1018 = vmatpush1.msra.mxu0 0.0
        %1019 = vmatprep.subr.mxu0 0.0
        %1020 = vmatpush1.msra.mxu0 0.0
        %1021 = vmatprep.subr.mxu0 0.0
        %1022 = vmatpush1.msra.mxu0 0.0
        %1023 = vmatprep.subr.mxu0 0.0
        %1024 = vmatpush1.msra.mxu0 0.0
        %1025 = vmatprep.subr.mxu0 0.0
        %1026 = vmatpush1.msra.mxu0 0.0
        %1027 = vmatprep.subr.mxu0 0.0
        %1028 = vmatpush1.msra.mxu0 0.0
        %1029 = vmatprep.subr.mxu0 0.0
        %1030 = vmatpush1.msra.mxu0 0.0
        %1031 = vmatprep.subr.mxu0 0.0
        %1032 = vmatpush1.msra.mxu0 0.0
        %1033 = vmatprep.subr.mxu0 0.0
        %1034 = vmatpush1.msra.mxu0 0.0
        %1035 = vmatprep.subr.mxu0 0.0
        %1036 = vmatpush1.msra.mxu0 0.0
        %1037 = vmatprep.subr.mxu0 0.0
        %1038 = vmatpush1.msra.mxu0 0.0
        %1039 = vmatprep.subr.mxu0 0.0
        %1040 = vmatpush1.msra.mxu0 0.0
        %1041 = vmatprep.subr.mxu0 0.0
        %1042 = vmatpush1.msra.mxu0 0.0
        %1043 = vmatprep.mubr.f32.mxu0 0.0
        %v1044 = vand.u32 %v715, 4294901760
        %v1045 = vsub.f32 %v715, %v1044
        %v1046 = vand.u32 %v1045, 4294901760
        %1047 = vmatmul.mubr.f32.gmra.mrb[0].mxu0 %v1046
        %v1048 = vpop.f32.mrb[0].mxu0
        %v1049 = vadd.f32 %v967, %v1048
        %v1050 = vpop.f32.mrb[0].mxu0
        %1051 = vmatprep.mubr.f32.mxu0 0.0
        %v1052 = vand.u32 %v718, 4294901760
        %v1053 = vsub.f32 %v718, %v1052
        %v1054 = vand.u32 %v1053, 4294901760
        %1055 = vmatmul.mubr.f32.gmra.mrb[0].mxu0 %v1054
        %v1056 = vpop.f32.mrb[0].mxu0
        %v1057 = vadd.f32 %v974, %v1056
        %v1058 = vpop.f32.mrb[0].mxu0
        %1059 = vdwg.mxu0
        %1060 = vmatprep.subr.mxu0 0.0
        %v1061 = vand.u32 %v194, 4294901760
        %v1062 = vsub.f32 %v194, %v1061
        %v1063 = vand.u32 %v1062, 4294901760
        %1064 = vmatpush1.msra.mxu0 %v1063
        %1065 = vmatprep.subr.mxu0 0.0
        %v1066 = vand.u32 %v195, 4294901760
        %v1067 = vsub.f32 %v195, %v1066
        %v1068 = vand.u32 %v1067, 4294901760
        %1069 = vmatpush1.msra.mxu0 %v1068
        %1070 = vmatprep.subr.mxu0 0.0
        %1071 = vmatpush1.msra.mxu0 0.0
        %1072 = vmatprep.subr.mxu0 0.0
        %1073 = vmatpush1.msra.mxu0 0.0
        %1074 = vmatprep.subr.mxu0 0.0
        %1075 = vmatpush1.msra.mxu0 0.0
        %1076 = vmatprep.subr.mxu0 0.0
        %1077 = vmatpush1.msra.mxu0 0.0
        %1078 = vmatprep.subr.mxu0 0.0
        %1079 = vmatpush1.msra.mxu0 0.0
        %1080 = vmatprep.subr.mxu0 0.0
        %1081 = vmatpush1.msra.mxu0 0.0
        %1082 = vmatprep.subr.mxu0 0.0
        %1083 = vmatpush1.msra.mxu0 0.0
        %1084 = vmatprep.subr.mxu0 0.0
        %1085 = vmatpush1.msra.mxu0 0.0
        %1086 = vmatprep.subr.mxu0 0.0
        %1087 = vmatpush1.msra.mxu0 0.0
        %1088 = vmatprep.subr.mxu0 0.0
        %1089 = vmatpush1.msra.mxu0 0.0
        %1090 = vmatprep.subr.mxu0 0.0
        %1091 = vmatpush1.msra.mxu0 0.0
        %1092 = vmatprep.subr.mxu0 0.0
        %1093 = vmatpush1.msra.mxu0 0.0
        %1094 = vmatprep.subr.mxu0 0.0
        %1095 = vmatpush1.msra.mxu0 0.0
        %1096 = vmatprep.subr.mxu0 0.0
        %1097 = vmatpush1.msra.mxu0 0.0
        %1098 = vmatprep.subr.mxu0 0.0
        %1099 = vmatpush1.msra.mxu0 0.0
        %1100 = vmatprep.subr.mxu0 0.0
        %1101 = vmatpush1.msra.mxu0 0.0
        %1102 = vmatprep.subr.mxu0 0.0
        %1103 = vmatpush1.msra.mxu0 0.0
        %1104 = vmatprep.subr.mxu0 0.0
        %1105 = vmatpush1.msra.mxu0 0.0
        %1106 = vmatprep.subr.mxu0 0.0
        %1107 = vmatpush1.msra.mxu0 0.0
        %1108 = vmatprep.subr.mxu0 0.0
        %1109 = vmatpush1.msra.mxu0 0.0
        %1110 = vmatprep.subr.mxu0 0.0
        %1111 = vmatpush1.msra.mxu0 0.0
        %1112 = vmatprep.subr.mxu0 0.0
        %1113 = vmatpush1.msra.mxu0 0.0
        %1114 = vmatprep.subr.mxu0 0.0
        %1115 = vmatpush1.msra.mxu0 0.0
        %1116 = vmatprep.subr.mxu0 0.0
        %1117 = vmatpush1.msra.mxu0 0.0
        %1118 = vmatprep.subr.mxu0 0.0
        %1119 = vmatpush1.msra.mxu0 0.0
        %1120 = vmatprep.subr.mxu0 0.0
        %1121 = vmatpush1.msra.mxu0 0.0
        %1122 = vmatprep.subr.mxu0 0.0
        %1123 = vmatpush1.msra.mxu0 0.0
        %1124 = vmatprep.subr.mxu0 0.0
        %1125 = vmatpush1.msra.mxu0 0.0
        %1126 = vmatprep.subr.mxu0 0.0
        %1127 = vmatpush1.msra.mxu0 0.0
        %1128 = vmatprep.subr.mxu0 0.0
        %1129 = vmatpush1.msra.mxu0 0.0
        %1130 = vmatprep.mubr.f32.mxu0 0.0
        %v1131 = vand.u32 %v715, 4294901760
        %1132 = vmatmul.mubr.f32.gmra.mrb[0].mxu0 %v1131
        %v1133 = vpop.f32.mrb[0].mxu0
        %v1134 = vadd.f32 %v1049, %v1133
        %v1135 = vpop.f32.mrb[0].mxu0
        %1136 = vmatprep.mubr.f32.mxu0 0.0
        %v1137 = vand.u32 %v718, 4294901760
        %1138 = vmatmul.mubr.f32.gmra.mrb[0].mxu0 %v1137
        %v1139 = vpop.f32.mrb[0].mxu0
        %v1140 = vadd.f32 %v1057, %v1139
        %v1141 = vpop.f32.mrb[0].mxu0
        %1142 = vdwg.mxu0
        %1143 = vmatprep.subr.mxu0 0.0
        %v1144 = vand.u32 %v194, 4294901760
        %1145 = vmatpush1.msra.mxu0 %v1144
        %1146 = vmatprep.subr.mxu0 0.0
        %v1147 = vand.u32 %v195, 4294901760
        %1148 = vmatpush1.msra.mxu0 %v1147
        %1149 = vmatprep.subr.mxu0 0.0
        %1150 = vmatpush1.msra.mxu0 0.0
        %1151 = vmatprep.subr.mxu0 0.0
        %1152 = vmatpush1.msra.mxu0 0.0
        %1153 = vmatprep.subr.mxu0 0.0
        %1154 = vmatpush1.msra.mxu0 0.0
        %1155 = vmatprep.subr.mxu0 0.0
        %1156 = vmatpush1.msra.mxu0 0.0
        %1157 = vmatprep.subr.mxu0 0.0
        %1158 = vmatpush1.msra.mxu0 0.0
        %1159 = vmatprep.subr.mxu0 0.0
        %1160 = vmatpush1.msra.mxu0 0.0
        %1161 = vmatprep.subr.mxu0 0.0
        %1162 = vmatpush1.msra.mxu0 0.0
        %1163 = vmatprep.subr.mxu0 0.0
        %1164 = vmatpush1.msra.mxu0 0.0
        %1165 = vmatprep.subr.mxu0 0.0
        %1166 = vmatpush1.msra.mxu0 0.0
        %1167 = vmatprep.subr.mxu0 0.0
        %1168 = vmatpush1.msra.mxu0 0.0
        %1169 = vmatprep.subr.mxu0 0.0
        %1170 = vmatpush1.msra.mxu0 0.0
        %1171 = vmatprep.subr.mxu0 0.0
        %1172 = vmatpush1.msra.mxu0 0.0
        %1173 = vmatprep.subr.mxu0 0.0
        %1174 = vmatpush1.msra.mxu0 0.0
        %1175 = vmatprep.subr.mxu0 0.0
        %1176 = vmatpush1.msra.mxu0 0.0
        %1177 = vmatprep.subr.mxu0 0.0
        %1178 = vmatpush1.msra.mxu0 0.0
        %1179 = vmatprep.subr.mxu0 0.0
        %1180 = vmatpush1.msra.mxu0 0.0
        %1181 = vmatprep.subr.mxu0 0.0
        %1182 = vmatpush1.msra.mxu0 0.0
        %1183 = vmatprep.subr.mxu0 0.0
        %1184 = vmatpush1.msra.mxu0 0.0
        %1185 = vmatprep.subr.mxu0 0.0
        %1186 = vmatpush1.msra.mxu0 0.0
        %1187 = vmatprep.subr.mxu0 0.0
        %1188 = vmatpush1.msra.mxu0 0.0
        %1189 = vmatprep.subr.mxu0 0.0
        %1190 = vmatpush1.msra.mxu0 0.0
        %1191 = vmatprep.subr.mxu0 0.0
        %1192 = vmatpush1.msra.mxu0 0.0
        %1193 = vmatprep.subr.mxu0 0.0
        %1194 = vmatpush1.msra.mxu0 0.0
        %1195 = vmatprep.subr.mxu0 0.0
        %1196 = vmatpush1.msra.mxu0 0.0
        %1197 = vmatprep.subr.mxu0 0.0
        %1198 = vmatpush1.msra.mxu0 0.0
        %1199 = vmatprep.subr.mxu0 0.0
        %1200 = vmatpush1.msra.mxu0 0.0
        %1201 = vmatprep.subr.mxu0 0.0
        %1202 = vmatpush1.msra.mxu0 0.0
        %1203 = vmatprep.subr.mxu0 0.0
        %1204 = vmatpush1.msra.mxu0 0.0
        %1205 = vmatprep.subr.mxu0 0.0
        %1206 = vmatpush1.msra.mxu0 0.0
        %1207 = vmatprep.subr.mxu0 0.0
        %1208 = vmatpush1.msra.mxu0 0.0
        %1209 = vmatprep.mubr.f32.mxu0 0.0
        %v1210 = vand.u32 %v715, 4294901760
        %1211 = vmatmul.mubr.f32.gmra.mrb[0].mxu0 %v1210
        %v1212 = vpop.f32.mrb[0].mxu0
        %v1213 = vadd.f32 %v1134, %v1212
        %v1214 = vpop.f32.mrb[0].mxu0
        %1215 = vmatprep.mubr.f32.mxu0 0.0
        %v1216 = vand.u32 %v718, 4294901760
        %1217 = vmatmul.mubr.f32.gmra.mrb[0].mxu0 %v1216
        %v1218 = vpop.f32.mrb[0].mxu0
        %v1219 = vadd.f32 %v1140, %v1218
        %v1220 = vpop.f32.mrb[0].mxu0
        %1221 = vdwg.mxu0
        %v1222 = vld [vmem:[#allocation2 + $0x8] sm:$0xff]
        %v1223 = vld [vmem:[#allocation2 + $0x10] sm:$0xff]
        %s1224 = scalar_lea.vmem %s0, 48
        %v1225 = vld [vmem:[%s1224] sm:$0xff]
        %v1226 = vld [vmem:[%s1224 + $0x8] sm:$0xff]
        %v1228 = vsel %vm155, %v1222, 0
        %v1231 = vsel %vm155, %v1223, 0
        %1233 = vmatprep.subr.mxu0 0.0
        %v1234 = vand.u32 %v1225, 4294901760
        %1235 = vmatpush1.msra.mxu0 %v1234
        %1236 = vmatprep.subr.mxu0 0.0
        %v1237 = vand.u32 %v1226, 4294901760
        %1238 = vmatpush1.msra.mxu0 %v1237
        %1239 = vmatprep.subr.mxu0 0.0
        %1240 = vmatpush1.msra.mxu0 0.0
        %1241 = vmatprep.subr.mxu0 0.0
        %1242 = vmatpush1.msra.mxu0 0.0
        %1243 = vmatprep.subr.mxu0 0.0
        %1244 = vmatpush1.msra.mxu0 0.0
        %1245 = vmatprep.subr.mxu0 0.0
        %1246 = vmatpush1.msra.mxu0 0.0
        %1247 = vmatprep.subr.mxu0 0.0
        %1248 = vmatpush1.msra.mxu0 0.0
        %1249 = vmatprep.subr.mxu0 0.0
        %1250 = vmatpush1.msra.mxu0 0.0
        %1251 = vmatprep.subr.mxu0 0.0
        %1252 = vmatpush1.msra.mxu0 0.0
        %1253 = vmatprep.subr.mxu0 0.0
        %1254 = vmatpush1.msra.mxu0 0.0
        %1255 = vmatprep.subr.mxu0 0.0
        %1256 = vmatpush1.msra.mxu0 0.0
        %1257 = vmatprep.subr.mxu0 0.0
        %1258 = vmatpush1.msra.mxu0 0.0
        %1259 = vmatprep.subr.mxu0 0.0
        %1260 = vmatpush1.msra.mxu0 0.0
        %1261 = vmatprep.subr.mxu0 0.0
        %1262 = vmatpush1.msra.mxu0 0.0
        %1263 = vmatprep.subr.mxu0 0.0
        %1264 = vmatpush1.msra.mxu0 0.0
        %1265 = vmatprep.subr.mxu0 0.0
        %1266 = vmatpush1.msra.mxu0 0.0
        %1267 = vmatprep.subr.mxu0 0.0
        %1268 = vmatpush1.msra.mxu0 0.0
        %1269 = vmatprep.subr.mxu0 0.0
        %1270 = vmatpush1.msra.mxu0 0.0
        %1271 = vmatprep.subr.mxu0 0.0
        %1272 = vmatpush1.msra.mxu0 0.0
        %1273 = vmatprep.subr.mxu0 0.0
        %1274 = vmatpush1.msra.mxu0 0.0
        %1275 = vmatprep.subr.mxu0 0.0
        %1276 = vmatpush1.msra.mxu0 0.0
        %1277 = vmatprep.subr.mxu0 0.0
        %1278 = vmatpush1.msra.mxu0 0.0
        %1279 = vmatprep.subr.mxu0 0.0
        %1280 = vmatpush1.msra.mxu0 0.0
        %1281 = vmatprep.subr.mxu0 0.0
        %1282 = vmatpush1.msra.mxu0 0.0
        %1283 = vmatprep.subr.mxu0 0.0
        %1284 = vmatpush1.msra.mxu0 0.0
        %1285 = vmatprep.subr.mxu0 0.0
        %1286 = vmatpush1.msra.mxu0 0.0
        %1287 = vmatprep.subr.mxu0 0.0
        %1288 = vmatpush1.msra.mxu0 0.0
        %1289 = vmatprep.subr.mxu0 0.0
        %1290 = vmatpush1.msra.mxu0 0.0
        %1291 = vmatprep.subr.mxu0 0.0
        %1292 = vmatpush1.msra.mxu0 0.0
        %1293 = vmatprep.subr.mxu0 0.0
        %1294 = vmatpush1.msra.mxu0 0.0
        %1295 = vmatprep.subr.mxu0 0.0
        %1296 = vmatpush1.msra.mxu0 0.0
        %1297 = vmatprep.subr.mxu0 0.0
        %1298 = vmatpush1.msra.mxu0 0.0
        %1299 = vmatprep.mubr.f32.mxu0 0.0
        %v1300 = vand.u32 %v1228, 4294901760
        %v1301 = vsub.f32 %v1228, %v1300
        %v1302 = vand.u32 %v1301, 4294901760
        %v1303 = vsub.f32 %v1301, %v1302
        %v1304 = vand.u32 %v1303, 4294901760
        %1305 = vmatmul.mubr.f32.gmra.mrb[0].mxu0 %v1304
        %v1306 = vpop.f32.mrb[0].mxu0
        %v1307 = vadd.f32 0.0, %v1306
        %v1308 = vpop.f32.mrb[0].mxu0
        %1309 = vmatprep.mubr.f32.mxu0 0.0
        %v1310 = vand.u32 %v1231, 4294901760
        %v1311 = vsub.f32 %v1231, %v1310
        %v1312 = vand.u32 %v1311, 4294901760
        %v1313 = vsub.f32 %v1311, %v1312
        %v1314 = vand.u32 %v1313, 4294901760
        %1315 = vmatmul.mubr.f32.gmra.mrb[0].mxu0 %v1314
        %v1316 = vpop.f32.mrb[0].mxu0
        %v1317 = vadd.f32 0.0, %v1316
        %v1318 = vpop.f32.mrb[0].mxu0
        %1319 = vdwg.mxu0
        %1320 = vmatprep.subr.mxu0 0.0
        %v1321 = vand.u32 %v1225, 4294901760
        %v1322 = vsub.f32 %v1225, %v1321
        %v1323 = vand.u32 %v1322, 4294901760
        %v1324 = vsub.f32 %v1322, %v1323
        %v1325 = vand.u32 %v1324, 4294901760
        %1326 = vmatpush1.msra.mxu0 %v1325
        %1327 = vmatprep.subr.mxu0 0.0
        %v1328 = vand.u32 %v1226, 4294901760
        %v1329 = vsub.f32 %v1226, %v1328
        %v1330 = vand.u32 %v1329, 4294901760
        %v1331 = vsub.f32 %v1329, %v1330
        %v1332 = vand.u32 %v1331, 4294901760
        %1333 = vmatpush1.msra.mxu0 %v1332
        %1334 = vmatprep.subr.mxu0 0.0
        %1335 = vmatpush1.msra.mxu0 0.0
        %1336 = vmatprep.subr.mxu0 0.0
        %1337 = vmatpush1.msra.mxu0 0.0
        %1338 = vmatprep.subr.mxu0 0.0
        %1339 = vmatpush1.msra.mxu0 0.0
        %1340 = vmatprep.subr.mxu0 0.0
        %1341 = vmatpush1.msra.mxu0 0.0
        %1342 = vmatprep.subr.mxu0 0.0
        %1343 = vmatpush1.msra.mxu0 0.0
        %1344 = vmatprep.subr.mxu0 0.0
        %1345 = vmatpush1.msra.mxu0 0.0
        %1346 = vmatprep.subr.mxu0 0.0
        %1347 = vmatpush1.msra.mxu0 0.0
        %1348 = vmatprep.subr.mxu0 0.0
        %1349 = vmatpush1.msra.mxu0 0.0
        %1350 = vmatprep.subr.mxu0 0.0
        %1351 = vmatpush1.msra.mxu0 0.0
        %1352 = vmatprep.subr.mxu0 0.0
        %1353 = vmatpush1.msra.mxu0 0.0
        %1354 = vmatprep.subr.mxu0 0.0
        %1355 = vmatpush1.msra.mxu0 0.0
        %1356 = vmatprep.subr.mxu0 0.0
        %1357 = vmatpush1.msra.mxu0 0.0
        %1358 = vmatprep.subr.mxu0 0.0
        %1359 = vmatpush1.msra.mxu0 0.0
        %1360 = vmatprep.subr.mxu0 0.0
        %1361 = vmatpush1.msra.mxu0 0.0
        %1362 = vmatprep.subr.mxu0 0.0
        %1363 = vmatpush1.msra.mxu0 0.0
        %1364 = vmatprep.subr.mxu0 0.0
        %1365 = vmatpush1.msra.mxu0 0.0
        %1366 = vmatprep.subr.mxu0 0.0
        %1367 = vmatpush1.msra.mxu0 0.0
        %1368 = vmatprep.subr.mxu0 0.0
        %1369 = vmatpush1.msra.mxu0 0.0
        %1370 = vmatprep.subr.mxu0 0.0
        %1371 = vmatpush1.msra.mxu0 0.0
        %1372 = vmatprep.subr.mxu0 0.0
        %1373 = vmatpush1.msra.mxu0 0.0
        %1374 = vmatprep.subr.mxu0 0.0
        %1375 = vmatpush1.msra.mxu0 0.0
        %1376 = vmatprep.subr.mxu0 0.0
        %1377 = vmatpush1.msra.mxu0 0.0
        %1378 = vmatprep.subr.mxu0 0.0
        %1379 = vmatpush1.msra.mxu0 0.0
        %1380 = vmatprep.subr.mxu0 0.0
        %1381 = vmatpush1.msra.mxu0 0.0
        %1382 = vmatprep.subr.mxu0 0.0
        %1383 = vmatpush1.msra.mxu0 0.0
        %1384 = vmatprep.subr.mxu0 0.0
        %1385 = vmatpush1.msra.mxu0 0.0
        %1386 = vmatprep.subr.mxu0 0.0
        %1387 = vmatpush1.msra.mxu0 0.0
        %1388 = vmatprep.subr.mxu0 0.0
        %1389 = vmatpush1.msra.mxu0 0.0
        %1390 = vmatprep.subr.mxu0 0.0
        %1391 = vmatpush1.msra.mxu0 0.0
        %1392 = vmatprep.subr.mxu0 0.0
        %1393 = vmatpush1.msra.mxu0 0.0
        %1394 = vmatprep.mubr.f32.mxu0 0.0
        %v1395 = vand.u32 %v1228, 4294901760
        %1396 = vmatmul.mubr.f32.gmra.mrb[0].mxu0 %v1395
        %v1397 = vpop.f32.mrb[0].mxu0
        %v1398 = vadd.f32 %v1307, %v1397
        %v1399 = vpop.f32.mrb[0].mxu0
        %1400 = vmatprep.mubr.f32.mxu0 0.0
        %v1401 = vand.u32 %v1231, 4294901760
        %1402 = vmatmul.mubr.f32.gmra.mrb[0].mxu0 %v1401
        %v1403 = vpop.f32.mrb[0].mxu0
        %v1404 = vadd.f32 %v1317, %v1403
        %v1405 = vpop.f32.mrb[0].mxu0
        %1406 = vdwg.mxu0
        %1407 = vmatprep.subr.mxu0 0.0
        %v1408 = vand.u32 %v1225, 4294901760
        %v1409 = vsub.f32 %v1225, %v1408
        %1410 = vmatpush1.msra.mxu0 %v1409
        %1411 = vmatprep.subr.mxu0 0.0
        %v1412 = vand.u32 %v1226, 4294901760
        %v1413 = vsub.f32 %v1226, %v1412
        %1414 = vmatpush1.msra.mxu0 %v1413
        %1415 = vmatprep.subr.mxu0 0.0
        %1416 = vmatpush1.msra.mxu0 0.0
        %1417 = vmatprep.subr.mxu0 0.0
        %1418 = vmatpush1.msra.mxu0 0.0
        %1419 = vmatprep.subr.mxu0 0.0
        %1420 = vmatpush1.msra.mxu0 0.0
        %1421 = vmatprep.subr.mxu0 0.0
        %1422 = vmatpush1.msra.mxu0 0.0
        %1423 = vmatprep.subr.mxu0 0.0
        %1424 = vmatpush1.msra.mxu0 0.0
        %1425 = vmatprep.subr.mxu0 0.0
        %1426 = vmatpush1.msra.mxu0 0.0
        %1427 = vmatprep.subr.mxu0 0.0
        %1428 = vmatpush1.msra.mxu0 0.0
        %1429 = vmatprep.subr.mxu0 0.0
        %1430 = vmatpush1.msra.mxu0 0.0
        %1431 = vmatprep.subr.mxu0 0.0
        %1432 = vmatpush1.msra.mxu0 0.0
        %1433 = vmatprep.subr.mxu0 0.0
        %1434 = vmatpush1.msra.mxu0 0.0
        %1435 = vmatprep.subr.mxu0 0.0
        %1436 = vmatpush1.msra.mxu0 0.0
        %1437 = vmatprep.subr.mxu0 0.0
        %1438 = vmatpush1.msra.mxu0 0.0
        %1439 = vmatprep.subr.mxu0 0.0
        %1440 = vmatpush1.msra.mxu0 0.0
        %1441 = vmatprep.subr.mxu0 0.0
        %1442 = vmatpush1.msra.mxu0 0.0
        %1443 = vmatprep.subr.mxu0 0.0
        %1444 = vmatpush1.msra.mxu0 0.0
        %1445 = vmatprep.subr.mxu0 0.0
        %1446 = vmatpush1.msra.mxu0 0.0
        %1447 = vmatprep.subr.mxu0 0.0
        %1448 = vmatpush1.msra.mxu0 0.0
        %1449 = vmatprep.subr.mxu0 0.0
        %1450 = vmatpush1.msra.mxu0 0.0
        %1451 = vmatprep.subr.mxu0 0.0
        %1452 = vmatpush1.msra.mxu0 0.0
        %1453 = vmatprep.subr.mxu0 0.0
        %1454 = vmatpush1.msra.mxu0 0.0
        %1455 = vmatprep.subr.mxu0 0.0
        %1456 = vmatpush1.msra.mxu0 0.0
        %1457 = vmatprep.subr.mxu0 0.0
        %1458 = vmatpush1.msra.mxu0 0.0
        %1459 = vmatprep.subr.mxu0 0.0
        %1460 = vmatpush1.msra.mxu0 0.0
        %1461 = vmatprep.subr.mxu0 0.0
        %1462 = vmatpush1.msra.mxu0 0.0
        %1463 = vmatprep.subr.mxu0 0.0
        %1464 = vmatpush1.msra.mxu0 0.0
        %1465 = vmatprep.subr.mxu0 0.0
        %1466 = vmatpush1.msra.mxu0 0.0
        %1467 = vmatprep.subr.mxu0 0.0
        %1468 = vmatpush1.msra.mxu0 0.0
        %1469 = vmatprep.subr.mxu0 0.0
        %1470 = vmatpush1.msra.mxu0 0.0
        %1471 = vmatprep.subr.mxu0 0.0
        %1472 = vmatpush1.msra.mxu0 0.0
        %1473 = vmatprep.subr.mxu0 0.0
        %1474 = vmatpush1.msra.mxu0 0.0
        %1475 = vmatprep.mubr.f32.mxu0 0.0
        %v1476 = vand.u32 %v1228, 4294901760
        %v1477 = vsub.f32 %v1228, %v1476
        %1478 = vmatmul.mubr.f32.gmra.mrb[0].mxu0 %v1477
        %v1479 = vpop.f32.mrb[0].mxu0
        %v1480 = vadd.f32 %v1398, %v1479
        %v1481 = vpop.f32.mrb[0].mxu0
        %1482 = vmatprep.mubr.f32.mxu0 0.0
        %v1483 = vand.u32 %v1231, 4294901760
        %v1484 = vsub.f32 %v1231, %v1483
        %1485 = vmatmul.mubr.f32.gmra.mrb[0].mxu0 %v1484
        %v1486 = vpop.f32.mrb[0].mxu0
        %v1487 = vadd.f32 %v1404, %v1486
        %v1488 = vpop.f32.mrb[0].mxu0
        %1489 = vdwg.mxu0
        %1490 = vmatprep.subr.mxu0 0.0
        %v1491 = vand.u32 %v1225, 4294901760
        %1492 = vmatpush1.msra.mxu0 %v1491
        %1493 = vmatprep.subr.mxu0 0.0
        %v1494 = vand.u32 %v1226, 4294901760
        %1495 = vmatpush1.msra.mxu0 %v1494
        %1496 = vmatprep.subr.mxu0 0.0
        %1497 = vmatpush1.msra.mxu0 0.0
        %1498 = vmatprep.subr.mxu0 0.0
        %1499 = vmatpush1.msra.mxu0 0.0
        %1500 = vmatprep.subr.mxu0 0.0
        %1501 = vmatpush1.msra.mxu0 0.0
        %1502 = vmatprep.subr.mxu0 0.0
        %1503 = vmatpush1.msra.mxu0 0.0
        %1504 = vmatprep.subr.mxu0 0.0
        %1505 = vmatpush1.msra.mxu0 0.0
        %1506 = vmatprep.subr.mxu0 0.0
        %1507 = vmatpush1.msra.mxu0 0.0
        %1508 = vmatprep.subr.mxu0 0.0
        %1509 = vmatpush1.msra.mxu0 0.0
        %1510 = vmatprep.subr.mxu0 0.0
        %1511 = vmatpush1.msra.mxu0 0.0
        %1512 = vmatprep.subr.mxu0 0.0
        %1513 = vmatpush1.msra.mxu0 0.0
        %1514 = vmatprep.subr.mxu0 0.0
        %1515 = vmatpush1.msra.mxu0 0.0
        %1516 = vmatprep.subr.mxu0 0.0
        %1517 = vmatpush1.msra.mxu0 0.0
        %1518 = vmatprep.subr.mxu0 0.0
        %1519 = vmatpush1.msra.mxu0 0.0
        %1520 = vmatprep.subr.mxu0 0.0
        %1521 = vmatpush1.msra.mxu0 0.0
        %1522 = vmatprep.subr.mxu0 0.0
        %1523 = vmatpush1.msra.mxu0 0.0
        %1524 = vmatprep.subr.mxu0 0.0
        %1525 = vmatpush1.msra.mxu0 0.0
        %1526 = vmatprep.subr.mxu0 0.0
        %1527 = vmatpush1.msra.mxu0 0.0
        %1528 = vmatprep.subr.mxu0 0.0
        %1529 = vmatpush1.msra.mxu0 0.0
        %1530 = vmatprep.subr.mxu0 0.0
        %1531 = vmatpush1.msra.mxu0 0.0
        %1532 = vmatprep.subr.mxu0 0.0
        %1533 = vmatpush1.msra.mxu0 0.0
        %1534 = vmatprep.subr.mxu0 0.0
        %1535 = vmatpush1.msra.mxu0 0.0
        %1536 = vmatprep.subr.mxu0 0.0
        %1537 = vmatpush1.msra.mxu0 0.0
        %1538 = vmatprep.subr.mxu0 0.0
        %1539 = vmatpush1.msra.mxu0 0.0
        %1540 = vmatprep.subr.mxu0 0.0
        %1541 = vmatpush1.msra.mxu0 0.0
        %1542 = vmatprep.subr.mxu0 0.0
        %1543 = vmatpush1.msra.mxu0 0.0
        %1544 = vmatprep.subr.mxu0 0.0
        %1545 = vmatpush1.msra.mxu0 0.0
        %1546 = vmatprep.subr.mxu0 0.0
        %1547 = vmatpush1.msra.mxu0 0.0
        %1548 = vmatprep.subr.mxu0 0.0
        %1549 = vmatpush1.msra.mxu0 0.0
        %1550 = vmatprep.subr.mxu0 0.0
        %1551 = vmatpush1.msra.mxu0 0.0
        %1552 = vmatprep.subr.mxu0 0.0
        %1553 = vmatpush1.msra.mxu0 0.0
        %1554 = vmatprep.subr.mxu0 0.0
        %1555 = vmatpush1.msra.mxu0 0.0
        %1556 = vmatprep.mubr.f32.mxu0 0.0
        %v1557 = vand.u32 %v1228, 4294901760
        %v1558 = vsub.f32 %v1228, %v1557
        %v1559 = vand.u32 %v1558, 4294901760
        %1560 = vmatmul.mubr.f32.gmra.mrb[0].mxu0 %v1559
        %v1561 = vpop.f32.mrb[0].mxu0
        %v1562 = vadd.f32 %v1480, %v1561
        %v1563 = vpop.f32.mrb[0].mxu0
        %1564 = vmatprep.mubr.f32.mxu0 0.0
        %v1565 = vand.u32 %v1231, 4294901760
        %v1566 = vsub.f32 %v1231, %v1565
        %v1567 = vand.u32 %v1566, 4294901760
        %1568 = vmatmul.mubr.f32.gmra.mrb[0].mxu0 %v1567
        %v1569 = vpop.f32.mrb[0].mxu0
        %v1570 = vadd.f32 %v1487, %v1569
        %v1571 = vpop.f32.mrb[0].mxu0
        %1572 = vdwg.mxu0
        %1573 = vmatprep.subr.mxu0 0.0
        %v1574 = vand.u32 %v1225, 4294901760
        %v1575 = vsub.f32 %v1225, %v1574
        %v1576 = vand.u32 %v1575, 4294901760
        %1577 = vmatpush1.msra.mxu0 %v1576
        %1578 = vmatprep.subr.mxu0 0.0
        %v1579 = vand.u32 %v1226, 4294901760
        %v1580 = vsub.f32 %v1226, %v1579
        %v1581 = vand.u32 %v1580, 4294901760
        %1582 = vmatpush1.msra.mxu0 %v1581
        %1583 = vmatprep.subr.mxu0 0.0
        %1584 = vmatpush1.msra.mxu0 0.0
        %1585 = vmatprep.subr.mxu0 0.0
        %1586 = vmatpush1.msra.mxu0 0.0
        %1587 = vmatprep.subr.mxu0 0.0
        %1588 = vmatpush1.msra.mxu0 0.0
        %1589 = vmatprep.subr.mxu0 0.0
        %1590 = vmatpush1.msra.mxu0 0.0
        %1591 = vmatprep.subr.mxu0 0.0
        %1592 = vmatpush1.msra.mxu0 0.0
        %1593 = vmatprep.subr.mxu0 0.0
        %1594 = vmatpush1.msra.mxu0 0.0
        %1595 = vmatprep.subr.mxu0 0.0
        %1596 = vmatpush1.msra.mxu0 0.0
        %1597 = vmatprep.subr.mxu0 0.0
        %1598 = vmatpush1.msra.mxu0 0.0
        %1599 = vmatprep.subr.mxu0 0.0
        %1600 = vmatpush1.msra.mxu0 0.0
        %1601 = vmatprep.subr.mxu0 0.0
        %1602 = vmatpush1.msra.mxu0 0.0
        %1603 = vmatprep.subr.mxu0 0.0
        %1604 = vmatpush1.msra.mxu0 0.0
        %1605 = vmatprep.subr.mxu0 0.0
        %1606 = vmatpush1.msra.mxu0 0.0
        %1607 = vmatprep.subr.mxu0 0.0
        %1608 = vmatpush1.msra.mxu0 0.0
        %1609 = vmatprep.subr.mxu0 0.0
        %1610 = vmatpush1.msra.mxu0 0.0
        %1611 = vmatprep.subr.mxu0 0.0
        %1612 = vmatpush1.msra.mxu0 0.0
        %1613 = vmatprep.subr.mxu0 0.0
        %1614 = vmatpush1.msra.mxu0 0.0
        %1615 = vmatprep.subr.mxu0 0.0
        %1616 = vmatpush1.msra.mxu0 0.0
        %1617 = vmatprep.subr.mxu0 0.0
        %1618 = vmatpush1.msra.mxu0 0.0
        %1619 = vmatprep.subr.mxu0 0.0
        %1620 = vmatpush1.msra.mxu0 0.0
        %1621 = vmatprep.subr.mxu0 0.0
        %1622 = vmatpush1.msra.mxu0 0.0
        %1623 = vmatprep.subr.mxu0 0.0
        %1624 = vmatpush1.msra.mxu0 0.0
        %1625 = vmatprep.subr.mxu0 0.0
        %1626 = vmatpush1.msra.mxu0 0.0
        %1627 = vmatprep.subr.mxu0 0.0
        %1628 = vmatpush1.msra.mxu0 0.0
        %1629 = vmatprep.subr.mxu0 0.0
        %1630 = vmatpush1.msra.mxu0 0.0
        %1631 = vmatprep.subr.mxu0 0.0
        %1632 = vmatpush1.msra.mxu0 0.0
        %1633 = vmatprep.subr.mxu0 0.0
        %1634 = vmatpush1.msra.mxu0 0.0
        %1635 = vmatprep.subr.mxu0 0.0
        %1636 = vmatpush1.msra.mxu0 0.0
        %1637 = vmatprep.subr.mxu0 0.0
        %1638 = vmatpush1.msra.mxu0 0.0
        %1639 = vmatprep.subr.mxu0 0.0
        %1640 = vmatpush1.msra.mxu0 0.0
        %1641 = vmatprep.subr.mxu0 0.0
        %1642 = vmatpush1.msra.mxu0 0.0
        %1643 = vmatprep.mubr.f32.mxu0 0.0
        %v1644 = vand.u32 %v1228, 4294901760
        %1645 = vmatmul.mubr.f32.gmra.mrb[0].mxu0 %v1644
        %v1646 = vpop.f32.mrb[0].mxu0
        %v1647 = vadd.f32 %v1562, %v1646
        %v1648 = vpop.f32.mrb[0].mxu0
        %1649 = vmatprep.mubr.f32.mxu0 0.0
        %v1650 = vand.u32 %v1231, 4294901760
        %1651 = vmatmul.mubr.f32.gmra.mrb[0].mxu0 %v1650
        %v1652 = vpop.f32.mrb[0].mxu0
        %v1653 = vadd.f32 %v1570, %v1652
        %v1654 = vpop.f32.mrb[0].mxu0
        %1655 = vdwg.mxu0
        %1656 = vmatprep.subr.mxu0 0.0
        %v1657 = vand.u32 %v1225, 4294901760
        %1658 = vmatpush1.msra.mxu0 %v1657
        %1659 = vmatprep.subr.mxu0 0.0
        %v1660 = vand.u32 %v1226, 4294901760
        %1661 = vmatpush1.msra.mxu0 %v1660
        %1662 = vmatprep.subr.mxu0 0.0
        %1663 = vmatpush1.msra.mxu0 0.0
        %1664 = vmatprep.subr.mxu0 0.0
        %1665 = vmatpush1.msra.mxu0 0.0
        %1666 = vmatprep.subr.mxu0 0.0
        %1667 = vmatpush1.msra.mxu0 0.0
        %1668 = vmatprep.subr.mxu0 0.0
        %1669 = vmatpush1.msra.mxu0 0.0
        %1670 = vmatprep.subr.mxu0 0.0
        %1671 = vmatpush1.msra.mxu0 0.0
        %1672 = vmatprep.subr.mxu0 0.0
        %1673 = vmatpush1.msra.mxu0 0.0
        %1674 = vmatprep.subr.mxu0 0.0
        %1675 = vmatpush1.msra.mxu0 0.0
        %1676 = vmatprep.subr.mxu0 0.0
        %1677 = vmatpush1.msra.mxu0 0.0
        %1678 = vmatprep.subr.mxu0 0.0
        %1679 = vmatpush1.msra.mxu0 0.0
        %1680 = vmatprep.subr.mxu0 0.0
        %1681 = vmatpush1.msra.mxu0 0.0
        %1682 = vmatprep.subr.mxu0 0.0
        %1683 = vmatpush1.msra.mxu0 0.0
        %1684 = vmatprep.subr.mxu0 0.0
        %1685 = vmatpush1.msra.mxu0 0.0
        %1686 = vmatprep.subr.mxu0 0.0
        %1687 = vmatpush1.msra.mxu0 0.0
        %1688 = vmatprep.subr.mxu0 0.0
        %1689 = vmatpush1.msra.mxu0 0.0
        %1690 = vmatprep.subr.mxu0 0.0
        %1691 = vmatpush1.msra.mxu0 0.0
        %1692 = vmatprep.subr.mxu0 0.0
        %1693 = vmatpush1.msra.mxu0 0.0
        %1694 = vmatprep.subr.mxu0 0.0
        %1695 = vmatpush1.msra.mxu0 0.0
        %1696 = vmatprep.subr.mxu0 0.0
        %1697 = vmatpush1.msra.mxu0 0.0
        %1698 = vmatprep.subr.mxu0 0.0
        %1699 = vmatpush1.msra.mxu0 0.0
        %1700 = vmatprep.subr.mxu0 0.0
        %1701 = vmatpush1.msra.mxu0 0.0
        %1702 = vmatprep.subr.mxu0 0.0
        %1703 = vmatpush1.msra.mxu0 0.0
        %1704 = vmatprep.subr.mxu0 0.0
        %1705 = vmatpush1.msra.mxu0 0.0
        %1706 = vmatprep.subr.mxu0 0.0
        %1707 = vmatpush1.msra.mxu0 0.0
        %1708 = vmatprep.subr.mxu0 0.0
        %1709 = vmatpush1.msra.mxu0 0.0
        %1710 = vmatprep.subr.mxu0 0.0
        %1711 = vmatpush1.msra.mxu0 0.0
        %1712 = vmatprep.subr.mxu0 0.0
        %1713 = vmatpush1.msra.mxu0 0.0
        %1714 = vmatprep.subr.mxu0 0.0
        %1715 = vmatpush1.msra.mxu0 0.0
        %1716 = vmatprep.subr.mxu0 0.0
        %1717 = vmatpush1.msra.mxu0 0.0
        %1718 = vmatprep.subr.mxu0 0.0
        %1719 = vmatpush1.msra.mxu0 0.0
        %1720 = vmatprep.subr.mxu0 0.0
        %1721 = vmatpush1.msra.mxu0 0.0
        %1722 = vmatprep.mubr.f32.mxu0 0.0
        %v1723 = vand.u32 %v1228, 4294901760
        %1724 = vmatmul.mubr.f32.gmra.mrb[0].mxu0 %v1723
        %v1725 = vpop.f32.mrb[0].mxu0
        %v1726 = vadd.f32 %v1647, %v1725
        %v1727 = vpop.f32.mrb[0].mxu0
        %1728 = vmatprep.mubr.f32.mxu0 0.0
        %v1729 = vand.u32 %v1231, 4294901760
        %1730 = vmatmul.mubr.f32.gmra.mrb[0].mxu0 %v1729
        %v1731 = vpop.f32.mrb[0].mxu0
        %v1732 = vadd.f32 %v1653, %v1731
        %v1733 = vpop.f32.mrb[0].mxu0
        %1734 = vdwg.mxu0
        %v1736 = vsel %vm155, %v196, 0
        %v1739 = vsel %vm155, %v197, 0
        %1741 = vmatprep.subr.mxu0 0.0
        %v1742 = vand.u32 %v199, 4294901760
        %1743 = vmatpush1.msra.mxu0 %v1742
        %1744 = vmatprep.subr.mxu0 0.0
        %v1745 = vand.u32 %v200, 4294901760
        %1746 = vmatpush1.msra.mxu0 %v1745
        %1747 = vmatprep.subr.mxu0 0.0
        %1748 = vmatpush1.msra.mxu0 0.0
        %1749 = vmatprep.subr.mxu0 0.0
        %1750 = vmatpush1.msra.mxu0 0.0
        %1751 = vmatprep.subr.mxu0 0.0
        %1752 = vmatpush1.msra.mxu0 0.0
        %1753 = vmatprep.subr.mxu0 0.0
        %1754 = vmatpush1.msra.mxu0 0.0
        %1755 = vmatprep.subr.mxu0 0.0
        %1756 = vmatpush1.msra.mxu0 0.0
        %1757 = vmatprep.subr.mxu0 0.0
        %1758 = vmatpush1.msra.mxu0 0.0
        %1759 = vmatprep.subr.mxu0 0.0
        %1760 = vmatpush1.msra.mxu0 0.0
        %1761 = vmatprep.subr.mxu0 0.0
        %1762 = vmatpush1.msra.mxu0 0.0
        %1763 = vmatprep.subr.mxu0 0.0
        %1764 = vmatpush1.msra.mxu0 0.0
        %1765 = vmatprep.subr.mxu0 0.0
        %1766 = vmatpush1.msra.mxu0 0.0
        %1767 = vmatprep.subr.mxu0 0.0
        %1768 = vmatpush1.msra.mxu0 0.0
        %1769 = vmatprep.subr.mxu0 0.0
        %1770 = vmatpush1.msra.mxu0 0.0
        %1771 = vmatprep.subr.mxu0 0.0
        %1772 = vmatpush1.msra.mxu0 0.0
        %1773 = vmatprep.subr.mxu0 0.0
        %1774 = vmatpush1.msra.mxu0 0.0
        %1775 = vmatprep.subr.mxu0 0.0
        %1776 = vmatpush1.msra.mxu0 0.0
        %1777 = vmatprep.subr.mxu0 0.0
        %1778 = vmatpush1.msra.mxu0 0.0
        %1779 = vmatprep.subr.mxu0 0.0
        %1780 = vmatpush1.msra.mxu0 0.0
        %1781 = vmatprep.subr.mxu0 0.0
        %1782 = vmatpush1.msra.mxu0 0.0
        %1783 = vmatprep.subr.mxu0 0.0
        %1784 = vmatpush1.msra.mxu0 0.0
        %1785 = vmatprep.subr.mxu0 0.0
        %1786 = vmatpush1.msra.mxu0 0.0
        %1787 = vmatprep.subr.mxu0 0.0
        %1788 = vmatpush1.msra.mxu0 0.0
        %1789 = vmatprep.subr.mxu0 0.0
        %1790 = vmatpush1.msra.mxu0 0.0
        %1791 = vmatprep.subr.mxu0 0.0
        %1792 = vmatpush1.msra.mxu0 0.0
        %1793 = vmatprep.subr.mxu0 0.0
        %1794 = vmatpush1.msra.mxu0 0.0
        %1795 = vmatprep.subr.mxu0 0.0
        %1796 = vmatpush1.msra.mxu0 0.0
        %1797 = vmatprep.subr.mxu0 0.0
        %1798 = vmatpush1.msra.mxu0 0.0
        %1799 = vmatprep.subr.mxu0 0.0
        %1800 = vmatpush1.msra.mxu0 0.0
        %1801 = vmatprep.subr.mxu0 0.0
        %1802 = vmatpush1.msra.mxu0 0.0
        %1803 = vmatprep.subr.mxu0 0.0
        %1804 = vmatpush1.msra.mxu0 0.0
        %1805 = vmatprep.subr.mxu0 0.0
        %1806 = vmatpush1.msra.mxu0 0.0
        %1807 = vmatprep.mubr.f32.mxu0 0.0
        %v1808 = vand.u32 %v1736, 4294901760
        %v1809 = vsub.f32 %v1736, %v1808
        %v1810 = vand.u32 %v1809, 4294901760
        %v1811 = vsub.f32 %v1809, %v1810
        %v1812 = vand.u32 %v1811, 4294901760
        %1813 = vmatmul.mubr.f32.gmra.mrb[0].mxu0 %v1812
        %v1814 = vpop.f32.mrb[0].mxu0
        %v1815 = vadd.f32 %v1726, %v1814
        %v1816 = vpop.f32.mrb[0].mxu0
        %1817 = vmatprep.mubr.f32.mxu0 0.0
        %v1818 = vand.u32 %v1739, 4294901760
        %v1819 = vsub.f32 %v1739, %v1818
        %v1820 = vand.u32 %v1819, 4294901760
        %v1821 = vsub.f32 %v1819, %v1820
        %v1822 = vand.u32 %v1821, 4294901760
        %1823 = vmatmul.mubr.f32.gmra.mrb[0].mxu0 %v1822
        %v1824 = vpop.f32.mrb[0].mxu0
        %v1825 = vadd.f32 %v1732, %v1824
        %v1826 = vpop.f32.mrb[0].mxu0
        %1827 = vdwg.mxu0
        %1828 = vmatprep.subr.mxu0 0.0
        %v1829 = vand.u32 %v199, 4294901760
        %v1830 = vsub.f32 %v199, %v1829
        %v1831 = vand.u32 %v1830, 4294901760
        %v1832 = vsub.f32 %v1830, %v1831
        %v1833 = vand.u32 %v1832, 4294901760
        %1834 = vmatpush1.msra.mxu0 %v1833
        %1835 = vmatprep.subr.mxu0 0.0
        %v1836 = vand.u32 %v200, 4294901760
        %v1837 = vsub.f32 %v200, %v1836
        %v1838 = vand.u32 %v1837, 4294901760
        %v1839 = vsub.f32 %v1837, %v1838
        %v1840 = vand.u32 %v1839, 4294901760
        %1841 = vmatpush1.msra.mxu0 %v1840
        %1842 = vmatprep.subr.mxu0 0.0
        %1843 = vmatpush1.msra.mxu0 0.0
        %1844 = vmatprep.subr.mxu0 0.0
        %1845 = vmatpush1.msra.mxu0 0.0
        %1846 = vmatprep.subr.mxu0 0.0
        %1847 = vmatpush1.msra.mxu0 0.0
        %1848 = vmatprep.subr.mxu0 0.0
        %1849 = vmatpush1.msra.mxu0 0.0
        %1850 = vmatprep.subr.mxu0 0.0
        %1851 = vmatpush1.msra.mxu0 0.0
        %1852 = vmatprep.subr.mxu0 0.0
        %1853 = vmatpush1.msra.mxu0 0.0
        %1854 = vmatprep.subr.mxu0 0.0
        %1855 = vmatpush1.msra.mxu0 0.0
        %1856 = vmatprep.subr.mxu0 0.0
        %1857 = vmatpush1.msra.mxu0 0.0
        %1858 = vmatprep.subr.mxu0 0.0
        %1859 = vmatpush1.msra.mxu0 0.0
        %1860 = vmatprep.subr.mxu0 0.0
        %1861 = vmatpush1.msra.mxu0 0.0
        %1862 = vmatprep.subr.mxu0 0.0
        %1863 = vmatpush1.msra.mxu0 0.0
        %1864 = vmatprep.subr.mxu0 0.0
        %1865 = vmatpush1.msra.mxu0 0.0
        %1866 = vmatprep.subr.mxu0 0.0
        %1867 = vmatpush1.msra.mxu0 0.0
        %1868 = vmatprep.subr.mxu0 0.0
        %1869 = vmatpush1.msra.mxu0 0.0
        %1870 = vmatprep.subr.mxu0 0.0
        %1871 = vmatpush1.msra.mxu0 0.0
        %1872 = vmatprep.subr.mxu0 0.0
        %1873 = vmatpush1.msra.mxu0 0.0
        %1874 = vmatprep.subr.mxu0 0.0
        %1875 = vmatpush1.msra.mxu0 0.0
        %1876 = vmatprep.subr.mxu0 0.0
        %1877 = vmatpush1.msra.mxu0 0.0
        %1878 = vmatprep.subr.mxu0 0.0
        %1879 = vmatpush1.msra.mxu0 0.0
        %1880 = vmatprep.subr.mxu0 0.0
        %1881 = vmatpush1.msra.mxu0 0.0
        %1882 = vmatprep.subr.mxu0 0.0
        %1883 = vmatpush1.msra.mxu0 0.0
        %1884 = vmatprep.subr.mxu0 0.0
        %1885 = vmatpush1.msra.mxu0 0.0
        %1886 = vmatprep.subr.mxu0 0.0
        %1887 = vmatpush1.msra.mxu0 0.0
        %1888 = vmatprep.subr.mxu0 0.0
        %1889 = vmatpush1.msra.mxu0 0.0
        %1890 = vmatprep.subr.mxu0 0.0
        %1891 = vmatpush1.msra.mxu0 0.0
        %1892 = vmatprep.subr.mxu0 0.0
        %1893 = vmatpush1.msra.mxu0 0.0
        %1894 = vmatprep.subr.mxu0 0.0
        %1895 = vmatpush1.msra.mxu0 0.0
        %1896 = vmatprep.subr.mxu0 0.0
        %1897 = vmatpush1.msra.mxu0 0.0
        %1898 = vmatprep.subr.mxu0 0.0
        %1899 = vmatpush1.msra.mxu0 0.0
        %1900 = vmatprep.subr.mxu0 0.0
        %1901 = vmatpush1.msra.mxu0 0.0
        %1902 = vmatprep.mubr.f32.mxu0 0.0
        %v1903 = vand.u32 %v1736, 4294901760
        %1904 = vmatmul.mubr.f32.gmra.mrb[0].mxu0 %v1903
        %v1905 = vpop.f32.mrb[0].mxu0
        %v1906 = vadd.f32 %v1815, %v1905
        %v1907 = vpop.f32.mrb[0].mxu0
        %1908 = vmatprep.mubr.f32.mxu0 0.0
        %v1909 = vand.u32 %v1739, 4294901760
        %1910 = vmatmul.mubr.f32.gmra.mrb[0].mxu0 %v1909
        %v1911 = vpop.f32.mrb[0].mxu0
        %v1912 = vadd.f32 %v1825, %v1911
        %v1913 = vpop.f32.mrb[0].mxu0
        %1914 = vdwg.mxu0
        %1915 = vmatprep.subr.mxu0 0.0
        %v1916 = vand.u32 %v199, 4294901760
        %v1917 = vsub.f32 %v199, %v1916
        %1918 = vmatpush1.msra.mxu0 %v1917
        %1919 = vmatprep.subr.mxu0 0.0
        %v1920 = vand.u32 %v200, 4294901760
        %v1921 = vsub.f32 %v200, %v1920
        %1922 = vmatpush1.msra.mxu0 %v1921
        %1923 = vmatprep.subr.mxu0 0.0
        %1924 = vmatpush1.msra.mxu0 0.0
        %1925 = vmatprep.subr.mxu0 0.0
        %1926 = vmatpush1.msra.mxu0 0.0
        %1927 = vmatprep.subr.mxu0 0.0
        %1928 = vmatpush1.msra.mxu0 0.0
        %1929 = vmatprep.subr.mxu0 0.0
        %1930 = vmatpush1.msra.mxu0 0.0
        %1931 = vmatprep.subr.mxu0 0.0
        %1932 = vmatpush1.msra.mxu0 0.0
        %1933 = vmatprep.subr.mxu0 0.0
        %1934 = vmatpush1.msra.mxu0 0.0
        %1935 = vmatprep.subr.mxu0 0.0
        %1936 = vmatpush1.msra.mxu0 0.0
        %1937 = vmatprep.subr.mxu0 0.0
        %1938 = vmatpush1.msra.mxu0 0.0
        %1939 = vmatprep.subr.mxu0 0.0
        %1940 = vmatpush1.msra.mxu0 0.0
        %1941 = vmatprep.subr.mxu0 0.0
        %1942 = vmatpush1.msra.mxu0 0.0
        %1943 = vmatprep.subr.mxu0 0.0
        %1944 = vmatpush1.msra.mxu0 0.0
        %1945 = vmatprep.subr.mxu0 0.0
        %1946 = vmatpush1.msra.mxu0 0.0
        %1947 = vmatprep.subr.mxu0 0.0
        %1948 = vmatpush1.msra.mxu0 0.0
        %1949 = vmatprep.subr.mxu0 0.0
        %1950 = vmatpush1.msra.mxu0 0.0
        %1951 = vmatprep.subr.mxu0 0.0
        %1952 = vmatpush1.msra.mxu0 0.0
        %1953 = vmatprep.subr.mxu0 0.0
        %1954 = vmatpush1.msra.mxu0 0.0
        %1955 = vmatprep.subr.mxu0 0.0
        %1956 = vmatpush1.msra.mxu0 0.0
        %1957 = vmatprep.subr.mxu0 0.0
        %1958 = vmatpush1.msra.mxu0 0.0
        %1959 = vmatprep.subr.mxu0 0.0
        %1960 = vmatpush1.msra.mxu0 0.0
        %1961 = vmatprep.subr.mxu0 0.0
        %1962 = vmatpush1.msra.mxu0 0.0
        %1963 = vmatprep.subr.mxu0 0.0
        %1964 = vmatpush1.msra.mxu0 0.0
        %1965 = vmatprep.subr.mxu0 0.0
        %1966 = vmatpush1.msra.mxu0 0.0
        %1967 = vmatprep.subr.mxu0 0.0
        %1968 = vmatpush1.msra.mxu0 0.0
        %1969 = vmatprep.subr.mxu0 0.0
        %1970 = vmatpush1.msra.mxu0 0.0
        %1971 = vmatprep.subr.mxu0 0.0
        %1972 = vmatpush1.msra.mxu0 0.0
        %1973 = vmatprep.subr.mxu0 0.0
        %1974 = vmatpush1.msra.mxu0 0.0
        %1975 = vmatprep.subr.mxu0 0.0
        %1976 = vmatpush1.msra.mxu0 0.0
        %1977 = vmatprep.subr.mxu0 0.0
        %1978 = vmatpush1.msra.mxu0 0.0
        %1979 = vmatprep.subr.mxu0 0.0
        %1980 = vmatpush1.msra.mxu0 0.0
        %1981 = vmatprep.subr.mxu0 0.0
        %1982 = vmatpush1.msra.mxu0 0.0
        %1983 = vmatprep.mubr.f32.mxu0 0.0
        %v1984 = vand.u32 %v1736, 4294901760
        %v1985 = vsub.f32 %v1736, %v1984
        %1986 = vmatmul.mubr.f32.gmra.mrb[0].mxu0 %v1985
        %v1987 = vpop.f32.mrb[0].mxu0
        %v1988 = vadd.f32 %v1906, %v1987
        %v1989 = vpop.f32.mrb[0].mxu0
        %1990 = vmatprep.mubr.f32.mxu0 0.0
        %v1991 = vand.u32 %v1739, 4294901760
        %v1992 = vsub.f32 %v1739, %v1991
        %1993 = vmatmul.mubr.f32.gmra.mrb[0].mxu0 %v1992
        %v1994 = vpop.f32.mrb[0].mxu0
        %v1995 = vadd.f32 %v1912, %v1994
        %v1996 = vpop.f32.mrb[0].mxu0
        %1997 = vdwg.mxu0
        %1998 = vmatprep.subr.mxu0 0.0
        %v1999 = vand.u32 %v199, 4294901760
        %2000 = vmatpush1.msra.mxu0 %v1999
        %2001 = vmatprep.subr.mxu0 0.0
        %v2002 = vand.u32 %v200, 4294901760
        %2003 = vmatpush1.msra.mxu0 %v2002
        %2004 = vmatprep.subr.mxu0 0.0
        %2005 = vmatpush1.msra.mxu0 0.0
        %2006 = vmatprep.subr.mxu0 0.0
        %2007 = vmatpush1.msra.mxu0 0.0
        %2008 = vmatprep.subr.mxu0 0.0
        %2009 = vmatpush1.msra.mxu0 0.0
        %2010 = vmatprep.subr.mxu0 0.0
        %2011 = vmatpush1.msra.mxu0 0.0
        %2012 = vmatprep.subr.mxu0 0.0
        %2013 = vmatpush1.msra.mxu0 0.0
        %2014 = vmatprep.subr.mxu0 0.0
        %2015 = vmatpush1.msra.mxu0 0.0
        %2016 = vmatprep.subr.mxu0 0.0
        %2017 = vmatpush1.msra.mxu0 0.0
        %2018 = vmatprep.subr.mxu0 0.0
        %2019 = vmatpush1.msra.mxu0 0.0
        %2020 = vmatprep.subr.mxu0 0.0
        %2021 = vmatpush1.msra.mxu0 0.0
        %2022 = vmatprep.subr.mxu0 0.0
        %2023 = vmatpush1.msra.mxu0 0.0
        %2024 = vmatprep.subr.mxu0 0.0
        %2025 = vmatpush1.msra.mxu0 0.0
        %2026 = vmatprep.subr.mxu0 0.0
        %2027 = vmatpush1.msra.mxu0 0.0
        %2028 = vmatprep.subr.mxu0 0.0
        %2029 = vmatpush1.msra.mxu0 0.0
        %2030 = vmatprep.subr.mxu0 0.0
        %2031 = vmatpush1.msra.mxu0 0.0
        %2032 = vmatprep.subr.mxu0 0.0
        %2033 = vmatpush1.msra.mxu0 0.0
        %2034 = vmatprep.subr.mxu0 0.0
        %2035 = vmatpush1.msra.mxu0 0.0
        %2036 = vmatprep.subr.mxu0 0.0
        %2037 = vmatpush1.msra.mxu0 0.0
        %2038 = vmatprep.subr.mxu0 0.0
        %2039 = vmatpush1.msra.mxu0 0.0
        %2040 = vmatprep.subr.mxu0 0.0
        %2041 = vmatpush1.msra.mxu0 0.0
        %2042 = vmatprep.subr.mxu0 0.0
        %2043 = vmatpush1.msra.mxu0 0.0
        %2044 = vmatprep.subr.mxu0 0.0
        %2045 = vmatpush1.msra.mxu0 0.0
        %2046 = vmatprep.subr.mxu0 0.0
        %2047 = vmatpush1.msra.mxu0 0.0
        %2048 = vmatprep.subr.mxu0 0.0
        %2049 = vmatpush1.msra.mxu0 0.0
        %2050 = vmatprep.subr.mxu0 0.0
        %2051 = vmatpush1.msra.mxu0 0.0
        %2052 = vmatprep.subr.mxu0 0.0
        %2053 = vmatpush1.msra.mxu0 0.0
        %2054 = vmatprep.subr.mxu0 0.0
        %2055 = vmatpush1.msra.mxu0 0.0
        %2056 = vmatprep.subr.mxu0 0.0
        %2057 = vmatpush1.msra.mxu0 0.0
        %2058 = vmatprep.subr.mxu0 0.0
        %2059 = vmatpush1.msra.mxu0 0.0
        %2060 = vmatprep.subr.mxu0 0.0
        %2061 = vmatpush1.msra.mxu0 0.0
        %2062 = vmatprep.subr.mxu0 0.0
        %2063 = vmatpush1.msra.mxu0 0.0
        %2064 = vmatprep.mubr.f32.mxu0 0.0
        %v2065 = vand.u32 %v1736, 4294901760
        %v2066 = vsub.f32 %v1736, %v2065
        %v2067 = vand.u32 %v2066, 4294901760
        %2068 = vmatmul.mubr.f32.gmra.mrb[0].mxu0 %v2067
        %v2069 = vpop.f32.mrb[0].mxu0
        %v2070 = vadd.f32 %v1988, %v2069
        %v2071 = vpop.f32.mrb[0].mxu0
        %2072 = vmatprep.mubr.f32.mxu0 0.0
        %v2073 = vand.u32 %v1739, 4294901760
        %v2074 = vsub.f32 %v1739, %v2073
        %v2075 = vand.u32 %v2074, 4294901760
        %2076 = vmatmul.mubr.f32.gmra.mrb[0].mxu0 %v2075
        %v2077 = vpop.f32.mrb[0].mxu0
        %v2078 = vadd.f32 %v1995, %v2077
        %v2079 = vpop.f32.mrb[0].mxu0
        %2080 = vdwg.mxu0
        %2081 = vmatprep.subr.mxu0 0.0
        %v2082 = vand.u32 %v199, 4294901760
        %v2083 = vsub.f32 %v199, %v2082
        %v2084 = vand.u32 %v2083, 4294901760
        %2085 = vmatpush1.msra.mxu0 %v2084
        %2086 = vmatprep.subr.mxu0 0.0
        %v2087 = vand.u32 %v200, 4294901760
        %v2088 = vsub.f32 %v200, %v2087
        %v2089 = vand.u32 %v2088, 4294901760
        %2090 = vmatpush1.msra.mxu0 %v2089
        %2091 = vmatprep.subr.mxu0 0.0
        %2092 = vmatpush1.msra.mxu0 0.0
        %2093 = vmatprep.subr.mxu0 0.0
        %2094 = vmatpush1.msra.mxu0 0.0
        %2095 = vmatprep.subr.mxu0 0.0
        %2096 = vmatpush1.msra.mxu0 0.0
        %2097 = vmatprep.subr.mxu0 0.0
        %2098 = vmatpush1.msra.mxu0 0.0
        %2099 = vmatprep.subr.mxu0 0.0
        %2100 = vmatpush1.msra.mxu0 0.0
        %2101 = vmatprep.subr.mxu0 0.0
        %2102 = vmatpush1.msra.mxu0 0.0
        %2103 = vmatprep.subr.mxu0 0.0
        %2104 = vmatpush1.msra.mxu0 0.0
        %2105 = vmatprep.subr.mxu0 0.0
        %2106 = vmatpush1.msra.mxu0 0.0
        %2107 = vmatprep.subr.mxu0 0.0
        %2108 = vmatpush1.msra.mxu0 0.0
        %2109 = vmatprep.subr.mxu0 0.0
        %2110 = vmatpush1.msra.mxu0 0.0
        %2111 = vmatprep.subr.mxu0 0.0
        %2112 = vmatpush1.msra.mxu0 0.0
        %2113 = vmatprep.subr.mxu0 0.0
        %2114 = vmatpush1.msra.mxu0 0.0
        %2115 = vmatprep.subr.mxu0 0.0
        %2116 = vmatpush1.msra.mxu0 0.0
        %2117 = vmatprep.subr.mxu0 0.0
        %2118 = vmatpush1.msra.mxu0 0.0
        %2119 = vmatprep.subr.mxu0 0.0
        %2120 = vmatpush1.msra.mxu0 0.0
        %2121 = vmatprep.subr.mxu0 0.0
        %2122 = vmatpush1.msra.mxu0 0.0
        %2123 = vmatprep.subr.mxu0 0.0
        %2124 = vmatpush1.msra.mxu0 0.0
        %2125 = vmatprep.subr.mxu0 0.0
        %2126 = vmatpush1.msra.mxu0 0.0
        %2127 = vmatprep.subr.mxu0 0.0
        %2128 = vmatpush1.msra.mxu0 0.0
        %2129 = vmatprep.subr.mxu0 0.0
        %2130 = vmatpush1.msra.mxu0 0.0
        %2131 = vmatprep.subr.mxu0 0.0
        %2132 = vmatpush1.msra.mxu0 0.0
        %2133 = vmatprep.subr.mxu0 0.0
        %2134 = vmatpush1.msra.mxu0 0.0
        %2135 = vmatprep.subr.mxu0 0.0
        %2136 = vmatpush1.msra.mxu0 0.0
        %2137 = vmatprep.subr.mxu0 0.0
        %2138 = vmatpush1.msra.mxu0 0.0
        %2139 = vmatprep.subr.mxu0 0.0
        %2140 = vmatpush1.msra.mxu0 0.0
        %2141 = vmatprep.subr.mxu0 0.0
        %2142 = vmatpush1.msra.mxu0 0.0
        %2143 = vmatprep.subr.mxu0 0.0
        %2144 = vmatpush1.msra.mxu0 0.0
        %2145 = vmatprep.subr.mxu0 0.0
        %2146 = vmatpush1.msra.mxu0 0.0
        %2147 = vmatprep.subr.mxu0 0.0
        %2148 = vmatpush1.msra.mxu0 0.0
        %2149 = vmatprep.subr.mxu0 0.0
        %2150 = vmatpush1.msra.mxu0 0.0
        %2151 = vmatprep.mubr.f32.mxu0 0.0
        %v2152 = vand.u32 %v1736, 4294901760
        %2153 = vmatmul.mubr.f32.gmra.mrb[0].mxu0 %v2152
        %v2154 = vpop.f32.mrb[0].mxu0
        %v2155 = vadd.f32 %v2070, %v2154
        %v2156 = vpop.f32.mrb[0].mxu0
        %2157 = vmatprep.mubr.f32.mxu0 0.0
        %v2158 = vand.u32 %v1739, 4294901760
        %2159 = vmatmul.mubr.f32.gmra.mrb[0].mxu0 %v2158
        %v2160 = vpop.f32.mrb[0].mxu0
        %v2161 = vadd.f32 %v2078, %v2160
        %v2162 = vpop.f32.mrb[0].mxu0
        %2163 = vdwg.mxu0
        %2164 = vmatprep.subr.mxu0 0.0
        %v2165 = vand.u32 %v199, 4294901760
        %2166 = vmatpush1.msra.mxu0 %v2165
        %2167 = vmatprep.subr.mxu0 0.0
        %v2168 = vand.u32 %v200, 4294901760
        %2169 = vmatpush1.msra.mxu0 %v2168
        %2170 = vmatprep.subr.mxu0 0.0
        %2171 = vmatpush1.msra.mxu0 0.0
        %2172 = vmatprep.subr.mxu0 0.0
        %2173 = vmatpush1.msra.mxu0 0.0
        %2174 = vmatprep.subr.mxu0 0.0
        %2175 = vmatpush1.msra.mxu0 0.0
        %2176 = vmatprep.subr.mxu0 0.0
        %2177 = vmatpush1.msra.mxu0 0.0
        %2178 = vmatprep.subr.mxu0 0.0
        %2179 = vmatpush1.msra.mxu0 0.0
        %2180 = vmatprep.subr.mxu0 0.0
        %2181 = vmatpush1.msra.mxu0 0.0
        %2182 = vmatprep.subr.mxu0 0.0
        %2183 = vmatpush1.msra.mxu0 0.0
        %2184 = vmatprep.subr.mxu0 0.0
        %2185 = vmatpush1.msra.mxu0 0.0
        %2186 = vmatprep.subr.mxu0 0.0
        %2187 = vmatpush1.msra.mxu0 0.0
        %2188 = vmatprep.subr.mxu0 0.0
        %2189 = vmatpush1.msra.mxu0 0.0
        %2190 = vmatprep.subr.mxu0 0.0
        %2191 = vmatpush1.msra.mxu0 0.0
        %2192 = vmatprep.subr.mxu0 0.0
        %2193 = vmatpush1.msra.mxu0 0.0
        %2194 = vmatprep.subr.mxu0 0.0
        %2195 = vmatpush1.msra.mxu0 0.0
        %2196 = vmatprep.subr.mxu0 0.0
        %2197 = vmatpush1.msra.mxu0 0.0
        %2198 = vmatprep.subr.mxu0 0.0
        %2199 = vmatpush1.msra.mxu0 0.0
        %2200 = vmatprep.subr.mxu0 0.0
        %2201 = vmatpush1.msra.mxu0 0.0
        %2202 = vmatprep.subr.mxu0 0.0
        %2203 = vmatpush1.msra.mxu0 0.0
        %2204 = vmatprep.subr.mxu0 0.0
        %2205 = vmatpush1.msra.mxu0 0.0
        %2206 = vmatprep.subr.mxu0 0.0
        %2207 = vmatpush1.msra.mxu0 0.0
        %2208 = vmatprep.subr.mxu0 0.0
        %2209 = vmatpush1.msra.mxu0 0.0
        %2210 = vmatprep.subr.mxu0 0.0
        %2211 = vmatpush1.msra.mxu0 0.0
        %2212 = vmatprep.subr.mxu0 0.0
        %2213 = vmatpush1.msra.mxu0 0.0
        %2214 = vmatprep.subr.mxu0 0.0
        %2215 = vmatpush1.msra.mxu0 0.0
        %2216 = vmatprep.subr.mxu0 0.0
        %2217 = vmatpush1.msra.mxu0 0.0
        %2218 = vmatprep.subr.mxu0 0.0
        %2219 = vmatpush1.msra.mxu0 0.0
        %2220 = vmatprep.subr.mxu0 0.0
        %2221 = vmatpush1.msra.mxu0 0.0
        %2222 = vmatprep.subr.mxu0 0.0
        %2223 = vmatpush1.msra.mxu0 0.0
        %2224 = vmatprep.subr.mxu0 0.0
        %2225 = vmatpush1.msra.mxu0 0.0
        %2226 = vmatprep.subr.mxu0 0.0
        %2227 = vmatpush1.msra.mxu0 0.0
        %2228 = vmatprep.subr.mxu0 0.0
        %2229 = vmatpush1.msra.mxu0 0.0
        %2230 = vmatprep.mubr.f32.mxu0 0.0
        %v2231 = vand.u32 %v1736, 4294901760
        %2232 = vmatmul.mubr.f32.gmra.mrb[0].mxu0 %v2231
        %v2233 = vpop.f32.mrb[0].mxu0
        %v2234 = vadd.f32 %v2155, %v2233
        %v2235 = vpop.f32.mrb[0].mxu0
        %2236 = vmatprep.mubr.f32.mxu0 0.0
        %v2237 = vand.u32 %v1739, 4294901760
        %2238 = vmatmul.mubr.f32.gmra.mrb[0].mxu0 %v2237
        %v2239 = vpop.f32.mrb[0].mxu0
        %v2240 = vadd.f32 %v2161, %v2239
        %v2241 = vpop.f32.mrb[0].mxu0
        %2242 = vdwg.mxu0
        %v2243 = vld [vmem:[#allocation2 + $0x9] sm:$0xff]
        %v2244 = vld [vmem:[#allocation2 + $0x11] sm:$0xff]
        %s2245 = scalar_lea.vmem %s0, 64
        %v2246 = vld [vmem:[%s2245] sm:$0xff]
        %v2247 = vld [vmem:[%s2245 + $0x8] sm:$0xff]
        %v2249 = vsel %vm155, %v2243, 0
        %v2252 = vsel %vm155, %v2244, 0
        %2254 = vmatprep.subr.mxu0 0.0
        %v2255 = vand.u32 %v2246, 4294901760
        %2256 = vmatpush1.msra.mxu0 %v2255
        %2257 = vmatprep.subr.mxu0 0.0
        %v2258 = vand.u32 %v2247, 4294901760
        %2259 = vmatpush1.msra.mxu0 %v2258
        %2260 = vmatprep.subr.mxu0 0.0
        %2261 = vmatpush1.msra.mxu0 0.0
        %2262 = vmatprep.subr.mxu0 0.0
        %2263 = vmatpush1.msra.mxu0 0.0
        %2264 = vmatprep.subr.mxu0 0.0
        %2265 = vmatpush1.msra.mxu0 0.0
        %2266 = vmatprep.subr.mxu0 0.0
        %2267 = vmatpush1.msra.mxu0 0.0
        %2268 = vmatprep.subr.mxu0 0.0
        %2269 = vmatpush1.msra.mxu0 0.0
        %2270 = vmatprep.subr.mxu0 0.0
        %2271 = vmatpush1.msra.mxu0 0.0
        %2272 = vmatprep.subr.mxu0 0.0
        %2273 = vmatpush1.msra.mxu0 0.0
        %2274 = vmatprep.subr.mxu0 0.0
        %2275 = vmatpush1.msra.mxu0 0.0
        %2276 = vmatprep.subr.mxu0 0.0
        %2277 = vmatpush1.msra.mxu0 0.0
        %2278 = vmatprep.subr.mxu0 0.0
        %2279 = vmatpush1.msra.mxu0 0.0
        %2280 = vmatprep.subr.mxu0 0.0
        %2281 = vmatpush1.msra.mxu0 0.0
        %2282 = vmatprep.subr.mxu0 0.0
        %2283 = vmatpush1.msra.mxu0 0.0
        %2284 = vmatprep.subr.mxu0 0.0
        %2285 = vmatpush1.msra.mxu0 0.0
        %2286 = vmatprep.subr.mxu0 0.0
        %2287 = vmatpush1.msra.mxu0 0.0
        %2288 = vmatprep.subr.mxu0 0.0
        %2289 = vmatpush1.msra.mxu0 0.0
        %2290 = vmatprep.subr.mxu0 0.0
        %2291 = vmatpush1.msra.mxu0 0.0
        %2292 = vmatprep.subr.mxu0 0.0
        %2293 = vmatpush1.msra.mxu0 0.0
        %2294 = vmatprep.subr.mxu0 0.0
        %2295 = vmatpush1.msra.mxu0 0.0
        %2296 = vmatprep.subr.mxu0 0.0
        %2297 = vmatpush1.msra.mxu0 0.0
        %2298 = vmatprep.subr.mxu0 0.0
        %2299 = vmatpush1.msra.mxu0 0.0
        %2300 = vmatprep.subr.mxu0 0.0
        %2301 = vmatpush1.msra.mxu0 0.0
        %2302 = vmatprep.subr.mxu0 0.0
        %2303 = vmatpush1.msra.mxu0 0.0
        %2304 = vmatprep.subr.mxu0 0.0
        %2305 = vmatpush1.msra.mxu0 0.0
        %2306 = vmatprep.subr.mxu0 0.0
        %2307 = vmatpush1.msra.mxu0 0.0
        %2308 = vmatprep.subr.mxu0 0.0
        %2309 = vmatpush1.msra.mxu0 0.0
        %2310 = vmatprep.subr.mxu0 0.0
        %2311 = vmatpush1.msra.mxu0 0.0
        %2312 = vmatprep.subr.mxu0 0.0
        %2313 = vmatpush1.msra.mxu0 0.0
        %2314 = vmatprep.subr.mxu0 0.0
        %2315 = vmatpush1.msra.mxu0 0.0
        %2316 = vmatprep.subr.mxu0 0.0
        %2317 = vmatpush1.msra.mxu0 0.0
        %2318 = vmatprep.subr.mxu0 0.0
        %2319 = vmatpush1.msra.mxu0 0.0
        %2320 = vmatprep.mubr.f32.mxu0 0.0
        %v2321 = vand.u32 %v2249, 4294901760
        %v2322 = vsub.f32 %v2249, %v2321
        %v2323 = vand.u32 %v2322, 4294901760
        %v2324 = vsub.f32 %v2322, %v2323
        %v2325 = vand.u32 %v2324, 4294901760
        %2326 = vmatmul.mubr.f32.gmra.mrb[0].mxu0 %v2325
        %v2327 = vpop.f32.mrb[0].mxu0
        %v2328 = vadd.f32 0.0, %v2327
        %v2329 = vpop.f32.mrb[0].mxu0
        %2330 = vmatprep.mubr.f32.mxu0 0.0
        %v2331 = vand.u32 %v2252, 4294901760
        %v2332 = vsub.f32 %v2252, %v2331
        %v2333 = vand.u32 %v2332, 4294901760
        %v2334 = vsub.f32 %v2332, %v2333
        %v2335 = vand.u32 %v2334, 4294901760
        %2336 = vmatmul.mubr.f32.gmra.mrb[0].mxu0 %v2335
        %v2337 = vpop.f32.mrb[0].mxu0
        %v2338 = vadd.f32 0.0, %v2337
        %v2339 = vpop.f32.mrb[0].mxu0
        %2340 = vdwg.mxu0
        %2341 = vmatprep.subr.mxu0 0.0
        %v2342 = vand.u32 %v2246, 4294901760
        %v2343 = vsub.f32 %v2246, %v2342
        %v2344 = vand.u32 %v2343, 4294901760
        %v2345 = vsub.f32 %v2343, %v2344
        %v2346 = vand.u32 %v2345, 4294901760
        %2347 = vmatpush1.msra.mxu0 %v2346
        %2348 = vmatprep.subr.mxu0 0.0
        %v2349 = vand.u32 %v2247, 4294901760
        %v2350 = vsub.f32 %v2247, %v2349
        %v2351 = vand.u32 %v2350, 4294901760
        %v2352 = vsub.f32 %v2350, %v2351
        %v2353 = vand.u32 %v2352, 4294901760
        %2354 = vmatpush1.msra.mxu0 %v2353
        %2355 = vmatprep.subr.mxu0 0.0
        %2356 = vmatpush1.msra.mxu0 0.0
        %2357 = vmatprep.subr.mxu0 0.0
        %2358 = vmatpush1.msra.mxu0 0.0
        %2359 = vmatprep.subr.mxu0 0.0
        %2360 = vmatpush1.msra.mxu0 0.0
        %2361 = vmatprep.subr.mxu0 0.0
        %2362 = vmatpush1.msra.mxu0 0.0
        %2363 = vmatprep.subr.mxu0 0.0
        %2364 = vmatpush1.msra.mxu0 0.0
        %2365 = vmatprep.subr.mxu0 0.0
        %2366 = vmatpush1.msra.mxu0 0.0
        %2367 = vmatprep.subr.mxu0 0.0
        %2368 = vmatpush1.msra.mxu0 0.0
        %2369 = vmatprep.subr.mxu0 0.0
        %2370 = vmatpush1.msra.mxu0 0.0
        %2371 = vmatprep.subr.mxu0 0.0
        %2372 = vmatpush1.msra.mxu0 0.0
        %2373 = vmatprep.subr.mxu0 0.0
        %2374 = vmatpush1.msra.mxu0 0.0
        %2375 = vmatprep.subr.mxu0 0.0
        %2376 = vmatpush1.msra.mxu0 0.0
        %2377 = vmatprep.subr.mxu0 0.0
        %2378 = vmatpush1.msra.mxu0 0.0
        %2379 = vmatprep.subr.mxu0 0.0
        %2380 = vmatpush1.msra.mxu0 0.0
        %2381 = vmatprep.subr.mxu0 0.0
        %2382 = vmatpush1.msra.mxu0 0.0
        %2383 = vmatprep.subr.mxu0 0.0
        %2384 = vmatpush1.msra.mxu0 0.0
        %2385 = vmatprep.subr.mxu0 0.0
        %2386 = vmatpush1.msra.mxu0 0.0
        %2387 = vmatprep.subr.mxu0 0.0
        %2388 = vmatpush1.msra.mxu0 0.0
        %2389 = vmatprep.subr.mxu0 0.0
        %2390 = vmatpush1.msra.mxu0 0.0
        %2391 = vmatprep.subr.mxu0 0.0
        %2392 = vmatpush1.msra.mxu0 0.0
        %2393 = vmatprep.subr.mxu0 0.0
        %2394 = vmatpush1.msra.mxu0 0.0
        %2395 = vmatprep.subr.mxu0 0.0
        %2396 = vmatpush1.msra.mxu0 0.0
        %2397 = vmatprep.subr.mxu0 0.0
        %2398 = vmatpush1.msra.mxu0 0.0
        %2399 = vmatprep.subr.mxu0 0.0
        %2400 = vmatpush1.msra.mxu0 0.0
        %2401 = vmatprep.subr.mxu0 0.0
        %2402 = vmatpush1.msra.mxu0 0.0
        %2403 = vmatprep.subr.mxu0 0.0
        %2404 = vmatpush1.msra.mxu0 0.0
        %2405 = vmatprep.subr.mxu0 0.0
        %2406 = vmatpush1.msra.mxu0 0.0
        %2407 = vmatprep.subr.mxu0 0.0
        %2408 = vmatpush1.msra.mxu0 0.0
        %2409 = vmatprep.subr.mxu0 0.0
        %2410 = vmatpush1.msra.mxu0 0.0
        %2411 = vmatprep.subr.mxu0 0.0
        %2412 = vmatpush1.msra.mxu0 0.0
        %2413 = vmatprep.subr.mxu0 0.0
        %2414 = vmatpush1.msra.mxu0 0.0
        %2415 = vmatprep.mubr.f32.mxu0 0.0
        %v2416 = vand.u32 %v2249, 4294901760
        %2417 = vmatmul.mubr.f32.gmra.mrb[0].mxu0 %v2416
        %v2418 = vpop.f32.mrb[0].mxu0
        %v2419 = vadd.f32 %v2328, %v2418
        %v2420 = vpop.f32.mrb[0].mxu0
        %2421 = vmatprep.mubr.f32.mxu0 0.0
        %v2422 = vand.u32 %v2252, 4294901760
        %2423 = vmatmul.mubr.f32.gmra.mrb[0].mxu0 %v2422
        %v2424 = vpop.f32.mrb[0].mxu0
        %v2425 = vadd.f32 %v2338, %v2424
        %v2426 = vpop.f32.mrb[0].mxu0
        %2427 = vdwg.mxu0
        %2428 = vmatprep.subr.mxu0 0.0
        %v2429 = vand.u32 %v2246, 4294901760
        %v2430 = vsub.f32 %v2246, %v2429
        %2431 = vmatpush1.msra.mxu0 %v2430
        %2432 = vmatprep.subr.mxu0 0.0
        %v2433 = vand.u32 %v2247, 4294901760
        %v2434 = vsub.f32 %v2247, %v2433
        %2435 = vmatpush1.msra.mxu0 %v2434
        %2436 = vmatprep.subr.mxu0 0.0
        %2437 = vmatpush1.msra.mxu0 0.0
        %2438 = vmatprep.subr.mxu0 0.0
        %2439 = vmatpush1.msra.mxu0 0.0
        %2440 = vmatprep.subr.mxu0 0.0
        %2441 = vmatpush1.msra.mxu0 0.0
        %2442 = vmatprep.subr.mxu0 0.0
        %2443 = vmatpush1.msra.mxu0 0.0
        %2444 = vmatprep.subr.mxu0 0.0
        %2445 = vmatpush1.msra.mxu0 0.0
        %2446 = vmatprep.subr.mxu0 0.0
        %2447 = vmatpush1.msra.mxu0 0.0
        %2448 = vmatprep.subr.mxu0 0.0
        %2449 = vmatpush1.msra.mxu0 0.0
        %2450 = vmatprep.subr.mxu0 0.0
        %2451 = vmatpush1.msra.mxu0 0.0
        %2452 = vmatprep.subr.mxu0 0.0
        %2453 = vmatpush1.msra.mxu0 0.0
        %2454 = vmatprep.subr.mxu0 0.0
        %2455 = vmatpush1.msra.mxu0 0.0
        %2456 = vmatprep.subr.mxu0 0.0
        %2457 = vmatpush1.msra.mxu0 0.0
        %2458 = vmatprep.subr.mxu0 0.0
        %2459 = vmatpush1.msra.mxu0 0.0
        %2460 = vmatprep.subr.mxu0 0.0
        %2461 = vmatpush1.msra.mxu0 0.0
        %2462 = vmatprep.subr.mxu0 0.0
        %2463 = vmatpush1.msra.mxu0 0.0
        %2464 = vmatprep.subr.mxu0 0.0
        %2465 = vmatpush1.msra.mxu0 0.0
        %2466 = vmatprep.subr.mxu0 0.0
        %2467 = vmatpush1.msra.mxu0 0.0
        %2468 = vmatprep.subr.mxu0 0.0
        %2469 = vmatpush1.msra.mxu0 0.0
        %2470 = vmatprep.subr.mxu0 0.0
        %2471 = vmatpush1.msra.mxu0 0.0
        %2472 = vmatprep.subr.mxu0 0.0
        %2473 = vmatpush1.msra.mxu0 0.0
        %2474 = vmatprep.subr.mxu0 0.0
        %2475 = vmatpush1.msra.mxu0 0.0
        %2476 = vmatprep.subr.mxu0 0.0
        %2477 = vmatpush1.msra.mxu0 0.0
        %2478 = vmatprep.subr.mxu0 0.0
        %2479 = vmatpush1.msra.mxu0 0.0
        %2480 = vmatprep.subr.mxu0 0.0
        %2481 = vmatpush1.msra.mxu0 0.0
        %2482 = vmatprep.subr.mxu0 0.0
        %2483 = vmatpush1.msra.mxu0 0.0
        %2484 = vmatprep.subr.mxu0 0.0
        %2485 = vmatpush1.msra.mxu0 0.0
        %2486 = vmatprep.subr.mxu0 0.0
        %2487 = vmatpush1.msra.mxu0 0.0
        %2488 = vmatprep.subr.mxu0 0.0
        %2489 = vmatpush1.msra.mxu0 0.0
        %2490 = vmatprep.subr.mxu0 0.0
        %2491 = vmatpush1.msra.mxu0 0.0
        %2492 = vmatprep.subr.mxu0 0.0
        %2493 = vmatpush1.msra.mxu0 0.0
        %2494 = vmatprep.subr.mxu0 0.0
        %2495 = vmatpush1.msra.mxu0 0.0
        %2496 = vmatprep.mubr.f32.mxu0 0.0
        %v2497 = vand.u32 %v2249, 4294901760
        %v2498 = vsub.f32 %v2249, %v2497
        %2499 = vmatmul.mubr.f32.gmra.mrb[0].mxu0 %v2498
        %v2500 = vpop.f32.mrb[0].mxu0
        %v2501 = vadd.f32 %v2419, %v2500
        %v2502 = vpop.f32.mrb[0].mxu0
        %2503 = vmatprep.mubr.f32.mxu0 0.0
        %v2504 = vand.u32 %v2252, 4294901760
        %v2505 = vsub.f32 %v2252, %v2504
        %2506 = vmatmul.mubr.f32.gmra.mrb[0].mxu0 %v2505
        %v2507 = vpop.f32.mrb[0].mxu0
        %v2508 = vadd.f32 %v2425, %v2507
        %v2509 = vpop.f32.mrb[0].mxu0
        %2510 = vdwg.mxu0
        %2511 = vmatprep.subr.mxu0 0.0
        %v2512 = vand.u32 %v2246, 4294901760
        %2513 = vmatpush1.msra.mxu0 %v2512
        %2514 = vmatprep.subr.mxu0 0.0
        %v2515 = vand.u32 %v2247, 4294901760
        %2516 = vmatpush1.msra.mxu0 %v2515
        %2517 = vmatprep.subr.mxu0 0.0
        %2518 = vmatpush1.msra.mxu0 0.0
        %2519 = vmatprep.subr.mxu0 0.0
        %2520 = vmatpush1.msra.mxu0 0.0
        %2521 = vmatprep.subr.mxu0 0.0
        %2522 = vmatpush1.msra.mxu0 0.0
        %2523 = vmatprep.subr.mxu0 0.0
        %2524 = vmatpush1.msra.mxu0 0.0
        %2525 = vmatprep.subr.mxu0 0.0
        %2526 = vmatpush1.msra.mxu0 0.0
        %2527 = vmatprep.subr.mxu0 0.0
        %2528 = vmatpush1.msra.mxu0 0.0
        %2529 = vmatprep.subr.mxu0 0.0
        %2530 = vmatpush1.msra.mxu0 0.0
        %2531 = vmatprep.subr.mxu0 0.0
        %2532 = vmatpush1.msra.mxu0 0.0
        %2533 = vmatprep.subr.mxu0 0.0
        %2534 = vmatpush1.msra.mxu0 0.0
        %2535 = vmatprep.subr.mxu0 0.0
        %2536 = vmatpush1.msra.mxu0 0.0
        %2537 = vmatprep.subr.mxu0 0.0
        %2538 = vmatpush1.msra.mxu0 0.0
        %2539 = vmatprep.subr.mxu0 0.0
        %2540 = vmatpush1.msra.mxu0 0.0
        %2541 = vmatprep.subr.mxu0 0.0
        %2542 = vmatpush1.msra.mxu0 0.0
        %2543 = vmatprep.subr.mxu0 0.0
        %2544 = vmatpush1.msra.mxu0 0.0
        %2545 = vmatprep.subr.mxu0 0.0
        %2546 = vmatpush1.msra.mxu0 0.0
        %2547 = vmatprep.subr.mxu0 0.0
        %2548 = vmatpush1.msra.mxu0 0.0
        %2549 = vmatprep.subr.mxu0 0.0
        %2550 = vmatpush1.msra.mxu0 0.0
        %2551 = vmatprep.subr.mxu0 0.0
        %2552 = vmatpush1.msra.mxu0 0.0
        %2553 = vmatprep.subr.mxu0 0.0
        %2554 = vmatpush1.msra.mxu0 0.0
        %2555 = vmatprep.subr.mxu0 0.0
        %2556 = vmatpush1.msra.mxu0 0.0
        %2557 = vmatprep.subr.mxu0 0.0
        %2558 = vmatpush1.msra.mxu0 0.0
        %2559 = vmatprep.subr.mxu0 0.0
        %2560 = vmatpush1.msra.mxu0 0.0
        %2561 = vmatprep.subr.mxu0 0.0
        %2562 = vmatpush1.msra.mxu0 0.0
        %2563 = vmatprep.subr.mxu0 0.0
        %2564 = vmatpush1.msra.mxu0 0.0
        %2565 = vmatprep.subr.mxu0 0.0
        %2566 = vmatpush1.msra.mxu0 0.0
        %2567 = vmatprep.subr.mxu0 0.0
        %2568 = vmatpush1.msra.mxu0 0.0
        %2569 = vmatprep.subr.mxu0 0.0
        %2570 = vmatpush1.msra.mxu0 0.0
        %2571 = vmatprep.subr.mxu0 0.0
        %2572 = vmatpush1.msra.mxu0 0.0
        %2573 = vmatprep.subr.mxu0 0.0
        %2574 = vmatpush1.msra.mxu0 0.0
        %2575 = vmatprep.subr.mxu0 0.0
        %2576 = vmatpush1.msra.mxu0 0.0
        %2577 = vmatprep.mubr.f32.mxu0 0.0
        %v2578 = vand.u32 %v2249, 4294901760
        %v2579 = vsub.f32 %v2249, %v2578
        %v2580 = vand.u32 %v2579, 4294901760
        %2581 = vmatmul.mubr.f32.gmra.mrb[0].mxu0 %v2580
        %v2582 = vpop.f32.mrb[0].mxu0
        %v2583 = vadd.f32 %v2501, %v2582
        %v2584 = vpop.f32.mrb[0].mxu0
        %2585 = vmatprep.mubr.f32.mxu0 0.0
        %v2586 = vand.u32 %v2252, 4294901760
        %v2587 = vsub.f32 %v2252, %v2586
        %v2588 = vand.u32 %v2587, 4294901760
        %2589 = vmatmul.mubr.f32.gmra.mrb[0].mxu0 %v2588
        %v2590 = vpop.f32.mrb[0].mxu0
        %v2591 = vadd.f32 %v2508, %v2590
        %v2592 = vpop.f32.mrb[0].mxu0
        %2593 = vdwg.mxu0
        %2594 = vmatprep.subr.mxu0 0.0
        %v2595 = vand.u32 %v2246, 4294901760
        %v2596 = vsub.f32 %v2246, %v2595
        %v2597 = vand.u32 %v2596, 4294901760
        %2598 = vmatpush1.msra.mxu0 %v2597
        %2599 = vmatprep.subr.mxu0 0.0
        %v2600 = vand.u32 %v2247, 4294901760
        %v2601 = vsub.f32 %v2247, %v2600
        %v2602 = vand.u32 %v2601, 4294901760
        %2603 = vmatpush1.msra.mxu0 %v2602
        %2604 = vmatprep.subr.mxu0 0.0
        %2605 = vmatpush1.msra.mxu0 0.0
        %2606 = vmatprep.subr.mxu0 0.0
        %2607 = vmatpush1.msra.mxu0 0.0
        %2608 = vmatprep.subr.mxu0 0.0
        %2609 = vmatpush1.msra.mxu0 0.0
        %2610 = vmatprep.subr.mxu0 0.0
        %2611 = vmatpush1.msra.mxu0 0.0
        %2612 = vmatprep.subr.mxu0 0.0
        %2613 = vmatpush1.msra.mxu0 0.0
        %2614 = vmatprep.subr.mxu0 0.0
        %2615 = vmatpush1.msra.mxu0 0.0
        %2616 = vmatprep.subr.mxu0 0.0
        %2617 = vmatpush1.msra.mxu0 0.0
        %2618 = vmatprep.subr.mxu0 0.0
        %2619 = vmatpush1.msra.mxu0 0.0
        %2620 = vmatprep.subr.mxu0 0.0
        %2621 = vmatpush1.msra.mxu0 0.0
        %2622 = vmatprep.subr.mxu0 0.0
        %2623 = vmatpush1.msra.mxu0 0.0
        %2624 = vmatprep.subr.mxu0 0.0
        %2625 = vmatpush1.msra.mxu0 0.0
        %2626 = vmatprep.subr.mxu0 0.0
        %2627 = vmatpush1.msra.mxu0 0.0
        %2628 = vmatprep.subr.mxu0 0.0
        %2629 = vmatpush1.msra.mxu0 0.0
        %2630 = vmatprep.subr.mxu0 0.0
        %2631 = vmatpush1.msra.mxu0 0.0
        %2632 = vmatprep.subr.mxu0 0.0
        %2633 = vmatpush1.msra.mxu0 0.0
        %2634 = vmatprep.subr.mxu0 0.0
        %2635 = vmatpush1.msra.mxu0 0.0
        %2636 = vmatprep.subr.mxu0 0.0
        %2637 = vmatpush1.msra.mxu0 0.0
        %2638 = vmatprep.subr.mxu0 0.0
        %2639 = vmatpush1.msra.mxu0 0.0
        %2640 = vmatprep.subr.mxu0 0.0
        %2641 = vmatpush1.msra.mxu0 0.0
        %2642 = vmatprep.subr.mxu0 0.0
        %2643 = vmatpush1.msra.mxu0 0.0
        %2644 = vmatprep.subr.mxu0 0.0
        %2645 = vmatpush1.msra.mxu0 0.0
        %2646 = vmatprep.subr.mxu0 0.0
        %2647 = vmatpush1.msra.mxu0 0.0
        %2648 = vmatprep.subr.mxu0 0.0
        %2649 = vmatpush1.msra.mxu0 0.0
        %2650 = vmatprep.subr.mxu0 0.0
        %2651 = vmatpush1.msra.mxu0 0.0
        %2652 = vmatprep.subr.mxu0 0.0
        %2653 = vmatpush1.msra.mxu0 0.0
        %2654 = vmatprep.subr.mxu0 0.0
        %2655 = vmatpush1.msra.mxu0 0.0
        %2656 = vmatprep.subr.mxu0 0.0
        %2657 = vmatpush1.msra.mxu0 0.0
        %2658 = vmatprep.subr.mxu0 0.0
        %2659 = vmatpush1.msra.mxu0 0.0
        %2660 = vmatprep.subr.mxu0 0.0
        %2661 = vmatpush1.msra.mxu0 0.0
        %2662 = vmatprep.subr.mxu0 0.0
        %2663 = vmatpush1.msra.mxu0 0.0
        %2664 = vmatprep.mubr.f32.mxu0 0.0
        %v2665 = vand.u32 %v2249, 4294901760
        %2666 = vmatmul.mubr.f32.gmra.mrb[0].mxu0 %v2665
        %v2667 = vpop.f32.mrb[0].mxu0
        %v2668 = vadd.f32 %v2583, %v2667
        %v2669 = vpop.f32.mrb[0].mxu0
        %2670 = vmatprep.mubr.f32.mxu0 0.0
        %v2671 = vand.u32 %v2252, 4294901760
        %2672 = vmatmul.mubr.f32.gmra.mrb[0].mxu0 %v2671
        %v2673 = vpop.f32.mrb[0].mxu0
        %v2674 = vadd.f32 %v2591, %v2673
        %v2675 = vpop.f32.mrb[0].mxu0
        %2676 = vdwg.mxu0
        %2677 = vmatprep.subr.mxu0 0.0
        %v2678 = vand.u32 %v2246, 4294901760
        %2679 = vmatpush1.msra.mxu0 %v2678
        %2680 = vmatprep.subr.mxu0 0.0
        %v2681 = vand.u32 %v2247, 4294901760
        %2682 = vmatpush1.msra.mxu0 %v2681
        %2683 = vmatprep.subr.mxu0 0.0
        %2684 = vmatpush1.msra.mxu0 0.0
        %2685 = vmatprep.subr.mxu0 0.0
        %2686 = vmatpush1.msra.mxu0 0.0
        %2687 = vmatprep.subr.mxu0 0.0
        %2688 = vmatpush1.msra.mxu0 0.0
        %2689 = vmatprep.subr.mxu0 0.0
        %2690 = vmatpush1.msra.mxu0 0.0
        %2691 = vmatprep.subr.mxu0 0.0
        %2692 = vmatpush1.msra.mxu0 0.0
        %2693 = vmatprep.subr.mxu0 0.0
        %2694 = vmatpush1.msra.mxu0 0.0
        %2695 = vmatprep.subr.mxu0 0.0
        %2696 = vmatpush1.msra.mxu0 0.0
        %2697 = vmatprep.subr.mxu0 0.0
        %2698 = vmatpush1.msra.mxu0 0.0
        %2699 = vmatprep.subr.mxu0 0.0
        %2700 = vmatpush1.msra.mxu0 0.0
        %2701 = vmatprep.subr.mxu0 0.0
        %2702 = vmatpush1.msra.mxu0 0.0
        %2703 = vmatprep.subr.mxu0 0.0
        %2704 = vmatpush1.msra.mxu0 0.0
        %2705 = vmatprep.subr.mxu0 0.0
        %2706 = vmatpush1.msra.mxu0 0.0
        %2707 = vmatprep.subr.mxu0 0.0
        %2708 = vmatpush1.msra.mxu0 0.0
        %2709 = vmatprep.subr.mxu0 0.0
        %2710 = vmatpush1.msra.mxu0 0.0
        %2711 = vmatprep.subr.mxu0 0.0
        %2712 = vmatpush1.msra.mxu0 0.0
        %2713 = vmatprep.subr.mxu0 0.0
        %2714 = vmatpush1.msra.mxu0 0.0
        %2715 = vmatprep.subr.mxu0 0.0
        %2716 = vmatpush1.msra.mxu0 0.0
        %2717 = vmatprep.subr.mxu0 0.0
        %2718 = vmatpush1.msra.mxu0 0.0
        %2719 = vmatprep.subr.mxu0 0.0
        %2720 = vmatpush1.msra.mxu0 0.0
        %2721 = vmatprep.subr.mxu0 0.0
        %2722 = vmatpush1.msra.mxu0 0.0
        %2723 = vmatprep.subr.mxu0 0.0
        %2724 = vmatpush1.msra.mxu0 0.0
        %2725 = vmatprep.subr.mxu0 0.0
        %2726 = vmatpush1.msra.mxu0 0.0
        %2727 = vmatprep.subr.mxu0 0.0
        %2728 = vmatpush1.msra.mxu0 0.0
        %2729 = vmatprep.subr.mxu0 0.0
        %2730 = vmatpush1.msra.mxu0 0.0
        %2731 = vmatprep.subr.mxu0 0.0
        %2732 = vmatpush1.msra.mxu0 0.0
        %2733 = vmatprep.subr.mxu0 0.0
        %2734 = vmatpush1.msra.mxu0 0.0
        %2735 = vmatprep.subr.mxu0 0.0
        %2736 = vmatpush1.msra.mxu0 0.0
        %2737 = vmatprep.subr.mxu0 0.0
        %2738 = vmatpush1.msra.mxu0 0.0
        %2739 = vmatprep.subr.mxu0 0.0
        %2740 = vmatpush1.msra.mxu0 0.0
        %2741 = vmatprep.subr.mxu0 0.0
        %2742 = vmatpush1.msra.mxu0 0.0
        %2743 = vmatprep.mubr.f32.mxu0 0.0
        %v2744 = vand.u32 %v2249, 4294901760
        %2745 = vmatmul.mubr.f32.gmra.mrb[0].mxu0 %v2744
        %v2746 = vpop.f32.mrb[0].mxu0
        %v2747 = vadd.f32 %v2668, %v2746
        %v2748 = vpop.f32.mrb[0].mxu0
        %2749 = vmatprep.mubr.f32.mxu0 0.0
        %v2750 = vand.u32 %v2252, 4294901760
        %2751 = vmatmul.mubr.f32.gmra.mrb[0].mxu0 %v2750
        %v2752 = vpop.f32.mrb[0].mxu0
        %v2753 = vadd.f32 %v2674, %v2752
        %v2754 = vpop.f32.mrb[0].mxu0
        %2755 = vdwg.mxu0
        %v2756 = vadd.f32 %v1213, %v2747
        %v2757 = vadd.f32 %v1219, %v2753
        %v2758 = vld [vmem:[#allocation2 + $0xa] sm:$0xff]
        %v2759 = vld [vmem:[#allocation2 + $0x12] sm:$0xff]
        %s2760 = scalar_lea.vmem %s0, 80
        %v2761 = vld [vmem:[%s2760] sm:$0xff]
        %v2762 = vld [vmem:[%s2760 + $0x8] sm:$0xff]
        %v2764 = vsel %vm155, %v2758, 0
        %v2767 = vsel %vm155, %v2759, 0
        %2769 = vmatprep.subr.mxu0 0.0
        %v2770 = vand.u32 %v2761, 4294901760
        %2771 = vmatpush1.msra.mxu0 %v2770
        %2772 = vmatprep.subr.mxu0 0.0
        %v2773 = vand.u32 %v2762, 4294901760
        %2774 = vmatpush1.msra.mxu0 %v2773
        %2775 = vmatprep.subr.mxu0 0.0
        %2776 = vmatpush1.msra.mxu0 0.0
        %2777 = vmatprep.subr.mxu0 0.0
        %2778 = vmatpush1.msra.mxu0 0.0
        %2779 = vmatprep.subr.mxu0 0.0
        %2780 = vmatpush1.msra.mxu0 0.0
        %2781 = vmatprep.subr.mxu0 0.0
        %2782 = vmatpush1.msra.mxu0 0.0
        %2783 = vmatprep.subr.mxu0 0.0
        %2784 = vmatpush1.msra.mxu0 0.0
        %2785 = vmatprep.subr.mxu0 0.0
        %2786 = vmatpush1.msra.mxu0 0.0
        %2787 = vmatprep.subr.mxu0 0.0
        %2788 = vmatpush1.msra.mxu0 0.0
        %2789 = vmatprep.subr.mxu0 0.0
        %2790 = vmatpush1.msra.mxu0 0.0
        %2791 = vmatprep.subr.mxu0 0.0
        %2792 = vmatpush1.msra.mxu0 0.0
        %2793 = vmatprep.subr.mxu0 0.0
        %2794 = vmatpush1.msra.mxu0 0.0
        %2795 = vmatprep.subr.mxu0 0.0
        %2796 = vmatpush1.msra.mxu0 0.0
        %2797 = vmatprep.subr.mxu0 0.0
        %2798 = vmatpush1.msra.mxu0 0.0
        %2799 = vmatprep.subr.mxu0 0.0
        %2800 = vmatpush1.msra.mxu0 0.0
        %2801 = vmatprep.subr.mxu0 0.0
        %2802 = vmatpush1.msra.mxu0 0.0
        %2803 = vmatprep.subr.mxu0 0.0
        %2804 = vmatpush1.msra.mxu0 0.0
        %2805 = vmatprep.subr.mxu0 0.0
        %2806 = vmatpush1.msra.mxu0 0.0
        %2807 = vmatprep.subr.mxu0 0.0
        %2808 = vmatpush1.msra.mxu0 0.0
        %2809 = vmatprep.subr.mxu0 0.0
        %2810 = vmatpush1.msra.mxu0 0.0
        %2811 = vmatprep.subr.mxu0 0.0
        %2812 = vmatpush1.msra.mxu0 0.0
        %2813 = vmatprep.subr.mxu0 0.0
        %2814 = vmatpush1.msra.mxu0 0.0
        %2815 = vmatprep.subr.mxu0 0.0
        %2816 = vmatpush1.msra.mxu0 0.0
        %2817 = vmatprep.subr.mxu0 0.0
        %2818 = vmatpush1.msra.mxu0 0.0
        %2819 = vmatprep.subr.mxu0 0.0
        %2820 = vmatpush1.msra.mxu0 0.0
        %2821 = vmatprep.subr.mxu0 0.0
        %2822 = vmatpush1.msra.mxu0 0.0
        %2823 = vmatprep.subr.mxu0 0.0
        %2824 = vmatpush1.msra.mxu0 0.0
        %2825 = vmatprep.subr.mxu0 0.0
        %2826 = vmatpush1.msra.mxu0 0.0
        %2827 = vmatprep.subr.mxu0 0.0
        %2828 = vmatpush1.msra.mxu0 0.0
        %2829 = vmatprep.subr.mxu0 0.0
        %2830 = vmatpush1.msra.mxu0 0.0
        %2831 = vmatprep.subr.mxu0 0.0
        %2832 = vmatpush1.msra.mxu0 0.0
        %2833 = vmatprep.subr.mxu0 0.0
        %2834 = vmatpush1.msra.mxu0 0.0
        %2835 = vmatprep.mubr.f32.mxu0 0.0
        %v2836 = vand.u32 %v2764, 4294901760
        %v2837 = vsub.f32 %v2764, %v2836
        %v2838 = vand.u32 %v2837, 4294901760
        %v2839 = vsub.f32 %v2837, %v2838
        %v2840 = vand.u32 %v2839, 4294901760
        %2841 = vmatmul.mubr.f32.gmra.mrb[0].mxu0 %v2840
        %v2842 = vpop.f32.mrb[0].mxu0
        %v2843 = vadd.f32 0.0, %v2842
        %v2844 = vpop.f32.mrb[0].mxu0
        %2845 = vmatprep.mubr.f32.mxu0 0.0
        %v2846 = vand.u32 %v2767, 4294901760
        %v2847 = vsub.f32 %v2767, %v2846
        %v2848 = vand.u32 %v2847, 4294901760
        %v2849 = vsub.f32 %v2847, %v2848
        %v2850 = vand.u32 %v2849, 4294901760
        %2851 = vmatmul.mubr.f32.gmra.mrb[0].mxu0 %v2850
        %v2852 = vpop.f32.mrb[0].mxu0
        %v2853 = vadd.f32 0.0, %v2852
        %v2854 = vpop.f32.mrb[0].mxu0
        %2855 = vdwg.mxu0
        %2856 = vmatprep.subr.mxu0 0.0
        %v2857 = vand.u32 %v2761, 4294901760
        %v2858 = vsub.f32 %v2761, %v2857
        %v2859 = vand.u32 %v2858, 4294901760
        %v2860 = vsub.f32 %v2858, %v2859
        %v2861 = vand.u32 %v2860, 4294901760
        %2862 = vmatpush1.msra.mxu0 %v2861
        %2863 = vmatprep.subr.mxu0 0.0
        %v2864 = vand.u32 %v2762, 4294901760
        %v2865 = vsub.f32 %v2762, %v2864
        %v2866 = vand.u32 %v2865, 4294901760
        %v2867 = vsub.f32 %v2865, %v2866
        %v2868 = vand.u32 %v2867, 4294901760
        %2869 = vmatpush1.msra.mxu0 %v2868
        %2870 = vmatprep.subr.mxu0 0.0
        %2871 = vmatpush1.msra.mxu0 0.0
        %2872 = vmatprep.subr.mxu0 0.0
        %2873 = vmatpush1.msra.mxu0 0.0
        %2874 = vmatprep.subr.mxu0 0.0
        %2875 = vmatpush1.msra.mxu0 0.0
        %2876 = vmatprep.subr.mxu0 0.0
        %2877 = vmatpush1.msra.mxu0 0.0
        %2878 = vmatprep.subr.mxu0 0.0
        %2879 = vmatpush1.msra.mxu0 0.0
        %2880 = vmatprep.subr.mxu0 0.0
        %2881 = vmatpush1.msra.mxu0 0.0
        %2882 = vmatprep.subr.mxu0 0.0
        %2883 = vmatpush1.msra.mxu0 0.0
        %2884 = vmatprep.subr.mxu0 0.0
        %2885 = vmatpush1.msra.mxu0 0.0
        %2886 = vmatprep.subr.mxu0 0.0
        %2887 = vmatpush1.msra.mxu0 0.0
        %2888 = vmatprep.subr.mxu0 0.0
        %2889 = vmatpush1.msra.mxu0 0.0
        %2890 = vmatprep.subr.mxu0 0.0
        %2891 = vmatpush1.msra.mxu0 0.0
        %2892 = vmatprep.subr.mxu0 0.0
        %2893 = vmatpush1.msra.mxu0 0.0
        %2894 = vmatprep.subr.mxu0 0.0
        %2895 = vmatpush1.msra.mxu0 0.0
        %2896 = vmatprep.subr.mxu0 0.0
        %2897 = vmatpush1.msra.mxu0 0.0
        %2898 = vmatprep.subr.mxu0 0.0
        %2899 = vmatpush1.msra.mxu0 0.0
        %2900 = vmatprep.subr.mxu0 0.0
        %2901 = vmatpush1.msra.mxu0 0.0
        %2902 = vmatprep.subr.mxu0 0.0
        %2903 = vmatpush1.msra.mxu0 0.0
        %2904 = vmatprep.subr.mxu0 0.0
        %2905 = vmatpush1.msra.mxu0 0.0
        %2906 = vmatprep.subr.mxu0 0.0
        %2907 = vmatpush1.msra.mxu0 0.0
        %2908 = vmatprep.subr.mxu0 0.0
        %2909 = vmatpush1.msra.mxu0 0.0
        %2910 = vmatprep.subr.mxu0 0.0
        %2911 = vmatpush1.msra.mxu0 0.0
        %2912 = vmatprep.subr.mxu0 0.0
        %2913 = vmatpush1.msra.mxu0 0.0
        %2914 = vmatprep.subr.mxu0 0.0
        %2915 = vmatpush1.msra.mxu0 0.0
        %2916 = vmatprep.subr.mxu0 0.0
        %2917 = vmatpush1.msra.mxu0 0.0
        %2918 = vmatprep.subr.mxu0 0.0
        %2919 = vmatpush1.msra.mxu0 0.0
        %2920 = vmatprep.subr.mxu0 0.0
        %2921 = vmatpush1.msra.mxu0 0.0
        %2922 = vmatprep.subr.mxu0 0.0
        %2923 = vmatpush1.msra.mxu0 0.0
        %2924 = vmatprep.subr.mxu0 0.0
        %2925 = vmatpush1.msra.mxu0 0.0
        %2926 = vmatprep.subr.mxu0 0.0
        %2927 = vmatpush1.msra.mxu0 0.0
        %2928 = vmatprep.subr.mxu0 0.0
        %2929 = vmatpush1.msra.mxu0 0.0
        %2930 = vmatprep.mubr.f32.mxu0 0.0
        %v2931 = vand.u32 %v2764, 4294901760
        %2932 = vmatmul.mubr.f32.gmra.mrb[0].mxu0 %v2931
        %v2933 = vpop.f32.mrb[0].mxu0
        %v2934 = vadd.f32 %v2843, %v2933
        %v2935 = vpop.f32.mrb[0].mxu0
        %2936 = vmatprep.mubr.f32.mxu0 0.0
        %v2937 = vand.u32 %v2767, 4294901760
        %2938 = vmatmul.mubr.f32.gmra.mrb[0].mxu0 %v2937
        %v2939 = vpop.f32.mrb[0].mxu0
        %v2940 = vadd.f32 %v2853, %v2939
        %v2941 = vpop.f32.mrb[0].mxu0
        %2942 = vdwg.mxu0
        %2943 = vmatprep.subr.mxu0 0.0
        %v2944 = vand.u32 %v2761, 4294901760
        %v2945 = vsub.f32 %v2761, %v2944
        %2946 = vmatpush1.msra.mxu0 %v2945
        %2947 = vmatprep.subr.mxu0 0.0
        %v2948 = vand.u32 %v2762, 4294901760
        %v2949 = vsub.f32 %v2762, %v2948
        %2950 = vmatpush1.msra.mxu0 %v2949
        %2951 = vmatprep.subr.mxu0 0.0
        %2952 = vmatpush1.msra.mxu0 0.0
        %2953 = vmatprep.subr.mxu0 0.0
        %2954 = vmatpush1.msra.mxu0 0.0
        %2955 = vmatprep.subr.mxu0 0.0
        %2956 = vmatpush1.msra.mxu0 0.0
        %2957 = vmatprep.subr.mxu0 0.0
        %2958 = vmatpush1.msra.mxu0 0.0
        %2959 = vmatprep.subr.mxu0 0.0
        %2960 = vmatpush1.msra.mxu0 0.0
        %2961 = vmatprep.subr.mxu0 0.0
        %2962 = vmatpush1.msra.mxu0 0.0
        %2963 = vmatprep.subr.mxu0 0.0
        %2964 = vmatpush1.msra.mxu0 0.0
        %2965 = vmatprep.subr.mxu0 0.0
        %2966 = vmatpush1.msra.mxu0 0.0
        %2967 = vmatprep.subr.mxu0 0.0
        %2968 = vmatpush1.msra.mxu0 0.0
        %2969 = vmatprep.subr.mxu0 0.0
        %2970 = vmatpush1.msra.mxu0 0.0
        %2971 = vmatprep.subr.mxu0 0.0
        %2972 = vmatpush1.msra.mxu0 0.0
        %2973 = vmatprep.subr.mxu0 0.0
        %2974 = vmatpush1.msra.mxu0 0.0
        %2975 = vmatprep.subr.mxu0 0.0
        %2976 = vmatpush1.msra.mxu0 0.0
        %2977 = vmatprep.subr.mxu0 0.0
        %2978 = vmatpush1.msra.mxu0 0.0
        %2979 = vmatprep.subr.mxu0 0.0
        %2980 = vmatpush1.msra.mxu0 0.0
        %2981 = vmatprep.subr.mxu0 0.0
        %2982 = vmatpush1.msra.mxu0 0.0
        %2983 = vmatprep.subr.mxu0 0.0
        %2984 = vmatpush1.msra.mxu0 0.0
        %2985 = vmatprep.subr.mxu0 0.0
        %2986 = vmatpush1.msra.mxu0 0.0
        %2987 = vmatprep.subr.mxu0 0.0
        %2988 = vmatpush1.msra.mxu0 0.0
        %2989 = vmatprep.subr.mxu0 0.0
        %2990 = vmatpush1.msra.mxu0 0.0
        %2991 = vmatprep.subr.mxu0 0.0
        %2992 = vmatpush1.msra.mxu0 0.0
        %2993 = vmatprep.subr.mxu0 0.0
        %2994 = vmatpush1.msra.mxu0 0.0
        %2995 = vmatprep.subr.mxu0 0.0
        %2996 = vmatpush1.msra.mxu0 0.0
        %2997 = vmatprep.subr.mxu0 0.0
        %2998 = vmatpush1.msra.mxu0 0.0
        %2999 = vmatprep.subr.mxu0 0.0
        %3000 = vmatpush1.msra.mxu0 0.0
        %3001 = vmatprep.subr.mxu0 0.0
        %3002 = vmatpush1.msra.mxu0 0.0
        %3003 = vmatprep.subr.mxu0 0.0
        %3004 = vmatpush1.msra.mxu0 0.0
        %3005 = vmatprep.subr.mxu0 0.0
        %3006 = vmatpush1.msra.mxu0 0.0
        %3007 = vmatprep.subr.mxu0 0.0
        %3008 = vmatpush1.msra.mxu0 0.0
        %3009 = vmatprep.subr.mxu0 0.0
        %3010 = vmatpush1.msra.mxu0 0.0
        %3011 = vmatprep.mubr.f32.mxu0 0.0
        %v3012 = vand.u32 %v2764, 4294901760
        %v3013 = vsub.f32 %v2764, %v3012
        %3014 = vmatmul.mubr.f32.gmra.mrb[0].mxu0 %v3013
        %v3015 = vpop.f32.mrb[0].mxu0
        %v3016 = vadd.f32 %v2934, %v3015
        %v3017 = vpop.f32.mrb[0].mxu0
        %3018 = vmatprep.mubr.f32.mxu0 0.0
        %v3019 = vand.u32 %v2767, 4294901760
        %v3020 = vsub.f32 %v2767, %v3019
        %3021 = vmatmul.mubr.f32.gmra.mrb[0].mxu0 %v3020
        %v3022 = vpop.f32.mrb[0].mxu0
        %v3023 = vadd.f32 %v2940, %v3022
        %v3024 = vpop.f32.mrb[0].mxu0
        %3025 = vdwg.mxu0
        %3026 = vmatprep.subr.mxu0 0.0
        %v3027 = vand.u32 %v2761, 4294901760
        %3028 = vmatpush1.msra.mxu0 %v3027
        %3029 = vmatprep.subr.mxu0 0.0
        %v3030 = vand.u32 %v2762, 4294901760
        %3031 = vmatpush1.msra.mxu0 %v3030
        %3032 = vmatprep.subr.mxu0 0.0
        %3033 = vmatpush1.msra.mxu0 0.0
        %3034 = vmatprep.subr.mxu0 0.0
        %3035 = vmatpush1.msra.mxu0 0.0
        %3036 = vmatprep.subr.mxu0 0.0
        %3037 = vmatpush1.msra.mxu0 0.0
        %3038 = vmatprep.subr.mxu0 0.0
        %3039 = vmatpush1.msra.mxu0 0.0
        %3040 = vmatprep.subr.mxu0 0.0
        %3041 = vmatpush1.msra.mxu0 0.0
        %3042 = vmatprep.subr.mxu0 0.0
        %3043 = vmatpush1.msra.mxu0 0.0
        %3044 = vmatprep.subr.mxu0 0.0
        %3045 = vmatpush1.msra.mxu0 0.0
        %3046 = vmatprep.subr.mxu0 0.0
        %3047 = vmatpush1.msra.mxu0 0.0
        %3048 = vmatprep.subr.mxu0 0.0
        %3049 = vmatpush1.msra.mxu0 0.0
        %3050 = vmatprep.subr.mxu0 0.0
        %3051 = vmatpush1.msra.mxu0 0.0
        %3052 = vmatprep.subr.mxu0 0.0
        %3053 = vmatpush1.msra.mxu0 0.0
        %3054 = vmatprep.subr.mxu0 0.0
        %3055 = vmatpush1.msra.mxu0 0.0
        %3056 = vmatprep.subr.mxu0 0.0
        %3057 = vmatpush1.msra.mxu0 0.0
        %3058 = vmatprep.subr.mxu0 0.0
        %3059 = vmatpush1.msra.mxu0 0.0
        %3060 = vmatprep.subr.mxu0 0.0
        %3061 = vmatpush1.msra.mxu0 0.0
        %3062 = vmatprep.subr.mxu0 0.0
        %3063 = vmatpush1.msra.mxu0 0.0
        %3064 = vmatprep.subr.mxu0 0.0
        %3065 = vmatpush1.msra.mxu0 0.0
        %3066 = vmatprep.subr.mxu0 0.0
        %3067 = vmatpush1.msra.mxu0 0.0
        %3068 = vmatprep.subr.mxu0 0.0
        %3069 = vmatpush1.msra.mxu0 0.0
        %3070 = vmatprep.subr.mxu0 0.0
        %3071 = vmatpush1.msra.mxu0 0.0
        %3072 = vmatprep.subr.mxu0 0.0
        %3073 = vmatpush1.msra.mxu0 0.0
        %3074 = vmatprep.subr.mxu0 0.0
        %3075 = vmatpush1.msra.mxu0 0.0
        %3076 = vmatprep.subr.mxu0 0.0
        %3077 = vmatpush1.msra.mxu0 0.0
        %3078 = vmatprep.subr.mxu0 0.0
        %3079 = vmatpush1.msra.mxu0 0.0
        %3080 = vmatprep.subr.mxu0 0.0
        %3081 = vmatpush1.msra.mxu0 0.0
        %3082 = vmatprep.subr.mxu0 0.0
        %3083 = vmatpush1.msra.mxu0 0.0
        %3084 = vmatprep.subr.mxu0 0.0
        %3085 = vmatpush1.msra.mxu0 0.0
        %3086 = vmatprep.subr.mxu0 0.0
        %3087 = vmatpush1.msra.mxu0 0.0
        %3088 = vmatprep.subr.mxu0 0.0
        %3089 = vmatpush1.msra.mxu0 0.0
        %3090 = vmatprep.subr.mxu0 0.0
        %3091 = vmatpush1.msra.mxu0 0.0
        %3092 = vmatprep.mubr.f32.mxu0 0.0
        %v3093 = vand.u32 %v2764, 4294901760
        %v3094 = vsub.f32 %v2764, %v3093
        %v3095 = vand.u32 %v3094, 4294901760
        %3096 = vmatmul.mubr.f32.gmra.mrb[0].mxu0 %v3095
        %v3097 = vpop.f32.mrb[0].mxu0
        %v3098 = vadd.f32 %v3016, %v3097
        %v3099 = vpop.f32.mrb[0].mxu0
        %3100 = vmatprep.mubr.f32.mxu0 0.0
        %v3101 = vand.u32 %v2767, 4294901760
        %v3102 = vsub.f32 %v2767, %v3101
        %v3103 = vand.u32 %v3102, 4294901760
        %3104 = vmatmul.mubr.f32.gmra.mrb[0].mxu0 %v3103
        %v3105 = vpop.f32.mrb[0].mxu0
        %v3106 = vadd.f32 %v3023, %v3105
        %v3107 = vpop.f32.mrb[0].mxu0
        %3108 = vdwg.mxu0
        %3109 = vmatprep.subr.mxu0 0.0
        %v3110 = vand.u32 %v2761, 4294901760
        %v3111 = vsub.f32 %v2761, %v3110
        %v3112 = vand.u32 %v3111, 4294901760
        %3113 = vmatpush1.msra.mxu0 %v3112
        %3114 = vmatprep.subr.mxu0 0.0
        %v3115 = vand.u32 %v2762, 4294901760
        %v3116 = vsub.f32 %v2762, %v3115
        %v3117 = vand.u32 %v3116, 4294901760
        %3118 = vmatpush1.msra.mxu0 %v3117
        %3119 = vmatprep.subr.mxu0 0.0
        %3120 = vmatpush1.msra.mxu0 0.0
        %3121 = vmatprep.subr.mxu0 0.0
        %3122 = vmatpush1.msra.mxu0 0.0
        %3123 = vmatprep.subr.mxu0 0.0
        %3124 = vmatpush1.msra.mxu0 0.0
        %3125 = vmatprep.subr.mxu0 0.0
        %3126 = vmatpush1.msra.mxu0 0.0
        %3127 = vmatprep.subr.mxu0 0.0
        %3128 = vmatpush1.msra.mxu0 0.0
        %3129 = vmatprep.subr.mxu0 0.0
        %3130 = vmatpush1.msra.mxu0 0.0
        %3131 = vmatprep.subr.mxu0 0.0
        %3132 = vmatpush1.msra.mxu0 0.0
        %3133 = vmatprep.subr.mxu0 0.0
        %3134 = vmatpush1.msra.mxu0 0.0
        %3135 = vmatprep.subr.mxu0 0.0
        %3136 = vmatpush1.msra.mxu0 0.0
        %3137 = vmatprep.subr.mxu0 0.0
        %3138 = vmatpush1.msra.mxu0 0.0
        %3139 = vmatprep.subr.mxu0 0.0
        %3140 = vmatpush1.msra.mxu0 0.0
        %3141 = vmatprep.subr.mxu0 0.0
        %3142 = vmatpush1.msra.mxu0 0.0
        %3143 = vmatprep.subr.mxu0 0.0
        %3144 = vmatpush1.msra.mxu0 0.0
        %3145 = vmatprep.subr.mxu0 0.0
        %3146 = vmatpush1.msra.mxu0 0.0
        %3147 = vmatprep.subr.mxu0 0.0
        %3148 = vmatpush1.msra.mxu0 0.0
        %3149 = vmatprep.subr.mxu0 0.0
        %3150 = vmatpush1.msra.mxu0 0.0
        %3151 = vmatprep.subr.mxu0 0.0
        %3152 = vmatpush1.msra.mxu0 0.0
        %3153 = vmatprep.subr.mxu0 0.0
        %3154 = vmatpush1.msra.mxu0 0.0
        %3155 = vmatprep.subr.mxu0 0.0
        %3156 = vmatpush1.msra.mxu0 0.0
        %3157 = vmatprep.subr.mxu0 0.0
        %3158 = vmatpush1.msra.mxu0 0.0
        %3159 = vmatprep.subr.mxu0 0.0
        %3160 = vmatpush1.msra.mxu0 0.0
        %3161 = vmatprep.subr.mxu0 0.0
        %3162 = vmatpush1.msra.mxu0 0.0
        %3163 = vmatprep.subr.mxu0 0.0
        %3164 = vmatpush1.msra.mxu0 0.0
        %3165 = vmatprep.subr.mxu0 0.0
        %3166 = vmatpush1.msra.mxu0 0.0
        %3167 = vmatprep.subr.mxu0 0.0
        %3168 = vmatpush1.msra.mxu0 0.0
        %3169 = vmatprep.subr.mxu0 0.0
        %3170 = vmatpush1.msra.mxu0 0.0
        %3171 = vmatprep.subr.mxu0 0.0
        %3172 = vmatpush1.msra.mxu0 0.0
        %3173 = vmatprep.subr.mxu0 0.0
        %3174 = vmatpush1.msra.mxu0 0.0
        %3175 = vmatprep.subr.mxu0 0.0
        %3176 = vmatpush1.msra.mxu0 0.0
        %3177 = vmatprep.subr.mxu0 0.0
        %3178 = vmatpush1.msra.mxu0 0.0
        %3179 = vmatprep.mubr.f32.mxu0 0.0
        %v3180 = vand.u32 %v2764, 4294901760
        %3181 = vmatmul.mubr.f32.gmra.mrb[0].mxu0 %v3180
        %v3182 = vpop.f32.mrb[0].mxu0
        %v3183 = vadd.f32 %v3098, %v3182
        %v3184 = vpop.f32.mrb[0].mxu0
        %3185 = vmatprep.mubr.f32.mxu0 0.0
        %v3186 = vand.u32 %v2767, 4294901760
        %3187 = vmatmul.mubr.f32.gmra.mrb[0].mxu0 %v3186
        %v3188 = vpop.f32.mrb[0].mxu0
        %v3189 = vadd.f32 %v3106, %v3188
        %v3190 = vpop.f32.mrb[0].mxu0
        %3191 = vdwg.mxu0
        %3192 = vmatprep.subr.mxu0 0.0
        %v3193 = vand.u32 %v2761, 4294901760
        %3194 = vmatpush1.msra.mxu0 %v3193
        %3195 = vmatprep.subr.mxu0 0.0
        %v3196 = vand.u32 %v2762, 4294901760
        %3197 = vmatpush1.msra.mxu0 %v3196
        %3198 = vmatprep.subr.mxu0 0.0
        %3199 = vmatpush1.msra.mxu0 0.0
        %3200 = vmatprep.subr.mxu0 0.0
        %3201 = vmatpush1.msra.mxu0 0.0
        %3202 = vmatprep.subr.mxu0 0.0
        %3203 = vmatpush1.msra.mxu0 0.0
        %3204 = vmatprep.subr.mxu0 0.0
        %3205 = vmatpush1.msra.mxu0 0.0
        %3206 = vmatprep.subr.mxu0 0.0
        %3207 = vmatpush1.msra.mxu0 0.0
        %3208 = vmatprep.subr.mxu0 0.0
        %3209 = vmatpush1.msra.mxu0 0.0
        %3210 = vmatprep.subr.mxu0 0.0
        %3211 = vmatpush1.msra.mxu0 0.0
        %3212 = vmatprep.subr.mxu0 0.0
        %3213 = vmatpush1.msra.mxu0 0.0
        %3214 = vmatprep.subr.mxu0 0.0
        %3215 = vmatpush1.msra.mxu0 0.0
        %3216 = vmatprep.subr.mxu0 0.0
        %3217 = vmatpush1.msra.mxu0 0.0
        %3218 = vmatprep.subr.mxu0 0.0
        %3219 = vmatpush1.msra.mxu0 0.0
        %3220 = vmatprep.subr.mxu0 0.0
        %3221 = vmatpush1.msra.mxu0 0.0
        %3222 = vmatprep.subr.mxu0 0.0
        %3223 = vmatpush1.msra.mxu0 0.0
        %3224 = vmatprep.subr.mxu0 0.0
        %3225 = vmatpush1.msra.mxu0 0.0
        %3226 = vmatprep.subr.mxu0 0.0
        %3227 = vmatpush1.msra.mxu0 0.0
        %3228 = vmatprep.subr.mxu0 0.0
        %3229 = vmatpush1.msra.mxu0 0.0
        %3230 = vmatprep.subr.mxu0 0.0
        %3231 = vmatpush1.msra.mxu0 0.0
        %3232 = vmatprep.subr.mxu0 0.0
        %3233 = vmatpush1.msra.mxu0 0.0
        %3234 = vmatprep.subr.mxu0 0.0
        %3235 = vmatpush1.msra.mxu0 0.0
        %3236 = vmatprep.subr.mxu0 0.0
        %3237 = vmatpush1.msra.mxu0 0.0
        %3238 = vmatprep.subr.mxu0 0.0
        %3239 = vmatpush1.msra.mxu0 0.0
        %3240 = vmatprep.subr.mxu0 0.0
        %3241 = vmatpush1.msra.mxu0 0.0
        %3242 = vmatprep.subr.mxu0 0.0
        %3243 = vmatpush1.msra.mxu0 0.0
        %3244 = vmatprep.subr.mxu0 0.0
        %3245 = vmatpush1.msra.mxu0 0.0
        %3246 = vmatprep.subr.mxu0 0.0
        %3247 = vmatpush1.msra.mxu0 0.0
        %3248 = vmatprep.subr.mxu0 0.0
        %3249 = vmatpush1.msra.mxu0 0.0
        %3250 = vmatprep.subr.mxu0 0.0
        %3251 = vmatpush1.msra.mxu0 0.0
        %3252 = vmatprep.subr.mxu0 0.0
        %3253 = vmatpush1.msra.mxu0 0.0
        %3254 = vmatprep.subr.mxu0 0.0
        %3255 = vmatpush1.msra.mxu0 0.0
        %3256 = vmatprep.subr.mxu0 0.0
        %3257 = vmatpush1.msra.mxu0 0.0
        %3258 = vmatprep.mubr.f32.mxu0 0.0
        %v3259 = vand.u32 %v2764, 4294901760
        %3260 = vmatmul.mubr.f32.gmra.mrb[0].mxu0 %v3259
        %v3261 = vpop.f32.mrb[0].mxu0
        %v3262 = vadd.f32 %v3183, %v3261
        %v3263 = vpop.f32.mrb[0].mxu0
        %3264 = vmatprep.mubr.f32.mxu0 0.0
        %v3265 = vand.u32 %v2767, 4294901760
        %3266 = vmatmul.mubr.f32.gmra.mrb[0].mxu0 %v3265
        %v3267 = vpop.f32.mrb[0].mxu0
        %v3268 = vadd.f32 %v3189, %v3267
        %v3269 = vpop.f32.mrb[0].mxu0
        %3270 = vdwg.mxu0
        %v3271 = vadd.f32 %v2234, %v3262
        %v3272 = vadd.f32 %v2240, %v3268
        %v3273 = vld [vmem:[#allocation2 + $0xb] sm:$0xff]
        %v3274 = vld [vmem:[#allocation2 + $0x13] sm:$0xff]
        %s3275 = scalar_lea.vmem %s0, 96
        %v3276 = vld [vmem:[%s3275] sm:$0xff]
        %v3277 = vld [vmem:[%s3275 + $0x8] sm:$0xff]
        %v3279 = vsel %vm155, %v3273, 0
        %v3282 = vsel %vm155, %v3274, 0
        %3284 = vmatprep.subr.mxu0 0.0
        %v3285 = vand.u32 %v3276, 4294901760
        %3286 = vmatpush1.msra.mxu0 %v3285
        %3287 = vmatprep.subr.mxu0 0.0
        %v3288 = vand.u32 %v3277, 4294901760
        %3289 = vmatpush1.msra.mxu0 %v3288
        %3290 = vmatprep.subr.mxu0 0.0
        %3291 = vmatpush1.msra.mxu0 0.0
        %3292 = vmatprep.subr.mxu0 0.0
        %3293 = vmatpush1.msra.mxu0 0.0
        %3294 = vmatprep.subr.mxu0 0.0
        %3295 = vmatpush1.msra.mxu0 0.0
        %3296 = vmatprep.subr.mxu0 0.0
        %3297 = vmatpush1.msra.mxu0 0.0
        %3298 = vmatprep.subr.mxu0 0.0
        %3299 = vmatpush1.msra.mxu0 0.0
        %3300 = vmatprep.subr.mxu0 0.0
        %3301 = vmatpush1.msra.mxu0 0.0
        %3302 = vmatprep.subr.mxu0 0.0
        %3303 = vmatpush1.msra.mxu0 0.0
        %3304 = vmatprep.subr.mxu0 0.0
        %3305 = vmatpush1.msra.mxu0 0.0
        %3306 = vmatprep.subr.mxu0 0.0
        %3307 = vmatpush1.msra.mxu0 0.0
        %3308 = vmatprep.subr.mxu0 0.0
        %3309 = vmatpush1.msra.mxu0 0.0
        %3310 = vmatprep.subr.mxu0 0.0
        %3311 = vmatpush1.msra.mxu0 0.0
        %3312 = vmatprep.subr.mxu0 0.0
        %3313 = vmatpush1.msra.mxu0 0.0
        %3314 = vmatprep.subr.mxu0 0.0
        %3315 = vmatpush1.msra.mxu0 0.0
        %3316 = vmatprep.subr.mxu0 0.0
        %3317 = vmatpush1.msra.mxu0 0.0
        %3318 = vmatprep.subr.mxu0 0.0
        %3319 = vmatpush1.msra.mxu0 0.0
        %3320 = vmatprep.subr.mxu0 0.0
        %3321 = vmatpush1.msra.mxu0 0.0
        %3322 = vmatprep.subr.mxu0 0.0
        %3323 = vmatpush1.msra.mxu0 0.0
        %3324 = vmatprep.subr.mxu0 0.0
        %3325 = vmatpush1.msra.mxu0 0.0
        %3326 = vmatprep.subr.mxu0 0.0
        %3327 = vmatpush1.msra.mxu0 0.0
        %3328 = vmatprep.subr.mxu0 0.0
        %3329 = vmatpush1.msra.mxu0 0.0
        %3330 = vmatprep.subr.mxu0 0.0
        %3331 = vmatpush1.msra.mxu0 0.0
        %3332 = vmatprep.subr.mxu0 0.0
        %3333 = vmatpush1.msra.mxu0 0.0
        %3334 = vmatprep.subr.mxu0 0.0
        %3335 = vmatpush1.msra.mxu0 0.0
        %3336 = vmatprep.subr.mxu0 0.0
        %3337 = vmatpush1.msra.mxu0 0.0
        %3338 = vmatprep.subr.mxu0 0.0
        %3339 = vmatpush1.msra.mxu0 0.0
        %3340 = vmatprep.subr.mxu0 0.0
        %3341 = vmatpush1.msra.mxu0 0.0
        %3342 = vmatprep.subr.mxu0 0.0
        %3343 = vmatpush1.msra.mxu0 0.0
        %3344 = vmatprep.subr.mxu0 0.0
        %3345 = vmatpush1.msra.mxu0 0.0
        %3346 = vmatprep.subr.mxu0 0.0
        %3347 = vmatpush1.msra.mxu0 0.0
        %3348 = vmatprep.subr.mxu0 0.0
        %3349 = vmatpush1.msra.mxu0 0.0
        %3350 = vmatprep.mubr.f32.mxu0 0.0
        %v3351 = vand.u32 %v3279, 4294901760
        %v3352 = vsub.f32 %v3279, %v3351
        %v3353 = vand.u32 %v3352, 4294901760
        %v3354 = vsub.f32 %v3352, %v3353
        %v3355 = vand.u32 %v3354, 4294901760
        %3356 = vmatmul.mubr.f32.gmra.mrb[0].mxu0 %v3355
        %v3357 = vpop.f32.mrb[0].mxu0
        %v3358 = vadd.f32 0.0, %v3357
        %v3359 = vpop.f32.mrb[0].mxu0
        %3360 = vmatprep.mubr.f32.mxu0 0.0
        %v3361 = vand.u32 %v3282, 4294901760
        %v3362 = vsub.f32 %v3282, %v3361
        %v3363 = vand.u32 %v3362, 4294901760
        %v3364 = vsub.f32 %v3362, %v3363
        %v3365 = vand.u32 %v3364, 4294901760
        %3366 = vmatmul.mubr.f32.gmra.mrb[0].mxu0 %v3365
        %v3367 = vpop.f32.mrb[0].mxu0
        %v3368 = vadd.f32 0.0, %v3367
        %v3369 = vpop.f32.mrb[0].mxu0
        %3370 = vdwg.mxu0
        %3371 = vmatprep.subr.mxu0 0.0
        %v3372 = vand.u32 %v3276, 4294901760
        %v3373 = vsub.f32 %v3276, %v3372
        %v3374 = vand.u32 %v3373, 4294901760
        %v3375 = vsub.f32 %v3373, %v3374
        %v3376 = vand.u32 %v3375, 4294901760
        %3377 = vmatpush1.msra.mxu0 %v3376
        %3378 = vmatprep.subr.mxu0 0.0
        %v3379 = vand.u32 %v3277, 4294901760
        %v3380 = vsub.f32 %v3277, %v3379
        %v3381 = vand.u32 %v3380, 4294901760
        %v3382 = vsub.f32 %v3380, %v3381
        %v3383 = vand.u32 %v3382, 4294901760
        %3384 = vmatpush1.msra.mxu0 %v3383
        %3385 = vmatprep.subr.mxu0 0.0
        %3386 = vmatpush1.msra.mxu0 0.0
        %3387 = vmatprep.subr.mxu0 0.0
        %3388 = vmatpush1.msra.mxu0 0.0
        %3389 = vmatprep.subr.mxu0 0.0
        %3390 = vmatpush1.msra.mxu0 0.0
        %3391 = vmatprep.subr.mxu0 0.0
        %3392 = vmatpush1.msra.mxu0 0.0
        %3393 = vmatprep.subr.mxu0 0.0
        %3394 = vmatpush1.msra.mxu0 0.0
        %3395 = vmatprep.subr.mxu0 0.0
        %3396 = vmatpush1.msra.mxu0 0.0
        %3397 = vmatprep.subr.mxu0 0.0
        %3398 = vmatpush1.msra.mxu0 0.0
        %3399 = vmatprep.subr.mxu0 0.0
        %3400 = vmatpush1.msra.mxu0 0.0
        %3401 = vmatprep.subr.mxu0 0.0
        %3402 = vmatpush1.msra.mxu0 0.0
        %3403 = vmatprep.subr.mxu0 0.0
        %3404 = vmatpush1.msra.mxu0 0.0
        %3405 = vmatprep.subr.mxu0 0.0
        %3406 = vmatpush1.msra.mxu0 0.0
        %3407 = vmatprep.subr.mxu0 0.0
        %3408 = vmatpush1.msra.mxu0 0.0
        %3409 = vmatprep.subr.mxu0 0.0
        %3410 = vmatpush1.msra.mxu0 0.0
        %3411 = vmatprep.subr.mxu0 0.0
        %3412 = vmatpush1.msra.mxu0 0.0
        %3413 = vmatprep.subr.mxu0 0.0
        %3414 = vmatpush1.msra.mxu0 0.0
        %3415 = vmatprep.subr.mxu0 0.0
        %3416 = vmatpush1.msra.mxu0 0.0
        %3417 = vmatprep.subr.mxu0 0.0
        %3418 = vmatpush1.msra.mxu0 0.0
        %3419 = vmatprep.subr.mxu0 0.0
        %3420 = vmatpush1.msra.mxu0 0.0
        %3421 = vmatprep.subr.mxu0 0.0
        %3422 = vmatpush1.msra.mxu0 0.0
        %3423 = vmatprep.subr.mxu0 0.0
        %3424 = vmatpush1.msra.mxu0 0.0
        %3425 = vmatprep.subr.mxu0 0.0
        %3426 = vmatpush1.msra.mxu0 0.0
        %3427 = vmatprep.subr.mxu0 0.0
        %3428 = vmatpush1.msra.mxu0 0.0
        %3429 = vmatprep.subr.mxu0 0.0
        %3430 = vmatpush1.msra.mxu0 0.0
        %3431 = vmatprep.subr.mxu0 0.0
        %3432 = vmatpush1.msra.mxu0 0.0
        %3433 = vmatprep.subr.mxu0 0.0
        %3434 = vmatpush1.msra.mxu0 0.0
        %3435 = vmatprep.subr.mxu0 0.0
        %3436 = vmatpush1.msra.mxu0 0.0
        %3437 = vmatprep.subr.mxu0 0.0
        %3438 = vmatpush1.msra.mxu0 0.0
        %3439 = vmatprep.subr.mxu0 0.0
        %3440 = vmatpush1.msra.mxu0 0.0
        %3441 = vmatprep.subr.mxu0 0.0
        %3442 = vmatpush1.msra.mxu0 0.0
        %3443 = vmatprep.subr.mxu0 0.0
        %3444 = vmatpush1.msra.mxu0 0.0
        %3445 = vmatprep.mubr.f32.mxu0 0.0
        %v3446 = vand.u32 %v3279, 4294901760
        %3447 = vmatmul.mubr.f32.gmra.mrb[0].mxu0 %v3446
        %v3448 = vpop.f32.mrb[0].mxu0
        %v3449 = vadd.f32 %v3358, %v3448
        %v3450 = vpop.f32.mrb[0].mxu0
        %3451 = vmatprep.mubr.f32.mxu0 0.0
        %v3452 = vand.u32 %v3282, 4294901760
        %3453 = vmatmul.mubr.f32.gmra.mrb[0].mxu0 %v3452
        %v3454 = vpop.f32.mrb[0].mxu0
        %v3455 = vadd.f32 %v3368, %v3454
        %v3456 = vpop.f32.mrb[0].mxu0
        %3457 = vdwg.mxu0
        %3458 = vmatprep.subr.mxu0 0.0
        %v3459 = vand.u32 %v3276, 4294901760
        %v3460 = vsub.f32 %v3276, %v3459
        %3461 = vmatpush1.msra.mxu0 %v3460
        %3462 = vmatprep.subr.mxu0 0.0
        %v3463 = vand.u32 %v3277, 4294901760
        %v3464 = vsub.f32 %v3277, %v3463
        %3465 = vmatpush1.msra.mxu0 %v3464
        %3466 = vmatprep.subr.mxu0 0.0
        %3467 = vmatpush1.msra.mxu0 0.0
        %3468 = vmatprep.subr.mxu0 0.0
        %3469 = vmatpush1.msra.mxu0 0.0
        %3470 = vmatprep.subr.mxu0 0.0
        %3471 = vmatpush1.msra.mxu0 0.0
        %3472 = vmatprep.subr.mxu0 0.0
        %3473 = vmatpush1.msra.mxu0 0.0
        %3474 = vmatprep.subr.mxu0 0.0
        %3475 = vmatpush1.msra.mxu0 0.0
        %3476 = vmatprep.subr.mxu0 0.0
        %3477 = vmatpush1.msra.mxu0 0.0
        %3478 = vmatprep.subr.mxu0 0.0
        %3479 = vmatpush1.msra.mxu0 0.0
        %3480 = vmatprep.subr.mxu0 0.0
        %3481 = vmatpush1.msra.mxu0 0.0
        %3482 = vmatprep.subr.mxu0 0.0
        %3483 = vmatpush1.msra.mxu0 0.0
        %3484 = vmatprep.subr.mxu0 0.0
        %3485 = vmatpush1.msra.mxu0 0.0
        %3486 = vmatprep.subr.mxu0 0.0
        %3487 = vmatpush1.msra.mxu0 0.0
        %3488 = vmatprep.subr.mxu0 0.0
        %3489 = vmatpush1.msra.mxu0 0.0
        %3490 = vmatprep.subr.mxu0 0.0
        %3491 = vmatpush1.msra.mxu0 0.0
        %3492 = vmatprep.subr.mxu0 0.0
        %3493 = vmatpush1.msra.mxu0 0.0
        %3494 = vmatprep.subr.mxu0 0.0
        %3495 = vmatpush1.msra.mxu0 0.0
        %3496 = vmatprep.subr.mxu0 0.0
        %3497 = vmatpush1.msra.mxu0 0.0
        %3498 = vmatprep.subr.mxu0 0.0
        %3499 = vmatpush1.msra.mxu0 0.0
        %3500 = vmatprep.subr.mxu0 0.0
        %3501 = vmatpush1.msra.mxu0 0.0
        %3502 = vmatprep.subr.mxu0 0.0
        %3503 = vmatpush1.msra.mxu0 0.0
        %3504 = vmatprep.subr.mxu0 0.0
        %3505 = vmatpush1.msra.mxu0 0.0
        %3506 = vmatprep.subr.mxu0 0.0
        %3507 = vmatpush1.msra.mxu0 0.0
        %3508 = vmatprep.subr.mxu0 0.0
        %3509 = vmatpush1.msra.mxu0 0.0
        %3510 = vmatprep.subr.mxu0 0.0
        %3511 = vmatpush1.msra.mxu0 0.0
        %3512 = vmatprep.subr.mxu0 0.0
        %3513 = vmatpush1.msra.mxu0 0.0
        %3514 = vmatprep.subr.mxu0 0.0
        %3515 = vmatpush1.msra.mxu0 0.0
        %3516 = vmatprep.subr.mxu0 0.0
        %3517 = vmatpush1.msra.mxu0 0.0
        %3518 = vmatprep.subr.mxu0 0.0
        %3519 = vmatpush1.msra.mxu0 0.0
        %3520 = vmatprep.subr.mxu0 0.0
        %3521 = vmatpush1.msra.mxu0 0.0
        %3522 = vmatprep.subr.mxu0 0.0
        %3523 = vmatpush1.msra.mxu0 0.0
        %3524 = vmatprep.subr.mxu0 0.0
        %3525 = vmatpush1.msra.mxu0 0.0
        %3526 = vmatprep.mubr.f32.mxu0 0.0
        %v3527 = vand.u32 %v3279, 4294901760
        %v3528 = vsub.f32 %v3279, %v3527
        %3529 = vmatmul.mubr.f32.gmra.mrb[0].mxu0 %v3528
        %v3530 = vpop.f32.mrb[0].mxu0
        %v3531 = vadd.f32 %v3449, %v3530
        %v3532 = vpop.f32.mrb[0].mxu0
        %3533 = vmatprep.mubr.f32.mxu0 0.0
        %v3534 = vand.u32 %v3282, 4294901760
        %v3535 = vsub.f32 %v3282, %v3534
        %3536 = vmatmul.mubr.f32.gmra.mrb[0].mxu0 %v3535
        %v3537 = vpop.f32.mrb[0].mxu0
        %v3538 = vadd.f32 %v3455, %v3537
        %v3539 = vpop.f32.mrb[0].mxu0
        %3540 = vdwg.mxu0
        %3541 = vmatprep.subr.mxu0 0.0
        %v3542 = vand.u32 %v3276, 4294901760
        %3543 = vmatpush1.msra.mxu0 %v3542
        %3544 = vmatprep.subr.mxu0 0.0
        %v3545 = vand.u32 %v3277, 4294901760
        %3546 = vmatpush1.msra.mxu0 %v3545
        %3547 = vmatprep.subr.mxu0 0.0
        %3548 = vmatpush1.msra.mxu0 0.0
        %3549 = vmatprep.subr.mxu0 0.0
        %3550 = vmatpush1.msra.mxu0 0.0
        %3551 = vmatprep.subr.mxu0 0.0
        %3552 = vmatpush1.msra.mxu0 0.0
        %3553 = vmatprep.subr.mxu0 0.0
        %3554 = vmatpush1.msra.mxu0 0.0
        %3555 = vmatprep.subr.mxu0 0.0
        %3556 = vmatpush1.msra.mxu0 0.0
        %3557 = vmatprep.subr.mxu0 0.0
        %3558 = vmatpush1.msra.mxu0 0.0
        %3559 = vmatprep.subr.mxu0 0.0
        %3560 = vmatpush1.msra.mxu0 0.0
        %3561 = vmatprep.subr.mxu0 0.0
        %3562 = vmatpush1.msra.mxu0 0.0
        %3563 = vmatprep.subr.mxu0 0.0
        %3564 = vmatpush1.msra.mxu0 0.0
        %3565 = vmatprep.subr.mxu0 0.0
        %3566 = vmatpush1.msra.mxu0 0.0
        %3567 = vmatprep.subr.mxu0 0.0
        %3568 = vmatpush1.msra.mxu0 0.0
        %3569 = vmatprep.subr.mxu0 0.0
        %3570 = vmatpush1.msra.mxu0 0.0
        %3571 = vmatprep.subr.mxu0 0.0
        %3572 = vmatpush1.msra.mxu0 0.0
        %3573 = vmatprep.subr.mxu0 0.0
        %3574 = vmatpush1.msra.mxu0 0.0
        %3575 = vmatprep.subr.mxu0 0.0
        %3576 = vmatpush1.msra.mxu0 0.0
        %3577 = vmatprep.subr.mxu0 0.0
        %3578 = vmatpush1.msra.mxu0 0.0
        %3579 = vmatprep.subr.mxu0 0.0
        %3580 = vmatpush1.msra.mxu0 0.0
        %3581 = vmatprep.subr.mxu0 0.0
        %3582 = vmatpush1.msra.mxu0 0.0
        %3583 = vmatprep.subr.mxu0 0.0
        %3584 = vmatpush1.msra.mxu0 0.0
        %3585 = vmatprep.subr.mxu0 0.0
        %3586 = vmatpush1.msra.mxu0 0.0
        %3587 = vmatprep.subr.mxu0 0.0
        %3588 = vmatpush1.msra.mxu0 0.0
        %3589 = vmatprep.subr.mxu0 0.0
        %3590 = vmatpush1.msra.mxu0 0.0
        %3591 = vmatprep.subr.mxu0 0.0
        %3592 = vmatpush1.msra.mxu0 0.0
        %3593 = vmatprep.subr.mxu0 0.0
        %3594 = vmatpush1.msra.mxu0 0.0
        %3595 = vmatprep.subr.mxu0 0.0
        %3596 = vmatpush1.msra.mxu0 0.0
        %3597 = vmatprep.subr.mxu0 0.0
        %3598 = vmatpush1.msra.mxu0 0.0
        %3599 = vmatprep.subr.mxu0 0.0
        %3600 = vmatpush1.msra.mxu0 0.0
        %3601 = vmatprep.subr.mxu0 0.0
        %3602 = vmatpush1.msra.mxu0 0.0
        %3603 = vmatprep.subr.mxu0 0.0
        %3604 = vmatpush1.msra.mxu0 0.0
        %3605 = vmatprep.subr.mxu0 0.0
        %3606 = vmatpush1.msra.mxu0 0.0
        %3607 = vmatprep.mubr.f32.mxu0 0.0
        %v3608 = vand.u32 %v3279, 4294901760
        %v3609 = vsub.f32 %v3279, %v3608
        %v3610 = vand.u32 %v3609, 4294901760
        %3611 = vmatmul.mubr.f32.gmra.mrb[0].mxu0 %v3610
        %v3612 = vpop.f32.mrb[0].mxu0
        %v3613 = vadd.f32 %v3531, %v3612
        %v3614 = vpop.f32.mrb[0].mxu0
        %3615 = vmatprep.mubr.f32.mxu0 0.0
        %v3616 = vand.u32 %v3282, 4294901760
        %v3617 = vsub.f32 %v3282, %v3616
        %v3618 = vand.u32 %v3617, 4294901760
        %3619 = vmatmul.mubr.f32.gmra.mrb[0].mxu0 %v3618
        %v3620 = vpop.f32.mrb[0].mxu0
        %v3621 = vadd.f32 %v3538, %v3620
        %v3622 = vpop.f32.mrb[0].mxu0
        %3623 = vdwg.mxu0
        %3624 = vmatprep.subr.mxu0 0.0
        %v3625 = vand.u32 %v3276, 4294901760
        %v3626 = vsub.f32 %v3276, %v3625
        %v3627 = vand.u32 %v3626, 4294901760
        %3628 = vmatpush1.msra.mxu0 %v3627
        %3629 = vmatprep.subr.mxu0 0.0
        %v3630 = vand.u32 %v3277, 4294901760
        %v3631 = vsub.f32 %v3277, %v3630
        %v3632 = vand.u32 %v3631, 4294901760
        %3633 = vmatpush1.msra.mxu0 %v3632
        %3634 = vmatprep.subr.mxu0 0.0
        %3635 = vmatpush1.msra.mxu0 0.0
        %3636 = vmatprep.subr.mxu0 0.0
        %3637 = vmatpush1.msra.mxu0 0.0
        %3638 = vmatprep.subr.mxu0 0.0
        %3639 = vmatpush1.msra.mxu0 0.0
        %3640 = vmatprep.subr.mxu0 0.0
        %3641 = vmatpush1.msra.mxu0 0.0
        %3642 = vmatprep.subr.mxu0 0.0
        %3643 = vmatpush1.msra.mxu0 0.0
        %3644 = vmatprep.subr.mxu0 0.0
        %3645 = vmatpush1.msra.mxu0 0.0
        %3646 = vmatprep.subr.mxu0 0.0
        %3647 = vmatpush1.msra.mxu0 0.0
        %3648 = vmatprep.subr.mxu0 0.0
        %3649 = vmatpush1.msra.mxu0 0.0
        %3650 = vmatprep.subr.mxu0 0.0
        %3651 = vmatpush1.msra.mxu0 0.0
        %3652 = vmatprep.subr.mxu0 0.0
        %3653 = vmatpush1.msra.mxu0 0.0
        %3654 = vmatprep.subr.mxu0 0.0
        %3655 = vmatpush1.msra.mxu0 0.0
        %3656 = vmatprep.subr.mxu0 0.0
        %3657 = vmatpush1.msra.mxu0 0.0
        %3658 = vmatprep.subr.mxu0 0.0
        %3659 = vmatpush1.msra.mxu0 0.0
        %3660 = vmatprep.subr.mxu0 0.0
        %3661 = vmatpush1.msra.mxu0 0.0
        %3662 = vmatprep.subr.mxu0 0.0
        %3663 = vmatpush1.msra.mxu0 0.0
        %3664 = vmatprep.subr.mxu0 0.0
        %3665 = vmatpush1.msra.mxu0 0.0
        %3666 = vmatprep.subr.mxu0 0.0
        %3667 = vmatpush1.msra.mxu0 0.0
        %3668 = vmatprep.subr.mxu0 0.0
        %3669 = vmatpush1.msra.mxu0 0.0
        %3670 = vmatprep.subr.mxu0 0.0
        %3671 = vmatpush1.msra.mxu0 0.0
        %3672 = vmatprep.subr.mxu0 0.0
        %3673 = vmatpush1.msra.mxu0 0.0
        %3674 = vmatprep.subr.mxu0 0.0
        %3675 = vmatpush1.msra.mxu0 0.0
        %3676 = vmatprep.subr.mxu0 0.0
        %3677 = vmatpush1.msra.mxu0 0.0
        %3678 = vmatprep.subr.mxu0 0.0
        %3679 = vmatpush1.msra.mxu0 0.0
        %3680 = vmatprep.subr.mxu0 0.0
        %3681 = vmatpush1.msra.mxu0 0.0
        %3682 = vmatprep.subr.mxu0 0.0
        %3683 = vmatpush1.msra.mxu0 0.0
        %3684 = vmatprep.subr.mxu0 0.0
        %3685 = vmatpush1.msra.mxu0 0.0
        %3686 = vmatprep.subr.mxu0 0.0
        %3687 = vmatpush1.msra.mxu0 0.0
        %3688 = vmatprep.subr.mxu0 0.0
        %3689 = vmatpush1.msra.mxu0 0.0
        %3690 = vmatprep.subr.mxu0 0.0
        %3691 = vmatpush1.msra.mxu0 0.0
        %3692 = vmatprep.subr.mxu0 0.0
        %3693 = vmatpush1.msra.mxu0 0.0
        %3694 = vmatprep.mubr.f32.mxu0 0.0
        %v3695 = vand.u32 %v3279, 4294901760
        %3696 = vmatmul.mubr.f32.gmra.mrb[0].mxu0 %v3695
        %v3697 = vpop.f32.mrb[0].mxu0
        %v3698 = vadd.f32 %v3613, %v3697
        %v3699 = vpop.f32.mrb[0].mxu0
        %3700 = vmatprep.mubr.f32.mxu0 0.0
        %v3701 = vand.u32 %v3282, 4294901760
        %3702 = vmatmul.mubr.f32.gmra.mrb[0].mxu0 %v3701
        %v3703 = vpop.f32.mrb[0].mxu0
        %v3704 = vadd.f32 %v3621, %v3703
        %v3705 = vpop.f32.mrb[0].mxu0
        %3706 = vdwg.mxu0
        %3707 = vmatprep.subr.mxu0 0.0
        %v3708 = vand.u32 %v3276, 4294901760
        %3709 = vmatpush1.msra.mxu0 %v3708
        %3710 = vmatprep.subr.mxu0 0.0
        %v3711 = vand.u32 %v3277, 4294901760
        %3712 = vmatpush1.msra.mxu0 %v3711
        %3713 = vmatprep.subr.mxu0 0.0
        %3714 = vmatpush1.msra.mxu0 0.0
        %3715 = vmatprep.subr.mxu0 0.0
        %3716 = vmatpush1.msra.mxu0 0.0
        %3717 = vmatprep.subr.mxu0 0.0
        %3718 = vmatpush1.msra.mxu0 0.0
        %3719 = vmatprep.subr.mxu0 0.0
        %3720 = vmatpush1.msra.mxu0 0.0
        %3721 = vmatprep.subr.mxu0 0.0
        %3722 = vmatpush1.msra.mxu0 0.0
        %3723 = vmatprep.subr.mxu0 0.0
        %3724 = vmatpush1.msra.mxu0 0.0
        %3725 = vmatprep.subr.mxu0 0.0
        %3726 = vmatpush1.msra.mxu0 0.0
        %3727 = vmatprep.subr.mxu0 0.0
        %3728 = vmatpush1.msra.mxu0 0.0
        %3729 = vmatprep.subr.mxu0 0.0
        %3730 = vmatpush1.msra.mxu0 0.0
        %3731 = vmatprep.subr.mxu0 0.0
        %3732 = vmatpush1.msra.mxu0 0.0
        %3733 = vmatprep.subr.mxu0 0.0
        %3734 = vmatpush1.msra.mxu0 0.0
        %3735 = vmatprep.subr.mxu0 0.0
        %3736 = vmatpush1.msra.mxu0 0.0
        %3737 = vmatprep.subr.mxu0 0.0
        %3738 = vmatpush1.msra.mxu0 0.0
        %3739 = vmatprep.subr.mxu0 0.0
        %3740 = vmatpush1.msra.mxu0 0.0
        %3741 = vmatprep.subr.mxu0 0.0
        %3742 = vmatpush1.msra.mxu0 0.0
        %3743 = vmatprep.subr.mxu0 0.0
        %3744 = vmatpush1.msra.mxu0 0.0
        %3745 = vmatprep.subr.mxu0 0.0
        %3746 = vmatpush1.msra.mxu0 0.0
        %3747 = vmatprep.subr.mxu0 0.0
        %3748 = vmatpush1.msra.mxu0 0.0
        %3749 = vmatprep.subr.mxu0 0.0
        %3750 = vmatpush1.msra.mxu0 0.0
        %3751 = vmatprep.subr.mxu0 0.0
        %3752 = vmatpush1.msra.mxu0 0.0
        %3753 = vmatprep.subr.mxu0 0.0
        %3754 = vmatpush1.msra.mxu0 0.0
        %3755 = vmatprep.subr.mxu0 0.0
        %3756 = vmatpush1.msra.mxu0 0.0
        %3757 = vmatprep.subr.mxu0 0.0
        %3758 = vmatpush1.msra.mxu0 0.0
        %3759 = vmatprep.subr.mxu0 0.0
        %3760 = vmatpush1.msra.mxu0 0.0
        %3761 = vmatprep.subr.mxu0 0.0
        %3762 = vmatpush1.msra.mxu0 0.0
        %3763 = vmatprep.subr.mxu0 0.0
        %3764 = vmatpush1.msra.mxu0 0.0
        %3765 = vmatprep.subr.mxu0 0.0
        %3766 = vmatpush1.msra.mxu0 0.0
        %3767 = vmatprep.subr.mxu0 0.0
        %3768 = vmatpush1.msra.mxu0 0.0
        %3769 = vmatprep.subr.mxu0 0.0
        %3770 = vmatpush1.msra.mxu0 0.0
        %3771 = vmatprep.subr.mxu0 0.0
        %3772 = vmatpush1.msra.mxu0 0.0
        %3773 = vmatprep.mubr.f32.mxu0 0.0
        %v3774 = vand.u32 %v3279, 4294901760
        %3775 = vmatmul.mubr.f32.gmra.mrb[0].mxu0 %v3774
        %v3776 = vpop.f32.mrb[0].mxu0
        %v3777 = vadd.f32 %v3698, %v3776
        %v3778 = vpop.f32.mrb[0].mxu0
        %3779 = vmatprep.mubr.f32.mxu0 0.0
        %v3780 = vand.u32 %v3282, 4294901760
        %3781 = vmatmul.mubr.f32.gmra.mrb[0].mxu0 %v3780
        %v3782 = vpop.f32.mrb[0].mxu0
        %v3783 = vadd.f32 %v3704, %v3782
        %v3784 = vpop.f32.mrb[0].mxu0
        %3785 = vdwg.mxu0
        %v3786 = vadd.f32 %v2756, %v3777
        %v3787 = vadd.f32 %v2757, %v3783
        %v3788 = vld [vmem:[%s189 + $0x5] sm:$0xff]
        %v3789 = vld [vmem:[%s189 + $0xd] sm:$0xff]
        %s3790 = scalar_lea.vmem %s0, 112
        %v3791 = vld [vmem:[%s3790] sm:$0xff]
        %v3792 = vld [vmem:[%s3790 + $0x8] sm:$0xff]
        %v3794 = vsel %vm155, %v3788, 0
        %v3797 = vsel %vm155, %v3789, 0
        %3799 = vmatprep.subr.mxu0 0.0
        %v3800 = vand.u32 %v3791, 4294901760
        %3801 = vmatpush1.msra.mxu0 %v3800
        %3802 = vmatprep.subr.mxu0 0.0
        %v3803 = vand.u32 %v3792, 4294901760
        %3804 = vmatpush1.msra.mxu0 %v3803
        %3805 = vmatprep.subr.mxu0 0.0
        %3806 = vmatpush1.msra.mxu0 0.0
        %3807 = vmatprep.subr.mxu0 0.0
        %3808 = vmatpush1.msra.mxu0 0.0
        %3809 = vmatprep.subr.mxu0 0.0
        %3810 = vmatpush1.msra.mxu0 0.0
        %3811 = vmatprep.subr.mxu0 0.0
        %3812 = vmatpush1.msra.mxu0 0.0
        %3813 = vmatprep.subr.mxu0 0.0
        %3814 = vmatpush1.msra.mxu0 0.0
        %3815 = vmatprep.subr.mxu0 0.0
        %3816 = vmatpush1.msra.mxu0 0.0
        %3817 = vmatprep.subr.mxu0 0.0
        %3818 = vmatpush1.msra.mxu0 0.0
        %3819 = vmatprep.subr.mxu0 0.0
        %3820 = vmatpush1.msra.mxu0 0.0
        %3821 = vmatprep.subr.mxu0 0.0
        %3822 = vmatpush1.msra.mxu0 0.0
        %3823 = vmatprep.subr.mxu0 0.0
        %3824 = vmatpush1.msra.mxu0 0.0
        %3825 = vmatprep.subr.mxu0 0.0
        %3826 = vmatpush1.msra.mxu0 0.0
        %3827 = vmatprep.subr.mxu0 0.0
        %3828 = vmatpush1.msra.mxu0 0.0
        %3829 = vmatprep.subr.mxu0 0.0
        %3830 = vmatpush1.msra.mxu0 0.0
        %3831 = vmatprep.subr.mxu0 0.0
        %3832 = vmatpush1.msra.mxu0 0.0
        %3833 = vmatprep.subr.mxu0 0.0
        %3834 = vmatpush1.msra.mxu0 0.0
        %3835 = vmatprep.subr.mxu0 0.0
        %3836 = vmatpush1.msra.mxu0 0.0
        %3837 = vmatprep.subr.mxu0 0.0
        %3838 = vmatpush1.msra.mxu0 0.0
        %3839 = vmatprep.subr.mxu0 0.0
        %3840 = vmatpush1.msra.mxu0 0.0
        %3841 = vmatprep.subr.mxu0 0.0
        %3842 = vmatpush1.msra.mxu0 0.0
        %3843 = vmatprep.subr.mxu0 0.0
        %3844 = vmatpush1.msra.mxu0 0.0
        %3845 = vmatprep.subr.mxu0 0.0
        %3846 = vmatpush1.msra.mxu0 0.0
        %3847 = vmatprep.subr.mxu0 0.0
        %3848 = vmatpush1.msra.mxu0 0.0
        %3849 = vmatprep.subr.mxu0 0.0
        %3850 = vmatpush1.msra.mxu0 0.0
        %3851 = vmatprep.subr.mxu0 0.0
        %3852 = vmatpush1.msra.mxu0 0.0
        %3853 = vmatprep.subr.mxu0 0.0
        %3854 = vmatpush1.msra.mxu0 0.0
        %3855 = vmatprep.subr.mxu0 0.0
        %3856 = vmatpush1.msra.mxu0 0.0
        %3857 = vmatprep.subr.mxu0 0.0
        %3858 = vmatpush1.msra.mxu0 0.0
        %3859 = vmatprep.subr.mxu0 0.0
        %3860 = vmatpush1.msra.mxu0 0.0
        %3861 = vmatprep.subr.mxu0 0.0
        %3862 = vmatpush1.msra.mxu0 0.0
        %3863 = vmatprep.subr.mxu0 0.0
        %3864 = vmatpush1.msra.mxu0 0.0
        %3865 = vmatprep.mubr.f32.mxu0 0.0
        %v3866 = vand.u32 %v3794, 4294901760
        %v3867 = vsub.f32 %v3794, %v3866
        %v3868 = vand.u32 %v3867, 4294901760
        %v3869 = vsub.f32 %v3867, %v3868
        %v3870 = vand.u32 %v3869, 4294901760
        %3871 = vmatmul.mubr.f32.gmra.mrb[0].mxu0 %v3870
        %v3872 = vpop.f32.mrb[0].mxu0
        %v3873 = vadd.f32 0.0, %v3872
        %v3874 = vpop.f32.mrb[0].mxu0
        %3875 = vmatprep.mubr.f32.mxu0 0.0
        %v3876 = vand.u32 %v3797, 4294901760
        %v3877 = vsub.f32 %v3797, %v3876
        %v3878 = vand.u32 %v3877, 4294901760
        %v3879 = vsub.f32 %v3877, %v3878
        %v3880 = vand.u32 %v3879, 4294901760
        %3881 = vmatmul.mubr.f32.gmra.mrb[0].mxu0 %v3880
        %v3882 = vpop.f32.mrb[0].mxu0
        %v3883 = vadd.f32 0.0, %v3882
        %v3884 = vpop.f32.mrb[0].mxu0
        %3885 = vdwg.mxu0
        %3886 = vmatprep.subr.mxu0 0.0
        %v3887 = vand.u32 %v3791, 4294901760
        %v3888 = vsub.f32 %v3791, %v3887
        %v3889 = vand.u32 %v3888, 4294901760
        %v3890 = vsub.f32 %v3888, %v3889
        %v3891 = vand.u32 %v3890, 4294901760
        %3892 = vmatpush1.msra.mxu0 %v3891
        %3893 = vmatprep.subr.mxu0 0.0
        %v3894 = vand.u32 %v3792, 4294901760
        %v3895 = vsub.f32 %v3792, %v3894
        %v3896 = vand.u32 %v3895, 4294901760
        %v3897 = vsub.f32 %v3895, %v3896
        %v3898 = vand.u32 %v3897, 4294901760
        %3899 = vmatpush1.msra.mxu0 %v3898
        %3900 = vmatprep.subr.mxu0 0.0
        %3901 = vmatpush1.msra.mxu0 0.0
        %3902 = vmatprep.subr.mxu0 0.0
        %3903 = vmatpush1.msra.mxu0 0.0
        %3904 = vmatprep.subr.mxu0 0.0
        %3905 = vmatpush1.msra.mxu0 0.0
        %3906 = vmatprep.subr.mxu0 0.0
        %3907 = vmatpush1.msra.mxu0 0.0
        %3908 = vmatprep.subr.mxu0 0.0
        %3909 = vmatpush1.msra.mxu0 0.0
        %3910 = vmatprep.subr.mxu0 0.0
        %3911 = vmatpush1.msra.mxu0 0.0
        %3912 = vmatprep.subr.mxu0 0.0
        %3913 = vmatpush1.msra.mxu0 0.0
        %3914 = vmatprep.subr.mxu0 0.0
        %3915 = vmatpush1.msra.mxu0 0.0
        %3916 = vmatprep.subr.mxu0 0.0
        %3917 = vmatpush1.msra.mxu0 0.0
        %3918 = vmatprep.subr.mxu0 0.0
        %3919 = vmatpush1.msra.mxu0 0.0
        %3920 = vmatprep.subr.mxu0 0.0
        %3921 = vmatpush1.msra.mxu0 0.0
        %3922 = vmatprep.subr.mxu0 0.0
        %3923 = vmatpush1.msra.mxu0 0.0
        %3924 = vmatprep.subr.mxu0 0.0
        %3925 = vmatpush1.msra.mxu0 0.0
        %3926 = vmatprep.subr.mxu0 0.0
        %3927 = vmatpush1.msra.mxu0 0.0
        %3928 = vmatprep.subr.mxu0 0.0
        %3929 = vmatpush1.msra.mxu0 0.0
        %3930 = vmatprep.subr.mxu0 0.0
        %3931 = vmatpush1.msra.mxu0 0.0
        %3932 = vmatprep.subr.mxu0 0.0
        %3933 = vmatpush1.msra.mxu0 0.0
        %3934 = vmatprep.subr.mxu0 0.0
        %3935 = vmatpush1.msra.mxu0 0.0
        %3936 = vmatprep.subr.mxu0 0.0
        %3937 = vmatpush1.msra.mxu0 0.0
        %3938 = vmatprep.subr.mxu0 0.0
        %3939 = vmatpush1.msra.mxu0 0.0
        %3940 = vmatprep.subr.mxu0 0.0
        %3941 = vmatpush1.msra.mxu0 0.0
        %3942 = vmatprep.subr.mxu0 0.0
        %3943 = vmatpush1.msra.mxu0 0.0
        %3944 = vmatprep.subr.mxu0 0.0
        %3945 = vmatpush1.msra.mxu0 0.0
        %3946 = vmatprep.subr.mxu0 0.0
        %3947 = vmatpush1.msra.mxu0 0.0
        %3948 = vmatprep.subr.mxu0 0.0
        %3949 = vmatpush1.msra.mxu0 0.0
        %3950 = vmatprep.subr.mxu0 0.0
        %3951 = vmatpush1.msra.mxu0 0.0
        %3952 = vmatprep.subr.mxu0 0.0
        %3953 = vmatpush1.msra.mxu0 0.0
        %3954 = vmatprep.subr.mxu0 0.0
        %3955 = vmatpush1.msra.mxu0 0.0
        %3956 = vmatprep.subr.mxu0 0.0
        %3957 = vmatpush1.msra.mxu0 0.0
        %3958 = vmatprep.subr.mxu0 0.0
        %3959 = vmatpush1.msra.mxu0 0.0
        %3960 = vmatprep.mubr.f32.mxu0 0.0
        %v3961 = vand.u32 %v3794, 4294901760
        %3962 = vmatmul.mubr.f32.gmra.mrb[0].mxu0 %v3961
        %v3963 = vpop.f32.mrb[0].mxu0
        %v3964 = vadd.f32 %v3873, %v3963
        %v3965 = vpop.f32.mrb[0].mxu0
        %3966 = vmatprep.mubr.f32.mxu0 0.0
        %v3967 = vand.u32 %v3797, 4294901760
        %3968 = vmatmul.mubr.f32.gmra.mrb[0].mxu0 %v3967
        %v3969 = vpop.f32.mrb[0].mxu0
        %v3970 = vadd.f32 %v3883, %v3969
        %v3971 = vpop.f32.mrb[0].mxu0
        %3972 = vdwg.mxu0
        %3973 = vmatprep.subr.mxu0 0.0
        %v3974 = vand.u32 %v3791, 4294901760
        %v3975 = vsub.f32 %v3791, %v3974
        %3976 = vmatpush1.msra.mxu0 %v3975
        %3977 = vmatprep.subr.mxu0 0.0
        %v3978 = vand.u32 %v3792, 4294901760
        %v3979 = vsub.f32 %v3792, %v3978
        %3980 = vmatpush1.msra.mxu0 %v3979
        %3981 = vmatprep.subr.mxu0 0.0
        %3982 = vmatpush1.msra.mxu0 0.0
        %3983 = vmatprep.subr.mxu0 0.0
        %3984 = vmatpush1.msra.mxu0 0.0
        %3985 = vmatprep.subr.mxu0 0.0
        %3986 = vmatpush1.msra.mxu0 0.0
        %3987 = vmatprep.subr.mxu0 0.0
        %3988 = vmatpush1.msra.mxu0 0.0
        %3989 = vmatprep.subr.mxu0 0.0
        %3990 = vmatpush1.msra.mxu0 0.0
        %3991 = vmatprep.subr.mxu0 0.0
        %3992 = vmatpush1.msra.mxu0 0.0
        %3993 = vmatprep.subr.mxu0 0.0
        %3994 = vmatpush1.msra.mxu0 0.0
        %3995 = vmatprep.subr.mxu0 0.0
        %3996 = vmatpush1.msra.mxu0 0.0
        %3997 = vmatprep.subr.mxu0 0.0
        %3998 = vmatpush1.msra.mxu0 0.0
        %3999 = vmatprep.subr.mxu0 0.0
        %4000 = vmatpush1.msra.mxu0 0.0
        %4001 = vmatprep.subr.mxu0 0.0
        %4002 = vmatpush1.msra.mxu0 0.0
        %4003 = vmatprep.subr.mxu0 0.0
        %4004 = vmatpush1.msra.mxu0 0.0
        %4005 = vmatprep.subr.mxu0 0.0
        %4006 = vmatpush1.msra.mxu0 0.0
        %4007 = vmatprep.subr.mxu0 0.0
        %4008 = vmatpush1.msra.mxu0 0.0
        %4009 = vmatprep.subr.mxu0 0.0
        %4010 = vmatpush1.msra.mxu0 0.0
        %4011 = vmatprep.subr.mxu0 0.0
        %4012 = vmatpush1.msra.mxu0 0.0
        %4013 = vmatprep.subr.mxu0 0.0
        %4014 = vmatpush1.msra.mxu0 0.0
        %4015 = vmatprep.subr.mxu0 0.0
        %4016 = vmatpush1.msra.mxu0 0.0
        %4017 = vmatprep.subr.mxu0 0.0
        %4018 = vmatpush1.msra.mxu0 0.0
        %4019 = vmatprep.subr.mxu0 0.0
        %4020 = vmatpush1.msra.mxu0 0.0
        %4021 = vmatprep.subr.mxu0 0.0
        %4022 = vmatpush1.msra.mxu0 0.0
        %4023 = vmatprep.subr.mxu0 0.0
        %4024 = vmatpush1.msra.mxu0 0.0
        %4025 = vmatprep.subr.mxu0 0.0
        %4026 = vmatpush1.msra.mxu0 0.0
        %4027 = vmatprep.subr.mxu0 0.0
        %4028 = vmatpush1.msra.mxu0 0.0
        %4029 = vmatprep.subr.mxu0 0.0
        %4030 = vmatpush1.msra.mxu0 0.0
        %4031 = vmatprep.subr.mxu0 0.0
        %4032 = vmatpush1.msra.mxu0 0.0
        %4033 = vmatprep.subr.mxu0 0.0
        %4034 = vmatpush1.msra.mxu0 0.0
        %4035 = vmatprep.subr.mxu0 0.0
        %4036 = vmatpush1.msra.mxu0 0.0
        %4037 = vmatprep.subr.mxu0 0.0
        %4038 = vmatpush1.msra.mxu0 0.0
        %4039 = vmatprep.subr.mxu0 0.0
        %4040 = vmatpush1.msra.mxu0 0.0
        %4041 = vmatprep.mubr.f32.mxu0 0.0
        %v4042 = vand.u32 %v3794, 4294901760
        %v4043 = vsub.f32 %v3794, %v4042
        %4044 = vmatmul.mubr.f32.gmra.mrb[0].mxu0 %v4043
        %v4045 = vpop.f32.mrb[0].mxu0
        %v4046 = vadd.f32 %v3964, %v4045
        %v4047 = vpop.f32.mrb[0].mxu0
        %4048 = vmatprep.mubr.f32.mxu0 0.0
        %v4049 = vand.u32 %v3797, 4294901760
        %v4050 = vsub.f32 %v3797, %v4049
        %4051 = vmatmul.mubr.f32.gmra.mrb[0].mxu0 %v4050
        %v4052 = vpop.f32.mrb[0].mxu0
        %v4053 = vadd.f32 %v3970, %v4052
        %v4054 = vpop.f32.mrb[0].mxu0
        %4055 = vdwg.mxu0
        %4056 = vmatprep.subr.mxu0 0.0
        %v4057 = vand.u32 %v3791, 4294901760
        %4058 = vmatpush1.msra.mxu0 %v4057
        %4059 = vmatprep.subr.mxu0 0.0
        %v4060 = vand.u32 %v3792, 4294901760
        %4061 = vmatpush1.msra.mxu0 %v4060
        %4062 = vmatprep.subr.mxu0 0.0
        %4063 = vmatpush1.msra.mxu0 0.0
        %4064 = vmatprep.subr.mxu0 0.0
        %4065 = vmatpush1.msra.mxu0 0.0
        %4066 = vmatprep.subr.mxu0 0.0
        %4067 = vmatpush1.msra.mxu0 0.0
        %4068 = vmatprep.subr.mxu0 0.0
        %4069 = vmatpush1.msra.mxu0 0.0
        %4070 = vmatprep.subr.mxu0 0.0
        %4071 = vmatpush1.msra.mxu0 0.0
        %4072 = vmatprep.subr.mxu0 0.0
        %4073 = vmatpush1.msra.mxu0 0.0
        %4074 = vmatprep.subr.mxu0 0.0
        %4075 = vmatpush1.msra.mxu0 0.0
        %4076 = vmatprep.subr.mxu0 0.0
        %4077 = vmatpush1.msra.mxu0 0.0
        %4078 = vmatprep.subr.mxu0 0.0
        %4079 = vmatpush1.msra.mxu0 0.0
        %4080 = vmatprep.subr.mxu0 0.0
        %4081 = vmatpush1.msra.mxu0 0.0
        %4082 = vmatprep.subr.mxu0 0.0
        %4083 = vmatpush1.msra.mxu0 0.0
        %4084 = vmatprep.subr.mxu0 0.0
        %4085 = vmatpush1.msra.mxu0 0.0
        %4086 = vmatprep.subr.mxu0 0.0
        %4087 = vmatpush1.msra.mxu0 0.0
        %4088 = vmatprep.subr.mxu0 0.0
        %4089 = vmatpush1.msra.mxu0 0.0
        %4090 = vmatprep.subr.mxu0 0.0
        %4091 = vmatpush1.msra.mxu0 0.0
        %4092 = vmatprep.subr.mxu0 0.0
        %4093 = vmatpush1.msra.mxu0 0.0
        %4094 = vmatprep.subr.mxu0 0.0
        %4095 = vmatpush1.msra.mxu0 0.0
        %4096 = vmatprep.subr.mxu0 0.0
        %4097 = vmatpush1.msra.mxu0 0.0
        %4098 = vmatprep.subr.mxu0 0.0
        %4099 = vmatpush1.msra.mxu0 0.0
        %4100 = vmatprep.subr.mxu0 0.0
        %4101 = vmatpush1.msra.mxu0 0.0
        %4102 = vmatprep.subr.mxu0 0.0
        %4103 = vmatpush1.msra.mxu0 0.0
        %4104 = vmatprep.subr.mxu0 0.0
        %4105 = vmatpush1.msra.mxu0 0.0
        %4106 = vmatprep.subr.mxu0 0.0
        %4107 = vmatpush1.msra.mxu0 0.0
        %4108 = vmatprep.subr.mxu0 0.0
        %4109 = vmatpush1.msra.mxu0 0.0
        %4110 = vmatprep.subr.mxu0 0.0
        %4111 = vmatpush1.msra.mxu0 0.0
        %4112 = vmatprep.subr.mxu0 0.0
        %4113 = vmatpush1.msra.mxu0 0.0
        %4114 = vmatprep.subr.mxu0 0.0
        %4115 = vmatpush1.msra.mxu0 0.0
        %4116 = vmatprep.subr.mxu0 0.0
        %4117 = vmatpush1.msra.mxu0 0.0
        %4118 = vmatprep.subr.mxu0 0.0
        %4119 = vmatpush1.msra.mxu0 0.0
        %4120 = vmatprep.subr.mxu0 0.0
        %4121 = vmatpush1.msra.mxu0 0.0
        %4122 = vmatprep.mubr.f32.mxu0 0.0
        %v4123 = vand.u32 %v3794, 4294901760
        %v4124 = vsub.f32 %v3794, %v4123
        %v4125 = vand.u32 %v4124, 4294901760
        %4126 = vmatmul.mubr.f32.gmra.mrb[0].mxu0 %v4125
        %v4127 = vpop.f32.mrb[0].mxu0
        %v4128 = vadd.f32 %v4046, %v4127
        %v4129 = vpop.f32.mrb[0].mxu0
        %4130 = vmatprep.mubr.f32.mxu0 0.0
        %v4131 = vand.u32 %v3797, 4294901760
        %v4132 = vsub.f32 %v3797, %v4131
        %v4133 = vand.u32 %v4132, 4294901760
        %4134 = vmatmul.mubr.f32.gmra.mrb[0].mxu0 %v4133
        %v4135 = vpop.f32.mrb[0].mxu0
        %v4136 = vadd.f32 %v4053, %v4135
        %v4137 = vpop.f32.mrb[0].mxu0
        %4138 = vdwg.mxu0
        %4139 = vmatprep.subr.mxu0 0.0
        %v4140 = vand.u32 %v3791, 4294901760
        %v4141 = vsub.f32 %v3791, %v4140
        %v4142 = vand.u32 %v4141, 4294901760
        %4143 = vmatpush1.msra.mxu0 %v4142
        %4144 = vmatprep.subr.mxu0 0.0
        %v4145 = vand.u32 %v3792, 4294901760
        %v4146 = vsub.f32 %v3792, %v4145
        %v4147 = vand.u32 %v4146, 4294901760
        %4148 = vmatpush1.msra.mxu0 %v4147
        %4149 = vmatprep.subr.mxu0 0.0
        %4150 = vmatpush1.msra.mxu0 0.0
        %4151 = vmatprep.subr.mxu0 0.0
        %4152 = vmatpush1.msra.mxu0 0.0
        %4153 = vmatprep.subr.mxu0 0.0
        %4154 = vmatpush1.msra.mxu0 0.0
        %4155 = vmatprep.subr.mxu0 0.0
        %4156 = vmatpush1.msra.mxu0 0.0
        %4157 = vmatprep.subr.mxu0 0.0
        %4158 = vmatpush1.msra.mxu0 0.0
        %4159 = vmatprep.subr.mxu0 0.0
        %4160 = vmatpush1.msra.mxu0 0.0
        %4161 = vmatprep.subr.mxu0 0.0
        %4162 = vmatpush1.msra.mxu0 0.0
        %4163 = vmatprep.subr.mxu0 0.0
        %4164 = vmatpush1.msra.mxu0 0.0
        %4165 = vmatprep.subr.mxu0 0.0
        %4166 = vmatpush1.msra.mxu0 0.0
        %4167 = vmatprep.subr.mxu0 0.0
        %4168 = vmatpush1.msra.mxu0 0.0
        %4169 = vmatprep.subr.mxu0 0.0
        %4170 = vmatpush1.msra.mxu0 0.0
        %4171 = vmatprep.subr.mxu0 0.0
        %4172 = vmatpush1.msra.mxu0 0.0
        %4173 = vmatprep.subr.mxu0 0.0
        %4174 = vmatpush1.msra.mxu0 0.0
        %4175 = vmatprep.subr.mxu0 0.0
        %4176 = vmatpush1.msra.mxu0 0.0
        %4177 = vmatprep.subr.mxu0 0.0
        %4178 = vmatpush1.msra.mxu0 0.0
        %4179 = vmatprep.subr.mxu0 0.0
        %4180 = vmatpush1.msra.mxu0 0.0
        %4181 = vmatprep.subr.mxu0 0.0
        %4182 = vmatpush1.msra.mxu0 0.0
        %4183 = vmatprep.subr.mxu0 0.0
        %4184 = vmatpush1.msra.mxu0 0.0
        %4185 = vmatprep.subr.mxu0 0.0
        %4186 = vmatpush1.msra.mxu0 0.0
        %4187 = vmatprep.subr.mxu0 0.0
        %4188 = vmatpush1.msra.mxu0 0.0
        %4189 = vmatprep.subr.mxu0 0.0
        %4190 = vmatpush1.msra.mxu0 0.0
        %4191 = vmatprep.subr.mxu0 0.0
        %4192 = vmatpush1.msra.mxu0 0.0
        %4193 = vmatprep.subr.mxu0 0.0
        %4194 = vmatpush1.msra.mxu0 0.0
        %4195 = vmatprep.subr.mxu0 0.0
        %4196 = vmatpush1.msra.mxu0 0.0
        %4197 = vmatprep.subr.mxu0 0.0
        %4198 = vmatpush1.msra.mxu0 0.0
        %4199 = vmatprep.subr.mxu0 0.0
        %4200 = vmatpush1.msra.mxu0 0.0
        %4201 = vmatprep.subr.mxu0 0.0
        %4202 = vmatpush1.msra.mxu0 0.0
        %4203 = vmatprep.subr.mxu0 0.0
        %4204 = vmatpush1.msra.mxu0 0.0
        %4205 = vmatprep.subr.mxu0 0.0
        %4206 = vmatpush1.msra.mxu0 0.0
        %4207 = vmatprep.subr.mxu0 0.0
        %4208 = vmatpush1.msra.mxu0 0.0
        %4209 = vmatprep.mubr.f32.mxu0 0.0
        %v4210 = vand.u32 %v3794, 4294901760
        %4211 = vmatmul.mubr.f32.gmra.mrb[0].mxu0 %v4210
        %v4212 = vpop.f32.mrb[0].mxu0
        %v4213 = vadd.f32 %v4128, %v4212
        %v4214 = vpop.f32.mrb[0].mxu0
        %4215 = vmatprep.mubr.f32.mxu0 0.0
        %v4216 = vand.u32 %v3797, 4294901760
        %4217 = vmatmul.mubr.f32.gmra.mrb[0].mxu0 %v4216
        %v4218 = vpop.f32.mrb[0].mxu0
        %v4219 = vadd.f32 %v4136, %v4218
        %v4220 = vpop.f32.mrb[0].mxu0
        %4221 = vdwg.mxu0
        %4222 = vmatprep.subr.mxu0 0.0
        %v4223 = vand.u32 %v3791, 4294901760
        %4224 = vmatpush1.msra.mxu0 %v4223
        %4225 = vmatprep.subr.mxu0 0.0
        %v4226 = vand.u32 %v3792, 4294901760
        %4227 = vmatpush1.msra.mxu0 %v4226
        %4228 = vmatprep.subr.mxu0 0.0
        %4229 = vmatpush1.msra.mxu0 0.0
        %4230 = vmatprep.subr.mxu0 0.0
        %4231 = vmatpush1.msra.mxu0 0.0
        %4232 = vmatprep.subr.mxu0 0.0
        %4233 = vmatpush1.msra.mxu0 0.0
        %4234 = vmatprep.subr.mxu0 0.0
        %4235 = vmatpush1.msra.mxu0 0.0
        %4236 = vmatprep.subr.mxu0 0.0
        %4237 = vmatpush1.msra.mxu0 0.0
        %4238 = vmatprep.subr.mxu0 0.0
        %4239 = vmatpush1.msra.mxu0 0.0
        %4240 = vmatprep.subr.mxu0 0.0
        %4241 = vmatpush1.msra.mxu0 0.0
        %4242 = vmatprep.subr.mxu0 0.0
        %4243 = vmatpush1.msra.mxu0 0.0
        %4244 = vmatprep.subr.mxu0 0.0
        %4245 = vmatpush1.msra.mxu0 0.0
        %4246 = vmatprep.subr.mxu0 0.0
        %4247 = vmatpush1.msra.mxu0 0.0
        %4248 = vmatprep.subr.mxu0 0.0
        %4249 = vmatpush1.msra.mxu0 0.0
        %4250 = vmatprep.subr.mxu0 0.0
        %4251 = vmatpush1.msra.mxu0 0.0
        %4252 = vmatprep.subr.mxu0 0.0
        %4253 = vmatpush1.msra.mxu0 0.0
        %4254 = vmatprep.subr.mxu0 0.0
        %4255 = vmatpush1.msra.mxu0 0.0
        %4256 = vmatprep.subr.mxu0 0.0
        %4257 = vmatpush1.msra.mxu0 0.0
        %4258 = vmatprep.subr.mxu0 0.0
        %4259 = vmatpush1.msra.mxu0 0.0
        %4260 = vmatprep.subr.mxu0 0.0
        %4261 = vmatpush1.msra.mxu0 0.0
        %4262 = vmatprep.subr.mxu0 0.0
        %4263 = vmatpush1.msra.mxu0 0.0
        %4264 = vmatprep.subr.mxu0 0.0
        %4265 = vmatpush1.msra.mxu0 0.0
        %4266 = vmatprep.subr.mxu0 0.0
        %4267 = vmatpush1.msra.mxu0 0.0
        %4268 = vmatprep.subr.mxu0 0.0
        %4269 = vmatpush1.msra.mxu0 0.0
        %4270 = vmatprep.subr.mxu0 0.0
        %4271 = vmatpush1.msra.mxu0 0.0
        %4272 = vmatprep.subr.mxu0 0.0
        %4273 = vmatpush1.msra.mxu0 0.0
        %4274 = vmatprep.subr.mxu0 0.0
        %4275 = vmatpush1.msra.mxu0 0.0
        %4276 = vmatprep.subr.mxu0 0.0
        %4277 = vmatpush1.msra.mxu0 0.0
        %4278 = vmatprep.subr.mxu0 0.0
        %4279 = vmatpush1.msra.mxu0 0.0
        %4280 = vmatprep.subr.mxu0 0.0
        %4281 = vmatpush1.msra.mxu0 0.0
        %4282 = vmatprep.subr.mxu0 0.0
        %4283 = vmatpush1.msra.mxu0 0.0
        %4284 = vmatprep.subr.mxu0 0.0
        %4285 = vmatpush1.msra.mxu0 0.0
        %4286 = vmatprep.subr.mxu0 0.0
        %4287 = vmatpush1.msra.mxu0 0.0
        %4288 = vmatprep.mubr.f32.mxu0 0.0
        %v4289 = vand.u32 %v3794, 4294901760
        %4290 = vmatmul.mubr.f32.gmra.mrb[0].mxu0 %v4289
        %v4291 = vpop.f32.mrb[0].mxu0
        %v4292 = vadd.f32 %v4213, %v4291
        %v4293 = vpop.f32.mrb[0].mxu0
        %4294 = vmatprep.mubr.f32.mxu0 0.0
        %v4295 = vand.u32 %v3797, 4294901760
        %4296 = vmatmul.mubr.f32.gmra.mrb[0].mxu0 %v4295
        %v4297 = vpop.f32.mrb[0].mxu0
        %v4298 = vadd.f32 %v4219, %v4297
        %v4299 = vpop.f32.mrb[0].mxu0
        %4300 = vdwg.mxu0
        %v4301 = vadd.f32 %v3271, %v4292
        %v4302 = vadd.f32 %v3272, %v4298
        %v4303 = vld [vmem:[%s189 + $0x6] sm:$0xff]
        %v4304 = vld [vmem:[%s189 + $0xe] sm:$0xff]
        %s4305 = scalar_lea.vmem %s0, 128
        %v4306 = vld [vmem:[%s4305] sm:$0xff]
        %v4307 = vld [vmem:[%s4305 + $0x8] sm:$0xff]
        %v4309 = vsel %vm155, %v4303, 0
        %v4312 = vsel %vm155, %v4304, 0
        %4314 = vmatprep.subr.mxu0 0.0
        %v4315 = vand.u32 %v4306, 4294901760
        %4316 = vmatpush1.msra.mxu0 %v4315
        %4317 = vmatprep.subr.mxu0 0.0
        %v4318 = vand.u32 %v4307, 4294901760
        %4319 = vmatpush1.msra.mxu0 %v4318
        %4320 = vmatprep.subr.mxu0 0.0
        %4321 = vmatpush1.msra.mxu0 0.0
        %4322 = vmatprep.subr.mxu0 0.0
        %4323 = vmatpush1.msra.mxu0 0.0
        %4324 = vmatprep.subr.mxu0 0.0
        %4325 = vmatpush1.msra.mxu0 0.0
        %4326 = vmatprep.subr.mxu0 0.0
        %4327 = vmatpush1.msra.mxu0 0.0
        %4328 = vmatprep.subr.mxu0 0.0
        %4329 = vmatpush1.msra.mxu0 0.0
        %4330 = vmatprep.subr.mxu0 0.0
        %4331 = vmatpush1.msra.mxu0 0.0
        %4332 = vmatprep.subr.mxu0 0.0
        %4333 = vmatpush1.msra.mxu0 0.0
        %4334 = vmatprep.subr.mxu0 0.0
        %4335 = vmatpush1.msra.mxu0 0.0
        %4336 = vmatprep.subr.mxu0 0.0
        %4337 = vmatpush1.msra.mxu0 0.0
        %4338 = vmatprep.subr.mxu0 0.0
        %4339 = vmatpush1.msra.mxu0 0.0
        %4340 = vmatprep.subr.mxu0 0.0
        %4341 = vmatpush1.msra.mxu0 0.0
        %4342 = vmatprep.subr.mxu0 0.0
        %4343 = vmatpush1.msra.mxu0 0.0
        %4344 = vmatprep.subr.mxu0 0.0
        %4345 = vmatpush1.msra.mxu0 0.0
        %4346 = vmatprep.subr.mxu0 0.0
        %4347 = vmatpush1.msra.mxu0 0.0
        %4348 = vmatprep.subr.mxu0 0.0
        %4349 = vmatpush1.msra.mxu0 0.0
        %4350 = vmatprep.subr.mxu0 0.0
        %4351 = vmatpush1.msra.mxu0 0.0
        %4352 = vmatprep.subr.mxu0 0.0
        %4353 = vmatpush1.msra.mxu0 0.0
        %4354 = vmatprep.subr.mxu0 0.0
        %4355 = vmatpush1.msra.mxu0 0.0
        %4356 = vmatprep.subr.mxu0 0.0
        %4357 = vmatpush1.msra.mxu0 0.0
        %4358 = vmatprep.subr.mxu0 0.0
        %4359 = vmatpush1.msra.mxu0 0.0
        %4360 = vmatprep.subr.mxu0 0.0
        %4361 = vmatpush1.msra.mxu0 0.0
        %4362 = vmatprep.subr.mxu0 0.0
        %4363 = vmatpush1.msra.mxu0 0.0
        %4364 = vmatprep.subr.mxu0 0.0
        %4365 = vmatpush1.msra.mxu0 0.0
        %4366 = vmatprep.subr.mxu0 0.0
        %4367 = vmatpush1.msra.mxu0 0.0
        %4368 = vmatprep.subr.mxu0 0.0
        %4369 = vmatpush1.msra.mxu0 0.0
        %4370 = vmatprep.subr.mxu0 0.0
        %4371 = vmatpush1.msra.mxu0 0.0
        %4372 = vmatprep.subr.mxu0 0.0
        %4373 = vmatpush1.msra.mxu0 0.0
        %4374 = vmatprep.subr.mxu0 0.0
        %4375 = vmatpush1.msra.mxu0 0.0
        %4376 = vmatprep.subr.mxu0 0.0
        %4377 = vmatpush1.msra.mxu0 0.0
        %4378 = vmatprep.subr.mxu0 0.0
        %4379 = vmatpush1.msra.mxu0 0.0
        %4380 = vmatprep.mubr.f32.mxu0 0.0
        %v4381 = vand.u32 %v4309, 4294901760
        %v4382 = vsub.f32 %v4309, %v4381
        %v4383 = vand.u32 %v4382, 4294901760
        %v4384 = vsub.f32 %v4382, %v4383
        %v4385 = vand.u32 %v4384, 4294901760
        %4386 = vmatmul.mubr.f32.gmra.mrb[0].mxu0 %v4385
        %v4387 = vpop.f32.mrb[0].mxu0
        %v4388 = vadd.f32 0.0, %v4387
        %v4389 = vpop.f32.mrb[0].mxu0
        %4390 = vmatprep.mubr.f32.mxu0 0.0
        %v4391 = vand.u32 %v4312, 4294901760
        %v4392 = vsub.f32 %v4312, %v4391
        %v4393 = vand.u32 %v4392, 4294901760
        %v4394 = vsub.f32 %v4392, %v4393
        %v4395 = vand.u32 %v4394, 4294901760
        %4396 = vmatmul.mubr.f32.gmra.mrb[0].mxu0 %v4395
        %v4397 = vpop.f32.mrb[0].mxu0
        %v4398 = vadd.f32 0.0, %v4397
        %v4399 = vpop.f32.mrb[0].mxu0
        %4400 = vdwg.mxu0
        %4401 = vmatprep.subr.mxu0 0.0
        %v4402 = vand.u32 %v4306, 4294901760
        %v4403 = vsub.f32 %v4306, %v4402
        %v4404 = vand.u32 %v4403, 4294901760
        %v4405 = vsub.f32 %v4403, %v4404
        %v4406 = vand.u32 %v4405, 4294901760
        %4407 = vmatpush1.msra.mxu0 %v4406
        %4408 = vmatprep.subr.mxu0 0.0
        %v4409 = vand.u32 %v4307, 4294901760
        %v4410 = vsub.f32 %v4307, %v4409
        %v4411 = vand.u32 %v4410, 4294901760
        %v4412 = vsub.f32 %v4410, %v4411
        %v4413 = vand.u32 %v4412, 4294901760
        %4414 = vmatpush1.msra.mxu0 %v4413
        %4415 = vmatprep.subr.mxu0 0.0
        %4416 = vmatpush1.msra.mxu0 0.0
        %4417 = vmatprep.subr.mxu0 0.0
        %4418 = vmatpush1.msra.mxu0 0.0
        %4419 = vmatprep.subr.mxu0 0.0
        %4420 = vmatpush1.msra.mxu0 0.0
        %4421 = vmatprep.subr.mxu0 0.0
        %4422 = vmatpush1.msra.mxu0 0.0
        %4423 = vmatprep.subr.mxu0 0.0
        %4424 = vmatpush1.msra.mxu0 0.0
        %4425 = vmatprep.subr.mxu0 0.0
        %4426 = vmatpush1.msra.mxu0 0.0
        %4427 = vmatprep.subr.mxu0 0.0
        %4428 = vmatpush1.msra.mxu0 0.0
        %4429 = vmatprep.subr.mxu0 0.0
        %4430 = vmatpush1.msra.mxu0 0.0
        %4431 = vmatprep.subr.mxu0 0.0
        %4432 = vmatpush1.msra.mxu0 0.0
        %4433 = vmatprep.subr.mxu0 0.0
        %4434 = vmatpush1.msra.mxu0 0.0
        %4435 = vmatprep.subr.mxu0 0.0
        %4436 = vmatpush1.msra.mxu0 0.0
        %4437 = vmatprep.subr.mxu0 0.0
        %4438 = vmatpush1.msra.mxu0 0.0
        %4439 = vmatprep.subr.mxu0 0.0
        %4440 = vmatpush1.msra.mxu0 0.0
        %4441 = vmatprep.subr.mxu0 0.0
        %4442 = vmatpush1.msra.mxu0 0.0
        %4443 = vmatprep.subr.mxu0 0.0
        %4444 = vmatpush1.msra.mxu0 0.0
        %4445 = vmatprep.subr.mxu0 0.0
        %4446 = vmatpush1.msra.mxu0 0.0
        %4447 = vmatprep.subr.mxu0 0.0
        %4448 = vmatpush1.msra.mxu0 0.0
        %4449 = vmatprep.subr.mxu0 0.0
        %4450 = vmatpush1.msra.mxu0 0.0
        %4451 = vmatprep.subr.mxu0 0.0
        %4452 = vmatpush1.msra.mxu0 0.0
        %4453 = vmatprep.subr.mxu0 0.0
        %4454 = vmatpush1.msra.mxu0 0.0
        %4455 = vmatprep.subr.mxu0 0.0
        %4456 = vmatpush1.msra.mxu0 0.0
        %4457 = vmatprep.subr.mxu0 0.0
        %4458 = vmatpush1.msra.mxu0 0.0
        %4459 = vmatprep.subr.mxu0 0.0
        %4460 = vmatpush1.msra.mxu0 0.0
        %4461 = vmatprep.subr.mxu0 0.0
        %4462 = vmatpush1.msra.mxu0 0.0
        %4463 = vmatprep.subr.mxu0 0.0
        %4464 = vmatpush1.msra.mxu0 0.0
        %4465 = vmatprep.subr.mxu0 0.0
        %4466 = vmatpush1.msra.mxu0 0.0
        %4467 = vmatprep.subr.mxu0 0.0
        %4468 = vmatpush1.msra.mxu0 0.0
        %4469 = vmatprep.subr.mxu0 0.0
        %4470 = vmatpush1.msra.mxu0 0.0
        %4471 = vmatprep.subr.mxu0 0.0
        %4472 = vmatpush1.msra.mxu0 0.0
        %4473 = vmatprep.subr.mxu0 0.0
        %4474 = vmatpush1.msra.mxu0 0.0
        %4475 = vmatprep.mubr.f32.mxu0 0.0
        %v4476 = vand.u32 %v4309, 4294901760
        %4477 = vmatmul.mubr.f32.gmra.mrb[0].mxu0 %v4476
        %v4478 = vpop.f32.mrb[0].mxu0
        %v4479 = vadd.f32 %v4388, %v4478
        %v4480 = vpop.f32.mrb[0].mxu0
        %4481 = vmatprep.mubr.f32.mxu0 0.0
        %v4482 = vand.u32 %v4312, 4294901760
        %4483 = vmatmul.mubr.f32.gmra.mrb[0].mxu0 %v4482
        %v4484 = vpop.f32.mrb[0].mxu0
        %v4485 = vadd.f32 %v4398, %v4484
        %v4486 = vpop.f32.mrb[0].mxu0
        %4487 = vdwg.mxu0
        %4488 = vmatprep.subr.mxu0 0.0
        %v4489 = vand.u32 %v4306, 4294901760
        %v4490 = vsub.f32 %v4306, %v4489
        %4491 = vmatpush1.msra.mxu0 %v4490
        %4492 = vmatprep.subr.mxu0 0.0
        %v4493 = vand.u32 %v4307, 4294901760
        %v4494 = vsub.f32 %v4307, %v4493
        %4495 = vmatpush1.msra.mxu0 %v4494
        %4496 = vmatprep.subr.mxu0 0.0
        %4497 = vmatpush1.msra.mxu0 0.0
        %4498 = vmatprep.subr.mxu0 0.0
        %4499 = vmatpush1.msra.mxu0 0.0
        %4500 = vmatprep.subr.mxu0 0.0
        %4501 = vmatpush1.msra.mxu0 0.0
        %4502 = vmatprep.subr.mxu0 0.0
        %4503 = vmatpush1.msra.mxu0 0.0
        %4504 = vmatprep.subr.mxu0 0.0
        %4505 = vmatpush1.msra.mxu0 0.0
        %4506 = vmatprep.subr.mxu0 0.0
        %4507 = vmatpush1.msra.mxu0 0.0
        %4508 = vmatprep.subr.mxu0 0.0
        %4509 = vmatpush1.msra.mxu0 0.0
        %4510 = vmatprep.subr.mxu0 0.0
        %4511 = vmatpush1.msra.mxu0 0.0
        %4512 = vmatprep.subr.mxu0 0.0
        %4513 = vmatpush1.msra.mxu0 0.0
        %4514 = vmatprep.subr.mxu0 0.0
        %4515 = vmatpush1.msra.mxu0 0.0
        %4516 = vmatprep.subr.mxu0 0.0
        %4517 = vmatpush1.msra.mxu0 0.0
        %4518 = vmatprep.subr.mxu0 0.0
        %4519 = vmatpush1.msra.mxu0 0.0
        %4520 = vmatprep.subr.mxu0 0.0
        %4521 = vmatpush1.msra.mxu0 0.0
        %4522 = vmatprep.subr.mxu0 0.0
        %4523 = vmatpush1.msra.mxu0 0.0
        %4524 = vmatprep.subr.mxu0 0.0
        %4525 = vmatpush1.msra.mxu0 0.0
        %4526 = vmatprep.subr.mxu0 0.0
        %4527 = vmatpush1.msra.mxu0 0.0
        %4528 = vmatprep.subr.mxu0 0.0
        %4529 = vmatpush1.msra.mxu0 0.0
        %4530 = vmatprep.subr.mxu0 0.0
        %4531 = vmatpush1.msra.mxu0 0.0
        %4532 = vmatprep.subr.mxu0 0.0
        %4533 = vmatpush1.msra.mxu0 0.0
        %4534 = vmatprep.subr.mxu0 0.0
        %4535 = vmatpush1.msra.mxu0 0.0
        %4536 = vmatprep.subr.mxu0 0.0
        %4537 = vmatpush1.msra.mxu0 0.0
        %4538 = vmatprep.subr.mxu0 0.0
        %4539 = vmatpush1.msra.mxu0 0.0
        %4540 = vmatprep.subr.mxu0 0.0
        %4541 = vmatpush1.msra.mxu0 0.0
        %4542 = vmatprep.subr.mxu0 0.0
        %4543 = vmatpush1.msra.mxu0 0.0
        %4544 = vmatprep.subr.mxu0 0.0
        %4545 = vmatpush1.msra.mxu0 0.0
        %4546 = vmatprep.subr.mxu0 0.0
        %4547 = vmatpush1.msra.mxu0 0.0
        %4548 = vmatprep.subr.mxu0 0.0
        %4549 = vmatpush1.msra.mxu0 0.0
        %4550 = vmatprep.subr.mxu0 0.0
        %4551 = vmatpush1.msra.mxu0 0.0
        %4552 = vmatprep.subr.mxu0 0.0
        %4553 = vmatpush1.msra.mxu0 0.0
        %4554 = vmatprep.subr.mxu0 0.0
        %4555 = vmatpush1.msra.mxu0 0.0
        %4556 = vmatprep.mubr.f32.mxu0 0.0
        %v4557 = vand.u32 %v4309, 4294901760
        %v4558 = vsub.f32 %v4309, %v4557
        %4559 = vmatmul.mubr.f32.gmra.mrb[0].mxu0 %v4558
        %v4560 = vpop.f32.mrb[0].mxu0
        %v4561 = vadd.f32 %v4479, %v4560
        %v4562 = vpop.f32.mrb[0].mxu0
        %4563 = vmatprep.mubr.f32.mxu0 0.0
        %v4564 = vand.u32 %v4312, 4294901760
        %v4565 = vsub.f32 %v4312, %v4564
        %4566 = vmatmul.mubr.f32.gmra.mrb[0].mxu0 %v4565
        %v4567 = vpop.f32.mrb[0].mxu0
        %v4568 = vadd.f32 %v4485, %v4567
        %v4569 = vpop.f32.mrb[0].mxu0
        %4570 = vdwg.mxu0
        %4571 = vmatprep.subr.mxu0 0.0
        %v4572 = vand.u32 %v4306, 4294901760
        %4573 = vmatpush1.msra.mxu0 %v4572
        %4574 = vmatprep.subr.mxu0 0.0
        %v4575 = vand.u32 %v4307, 4294901760
        %4576 = vmatpush1.msra.mxu0 %v4575
        %4577 = vmatprep.subr.mxu0 0.0
        %4578 = vmatpush1.msra.mxu0 0.0
        %4579 = vmatprep.subr.mxu0 0.0
        %4580 = vmatpush1.msra.mxu0 0.0
        %4581 = vmatprep.subr.mxu0 0.0
        %4582 = vmatpush1.msra.mxu0 0.0
        %4583 = vmatprep.subr.mxu0 0.0
        %4584 = vmatpush1.msra.mxu0 0.0
        %4585 = vmatprep.subr.mxu0 0.0
        %4586 = vmatpush1.msra.mxu0 0.0
        %4587 = vmatprep.subr.mxu0 0.0
        %4588 = vmatpush1.msra.mxu0 0.0
        %4589 = vmatprep.subr.mxu0 0.0
        %4590 = vmatpush1.msra.mxu0 0.0
        %4591 = vmatprep.subr.mxu0 0.0
        %4592 = vmatpush1.msra.mxu0 0.0
        %4593 = vmatprep.subr.mxu0 0.0
        %4594 = vmatpush1.msra.mxu0 0.0
        %4595 = vmatprep.subr.mxu0 0.0
        %4596 = vmatpush1.msra.mxu0 0.0
        %4597 = vmatprep.subr.mxu0 0.0
        %4598 = vmatpush1.msra.mxu0 0.0
        %4599 = vmatprep.subr.mxu0 0.0
        %4600 = vmatpush1.msra.mxu0 0.0
        %4601 = vmatprep.subr.mxu0 0.0
        %4602 = vmatpush1.msra.mxu0 0.0
        %4603 = vmatprep.subr.mxu0 0.0
        %4604 = vmatpush1.msra.mxu0 0.0
        %4605 = vmatprep.subr.mxu0 0.0
        %4606 = vmatpush1.msra.mxu0 0.0
        %4607 = vmatprep.subr.mxu0 0.0
        %4608 = vmatpush1.msra.mxu0 0.0
        %4609 = vmatprep.subr.mxu0 0.0
        %4610 = vmatpush1.msra.mxu0 0.0
        %4611 = vmatprep.subr.mxu0 0.0
        %4612 = vmatpush1.msra.mxu0 0.0
        %4613 = vmatprep.subr.mxu0 0.0
        %4614 = vmatpush1.msra.mxu0 0.0
        %4615 = vmatprep.subr.mxu0 0.0
        %4616 = vmatpush1.msra.mxu0 0.0
        %4617 = vmatprep.subr.mxu0 0.0
        %4618 = vmatpush1.msra.mxu0 0.0
        %4619 = vmatprep.subr.mxu0 0.0
        %4620 = vmatpush1.msra.mxu0 0.0
        %4621 = vmatprep.subr.mxu0 0.0
        %4622 = vmatpush1.msra.mxu0 0.0
        %4623 = vmatprep.subr.mxu0 0.0
        %4624 = vmatpush1.msra.mxu0 0.0
        %4625 = vmatprep.subr.mxu0 0.0
        %4626 = vmatpush1.msra.mxu0 0.0
        %4627 = vmatprep.subr.mxu0 0.0
        %4628 = vmatpush1.msra.mxu0 0.0
        %4629 = vmatprep.subr.mxu0 0.0
        %4630 = vmatpush1.msra.mxu0 0.0
        %4631 = vmatprep.subr.mxu0 0.0
        %4632 = vmatpush1.msra.mxu0 0.0
        %4633 = vmatprep.subr.mxu0 0.0
        %4634 = vmatpush1.msra.mxu0 0.0
        %4635 = vmatprep.subr.mxu0 0.0
        %4636 = vmatpush1.msra.mxu0 0.0
        %4637 = vmatprep.mubr.f32.mxu0 0.0
        %v4638 = vand.u32 %v4309, 4294901760
        %v4639 = vsub.f32 %v4309, %v4638
        %v4640 = vand.u32 %v4639, 4294901760
        %4641 = vmatmul.mubr.f32.gmra.mrb[0].mxu0 %v4640
        %v4642 = vpop.f32.mrb[0].mxu0
        %v4643 = vadd.f32 %v4561, %v4642
        %v4644 = vpop.f32.mrb[0].mxu0
        %4645 = vmatprep.mubr.f32.mxu0 0.0
        %v4646 = vand.u32 %v4312, 4294901760
        %v4647 = vsub.f32 %v4312, %v4646
        %v4648 = vand.u32 %v4647, 4294901760
        %4649 = vmatmul.mubr.f32.gmra.mrb[0].mxu0 %v4648
        %v4650 = vpop.f32.mrb[0].mxu0
        %v4651 = vadd.f32 %v4568, %v4650
        %v4652 = vpop.f32.mrb[0].mxu0
        %4653 = vdwg.mxu0
        %4654 = vmatprep.subr.mxu0 0.0
        %v4655 = vand.u32 %v4306, 4294901760
        %v4656 = vsub.f32 %v4306, %v4655
        %v4657 = vand.u32 %v4656, 4294901760
        %4658 = vmatpush1.msra.mxu0 %v4657
        %4659 = vmatprep.subr.mxu0 0.0
        %v4660 = vand.u32 %v4307, 4294901760
        %v4661 = vsub.f32 %v4307, %v4660
        %v4662 = vand.u32 %v4661, 4294901760
        %4663 = vmatpush1.msra.mxu0 %v4662
        %4664 = vmatprep.subr.mxu0 0.0
        %4665 = vmatpush1.msra.mxu0 0.0
        %4666 = vmatprep.subr.mxu0 0.0
        %4667 = vmatpush1.msra.mxu0 0.0
        %4668 = vmatprep.subr.mxu0 0.0
        %4669 = vmatpush1.msra.mxu0 0.0
        %4670 = vmatprep.subr.mxu0 0.0
        %4671 = vmatpush1.msra.mxu0 0.0
        %4672 = vmatprep.subr.mxu0 0.0
        %4673 = vmatpush1.msra.mxu0 0.0
        %4674 = vmatprep.subr.mxu0 0.0
        %4675 = vmatpush1.msra.mxu0 0.0
        %4676 = vmatprep.subr.mxu0 0.0
        %4677 = vmatpush1.msra.mxu0 0.0
        %4678 = vmatprep.subr.mxu0 0.0
        %4679 = vmatpush1.msra.mxu0 0.0
        %4680 = vmatprep.subr.mxu0 0.0
        %4681 = vmatpush1.msra.mxu0 0.0
        %4682 = vmatprep.subr.mxu0 0.0
        %4683 = vmatpush1.msra.mxu0 0.0
        %4684 = vmatprep.subr.mxu0 0.0
        %4685 = vmatpush1.msra.mxu0 0.0
        %4686 = vmatprep.subr.mxu0 0.0
        %4687 = vmatpush1.msra.mxu0 0.0
        %4688 = vmatprep.subr.mxu0 0.0
        %4689 = vmatpush1.msra.mxu0 0.0
        %4690 = vmatprep.subr.mxu0 0.0
        %4691 = vmatpush1.msra.mxu0 0.0
        %4692 = vmatprep.subr.mxu0 0.0
        %4693 = vmatpush1.msra.mxu0 0.0
        %4694 = vmatprep.subr.mxu0 0.0
        %4695 = vmatpush1.msra.mxu0 0.0
        %4696 = vmatprep.subr.mxu0 0.0
        %4697 = vmatpush1.msra.mxu0 0.0
        %4698 = vmatprep.subr.mxu0 0.0
        %4699 = vmatpush1.msra.mxu0 0.0
        %4700 = vmatprep.subr.mxu0 0.0
        %4701 = vmatpush1.msra.mxu0 0.0
        %4702 = vmatprep.subr.mxu0 0.0
        %4703 = vmatpush1.msra.mxu0 0.0
        %4704 = vmatprep.subr.mxu0 0.0
        %4705 = vmatpush1.msra.mxu0 0.0
        %4706 = vmatprep.subr.mxu0 0.0
        %4707 = vmatpush1.msra.mxu0 0.0
        %4708 = vmatprep.subr.mxu0 0.0
        %4709 = vmatpush1.msra.mxu0 0.0
        %4710 = vmatprep.subr.mxu0 0.0
        %4711 = vmatpush1.msra.mxu0 0.0
        %4712 = vmatprep.subr.mxu0 0.0
        %4713 = vmatpush1.msra.mxu0 0.0
        %4714 = vmatprep.subr.mxu0 0.0
        %4715 = vmatpush1.msra.mxu0 0.0
        %4716 = vmatprep.subr.mxu0 0.0
        %4717 = vmatpush1.msra.mxu0 0.0
        %4718 = vmatprep.subr.mxu0 0.0
        %4719 = vmatpush1.msra.mxu0 0.0
        %4720 = vmatprep.subr.mxu0 0.0
        %4721 = vmatpush1.msra.mxu0 0.0
        %4722 = vmatprep.subr.mxu0 0.0
        %4723 = vmatpush1.msra.mxu0 0.0
        %4724 = vmatprep.mubr.f32.mxu0 0.0
        %v4725 = vand.u32 %v4309, 4294901760
        %4726 = vmatmul.mubr.f32.gmra.mrb[0].mxu0 %v4725
        %v4727 = vpop.f32.mrb[0].mxu0
        %v4728 = vadd.f32 %v4643, %v4727
        %v4729 = vpop.f32.mrb[0].mxu0
        %4730 = vmatprep.mubr.f32.mxu0 0.0
        %v4731 = vand.u32 %v4312, 4294901760
        %4732 = vmatmul.mubr.f32.gmra.mrb[0].mxu0 %v4731
        %v4733 = vpop.f32.mrb[0].mxu0
        %v4734 = vadd.f32 %v4651, %v4733
        %v4735 = vpop.f32.mrb[0].mxu0
        %4736 = vdwg.mxu0
        %4737 = vmatprep.subr.mxu0 0.0
        %v4738 = vand.u32 %v4306, 4294901760
        %4739 = vmatpush1.msra.mxu0 %v4738
        %4740 = vmatprep.subr.mxu0 0.0
        %v4741 = vand.u32 %v4307, 4294901760
        %4742 = vmatpush1.msra.mxu0 %v4741
        %4743 = vmatprep.subr.mxu0 0.0
        %4744 = vmatpush1.msra.mxu0 0.0
        %4745 = vmatprep.subr.mxu0 0.0
        %4746 = vmatpush1.msra.mxu0 0.0
        %4747 = vmatprep.subr.mxu0 0.0
        %4748 = vmatpush1.msra.mxu0 0.0
        %4749 = vmatprep.subr.mxu0 0.0
        %4750 = vmatpush1.msra.mxu0 0.0
        %4751 = vmatprep.subr.mxu0 0.0
        %4752 = vmatpush1.msra.mxu0 0.0
        %4753 = vmatprep.subr.mxu0 0.0
        %4754 = vmatpush1.msra.mxu0 0.0
        %4755 = vmatprep.subr.mxu0 0.0
        %4756 = vmatpush1.msra.mxu0 0.0
        %4757 = vmatprep.subr.mxu0 0.0
        %4758 = vmatpush1.msra.mxu0 0.0
        %4759 = vmatprep.subr.mxu0 0.0
        %4760 = vmatpush1.msra.mxu0 0.0
        %4761 = vmatprep.subr.mxu0 0.0
        %4762 = vmatpush1.msra.mxu0 0.0
        %4763 = vmatprep.subr.mxu0 0.0
        %4764 = vmatpush1.msra.mxu0 0.0
        %4765 = vmatprep.subr.mxu0 0.0
        %4766 = vmatpush1.msra.mxu0 0.0
        %4767 = vmatprep.subr.mxu0 0.0
        %4768 = vmatpush1.msra.mxu0 0.0
        %4769 = vmatprep.subr.mxu0 0.0
        %4770 = vmatpush1.msra.mxu0 0.0
        %4771 = vmatprep.subr.mxu0 0.0
        %4772 = vmatpush1.msra.mxu0 0.0
        %4773 = vmatprep.subr.mxu0 0.0
        %4774 = vmatpush1.msra.mxu0 0.0
        %4775 = vmatprep.subr.mxu0 0.0
        %4776 = vmatpush1.msra.mxu0 0.0
        %4777 = vmatprep.subr.mxu0 0.0
        %4778 = vmatpush1.msra.mxu0 0.0
        %4779 = vmatprep.subr.mxu0 0.0
        %4780 = vmatpush1.msra.mxu0 0.0
        %4781 = vmatprep.subr.mxu0 0.0
        %4782 = vmatpush1.msra.mxu0 0.0
        %4783 = vmatprep.subr.mxu0 0.0
        %4784 = vmatpush1.msra.mxu0 0.0
        %4785 = vmatprep.subr.mxu0 0.0
        %4786 = vmatpush1.msra.mxu0 0.0
        %4787 = vmatprep.subr.mxu0 0.0
        %4788 = vmatpush1.msra.mxu0 0.0
        %4789 = vmatprep.subr.mxu0 0.0
        %4790 = vmatpush1.msra.mxu0 0.0
        %4791 = vmatprep.subr.mxu0 0.0
        %4792 = vmatpush1.msra.mxu0 0.0
        %4793 = vmatprep.subr.mxu0 0.0
        %4794 = vmatpush1.msra.mxu0 0.0
        %4795 = vmatprep.subr.mxu0 0.0
        %4796 = vmatpush1.msra.mxu0 0.0
        %4797 = vmatprep.subr.mxu0 0.0
        %4798 = vmatpush1.msra.mxu0 0.0
        %4799 = vmatprep.subr.mxu0 0.0
        %4800 = vmatpush1.msra.mxu0 0.0
        %4801 = vmatprep.subr.mxu0 0.0
        %4802 = vmatpush1.msra.mxu0 0.0
        %4803 = vmatprep.mubr.f32.mxu0 0.0
        %v4804 = vand.u32 %v4309, 4294901760
        %4805 = vmatmul.mubr.f32.gmra.mrb[0].mxu0 %v4804
        %v4806 = vpop.f32.mrb[0].mxu0
        %v4807 = vadd.f32 %v4728, %v4806
        %v4808 = vpop.f32.mrb[0].mxu0
        %4809 = vmatprep.mubr.f32.mxu0 0.0
        %v4810 = vand.u32 %v4312, 4294901760
        %4811 = vmatmul.mubr.f32.gmra.mrb[0].mxu0 %v4810
        %v4812 = vpop.f32.mrb[0].mxu0
        %v4813 = vadd.f32 %v4734, %v4812
        %v4814 = vpop.f32.mrb[0].mxu0
        %4815 = vdwg.mxu0
        %v4816 = vadd.f32 %v3786, %v4807
        %v4817 = vadd.f32 %v3787, %v4813
        %v4818 = vld [vmem:[%s189 + $0x7] sm:$0xff]
        %v4819 = vld [vmem:[%s189 + $0xf] sm:$0xff]
        %s4820 = scalar_lea.vmem %s0, 144
        %v4821 = vld [vmem:[%s4820] sm:$0xff]
        %v4822 = vld [vmem:[%s4820 + $0x8] sm:$0xff]
        %v4824 = vsel %vm155, %v4818, 0
        %v4827 = vsel %vm155, %v4819, 0
        %4829 = vmatprep.subr.mxu0 0.0
        %v4830 = vand.u32 %v4821, 4294901760
        %4831 = vmatpush1.msra.mxu0 %v4830
        %4832 = vmatprep.subr.mxu0 0.0
        %v4833 = vand.u32 %v4822, 4294901760
        %4834 = vmatpush1.msra.mxu0 %v4833
        %4835 = vmatprep.subr.mxu0 0.0
        %4836 = vmatpush1.msra.mxu0 0.0
        %4837 = vmatprep.subr.mxu0 0.0
        %4838 = vmatpush1.msra.mxu0 0.0
        %4839 = vmatprep.subr.mxu0 0.0
        %4840 = vmatpush1.msra.mxu0 0.0
        %4841 = vmatprep.subr.mxu0 0.0
        %4842 = vmatpush1.msra.mxu0 0.0
        %4843 = vmatprep.subr.mxu0 0.0
        %4844 = vmatpush1.msra.mxu0 0.0
        %4845 = vmatprep.subr.mxu0 0.0
        %4846 = vmatpush1.msra.mxu0 0.0
        %4847 = vmatprep.subr.mxu0 0.0
        %4848 = vmatpush1.msra.mxu0 0.0
        %4849 = vmatprep.subr.mxu0 0.0
        %4850 = vmatpush1.msra.mxu0 0.0
        %4851 = vmatprep.subr.mxu0 0.0
        %4852 = vmatpush1.msra.mxu0 0.0
        %4853 = vmatprep.subr.mxu0 0.0
        %4854 = vmatpush1.msra.mxu0 0.0
        %4855 = vmatprep.subr.mxu0 0.0
        %4856 = vmatpush1.msra.mxu0 0.0
        %4857 = vmatprep.subr.mxu0 0.0
        %4858 = vmatpush1.msra.mxu0 0.0
        %4859 = vmatprep.subr.mxu0 0.0
        %4860 = vmatpush1.msra.mxu0 0.0
        %4861 = vmatprep.subr.mxu0 0.0
        %4862 = vmatpush1.msra.mxu0 0.0
        %4863 = vmatprep.subr.mxu0 0.0
        %4864 = vmatpush1.msra.mxu0 0.0
        %4865 = vmatprep.subr.mxu0 0.0
        %4866 = vmatpush1.msra.mxu0 0.0
        %4867 = vmatprep.subr.mxu0 0.0
        %4868 = vmatpush1.msra.mxu0 0.0
        %4869 = vmatprep.subr.mxu0 0.0
        %4870 = vmatpush1.msra.mxu0 0.0
        %4871 = vmatprep.subr.mxu0 0.0
        %4872 = vmatpush1.msra.mxu0 0.0
        %4873 = vmatprep.subr.mxu0 0.0
        %4874 = vmatpush1.msra.mxu0 0.0
        %4875 = vmatprep.subr.mxu0 0.0
        %4876 = vmatpush1.msra.mxu0 0.0
        %4877 = vmatprep.subr.mxu0 0.0
        %4878 = vmatpush1.msra.mxu0 0.0
        %4879 = vmatprep.subr.mxu0 0.0
        %4880 = vmatpush1.msra.mxu0 0.0
        %4881 = vmatprep.subr.mxu0 0.0
        %4882 = vmatpush1.msra.mxu0 0.0
        %4883 = vmatprep.subr.mxu0 0.0
        %4884 = vmatpush1.msra.mxu0 0.0
        %4885 = vmatprep.subr.mxu0 0.0
        %4886 = vmatpush1.msra.mxu0 0.0
        %4887 = vmatprep.subr.mxu0 0.0
        %4888 = vmatpush1.msra.mxu0 0.0
        %4889 = vmatprep.subr.mxu0 0.0
        %4890 = vmatpush1.msra.mxu0 0.0
        %4891 = vmatprep.subr.mxu0 0.0
        %4892 = vmatpush1.msra.mxu0 0.0
        %4893 = vmatprep.subr.mxu0 0.0
        %4894 = vmatpush1.msra.mxu0 0.0
        %4895 = vmatprep.mubr.f32.mxu0 0.0
        %v4896 = vand.u32 %v4824, 4294901760
        %v4897 = vsub.f32 %v4824, %v4896
        %v4898 = vand.u32 %v4897, 4294901760
        %v4899 = vsub.f32 %v4897, %v4898
        %v4900 = vand.u32 %v4899, 4294901760
        %4901 = vmatmul.mubr.f32.gmra.mrb[0].mxu0 %v4900
        %v4902 = vpop.f32.mrb[0].mxu0
        %v4903 = vadd.f32 0.0, %v4902
        %v4904 = vpop.f32.mrb[0].mxu0
        %4905 = vmatprep.mubr.f32.mxu0 0.0
        %v4906 = vand.u32 %v4827, 4294901760
        %v4907 = vsub.f32 %v4827, %v4906
        %v4908 = vand.u32 %v4907, 4294901760
        %v4909 = vsub.f32 %v4907, %v4908
        %v4910 = vand.u32 %v4909, 4294901760
        %4911 = vmatmul.mubr.f32.gmra.mrb[0].mxu0 %v4910
        %v4912 = vpop.f32.mrb[0].mxu0
        %v4913 = vadd.f32 0.0, %v4912
        %v4914 = vpop.f32.mrb[0].mxu0
        %4915 = vdwg.mxu0
        %4916 = vmatprep.subr.mxu0 0.0
        %v4917 = vand.u32 %v4821, 4294901760
        %v4918 = vsub.f32 %v4821, %v4917
        %v4919 = vand.u32 %v4918, 4294901760
        %v4920 = vsub.f32 %v4918, %v4919
        %v4921 = vand.u32 %v4920, 4294901760
        %4922 = vmatpush1.msra.mxu0 %v4921
        %4923 = vmatprep.subr.mxu0 0.0
        %v4924 = vand.u32 %v4822, 4294901760
        %v4925 = vsub.f32 %v4822, %v4924
        %v4926 = vand.u32 %v4925, 4294901760
        %v4927 = vsub.f32 %v4925, %v4926
        %v4928 = vand.u32 %v4927, 4294901760
        %4929 = vmatpush1.msra.mxu0 %v4928
        %4930 = vmatprep.subr.mxu0 0.0
        %4931 = vmatpush1.msra.mxu0 0.0
        %4932 = vmatprep.subr.mxu0 0.0
        %4933 = vmatpush1.msra.mxu0 0.0
        %4934 = vmatprep.subr.mxu0 0.0
        %4935 = vmatpush1.msra.mxu0 0.0
        %4936 = vmatprep.subr.mxu0 0.0
        %4937 = vmatpush1.msra.mxu0 0.0
        %4938 = vmatprep.subr.mxu0 0.0
        %4939 = vmatpush1.msra.mxu0 0.0
        %4940 = vmatprep.subr.mxu0 0.0
        %4941 = vmatpush1.msra.mxu0 0.0
        %4942 = vmatprep.subr.mxu0 0.0
        %4943 = vmatpush1.msra.mxu0 0.0
        %4944 = vmatprep.subr.mxu0 0.0
        %4945 = vmatpush1.msra.mxu0 0.0
        %4946 = vmatprep.subr.mxu0 0.0
        %4947 = vmatpush1.msra.mxu0 0.0
        %4948 = vmatprep.subr.mxu0 0.0
        %4949 = vmatpush1.msra.mxu0 0.0
        %4950 = vmatprep.subr.mxu0 0.0
        %4951 = vmatpush1.msra.mxu0 0.0
        %4952 = vmatprep.subr.mxu0 0.0
        %4953 = vmatpush1.msra.mxu0 0.0
        %4954 = vmatprep.subr.mxu0 0.0
        %4955 = vmatpush1.msra.mxu0 0.0
        %4956 = vmatprep.subr.mxu0 0.0
        %4957 = vmatpush1.msra.mxu0 0.0
        %4958 = vmatprep.subr.mxu0 0.0
        %4959 = vmatpush1.msra.mxu0 0.0
        %4960 = vmatprep.subr.mxu0 0.0
        %4961 = vmatpush1.msra.mxu0 0.0
        %4962 = vmatprep.subr.mxu0 0.0
        %4963 = vmatpush1.msra.mxu0 0.0
        %4964 = vmatprep.subr.mxu0 0.0
        %4965 = vmatpush1.msra.mxu0 0.0
        %4966 = vmatprep.subr.mxu0 0.0
        %4967 = vmatpush1.msra.mxu0 0.0
        %4968 = vmatprep.subr.mxu0 0.0
        %4969 = vmatpush1.msra.mxu0 0.0
        %4970 = vmatprep.subr.mxu0 0.0
        %4971 = vmatpush1.msra.mxu0 0.0
        %4972 = vmatprep.subr.mxu0 0.0
        %4973 = vmatpush1.msra.mxu0 0.0
        %4974 = vmatprep.subr.mxu0 0.0
        %4975 = vmatpush1.msra.mxu0 0.0
        %4976 = vmatprep.subr.mxu0 0.0
        %4977 = vmatpush1.msra.mxu0 0.0
        %4978 = vmatprep.subr.mxu0 0.0
        %4979 = vmatpush1.msra.mxu0 0.0
        %4980 = vmatprep.subr.mxu0 0.0
        %4981 = vmatpush1.msra.mxu0 0.0
        %4982 = vmatprep.subr.mxu0 0.0
        %4983 = vmatpush1.msra.mxu0 0.0
        %4984 = vmatprep.subr.mxu0 0.0
        %4985 = vmatpush1.msra.mxu0 0.0
        %4986 = vmatprep.subr.mxu0 0.0
        %4987 = vmatpush1.msra.mxu0 0.0
        %4988 = vmatprep.subr.mxu0 0.0
        %4989 = vmatpush1.msra.mxu0 0.0
        %4990 = vmatprep.mubr.f32.mxu0 0.0
        %v4991 = vand.u32 %v4824, 4294901760
        %4992 = vmatmul.mubr.f32.gmra.mrb[0].mxu0 %v4991
        %v4993 = vpop.f32.mrb[0].mxu0
        %v4994 = vadd.f32 %v4903, %v4993
        %v4995 = vpop.f32.mrb[0].mxu0
        %4996 = vmatprep.mubr.f32.mxu0 0.0
        %v4997 = vand.u32 %v4827, 4294901760
        %4998 = vmatmul.mubr.f32.gmra.mrb[0].mxu0 %v4997
        %v4999 = vpop.f32.mrb[0].mxu0
        %v5000 = vadd.f32 %v4913, %v4999
        %v5001 = vpop.f32.mrb[0].mxu0
        %5002 = vdwg.mxu0
        %5003 = vmatprep.subr.mxu0 0.0
        %v5004 = vand.u32 %v4821, 4294901760
        %v5005 = vsub.f32 %v4821, %v5004
        %5006 = vmatpush1.msra.mxu0 %v5005
        %5007 = vmatprep.subr.mxu0 0.0
        %v5008 = vand.u32 %v4822, 4294901760
        %v5009 = vsub.f32 %v4822, %v5008
        %5010 = vmatpush1.msra.mxu0 %v5009
        %5011 = vmatprep.subr.mxu0 0.0
        %5012 = vmatpush1.msra.mxu0 0.0
        %5013 = vmatprep.subr.mxu0 0.0
        %5014 = vmatpush1.msra.mxu0 0.0
        %5015 = vmatprep.subr.mxu0 0.0
        %5016 = vmatpush1.msra.mxu0 0.0
        %5017 = vmatprep.subr.mxu0 0.0
        %5018 = vmatpush1.msra.mxu0 0.0
        %5019 = vmatprep.subr.mxu0 0.0
        %5020 = vmatpush1.msra.mxu0 0.0
        %5021 = vmatprep.subr.mxu0 0.0
        %5022 = vmatpush1.msra.mxu0 0.0
        %5023 = vmatprep.subr.mxu0 0.0
        %5024 = vmatpush1.msra.mxu0 0.0
        %5025 = vmatprep.subr.mxu0 0.0
        %5026 = vmatpush1.msra.mxu0 0.0
        %5027 = vmatprep.subr.mxu0 0.0
        %5028 = vmatpush1.msra.mxu0 0.0
        %5029 = vmatprep.subr.mxu0 0.0
        %5030 = vmatpush1.msra.mxu0 0.0
        %5031 = vmatprep.subr.mxu0 0.0
        %5032 = vmatpush1.msra.mxu0 0.0
        %5033 = vmatprep.subr.mxu0 0.0
        %5034 = vmatpush1.msra.mxu0 0.0
        %5035 = vmatprep.subr.mxu0 0.0
        %5036 = vmatpush1.msra.mxu0 0.0
        %5037 = vmatprep.subr.mxu0 0.0
        %5038 = vmatpush1.msra.mxu0 0.0
        %5039 = vmatprep.subr.mxu0 0.0
        %5040 = vmatpush1.msra.mxu0 0.0
        %5041 = vmatprep.subr.mxu0 0.0
        %5042 = vmatpush1.msra.mxu0 0.0
        %5043 = vmatprep.subr.mxu0 0.0
        %5044 = vmatpush1.msra.mxu0 0.0
        %5045 = vmatprep.subr.mxu0 0.0
        %5046 = vmatpush1.msra.mxu0 0.0
        %5047 = vmatprep.subr.mxu0 0.0
        %5048 = vmatpush1.msra.mxu0 0.0
        %5049 = vmatprep.subr.mxu0 0.0
        %5050 = vmatpush1.msra.mxu0 0.0
        %5051 = vmatprep.subr.mxu0 0.0
        %5052 = vmatpush1.msra.mxu0 0.0
        %5053 = vmatprep.subr.mxu0 0.0
        %5054 = vmatpush1.msra.mxu0 0.0
        %5055 = vmatprep.subr.mxu0 0.0
        %5056 = vmatpush1.msra.mxu0 0.0
        %5057 = vmatprep.subr.mxu0 0.0
        %5058 = vmatpush1.msra.mxu0 0.0
        %5059 = vmatprep.subr.mxu0 0.0
        %5060 = vmatpush1.msra.mxu0 0.0
        %5061 = vmatprep.subr.mxu0 0.0
        %5062 = vmatpush1.msra.mxu0 0.0
        %5063 = vmatprep.subr.mxu0 0.0
        %5064 = vmatpush1.msra.mxu0 0.0
        %5065 = vmatprep.subr.mxu0 0.0
        %5066 = vmatpush1.msra.mxu0 0.0
        %5067 = vmatprep.subr.mxu0 0.0
        %5068 = vmatpush1.msra.mxu0 0.0
        %5069 = vmatprep.subr.mxu0 0.0
        %5070 = vmatpush1.msra.mxu0 0.0
        %5071 = vmatprep.mubr.f32.mxu0 0.0
        %v5072 = vand.u32 %v4824, 4294901760
        %v5073 = vsub.f32 %v4824, %v5072
        %5074 = vmatmul.mubr.f32.gmra.mrb[0].mxu0 %v5073
        %v5075 = vpop.f32.mrb[0].mxu0
        %v5076 = vadd.f32 %v4994, %v5075
        %v5077 = vpop.f32.mrb[0].mxu0
        %5078 = vmatprep.mubr.f32.mxu0 0.0
        %v5079 = vand.u32 %v4827, 4294901760
        %v5080 = vsub.f32 %v4827, %v5079
        %5081 = vmatmul.mubr.f32.gmra.mrb[0].mxu0 %v5080
        %v5082 = vpop.f32.mrb[0].mxu0
        %v5083 = vadd.f32 %v5000, %v5082
        %v5084 = vpop.f32.mrb[0].mxu0
        %5085 = vdwg.mxu0
        %5086 = vmatprep.subr.mxu0 0.0
        %v5087 = vand.u32 %v4821, 4294901760
        %5088 = vmatpush1.msra.mxu0 %v5087
        %5089 = vmatprep.subr.mxu0 0.0
        %v5090 = vand.u32 %v4822, 4294901760
        %5091 = vmatpush1.msra.mxu0 %v5090
        %5092 = vmatprep.subr.mxu0 0.0
        %5093 = vmatpush1.msra.mxu0 0.0
        %5094 = vmatprep.subr.mxu0 0.0
        %5095 = vmatpush1.msra.mxu0 0.0
        %5096 = vmatprep.subr.mxu0 0.0
        %5097 = vmatpush1.msra.mxu0 0.0
        %5098 = vmatprep.subr.mxu0 0.0
        %5099 = vmatpush1.msra.mxu0 0.0
        %5100 = vmatprep.subr.mxu0 0.0
        %5101 = vmatpush1.msra.mxu0 0.0
        %5102 = vmatprep.subr.mxu0 0.0
        %5103 = vmatpush1.msra.mxu0 0.0
        %5104 = vmatprep.subr.mxu0 0.0
        %5105 = vmatpush1.msra.mxu0 0.0
        %5106 = vmatprep.subr.mxu0 0.0
        %5107 = vmatpush1.msra.mxu0 0.0
        %5108 = vmatprep.subr.mxu0 0.0
        %5109 = vmatpush1.msra.mxu0 0.0
        %5110 = vmatprep.subr.mxu0 0.0
        %5111 = vmatpush1.msra.mxu0 0.0
        %5112 = vmatprep.subr.mxu0 0.0
        %5113 = vmatpush1.msra.mxu0 0.0
        %5114 = vmatprep.subr.mxu0 0.0
        %5115 = vmatpush1.msra.mxu0 0.0
        %5116 = vmatprep.subr.mxu0 0.0
        %5117 = vmatpush1.msra.mxu0 0.0
        %5118 = vmatprep.subr.mxu0 0.0
        %5119 = vmatpush1.msra.mxu0 0.0
        %5120 = vmatprep.subr.mxu0 0.0
        %5121 = vmatpush1.msra.mxu0 0.0
        %5122 = vmatprep.subr.mxu0 0.0
        %5123 = vmatpush1.msra.mxu0 0.0
        %5124 = vmatprep.subr.mxu0 0.0
        %5125 = vmatpush1.msra.mxu0 0.0
        %5126 = vmatprep.subr.mxu0 0.0
        %5127 = vmatpush1.msra.mxu0 0.0
        %5128 = vmatprep.subr.mxu0 0.0
        %5129 = vmatpush1.msra.mxu0 0.0
        %5130 = vmatprep.subr.mxu0 0.0
        %5131 = vmatpush1.msra.mxu0 0.0
        %5132 = vmatprep.subr.mxu0 0.0
        %5133 = vmatpush1.msra.mxu0 0.0
        %5134 = vmatprep.subr.mxu0 0.0
        %5135 = vmatpush1.msra.mxu0 0.0
        %5136 = vmatprep.subr.mxu0 0.0
        %5137 = vmatpush1.msra.mxu0 0.0
        %5138 = vmatprep.subr.mxu0 0.0
        %5139 = vmatpush1.msra.mxu0 0.0
        %5140 = vmatprep.subr.mxu0 0.0
        %5141 = vmatpush1.msra.mxu0 0.0
        %5142 = vmatprep.subr.mxu0 0.0
        %5143 = vmatpush1.msra.mxu0 0.0
        %5144 = vmatprep.subr.mxu0 0.0
        %5145 = vmatpush1.msra.mxu0 0.0
        %5146 = vmatprep.subr.mxu0 0.0
        %5147 = vmatpush1.msra.mxu0 0.0
        %5148 = vmatprep.subr.mxu0 0.0
        %5149 = vmatpush1.msra.mxu0 0.0
        %5150 = vmatprep.subr.mxu0 0.0
        %5151 = vmatpush1.msra.mxu0 0.0
        %5152 = vmatprep.mubr.f32.mxu0 0.0
        %v5153 = vand.u32 %v4824, 4294901760
        %v5154 = vsub.f32 %v4824, %v5153
        %v5155 = vand.u32 %v5154, 4294901760
        %5156 = vmatmul.mubr.f32.gmra.mrb[0].mxu0 %v5155
        %v5157 = vpop.f32.mrb[0].mxu0
        %v5158 = vadd.f32 %v5076, %v5157
        %v5159 = vpop.f32.mrb[0].mxu0
        %5160 = vmatprep.mubr.f32.mxu0 0.0
        %v5161 = vand.u32 %v4827, 4294901760
        %v5162 = vsub.f32 %v4827, %v5161
        %v5163 = vand.u32 %v5162, 4294901760
        %5164 = vmatmul.mubr.f32.gmra.mrb[0].mxu0 %v5163
        %v5165 = vpop.f32.mrb[0].mxu0
        %v5166 = vadd.f32 %v5083, %v5165
        %v5167 = vpop.f32.mrb[0].mxu0
        %5168 = vdwg.mxu0
        %5169 = vmatprep.subr.mxu0 0.0
        %v5170 = vand.u32 %v4821, 4294901760
        %v5171 = vsub.f32 %v4821, %v5170
        %v5172 = vand.u32 %v5171, 4294901760
        %5173 = vmatpush1.msra.mxu0 %v5172
        %5174 = vmatprep.subr.mxu0 0.0
        %v5175 = vand.u32 %v4822, 4294901760
        %v5176 = vsub.f32 %v4822, %v5175
        %v5177 = vand.u32 %v5176, 4294901760
        %5178 = vmatpush1.msra.mxu0 %v5177
        %5179 = vmatprep.subr.mxu0 0.0
        %5180 = vmatpush1.msra.mxu0 0.0
        %5181 = vmatprep.subr.mxu0 0.0
        %5182 = vmatpush1.msra.mxu0 0.0
        %5183 = vmatprep.subr.mxu0 0.0
        %5184 = vmatpush1.msra.mxu0 0.0
        %5185 = vmatprep.subr.mxu0 0.0
        %5186 = vmatpush1.msra.mxu0 0.0
        %5187 = vmatprep.subr.mxu0 0.0
        %5188 = vmatpush1.msra.mxu0 0.0
        %5189 = vmatprep.subr.mxu0 0.0
        %5190 = vmatpush1.msra.mxu0 0.0
        %5191 = vmatprep.subr.mxu0 0.0
        %5192 = vmatpush1.msra.mxu0 0.0
        %5193 = vmatprep.subr.mxu0 0.0
        %5194 = vmatpush1.msra.mxu0 0.0
        %5195 = vmatprep.subr.mxu0 0.0
        %5196 = vmatpush1.msra.mxu0 0.0
        %5197 = vmatprep.subr.mxu0 0.0
        %5198 = vmatpush1.msra.mxu0 0.0
        %5199 = vmatprep.subr.mxu0 0.0
        %5200 = vmatpush1.msra.mxu0 0.0
        %5201 = vmatprep.subr.mxu0 0.0
        %5202 = vmatpush1.msra.mxu0 0.0
        %5203 = vmatprep.subr.mxu0 0.0
        %5204 = vmatpush1.msra.mxu0 0.0
        %5205 = vmatprep.subr.mxu0 0.0
        %5206 = vmatpush1.msra.mxu0 0.0
        %5207 = vmatprep.subr.mxu0 0.0
        %5208 = vmatpush1.msra.mxu0 0.0
        %5209 = vmatprep.subr.mxu0 0.0
        %5210 = vmatpush1.msra.mxu0 0.0
        %5211 = vmatprep.subr.mxu0 0.0
        %5212 = vmatpush1.msra.mxu0 0.0
        %5213 = vmatprep.subr.mxu0 0.0
        %5214 = vmatpush1.msra.mxu0 0.0
        %5215 = vmatprep.subr.mxu0 0.0
        %5216 = vmatpush1.msra.mxu0 0.0
        %5217 = vmatprep.subr.mxu0 0.0
        %5218 = vmatpush1.msra.mxu0 0.0
        %5219 = vmatprep.subr.mxu0 0.0
        %5220 = vmatpush1.msra.mxu0 0.0
        %5221 = vmatprep.subr.mxu0 0.0
        %5222 = vmatpush1.msra.mxu0 0.0
        %5223 = vmatprep.subr.mxu0 0.0
        %5224 = vmatpush1.msra.mxu0 0.0
        %5225 = vmatprep.subr.mxu0 0.0
        %5226 = vmatpush1.msra.mxu0 0.0
        %5227 = vmatprep.subr.mxu0 0.0
        %5228 = vmatpush1.msra.mxu0 0.0
        %5229 = vmatprep.subr.mxu0 0.0
        %5230 = vmatpush1.msra.mxu0 0.0
        %5231 = vmatprep.subr.mxu0 0.0
        %5232 = vmatpush1.msra.mxu0 0.0
        %5233 = vmatprep.subr.mxu0 0.0
        %5234 = vmatpush1.msra.mxu0 0.0
        %5235 = vmatprep.subr.mxu0 0.0
        %5236 = vmatpush1.msra.mxu0 0.0
        %5237 = vmatprep.subr.mxu0 0.0
        %5238 = vmatpush1.msra.mxu0 0.0
        %5239 = vmatprep.mubr.f32.mxu0 0.0
        %v5240 = vand.u32 %v4824, 4294901760
        %5241 = vmatmul.mubr.f32.gmra.mrb[0].mxu0 %v5240
        %v5242 = vpop.f32.mrb[0].mxu0
        %v5243 = vadd.f32 %v5158, %v5242
        %v5244 = vpop.f32.mrb[0].mxu0
        %5245 = vmatprep.mubr.f32.mxu0 0.0
        %v5246 = vand.u32 %v4827, 4294901760
        %5247 = vmatmul.mubr.f32.gmra.mrb[0].mxu0 %v5246
        %v5248 = vpop.f32.mrb[0].mxu0
        %v5249 = vadd.f32 %v5166, %v5248
        %v5250 = vpop.f32.mrb[0].mxu0
        %5251 = vdwg.mxu0
        %5252 = vmatprep.subr.mxu0 0.0
        %v5253 = vand.u32 %v4821, 4294901760
        %5254 = vmatpush1.msra.mxu0 %v5253
        %5255 = vmatprep.subr.mxu0 0.0
        %v5256 = vand.u32 %v4822, 4294901760
        %5257 = vmatpush1.msra.mxu0 %v5256
        %5258 = vmatprep.subr.mxu0 0.0
        %5259 = vmatpush1.msra.mxu0 0.0
        %5260 = vmatprep.subr.mxu0 0.0
        %5261 = vmatpush1.msra.mxu0 0.0
        %5262 = vmatprep.subr.mxu0 0.0
        %5263 = vmatpush1.msra.mxu0 0.0
        %5264 = vmatprep.subr.mxu0 0.0
        %5265 = vmatpush1.msra.mxu0 0.0
        %5266 = vmatprep.subr.mxu0 0.0
        %5267 = vmatpush1.msra.mxu0 0.0
        %5268 = vmatprep.subr.mxu0 0.0
        %5269 = vmatpush1.msra.mxu0 0.0
        %5270 = vmatprep.subr.mxu0 0.0
        %5271 = vmatpush1.msra.mxu0 0.0
        %5272 = vmatprep.subr.mxu0 0.0
        %5273 = vmatpush1.msra.mxu0 0.0
        %5274 = vmatprep.subr.mxu0 0.0
        %5275 = vmatpush1.msra.mxu0 0.0
        %5276 = vmatprep.subr.mxu0 0.0
        %5277 = vmatpush1.msra.mxu0 0.0
        %5278 = vmatprep.subr.mxu0 0.0
        %5279 = vmatpush1.msra.mxu0 0.0
        %5280 = vmatprep.subr.mxu0 0.0
        %5281 = vmatpush1.msra.mxu0 0.0
        %5282 = vmatprep.subr.mxu0 0.0
        %5283 = vmatpush1.msra.mxu0 0.0
        %5284 = vmatprep.subr.mxu0 0.0
        %5285 = vmatpush1.msra.mxu0 0.0
        %5286 = vmatprep.subr.mxu0 0.0
        %5287 = vmatpush1.msra.mxu0 0.0
        %5288 = vmatprep.subr.mxu0 0.0
        %5289 = vmatpush1.msra.mxu0 0.0
        %5290 = vmatprep.subr.mxu0 0.0
        %5291 = vmatpush1.msra.mxu0 0.0
        %5292 = vmatprep.subr.mxu0 0.0
        %5293 = vmatpush1.msra.mxu0 0.0
        %5294 = vmatprep.subr.mxu0 0.0
        %5295 = vmatpush1.msra.mxu0 0.0
        %5296 = vmatprep.subr.mxu0 0.0
        %5297 = vmatpush1.msra.mxu0 0.0
        %5298 = vmatprep.subr.mxu0 0.0
        %5299 = vmatpush1.msra.mxu0 0.0
        %5300 = vmatprep.subr.mxu0 0.0
        %5301 = vmatpush1.msra.mxu0 0.0
        %5302 = vmatprep.subr.mxu0 0.0
        %5303 = vmatpush1.msra.mxu0 0.0
        %5304 = vmatprep.subr.mxu0 0.0
        %5305 = vmatpush1.msra.mxu0 0.0
        %5306 = vmatprep.subr.mxu0 0.0
        %5307 = vmatpush1.msra.mxu0 0.0
        %5308 = vmatprep.subr.mxu0 0.0
        %5309 = vmatpush1.msra.mxu0 0.0
        %5310 = vmatprep.subr.mxu0 0.0
        %5311 = vmatpush1.msra.mxu0 0.0
        %5312 = vmatprep.subr.mxu0 0.0
        %5313 = vmatpush1.msra.mxu0 0.0
        %5314 = vmatprep.subr.mxu0 0.0
        %5315 = vmatpush1.msra.mxu0 0.0
        %5316 = vmatprep.subr.mxu0 0.0
        %5317 = vmatpush1.msra.mxu0 0.0
        %5318 = vmatprep.mubr.f32.mxu0 0.0
        %v5319 = vand.u32 %v4824, 4294901760
        %5320 = vmatmul.mubr.f32.gmra.mrb[0].mxu0 %v5319
        %v5321 = vpop.f32.mrb[0].mxu0
        %v5322 = vadd.f32 %v5243, %v5321
        %v5323 = vpop.f32.mrb[0].mxu0
        %5324 = vmatprep.mubr.f32.mxu0 0.0
        %v5325 = vand.u32 %v4827, 4294901760
        %5326 = vmatmul.mubr.f32.gmra.mrb[0].mxu0 %v5325
        %v5327 = vpop.f32.mrb[0].mxu0
        %v5328 = vadd.f32 %v5249, %v5327
        %v5329 = vpop.f32.mrb[0].mxu0
        %5330 = vdwg.mxu0
        %v5331 = vadd.f32 %v4301, %v5322
        %v5332 = vadd.f32 %v4302, %v5328
        %v5333 = vld [vmem:[%s189 + $0x8] sm:$0xff]
        %v5334 = vld [vmem:[%s189 + $0x10] sm:$0xff]
        %s5335 = scalar_lea.vmem %s0, 160
        %v5336 = vld [vmem:[%s5335] sm:$0xff]
        %v5337 = vld [vmem:[%s5335 + $0x8] sm:$0xff]
        %v5339 = vsel %vm155, %v5333, 0
        %v5342 = vsel %vm155, %v5334, 0
        %5344 = vmatprep.subr.mxu0 0.0
        %v5345 = vand.u32 %v5336, 4294901760
        %5346 = vmatpush1.msra.mxu0 %v5345
        %5347 = vmatprep.subr.mxu0 0.0
        %v5348 = vand.u32 %v5337, 4294901760
        %5349 = vmatpush1.msra.mxu0 %v5348
        %5350 = vmatprep.subr.mxu0 0.0
        %5351 = vmatpush1.msra.mxu0 0.0
        %5352 = vmatprep.subr.mxu0 0.0
        %5353 = vmatpush1.msra.mxu0 0.0
        %5354 = vmatprep.subr.mxu0 0.0
        %5355 = vmatpush1.msra.mxu0 0.0
        %5356 = vmatprep.subr.mxu0 0.0
        %5357 = vmatpush1.msra.mxu0 0.0
        %5358 = vmatprep.subr.mxu0 0.0
        %5359 = vmatpush1.msra.mxu0 0.0
        %5360 = vmatprep.subr.mxu0 0.0
        %5361 = vmatpush1.msra.mxu0 0.0
        %5362 = vmatprep.subr.mxu0 0.0
        %5363 = vmatpush1.msra.mxu0 0.0
        %5364 = vmatprep.subr.mxu0 0.0
        %5365 = vmatpush1.msra.mxu0 0.0
        %5366 = vmatprep.subr.mxu0 0.0
        %5367 = vmatpush1.msra.mxu0 0.0
        %5368 = vmatprep.subr.mxu0 0.0
        %5369 = vmatpush1.msra.mxu0 0.0
        %5370 = vmatprep.subr.mxu0 0.0
        %5371 = vmatpush1.msra.mxu0 0.0
        %5372 = vmatprep.subr.mxu0 0.0
        %5373 = vmatpush1.msra.mxu0 0.0
        %5374 = vmatprep.subr.mxu0 0.0
        %5375 = vmatpush1.msra.mxu0 0.0
        %5376 = vmatprep.subr.mxu0 0.0
        %5377 = vmatpush1.msra.mxu0 0.0
        %5378 = vmatprep.subr.mxu0 0.0
        %5379 = vmatpush1.msra.mxu0 0.0
        %5380 = vmatprep.subr.mxu0 0.0
        %5381 = vmatpush1.msra.mxu0 0.0
        %5382 = vmatprep.subr.mxu0 0.0
        %5383 = vmatpush1.msra.mxu0 0.0
        %5384 = vmatprep.subr.mxu0 0.0
        %5385 = vmatpush1.msra.mxu0 0.0
        %5386 = vmatprep.subr.mxu0 0.0
        %5387 = vmatpush1.msra.mxu0 0.0
        %5388 = vmatprep.subr.mxu0 0.0
        %5389 = vmatpush1.msra.mxu0 0.0
        %5390 = vmatprep.subr.mxu0 0.0
        %5391 = vmatpush1.msra.mxu0 0.0
        %5392 = vmatprep.subr.mxu0 0.0
        %5393 = vmatpush1.msra.mxu0 0.0
        %5394 = vmatprep.subr.mxu0 0.0
        %5395 = vmatpush1.msra.mxu0 0.0
        %5396 = vmatprep.subr.mxu0 0.0
        %5397 = vmatpush1.msra.mxu0 0.0
        %5398 = vmatprep.subr.mxu0 0.0
        %5399 = vmatpush1.msra.mxu0 0.0
        %5400 = vmatprep.subr.mxu0 0.0
        %5401 = vmatpush1.msra.mxu0 0.0
        %5402 = vmatprep.subr.mxu0 0.0
        %5403 = vmatpush1.msra.mxu0 0.0
        %5404 = vmatprep.subr.mxu0 0.0
        %5405 = vmatpush1.msra.mxu0 0.0
        %5406 = vmatprep.subr.mxu0 0.0
        %5407 = vmatpush1.msra.mxu0 0.0
        %5408 = vmatprep.subr.mxu0 0.0
        %5409 = vmatpush1.msra.mxu0 0.0
        %5410 = vmatprep.mubr.f32.mxu0 0.0
        %v5411 = vand.u32 %v5339, 4294901760
        %v5412 = vsub.f32 %v5339, %v5411
        %v5413 = vand.u32 %v5412, 4294901760
        %v5414 = vsub.f32 %v5412, %v5413
        %v5415 = vand.u32 %v5414, 4294901760
        %5416 = vmatmul.mubr.f32.gmra.mrb[0].mxu0 %v5415
        %v5417 = vpop.f32.mrb[0].mxu0
        %v5418 = vadd.f32 0.0, %v5417
        %v5419 = vpop.f32.mrb[0].mxu0
        %5420 = vmatprep.mubr.f32.mxu0 0.0
        %v5421 = vand.u32 %v5342, 4294901760
        %v5422 = vsub.f32 %v5342, %v5421
        %v5423 = vand.u32 %v5422, 4294901760
        %v5424 = vsub.f32 %v5422, %v5423
        %v5425 = vand.u32 %v5424, 4294901760
        %5426 = vmatmul.mubr.f32.gmra.mrb[0].mxu0 %v5425
        %v5427 = vpop.f32.mrb[0].mxu0
        %v5428 = vadd.f32 0.0, %v5427
        %v5429 = vpop.f32.mrb[0].mxu0
        %5430 = vdwg.mxu0
        %5431 = vmatprep.subr.mxu0 0.0
        %v5432 = vand.u32 %v5336, 4294901760
        %v5433 = vsub.f32 %v5336, %v5432
        %v5434 = vand.u32 %v5433, 4294901760
        %v5435 = vsub.f32 %v5433, %v5434
        %v5436 = vand.u32 %v5435, 4294901760
        %5437 = vmatpush1.msra.mxu0 %v5436
        %5438 = vmatprep.subr.mxu0 0.0
        %v5439 = vand.u32 %v5337, 4294901760
        %v5440 = vsub.f32 %v5337, %v5439
        %v5441 = vand.u32 %v5440, 4294901760
        %v5442 = vsub.f32 %v5440, %v5441
        %v5443 = vand.u32 %v5442, 4294901760
        %5444 = vmatpush1.msra.mxu0 %v5443
        %5445 = vmatprep.subr.mxu0 0.0
        %5446 = vmatpush1.msra.mxu0 0.0
        %5447 = vmatprep.subr.mxu0 0.0
        %5448 = vmatpush1.msra.mxu0 0.0
        %5449 = vmatprep.subr.mxu0 0.0
        %5450 = vmatpush1.msra.mxu0 0.0
        %5451 = vmatprep.subr.mxu0 0.0
        %5452 = vmatpush1.msra.mxu0 0.0
        %5453 = vmatprep.subr.mxu0 0.0
        %5454 = vmatpush1.msra.mxu0 0.0
        %5455 = vmatprep.subr.mxu0 0.0
        %5456 = vmatpush1.msra.mxu0 0.0
        %5457 = vmatprep.subr.mxu0 0.0
        %5458 = vmatpush1.msra.mxu0 0.0
        %5459 = vmatprep.subr.mxu0 0.0
        %5460 = vmatpush1.msra.mxu0 0.0
        %5461 = vmatprep.subr.mxu0 0.0
        %5462 = vmatpush1.msra.mxu0 0.0
        %5463 = vmatprep.subr.mxu0 0.0
        %5464 = vmatpush1.msra.mxu0 0.0
        %5465 = vmatprep.subr.mxu0 0.0
        %5466 = vmatpush1.msra.mxu0 0.0
        %5467 = vmatprep.subr.mxu0 0.0
        %5468 = vmatpush1.msra.mxu0 0.0
        %5469 = vmatprep.subr.mxu0 0.0
        %5470 = vmatpush1.msra.mxu0 0.0
        %5471 = vmatprep.subr.mxu0 0.0
        %5472 = vmatpush1.msra.mxu0 0.0
        %5473 = vmatprep.subr.mxu0 0.0
        %5474 = vmatpush1.msra.mxu0 0.0
        %5475 = vmatprep.subr.mxu0 0.0
        %5476 = vmatpush1.msra.mxu0 0.0
        %5477 = vmatprep.subr.mxu0 0.0
        %5478 = vmatpush1.msra.mxu0 0.0
        %5479 = vmatprep.subr.mxu0 0.0
        %5480 = vmatpush1.msra.mxu0 0.0
        %5481 = vmatprep.subr.mxu0 0.0
        %5482 = vmatpush1.msra.mxu0 0.0
        %5483 = vmatprep.subr.mxu0 0.0
        %5484 = vmatpush1.msra.mxu0 0.0
        %5485 = vmatprep.subr.mxu0 0.0
        %5486 = vmatpush1.msra.mxu0 0.0
        %5487 = vmatprep.subr.mxu0 0.0
        %5488 = vmatpush1.msra.mxu0 0.0
        %5489 = vmatprep.subr.mxu0 0.0
        %5490 = vmatpush1.msra.mxu0 0.0
        %5491 = vmatprep.subr.mxu0 0.0
        %5492 = vmatpush1.msra.mxu0 0.0
        %5493 = vmatprep.subr.mxu0 0.0
        %5494 = vmatpush1.msra.mxu0 0.0
        %5495 = vmatprep.subr.mxu0 0.0
        %5496 = vmatpush1.msra.mxu0 0.0
        %5497 = vmatprep.subr.mxu0 0.0
        %5498 = vmatpush1.msra.mxu0 0.0
        %5499 = vmatprep.subr.mxu0 0.0
        %5500 = vmatpush1.msra.mxu0 0.0
        %5501 = vmatprep.subr.mxu0 0.0
        %5502 = vmatpush1.msra.mxu0 0.0
        %5503 = vmatprep.subr.mxu0 0.0
        %5504 = vmatpush1.msra.mxu0 0.0
        %5505 = vmatprep.mubr.f32.mxu0 0.0
        %v5506 = vand.u32 %v5339, 4294901760
        %5507 = vmatmul.mubr.f32.gmra.mrb[0].mxu0 %v5506
        %v5508 = vpop.f32.mrb[0].mxu0
        %v5509 = vadd.f32 %v5418, %v5508
        %v5510 = vpop.f32.mrb[0].mxu0
        %5511 = vmatprep.mubr.f32.mxu0 0.0
        %v5512 = vand.u32 %v5342, 4294901760
        %5513 = vmatmul.mubr.f32.gmra.mrb[0].mxu0 %v5512
        %v5514 = vpop.f32.mrb[0].mxu0
        %v5515 = vadd.f32 %v5428, %v5514
        %v5516 = vpop.f32.mrb[0].mxu0
        %5517 = vdwg.mxu0
        %5518 = vmatprep.subr.mxu0 0.0
        %v5519 = vand.u32 %v5336, 4294901760
        %v5520 = vsub.f32 %v5336, %v5519
        %5521 = vmatpush1.msra.mxu0 %v5520
        %5522 = vmatprep.subr.mxu0 0.0
        %v5523 = vand.u32 %v5337, 4294901760
        %v5524 = vsub.f32 %v5337, %v5523
        %5525 = vmatpush1.msra.mxu0 %v5524
        %5526 = vmatprep.subr.mxu0 0.0
        %5527 = vmatpush1.msra.mxu0 0.0
        %5528 = vmatprep.subr.mxu0 0.0
        %5529 = vmatpush1.msra.mxu0 0.0
        %5530 = vmatprep.subr.mxu0 0.0
        %5531 = vmatpush1.msra.mxu0 0.0
        %5532 = vmatprep.subr.mxu0 0.0
        %5533 = vmatpush1.msra.mxu0 0.0
        %5534 = vmatprep.subr.mxu0 0.0
        %5535 = vmatpush1.msra.mxu0 0.0
        %5536 = vmatprep.subr.mxu0 0.0
        %5537 = vmatpush1.msra.mxu0 0.0
        %5538 = vmatprep.subr.mxu0 0.0
        %5539 = vmatpush1.msra.mxu0 0.0
        %5540 = vmatprep.subr.mxu0 0.0
        %5541 = vmatpush1.msra.mxu0 0.0
        %5542 = vmatprep.subr.mxu0 0.0
        %5543 = vmatpush1.msra.mxu0 0.0
        %5544 = vmatprep.subr.mxu0 0.0
        %5545 = vmatpush1.msra.mxu0 0.0
        %5546 = vmatprep.subr.mxu0 0.0
        %5547 = vmatpush1.msra.mxu0 0.0
        %5548 = vmatprep.subr.mxu0 0.0
        %5549 = vmatpush1.msra.mxu0 0.0
        %5550 = vmatprep.subr.mxu0 0.0
        %5551 = vmatpush1.msra.mxu0 0.0
        %5552 = vmatprep.subr.mxu0 0.0
        %5553 = vmatpush1.msra.mxu0 0.0
        %5554 = vmatprep.subr.mxu0 0.0
        %5555 = vmatpush1.msra.mxu0 0.0
        %5556 = vmatprep.subr.mxu0 0.0
        %5557 = vmatpush1.msra.mxu0 0.0
        %5558 = vmatprep.subr.mxu0 0.0
        %5559 = vmatpush1.msra.mxu0 0.0
        %5560 = vmatprep.subr.mxu0 0.0
        %5561 = vmatpush1.msra.mxu0 0.0
        %5562 = vmatprep.subr.mxu0 0.0
        %5563 = vmatpush1.msra.mxu0 0.0
        %5564 = vmatprep.subr.mxu0 0.0
        %5565 = vmatpush1.msra.mxu0 0.0
        %5566 = vmatprep.subr.mxu0 0.0
        %5567 = vmatpush1.msra.mxu0 0.0
        %5568 = vmatprep.subr.mxu0 0.0
        %5569 = vmatpush1.msra.mxu0 0.0
        %5570 = vmatprep.subr.mxu0 0.0
        %5571 = vmatpush1.msra.mxu0 0.0
        %5572 = vmatprep.subr.mxu0 0.0
        %5573 = vmatpush1.msra.mxu0 0.0
        %5574 = vmatprep.subr.mxu0 0.0
        %5575 = vmatpush1.msra.mxu0 0.0
        %5576 = vmatprep.subr.mxu0 0.0
        %5577 = vmatpush1.msra.mxu0 0.0
        %5578 = vmatprep.subr.mxu0 0.0
        %5579 = vmatpush1.msra.mxu0 0.0
        %5580 = vmatprep.subr.mxu0 0.0
        %5581 = vmatpush1.msra.mxu0 0.0
        %5582 = vmatprep.subr.mxu0 0.0
        %5583 = vmatpush1.msra.mxu0 0.0
        %5584 = vmatprep.subr.mxu0 0.0
        %5585 = vmatpush1.msra.mxu0 0.0
        %5586 = vmatprep.mubr.f32.mxu0 0.0
        %v5587 = vand.u32 %v5339, 4294901760
        %v5588 = vsub.f32 %v5339, %v5587
        %5589 = vmatmul.mubr.f32.gmra.mrb[0].mxu0 %v5588
        %v5590 = vpop.f32.mrb[0].mxu0
        %v5591 = vadd.f32 %v5509, %v5590
        %v5592 = vpop.f32.mrb[0].mxu0
        %5593 = vmatprep.mubr.f32.mxu0 0.0
        %v5594 = vand.u32 %v5342, 4294901760
        %v5595 = vsub.f32 %v5342, %v5594
        %5596 = vmatmul.mubr.f32.gmra.mrb[0].mxu0 %v5595
        %v5597 = vpop.f32.mrb[0].mxu0
        %v5598 = vadd.f32 %v5515, %v5597
        %v5599 = vpop.f32.mrb[0].mxu0
        %5600 = vdwg.mxu0
        %5601 = vmatprep.subr.mxu0 0.0
        %v5602 = vand.u32 %v5336, 4294901760
        %5603 = vmatpush1.msra.mxu0 %v5602
        %5604 = vmatprep.subr.mxu0 0.0
        %v5605 = vand.u32 %v5337, 4294901760
        %5606 = vmatpush1.msra.mxu0 %v5605
        %5607 = vmatprep.subr.mxu0 0.0
        %5608 = vmatpush1.msra.mxu0 0.0
        %5609 = vmatprep.subr.mxu0 0.0
        %5610 = vmatpush1.msra.mxu0 0.0
        %5611 = vmatprep.subr.mxu0 0.0
        %5612 = vmatpush1.msra.mxu0 0.0
        %5613 = vmatprep.subr.mxu0 0.0
        %5614 = vmatpush1.msra.mxu0 0.0
        %5615 = vmatprep.subr.mxu0 0.0
        %5616 = vmatpush1.msra.mxu0 0.0
        %5617 = vmatprep.subr.mxu0 0.0
        %5618 = vmatpush1.msra.mxu0 0.0
        %5619 = vmatprep.subr.mxu0 0.0
        %5620 = vmatpush1.msra.mxu0 0.0
        %5621 = vmatprep.subr.mxu0 0.0
        %5622 = vmatpush1.msra.mxu0 0.0
        %5623 = vmatprep.subr.mxu0 0.0
        %5624 = vmatpush1.msra.mxu0 0.0
        %5625 = vmatprep.subr.mxu0 0.0
        %5626 = vmatpush1.msra.mxu0 0.0
        %5627 = vmatprep.subr.mxu0 0.0
        %5628 = vmatpush1.msra.mxu0 0.0
        %5629 = vmatprep.subr.mxu0 0.0
        %5630 = vmatpush1.msra.mxu0 0.0
        %5631 = vmatprep.subr.mxu0 0.0
        %5632 = vmatpush1.msra.mxu0 0.0
        %5633 = vmatprep.subr.mxu0 0.0
        %5634 = vmatpush1.msra.mxu0 0.0
        %5635 = vmatprep.subr.mxu0 0.0
        %5636 = vmatpush1.msra.mxu0 0.0
        %5637 = vmatprep.subr.mxu0 0.0
        %5638 = vmatpush1.msra.mxu0 0.0
        %5639 = vmatprep.subr.mxu0 0.0
        %5640 = vmatpush1.msra.mxu0 0.0
        %5641 = vmatprep.subr.mxu0 0.0
        %5642 = vmatpush1.msra.mxu0 0.0
        %5643 = vmatprep.subr.mxu0 0.0
        %5644 = vmatpush1.msra.mxu0 0.0
        %5645 = vmatprep.subr.mxu0 0.0
        %5646 = vmatpush1.msra.mxu0 0.0
        %5647 = vmatprep.subr.mxu0 0.0
        %5648 = vmatpush1.msra.mxu0 0.0
        %5649 = vmatprep.subr.mxu0 0.0
        %5650 = vmatpush1.msra.mxu0 0.0
        %5651 = vmatprep.subr.mxu0 0.0
        %5652 = vmatpush1.msra.mxu0 0.0
        %5653 = vmatprep.subr.mxu0 0.0
        %5654 = vmatpush1.msra.mxu0 0.0
        %5655 = vmatprep.subr.mxu0 0.0
        %5656 = vmatpush1.msra.mxu0 0.0
        %5657 = vmatprep.subr.mxu0 0.0
        %5658 = vmatpush1.msra.mxu0 0.0
        %5659 = vmatprep.subr.mxu0 0.0
        %5660 = vmatpush1.msra.mxu0 0.0
        %5661 = vmatprep.subr.mxu0 0.0
        %5662 = vmatpush1.msra.mxu0 0.0
        %5663 = vmatprep.subr.mxu0 0.0
        %5664 = vmatpush1.msra.mxu0 0.0
        %5665 = vmatprep.subr.mxu0 0.0
        %5666 = vmatpush1.msra.mxu0 0.0
        %5667 = vmatprep.mubr.f32.mxu0 0.0
        %v5668 = vand.u32 %v5339, 4294901760
        %v5669 = vsub.f32 %v5339, %v5668
        %v5670 = vand.u32 %v5669, 4294901760
        %5671 = vmatmul.mubr.f32.gmra.mrb[0].mxu0 %v5670
        %v5672 = vpop.f32.mrb[0].mxu0
        %v5673 = vadd.f32 %v5591, %v5672
        %v5674 = vpop.f32.mrb[0].mxu0
        %5675 = vmatprep.mubr.f32.mxu0 0.0
        %v5676 = vand.u32 %v5342, 4294901760
        %v5677 = vsub.f32 %v5342, %v5676
        %v5678 = vand.u32 %v5677, 4294901760
        %5679 = vmatmul.mubr.f32.gmra.mrb[0].mxu0 %v5678
        %v5680 = vpop.f32.mrb[0].mxu0
        %v5681 = vadd.f32 %v5598, %v5680
        %v5682 = vpop.f32.mrb[0].mxu0
        %5683 = vdwg.mxu0
        %5684 = vmatprep.subr.mxu0 0.0
        %v5685 = vand.u32 %v5336, 4294901760
        %v5686 = vsub.f32 %v5336, %v5685
        %v5687 = vand.u32 %v5686, 4294901760
        %5688 = vmatpush1.msra.mxu0 %v5687
        %5689 = vmatprep.subr.mxu0 0.0
        %v5690 = vand.u32 %v5337, 4294901760
        %v5691 = vsub.f32 %v5337, %v5690
        %v5692 = vand.u32 %v5691, 4294901760
        %5693 = vmatpush1.msra.mxu0 %v5692
        %5694 = vmatprep.subr.mxu0 0.0
        %5695 = vmatpush1.msra.mxu0 0.0
        %5696 = vmatprep.subr.mxu0 0.0
        %5697 = vmatpush1.msra.mxu0 0.0
        %5698 = vmatprep.subr.mxu0 0.0
        %5699 = vmatpush1.msra.mxu0 0.0
        %5700 = vmatprep.subr.mxu0 0.0
        %5701 = vmatpush1.msra.mxu0 0.0
        %5702 = vmatprep.subr.mxu0 0.0
        %5703 = vmatpush1.msra.mxu0 0.0
        %5704 = vmatprep.subr.mxu0 0.0
        %5705 = vmatpush1.msra.mxu0 0.0
        %5706 = vmatprep.subr.mxu0 0.0
        %5707 = vmatpush1.msra.mxu0 0.0
        %5708 = vmatprep.subr.mxu0 0.0
        %5709 = vmatpush1.msra.mxu0 0.0
        %5710 = vmatprep.subr.mxu0 0.0
        %5711 = vmatpush1.msra.mxu0 0.0
        %5712 = vmatprep.subr.mxu0 0.0
        %5713 = vmatpush1.msra.mxu0 0.0
        %5714 = vmatprep.subr.mxu0 0.0
        %5715 = vmatpush1.msra.mxu0 0.0
        %5716 = vmatprep.subr.mxu0 0.0
        %5717 = vmatpush1.msra.mxu0 0.0
        %5718 = vmatprep.subr.mxu0 0.0
        %5719 = vmatpush1.msra.mxu0 0.0
        %5720 = vmatprep.subr.mxu0 0.0
        %5721 = vmatpush1.msra.mxu0 0.0
        %5722 = vmatprep.subr.mxu0 0.0
        %5723 = vmatpush1.msra.mxu0 0.0
        %5724 = vmatprep.subr.mxu0 0.0
        %5725 = vmatpush1.msra.mxu0 0.0
        %5726 = vmatprep.subr.mxu0 0.0
        %5727 = vmatpush1.msra.mxu0 0.0
        %5728 = vmatprep.subr.mxu0 0.0
        %5729 = vmatpush1.msra.mxu0 0.0
        %5730 = vmatprep.subr.mxu0 0.0
        %5731 = vmatpush1.msra.mxu0 0.0
        %5732 = vmatprep.subr.mxu0 0.0
        %5733 = vmatpush1.msra.mxu0 0.0
        %5734 = vmatprep.subr.mxu0 0.0
        %5735 = vmatpush1.msra.mxu0 0.0
        %5736 = vmatprep.subr.mxu0 0.0
        %5737 = vmatpush1.msra.mxu0 0.0
        %5738 = vmatprep.subr.mxu0 0.0
        %5739 = vmatpush1.msra.mxu0 0.0
        %5740 = vmatprep.subr.mxu0 0.0
        %5741 = vmatpush1.msra.mxu0 0.0
        %5742 = vmatprep.subr.mxu0 0.0
        %5743 = vmatpush1.msra.mxu0 0.0
        %5744 = vmatprep.subr.mxu0 0.0
        %5745 = vmatpush1.msra.mxu0 0.0
        %5746 = vmatprep.subr.mxu0 0.0
        %5747 = vmatpush1.msra.mxu0 0.0
        %5748 = vmatprep.subr.mxu0 0.0
        %5749 = vmatpush1.msra.mxu0 0.0
        %5750 = vmatprep.subr.mxu0 0.0
        %5751 = vmatpush1.msra.mxu0 0.0
        %5752 = vmatprep.subr.mxu0 0.0
        %5753 = vmatpush1.msra.mxu0 0.0
        %5754 = vmatprep.mubr.f32.mxu0 0.0
        %v5755 = vand.u32 %v5339, 4294901760
        %5756 = vmatmul.mubr.f32.gmra.mrb[0].mxu0 %v5755
        %v5757 = vpop.f32.mrb[0].mxu0
        %v5758 = vadd.f32 %v5673, %v5757
        %v5759 = vpop.f32.mrb[0].mxu0
        %5760 = vmatprep.mubr.f32.mxu0 0.0
        %v5761 = vand.u32 %v5342, 4294901760
        %5762 = vmatmul.mubr.f32.gmra.mrb[0].mxu0 %v5761
        %v5763 = vpop.f32.mrb[0].mxu0
        %v5764 = vadd.f32 %v5681, %v5763
        %v5765 = vpop.f32.mrb[0].mxu0
        %5766 = vdwg.mxu0
        %5767 = vmatprep.subr.mxu0 0.0
        %v5768 = vand.u32 %v5336, 4294901760
        %5769 = vmatpush1.msra.mxu0 %v5768
        %5770 = vmatprep.subr.mxu0 0.0
        %v5771 = vand.u32 %v5337, 4294901760
        %5772 = vmatpush1.msra.mxu0 %v5771
        %5773 = vmatprep.subr.mxu0 0.0
        %5774 = vmatpush1.msra.mxu0 0.0
        %5775 = vmatprep.subr.mxu0 0.0
        %5776 = vmatpush1.msra.mxu0 0.0
        %5777 = vmatprep.subr.mxu0 0.0
        %5778 = vmatpush1.msra.mxu0 0.0
        %5779 = vmatprep.subr.mxu0 0.0
        %5780 = vmatpush1.msra.mxu0 0.0
        %5781 = vmatprep.subr.mxu0 0.0
        %5782 = vmatpush1.msra.mxu0 0.0
        %5783 = vmatprep.subr.mxu0 0.0
        %5784 = vmatpush1.msra.mxu0 0.0
        %5785 = vmatprep.subr.mxu0 0.0
        %5786 = vmatpush1.msra.mxu0 0.0
        %5787 = vmatprep.subr.mxu0 0.0
        %5788 = vmatpush1.msra.mxu0 0.0
        %5789 = vmatprep.subr.mxu0 0.0
        %5790 = vmatpush1.msra.mxu0 0.0
        %5791 = vmatprep.subr.mxu0 0.0
        %5792 = vmatpush1.msra.mxu0 0.0
        %5793 = vmatprep.subr.mxu0 0.0
        %5794 = vmatpush1.msra.mxu0 0.0
        %5795 = vmatprep.subr.mxu0 0.0
        %5796 = vmatpush1.msra.mxu0 0.0
        %5797 = vmatprep.subr.mxu0 0.0
        %5798 = vmatpush1.msra.mxu0 0.0
        %5799 = vmatprep.subr.mxu0 0.0
        %5800 = vmatpush1.msra.mxu0 0.0
        %5801 = vmatprep.subr.mxu0 0.0
        %5802 = vmatpush1.msra.mxu0 0.0
        %5803 = vmatprep.subr.mxu0 0.0
        %5804 = vmatpush1.msra.mxu0 0.0
        %5805 = vmatprep.subr.mxu0 0.0
        %5806 = vmatpush1.msra.mxu0 0.0
        %5807 = vmatprep.subr.mxu0 0.0
        %5808 = vmatpush1.msra.mxu0 0.0
        %5809 = vmatprep.subr.mxu0 0.0
        %5810 = vmatpush1.msra.mxu0 0.0
        %5811 = vmatprep.subr.mxu0 0.0
        %5812 = vmatpush1.msra.mxu0 0.0
        %5813 = vmatprep.subr.mxu0 0.0
        %5814 = vmatpush1.msra.mxu0 0.0
        %5815 = vmatprep.subr.mxu0 0.0
        %5816 = vmatpush1.msra.mxu0 0.0
        %5817 = vmatprep.subr.mxu0 0.0
        %5818 = vmatpush1.msra.mxu0 0.0
        %5819 = vmatprep.subr.mxu0 0.0
        %5820 = vmatpush1.msra.mxu0 0.0
        %5821 = vmatprep.subr.mxu0 0.0
        %5822 = vmatpush1.msra.mxu0 0.0
        %5823 = vmatprep.subr.mxu0 0.0
        %5824 = vmatpush1.msra.mxu0 0.0
        %5825 = vmatprep.subr.mxu0 0.0
        %5826 = vmatpush1.msra.mxu0 0.0
        %5827 = vmatprep.subr.mxu0 0.0
        %5828 = vmatpush1.msra.mxu0 0.0
        %5829 = vmatprep.subr.mxu0 0.0
        %5830 = vmatpush1.msra.mxu0 0.0
        %5831 = vmatprep.subr.mxu0 0.0
        %5832 = vmatpush1.msra.mxu0 0.0
        %5833 = vmatprep.mubr.f32.mxu0 0.0
        %v5834 = vand.u32 %v5339, 4294901760
        %5835 = vmatmul.mubr.f32.gmra.mrb[0].mxu0 %v5834
        %v5836 = vpop.f32.mrb[0].mxu0
        %v5837 = vadd.f32 %v5758, %v5836
        %v5838 = vpop.f32.mrb[0].mxu0
        %5839 = vmatprep.mubr.f32.mxu0 0.0
        %v5840 = vand.u32 %v5342, 4294901760
        %5841 = vmatmul.mubr.f32.gmra.mrb[0].mxu0 %v5840
        %v5842 = vpop.f32.mrb[0].mxu0
        %v5843 = vadd.f32 %v5764, %v5842
        %v5844 = vpop.f32.mrb[0].mxu0
        %5845 = vdwg.mxu0
        %v5846 = vadd.f32 %v4816, %v5837
        %v5847 = vadd.f32 %v4817, %v5843
        %v5848 = vld [vmem:[%s189 + $0x9] sm:$0xff]
        %v5849 = vld [vmem:[%s189 + $0x11] sm:$0xff]
        %s5850 = scalar_lea.vmem %s0, 176
        %v5851 = vld [vmem:[%s5850] sm:$0xff]
        %v5852 = vld [vmem:[%s5850 + $0x8] sm:$0xff]
        %v5854 = vsel %vm155, %v5848, 0
        %v5857 = vsel %vm155, %v5849, 0
        %5859 = vmatprep.subr.mxu0 0.0
        %v5860 = vand.u32 %v5851, 4294901760
        %5861 = vmatpush1.msra.mxu0 %v5860
        %5862 = vmatprep.subr.mxu0 0.0
        %v5863 = vand.u32 %v5852, 4294901760
        %5864 = vmatpush1.msra.mxu0 %v5863
        %5865 = vmatprep.subr.mxu0 0.0
        %5866 = vmatpush1.msra.mxu0 0.0
        %5867 = vmatprep.subr.mxu0 0.0
        %5868 = vmatpush1.msra.mxu0 0.0
        %5869 = vmatprep.subr.mxu0 0.0
        %5870 = vmatpush1.msra.mxu0 0.0
        %5871 = vmatprep.subr.mxu0 0.0
        %5872 = vmatpush1.msra.mxu0 0.0
        %5873 = vmatprep.subr.mxu0 0.0
        %5874 = vmatpush1.msra.mxu0 0.0
        %5875 = vmatprep.subr.mxu0 0.0
        %5876 = vmatpush1.msra.mxu0 0.0
        %5877 = vmatprep.subr.mxu0 0.0
        %5878 = vmatpush1.msra.mxu0 0.0
        %5879 = vmatprep.subr.mxu0 0.0
        %5880 = vmatpush1.msra.mxu0 0.0
        %5881 = vmatprep.subr.mxu0 0.0
        %5882 = vmatpush1.msra.mxu0 0.0
        %5883 = vmatprep.subr.mxu0 0.0
        %5884 = vmatpush1.msra.mxu0 0.0
        %5885 = vmatprep.subr.mxu0 0.0
        %5886 = vmatpush1.msra.mxu0 0.0
        %5887 = vmatprep.subr.mxu0 0.0
        %5888 = vmatpush1.msra.mxu0 0.0
        %5889 = vmatprep.subr.mxu0 0.0
        %5890 = vmatpush1.msra.mxu0 0.0
        %5891 = vmatprep.subr.mxu0 0.0
        %5892 = vmatpush1.msra.mxu0 0.0
        %5893 = vmatprep.subr.mxu0 0.0
        %5894 = vmatpush1.msra.mxu0 0.0
        %5895 = vmatprep.subr.mxu0 0.0
        %5896 = vmatpush1.msra.mxu0 0.0
        %5897 = vmatprep.subr.mxu0 0.0
        %5898 = vmatpush1.msra.mxu0 0.0
        %5899 = vmatprep.subr.mxu0 0.0
        %5900 = vmatpush1.msra.mxu0 0.0
        %5901 = vmatprep.subr.mxu0 0.0
        %5902 = vmatpush1.msra.mxu0 0.0
        %5903 = vmatprep.subr.mxu0 0.0
        %5904 = vmatpush1.msra.mxu0 0.0
        %5905 = vmatprep.subr.mxu0 0.0
        %5906 = vmatpush1.msra.mxu0 0.0
        %5907 = vmatprep.subr.mxu0 0.0
        %5908 = vmatpush1.msra.mxu0 0.0
        %5909 = vmatprep.subr.mxu0 0.0
        %5910 = vmatpush1.msra.mxu0 0.0
        %5911 = vmatprep.subr.mxu0 0.0
        %5912 = vmatpush1.msra.mxu0 0.0
        %5913 = vmatprep.subr.mxu0 0.0
        %5914 = vmatpush1.msra.mxu0 0.0
        %5915 = vmatprep.subr.mxu0 0.0
        %5916 = vmatpush1.msra.mxu0 0.0
        %5917 = vmatprep.subr.mxu0 0.0
        %5918 = vmatpush1.msra.mxu0 0.0
        %5919 = vmatprep.subr.mxu0 0.0
        %5920 = vmatpush1.msra.mxu0 0.0
        %5921 = vmatprep.subr.mxu0 0.0
        %5922 = vmatpush1.msra.mxu0 0.0
        %5923 = vmatprep.subr.mxu0 0.0
        %5924 = vmatpush1.msra.mxu0 0.0
        %5925 = vmatprep.mubr.f32.mxu0 0.0
        %v5926 = vand.u32 %v5854, 4294901760
        %v5927 = vsub.f32 %v5854, %v5926
        %v5928 = vand.u32 %v5927, 4294901760
        %v5929 = vsub.f32 %v5927, %v5928
        %v5930 = vand.u32 %v5929, 4294901760
        %5931 = vmatmul.mubr.f32.gmra.mrb[0].mxu0 %v5930
        %v5932 = vpop.f32.mrb[0].mxu0
        %v5933 = vadd.f32 0.0, %v5932
        %v5934 = vpop.f32.mrb[0].mxu0
        %5935 = vmatprep.mubr.f32.mxu0 0.0
        %v5936 = vand.u32 %v5857, 4294901760
        %v5937 = vsub.f32 %v5857, %v5936
        %v5938 = vand.u32 %v5937, 4294901760
        %v5939 = vsub.f32 %v5937, %v5938
        %v5940 = vand.u32 %v5939, 4294901760
        %5941 = vmatmul.mubr.f32.gmra.mrb[0].mxu0 %v5940
        %v5942 = vpop.f32.mrb[0].mxu0
        %v5943 = vadd.f32 0.0, %v5942
        %v5944 = vpop.f32.mrb[0].mxu0
        %5945 = vdwg.mxu0
        %5946 = vmatprep.subr.mxu0 0.0
        %v5947 = vand.u32 %v5851, 4294901760
        %v5948 = vsub.f32 %v5851, %v5947
        %v5949 = vand.u32 %v5948, 4294901760
        %v5950 = vsub.f32 %v5948, %v5949
        %v5951 = vand.u32 %v5950, 4294901760
        %5952 = vmatpush1.msra.mxu0 %v5951
        %5953 = vmatprep.subr.mxu0 0.0
        %v5954 = vand.u32 %v5852, 4294901760
        %v5955 = vsub.f32 %v5852, %v5954
        %v5956 = vand.u32 %v5955, 4294901760
        %v5957 = vsub.f32 %v5955, %v5956
        %v5958 = vand.u32 %v5957, 4294901760
        %5959 = vmatpush1.msra.mxu0 %v5958
        %5960 = vmatprep.subr.mxu0 0.0
        %5961 = vmatpush1.msra.mxu0 0.0
        %5962 = vmatprep.subr.mxu0 0.0
        %5963 = vmatpush1.msra.mxu0 0.0
        %5964 = vmatprep.subr.mxu0 0.0
        %5965 = vmatpush1.msra.mxu0 0.0
        %5966 = vmatprep.subr.mxu0 0.0
        %5967 = vmatpush1.msra.mxu0 0.0
        %5968 = vmatprep.subr.mxu0 0.0
        %5969 = vmatpush1.msra.mxu0 0.0
        %5970 = vmatprep.subr.mxu0 0.0
        %5971 = vmatpush1.msra.mxu0 0.0
        %5972 = vmatprep.subr.mxu0 0.0
        %5973 = vmatpush1.msra.mxu0 0.0
        %5974 = vmatprep.subr.mxu0 0.0
        %5975 = vmatpush1.msra.mxu0 0.0
        %5976 = vmatprep.subr.mxu0 0.0
        %5977 = vmatpush1.msra.mxu0 0.0
        %5978 = vmatprep.subr.mxu0 0.0
        %5979 = vmatpush1.msra.mxu0 0.0
        %5980 = vmatprep.subr.mxu0 0.0
        %5981 = vmatpush1.msra.mxu0 0.0
        %5982 = vmatprep.subr.mxu0 0.0
        %5983 = vmatpush1.msra.mxu0 0.0
        %5984 = vmatprep.subr.mxu0 0.0
        %5985 = vmatpush1.msra.mxu0 0.0
        %5986 = vmatprep.subr.mxu0 0.0
        %5987 = vmatpush1.msra.mxu0 0.0
        %5988 = vmatprep.subr.mxu0 0.0
        %5989 = vmatpush1.msra.mxu0 0.0
        %5990 = vmatprep.subr.mxu0 0.0
        %5991 = vmatpush1.msra.mxu0 0.0
        %5992 = vmatprep.subr.mxu0 0.0
        %5993 = vmatpush1.msra.mxu0 0.0
        %5994 = vmatprep.subr.mxu0 0.0
        %5995 = vmatpush1.msra.mxu0 0.0
        %5996 = vmatprep.subr.mxu0 0.0
        %5997 = vmatpush1.msra.mxu0 0.0
        %5998 = vmatprep.subr.mxu0 0.0
        %5999 = vmatpush1.msra.mxu0 0.0
        %6000 = vmatprep.subr.mxu0 0.0
        %6001 = vmatpush1.msra.mxu0 0.0
        %6002 = vmatprep.subr.mxu0 0.0
        %6003 = vmatpush1.msra.mxu0 0.0
        %6004 = vmatprep.subr.mxu0 0.0
        %6005 = vmatpush1.msra.mxu0 0.0
        %6006 = vmatprep.subr.mxu0 0.0
        %6007 = vmatpush1.msra.mxu0 0.0
        %6008 = vmatprep.subr.mxu0 0.0
        %6009 = vmatpush1.msra.mxu0 0.0
        %6010 = vmatprep.subr.mxu0 0.0
        %6011 = vmatpush1.msra.mxu0 0.0
        %6012 = vmatprep.subr.mxu0 0.0
        %6013 = vmatpush1.msra.mxu0 0.0
        %6014 = vmatprep.subr.mxu0 0.0
        %6015 = vmatpush1.msra.mxu0 0.0
        %6016 = vmatprep.subr.mxu0 0.0
        %6017 = vmatpush1.msra.mxu0 0.0
        %6018 = vmatprep.subr.mxu0 0.0
        %6019 = vmatpush1.msra.mxu0 0.0
        %6020 = vmatprep.mubr.f32.mxu0 0.0
        %v6021 = vand.u32 %v5854, 4294901760
        %6022 = vmatmul.mubr.f32.gmra.mrb[0].mxu0 %v6021
        %v6023 = vpop.f32.mrb[0].mxu0
        %v6024 = vadd.f32 %v5933, %v6023
        %v6025 = vpop.f32.mrb[0].mxu0
        %6026 = vmatprep.mubr.f32.mxu0 0.0
        %v6027 = vand.u32 %v5857, 4294901760
        %6028 = vmatmul.mubr.f32.gmra.mrb[0].mxu0 %v6027
        %v6029 = vpop.f32.mrb[0].mxu0
        %v6030 = vadd.f32 %v5943, %v6029
        %v6031 = vpop.f32.mrb[0].mxu0
        %6032 = vdwg.mxu0
        %6033 = vmatprep.subr.mxu0 0.0
        %v6034 = vand.u32 %v5851, 4294901760
        %v6035 = vsub.f32 %v5851, %v6034
        %6036 = vmatpush1.msra.mxu0 %v6035
        %6037 = vmatprep.subr.mxu0 0.0
        %v6038 = vand.u32 %v5852, 4294901760
        %v6039 = vsub.f32 %v5852, %v6038
        %6040 = vmatpush1.msra.mxu0 %v6039
        %6041 = vmatprep.subr.mxu0 0.0
        %6042 = vmatpush1.msra.mxu0 0.0
        %6043 = vmatprep.subr.mxu0 0.0
        %6044 = vmatpush1.msra.mxu0 0.0
        %6045 = vmatprep.subr.mxu0 0.0
        %6046 = vmatpush1.msra.mxu0 0.0
        %6047 = vmatprep.subr.mxu0 0.0
        %6048 = vmatpush1.msra.mxu0 0.0
        %6049 = vmatprep.subr.mxu0 0.0
        %6050 = vmatpush1.msra.mxu0 0.0
        %6051 = vmatprep.subr.mxu0 0.0
        %6052 = vmatpush1.msra.mxu0 0.0
        %6053 = vmatprep.subr.mxu0 0.0
        %6054 = vmatpush1.msra.mxu0 0.0
        %6055 = vmatprep.subr.mxu0 0.0
        %6056 = vmatpush1.msra.mxu0 0.0
        %6057 = vmatprep.subr.mxu0 0.0
        %6058 = vmatpush1.msra.mxu0 0.0
        %6059 = vmatprep.subr.mxu0 0.0
        %6060 = vmatpush1.msra.mxu0 0.0
        %6061 = vmatprep.subr.mxu0 0.0
        %6062 = vmatpush1.msra.mxu0 0.0
        %6063 = vmatprep.subr.mxu0 0.0
        %6064 = vmatpush1.msra.mxu0 0.0
        %6065 = vmatprep.subr.mxu0 0.0
        %6066 = vmatpush1.msra.mxu0 0.0
        %6067 = vmatprep.subr.mxu0 0.0
        %6068 = vmatpush1.msra.mxu0 0.0
        %6069 = vmatprep.subr.mxu0 0.0
        %6070 = vmatpush1.msra.mxu0 0.0
        %6071 = vmatprep.subr.mxu0 0.0
        %6072 = vmatpush1.msra.mxu0 0.0
        %6073 = vmatprep.subr.mxu0 0.0
        %6074 = vmatpush1.msra.mxu0 0.0
        %6075 = vmatprep.subr.mxu0 0.0
        %6076 = vmatpush1.msra.mxu0 0.0
        %6077 = vmatprep.subr.mxu0 0.0
        %6078 = vmatpush1.msra.mxu0 0.0
        %6079 = vmatprep.subr.mxu0 0.0
        %6080 = vmatpush1.msra.mxu0 0.0
        %6081 = vmatprep.subr.mxu0 0.0
        %6082 = vmatpush1.msra.mxu0 0.0
        %6083 = vmatprep.subr.mxu0 0.0
        %6084 = vmatpush1.msra.mxu0 0.0
        %6085 = vmatprep.subr.mxu0 0.0
        %6086 = vmatpush1.msra.mxu0 0.0
        %6087 = vmatprep.subr.mxu0 0.0
        %6088 = vmatpush1.msra.mxu0 0.0
        %6089 = vmatprep.subr.mxu0 0.0
        %6090 = vmatpush1.msra.mxu0 0.0
        %6091 = vmatprep.subr.mxu0 0.0
        %6092 = vmatpush1.msra.mxu0 0.0
        %6093 = vmatprep.subr.mxu0 0.0
        %6094 = vmatpush1.msra.mxu0 0.0
        %6095 = vmatprep.subr.mxu0 0.0
        %6096 = vmatpush1.msra.mxu0 0.0
        %6097 = vmatprep.subr.mxu0 0.0
        %6098 = vmatpush1.msra.mxu0 0.0
        %6099 = vmatprep.subr.mxu0 0.0
        %6100 = vmatpush1.msra.mxu0 0.0
        %6101 = vmatprep.mubr.f32.mxu0 0.0
        %v6102 = vand.u32 %v5854, 4294901760
        %v6103 = vsub.f32 %v5854, %v6102
        %6104 = vmatmul.mubr.f32.gmra.mrb[0].mxu0 %v6103
        %v6105 = vpop.f32.mrb[0].mxu0
        %v6106 = vadd.f32 %v6024, %v6105
        %v6107 = vpop.f32.mrb[0].mxu0
        %6108 = vmatprep.mubr.f32.mxu0 0.0
        %v6109 = vand.u32 %v5857, 4294901760
        %v6110 = vsub.f32 %v5857, %v6109
        %6111 = vmatmul.mubr.f32.gmra.mrb[0].mxu0 %v6110
        %v6112 = vpop.f32.mrb[0].mxu0
        %v6113 = vadd.f32 %v6030, %v6112
        %v6114 = vpop.f32.mrb[0].mxu0
        %6115 = vdwg.mxu0
        %6116 = vmatprep.subr.mxu0 0.0
        %v6117 = vand.u32 %v5851, 4294901760
        %6118 = vmatpush1.msra.mxu0 %v6117
        %6119 = vmatprep.subr.mxu0 0.0
        %v6120 = vand.u32 %v5852, 4294901760
        %6121 = vmatpush1.msra.mxu0 %v6120
        %6122 = vmatprep.subr.mxu0 0.0
        %6123 = vmatpush1.msra.mxu0 0.0
        %6124 = vmatprep.subr.mxu0 0.0
        %6125 = vmatpush1.msra.mxu0 0.0
        %6126 = vmatprep.subr.mxu0 0.0
        %6127 = vmatpush1.msra.mxu0 0.0
        %6128 = vmatprep.subr.mxu0 0.0
        %6129 = vmatpush1.msra.mxu0 0.0
        %6130 = vmatprep.subr.mxu0 0.0
        %6131 = vmatpush1.msra.mxu0 0.0
        %6132 = vmatprep.subr.mxu0 0.0
        %6133 = vmatpush1.msra.mxu0 0.0
        %6134 = vmatprep.subr.mxu0 0.0
        %6135 = vmatpush1.msra.mxu0 0.0
        %6136 = vmatprep.subr.mxu0 0.0
        %6137 = vmatpush1.msra.mxu0 0.0
        %6138 = vmatprep.subr.mxu0 0.0
        %6139 = vmatpush1.msra.mxu0 0.0
        %6140 = vmatprep.subr.mxu0 0.0
        %6141 = vmatpush1.msra.mxu0 0.0
        %6142 = vmatprep.subr.mxu0 0.0
        %6143 = vmatpush1.msra.mxu0 0.0
        %6144 = vmatprep.subr.mxu0 0.0
        %6145 = vmatpush1.msra.mxu0 0.0
        %6146 = vmatprep.subr.mxu0 0.0
        %6147 = vmatpush1.msra.mxu0 0.0
        %6148 = vmatprep.subr.mxu0 0.0
        %6149 = vmatpush1.msra.mxu0 0.0
        %6150 = vmatprep.subr.mxu0 0.0
        %6151 = vmatpush1.msra.mxu0 0.0
        %6152 = vmatprep.subr.mxu0 0.0
        %6153 = vmatpush1.msra.mxu0 0.0
        %6154 = vmatprep.subr.mxu0 0.0
        %6155 = vmatpush1.msra.mxu0 0.0
        %6156 = vmatprep.subr.mxu0 0.0
        %6157 = vmatpush1.msra.mxu0 0.0
        %6158 = vmatprep.subr.mxu0 0.0
        %6159 = vmatpush1.msra.mxu0 0.0
        %6160 = vmatprep.subr.mxu0 0.0
        %6161 = vmatpush1.msra.mxu0 0.0
        %6162 = vmatprep.subr.mxu0 0.0
        %6163 = vmatpush1.msra.mxu0 0.0
        %6164 = vmatprep.subr.mxu0 0.0
        %6165 = vmatpush1.msra.mxu0 0.0
        %6166 = vmatprep.subr.mxu0 0.0
        %6167 = vmatpush1.msra.mxu0 0.0
        %6168 = vmatprep.subr.mxu0 0.0
        %6169 = vmatpush1.msra.mxu0 0.0
        %6170 = vmatprep.subr.mxu0 0.0
        %6171 = vmatpush1.msra.mxu0 0.0
        %6172 = vmatprep.subr.mxu0 0.0
        %6173 = vmatpush1.msra.mxu0 0.0
        %6174 = vmatprep.subr.mxu0 0.0
        %6175 = vmatpush1.msra.mxu0 0.0
        %6176 = vmatprep.subr.mxu0 0.0
        %6177 = vmatpush1.msra.mxu0 0.0
        %6178 = vmatprep.subr.mxu0 0.0
        %6179 = vmatpush1.msra.mxu0 0.0
        %6180 = vmatprep.subr.mxu0 0.0
        %6181 = vmatpush1.msra.mxu0 0.0
        %6182 = vmatprep.mubr.f32.mxu0 0.0
        %v6183 = vand.u32 %v5854, 4294901760
        %v6184 = vsub.f32 %v5854, %v6183
        %v6185 = vand.u32 %v6184, 4294901760
        %6186 = vmatmul.mubr.f32.gmra.mrb[0].mxu0 %v6185
        %v6187 = vpop.f32.mrb[0].mxu0
        %v6188 = vadd.f32 %v6106, %v6187
        %v6189 = vpop.f32.mrb[0].mxu0
        %6190 = vmatprep.mubr.f32.mxu0 0.0
        %v6191 = vand.u32 %v5857, 4294901760
        %v6192 = vsub.f32 %v5857, %v6191
        %v6193 = vand.u32 %v6192, 4294901760
        %6194 = vmatmul.mubr.f32.gmra.mrb[0].mxu0 %v6193
        %v6195 = vpop.f32.mrb[0].mxu0
        %v6196 = vadd.f32 %v6113, %v6195
        %v6197 = vpop.f32.mrb[0].mxu0
        %6198 = vdwg.mxu0
        %6199 = vmatprep.subr.mxu0 0.0
        %v6200 = vand.u32 %v5851, 4294901760
        %v6201 = vsub.f32 %v5851, %v6200
        %v6202 = vand.u32 %v6201, 4294901760
        %6203 = vmatpush1.msra.mxu0 %v6202
        %6204 = vmatprep.subr.mxu0 0.0
        %v6205 = vand.u32 %v5852, 4294901760
        %v6206 = vsub.f32 %v5852, %v6205
        %v6207 = vand.u32 %v6206, 4294901760
        %6208 = vmatpush1.msra.mxu0 %v6207
        %6209 = vmatprep.subr.mxu0 0.0
        %6210 = vmatpush1.msra.mxu0 0.0
        %6211 = vmatprep.subr.mxu0 0.0
        %6212 = vmatpush1.msra.mxu0 0.0
        %6213 = vmatprep.subr.mxu0 0.0
        %6214 = vmatpush1.msra.mxu0 0.0
        %6215 = vmatprep.subr.mxu0 0.0
        %6216 = vmatpush1.msra.mxu0 0.0
        %6217 = vmatprep.subr.mxu0 0.0
        %6218 = vmatpush1.msra.mxu0 0.0
        %6219 = vmatprep.subr.mxu0 0.0
        %6220 = vmatpush1.msra.mxu0 0.0
        %6221 = vmatprep.subr.mxu0 0.0
        %6222 = vmatpush1.msra.mxu0 0.0
        %6223 = vmatprep.subr.mxu0 0.0
        %6224 = vmatpush1.msra.mxu0 0.0
        %6225 = vmatprep.subr.mxu0 0.0
        %6226 = vmatpush1.msra.mxu0 0.0
        %6227 = vmatprep.subr.mxu0 0.0
        %6228 = vmatpush1.msra.mxu0 0.0
        %6229 = vmatprep.subr.mxu0 0.0
        %6230 = vmatpush1.msra.mxu0 0.0
        %6231 = vmatprep.subr.mxu0 0.0
        %6232 = vmatpush1.msra.mxu0 0.0
        %6233 = vmatprep.subr.mxu0 0.0
        %6234 = vmatpush1.msra.mxu0 0.0
        %6235 = vmatprep.subr.mxu0 0.0
        %6236 = vmatpush1.msra.mxu0 0.0
        %6237 = vmatprep.subr.mxu0 0.0
        %6238 = vmatpush1.msra.mxu0 0.0
        %6239 = vmatprep.subr.mxu0 0.0
        %6240 = vmatpush1.msra.mxu0 0.0
        %6241 = vmatprep.subr.mxu0 0.0
        %6242 = vmatpush1.msra.mxu0 0.0
        %6243 = vmatprep.subr.mxu0 0.0
        %6244 = vmatpush1.msra.mxu0 0.0
        %6245 = vmatprep.subr.mxu0 0.0
        %6246 = vmatpush1.msra.mxu0 0.0
        %6247 = vmatprep.subr.mxu0 0.0
        %6248 = vmatpush1.msra.mxu0 0.0
        %6249 = vmatprep.subr.mxu0 0.0
        %6250 = vmatpush1.msra.mxu0 0.0
        %6251 = vmatprep.subr.mxu0 0.0
        %6252 = vmatpush1.msra.mxu0 0.0
        %6253 = vmatprep.subr.mxu0 0.0
        %6254 = vmatpush1.msra.mxu0 0.0
        %6255 = vmatprep.subr.mxu0 0.0
        %6256 = vmatpush1.msra.mxu0 0.0
        %6257 = vmatprep.subr.mxu0 0.0
        %6258 = vmatpush1.msra.mxu0 0.0
        %6259 = vmatprep.subr.mxu0 0.0
        %6260 = vmatpush1.msra.mxu0 0.0
        %6261 = vmatprep.subr.mxu0 0.0
        %6262 = vmatpush1.msra.mxu0 0.0
        %6263 = vmatprep.subr.mxu0 0.0
        %6264 = vmatpush1.msra.mxu0 0.0
        %6265 = vmatprep.subr.mxu0 0.0
        %6266 = vmatpush1.msra.mxu0 0.0
        %6267 = vmatprep.subr.mxu0 0.0
        %6268 = vmatpush1.msra.mxu0 0.0
        %6269 = vmatprep.mubr.f32.mxu0 0.0
        %v6270 = vand.u32 %v5854, 4294901760
        %6271 = vmatmul.mubr.f32.gmra.mrb[0].mxu0 %v6270
        %v6272 = vpop.f32.mrb[0].mxu0
        %v6273 = vadd.f32 %v6188, %v6272
        %v6274 = vpop.f32.mrb[0].mxu0
        %6275 = vmatprep.mubr.f32.mxu0 0.0
        %v6276 = vand.u32 %v5857, 4294901760
        %6277 = vmatmul.mubr.f32.gmra.mrb[0].mxu0 %v6276
        %v6278 = vpop.f32.mrb[0].mxu0
        %v6279 = vadd.f32 %v6196, %v6278
        %v6280 = vpop.f32.mrb[0].mxu0
        %6281 = vdwg.mxu0
        %6282 = vmatprep.subr.mxu0 0.0
        %v6283 = vand.u32 %v5851, 4294901760
        %6284 = vmatpush1.msra.mxu0 %v6283
        %6285 = vmatprep.subr.mxu0 0.0
        %v6286 = vand.u32 %v5852, 4294901760
        %6287 = vmatpush1.msra.mxu0 %v6286
        %6288 = vmatprep.subr.mxu0 0.0
        %6289 = vmatpush1.msra.mxu0 0.0
        %6290 = vmatprep.subr.mxu0 0.0
        %6291 = vmatpush1.msra.mxu0 0.0
        %6292 = vmatprep.subr.mxu0 0.0
        %6293 = vmatpush1.msra.mxu0 0.0
        %6294 = vmatprep.subr.mxu0 0.0
        %6295 = vmatpush1.msra.mxu0 0.0
        %6296 = vmatprep.subr.mxu0 0.0
        %6297 = vmatpush1.msra.mxu0 0.0
        %6298 = vmatprep.subr.mxu0 0.0
        %6299 = vmatpush1.msra.mxu0 0.0
        %6300 = vmatprep.subr.mxu0 0.0
        %6301 = vmatpush1.msra.mxu0 0.0
        %6302 = vmatprep.subr.mxu0 0.0
        %6303 = vmatpush1.msra.mxu0 0.0
        %6304 = vmatprep.subr.mxu0 0.0
        %6305 = vmatpush1.msra.mxu0 0.0
        %6306 = vmatprep.subr.mxu0 0.0
        %6307 = vmatpush1.msra.mxu0 0.0
        %6308 = vmatprep.subr.mxu0 0.0
        %6309 = vmatpush1.msra.mxu0 0.0
        %6310 = vmatprep.subr.mxu0 0.0
        %6311 = vmatpush1.msra.mxu0 0.0
        %6312 = vmatprep.subr.mxu0 0.0
        %6313 = vmatpush1.msra.mxu0 0.0
        %6314 = vmatprep.subr.mxu0 0.0
        %6315 = vmatpush1.msra.mxu0 0.0
        %6316 = vmatprep.subr.mxu0 0.0
        %6317 = vmatpush1.msra.mxu0 0.0
        %6318 = vmatprep.subr.mxu0 0.0
        %6319 = vmatpush1.msra.mxu0 0.0
        %6320 = vmatprep.subr.mxu0 0.0
        %6321 = vmatpush1.msra.mxu0 0.0
        %6322 = vmatprep.subr.mxu0 0.0
        %6323 = vmatpush1.msra.mxu0 0.0
        %6324 = vmatprep.subr.mxu0 0.0
        %6325 = vmatpush1.msra.mxu0 0.0
        %6326 = vmatprep.subr.mxu0 0.0
        %6327 = vmatpush1.msra.mxu0 0.0
        %6328 = vmatprep.subr.mxu0 0.0
        %6329 = vmatpush1.msra.mxu0 0.0
        %6330 = vmatprep.subr.mxu0 0.0
        %6331 = vmatpush1.msra.mxu0 0.0
        %6332 = vmatprep.subr.mxu0 0.0
        %6333 = vmatpush1.msra.mxu0 0.0
        %6334 = vmatprep.subr.mxu0 0.0
        %6335 = vmatpush1.msra.mxu0 0.0
        %6336 = vmatprep.subr.mxu0 0.0
        %6337 = vmatpush1.msra.mxu0 0.0
        %6338 = vmatprep.subr.mxu0 0.0
        %6339 = vmatpush1.msra.mxu0 0.0
        %6340 = vmatprep.subr.mxu0 0.0
        %6341 = vmatpush1.msra.mxu0 0.0
        %6342 = vmatprep.subr.mxu0 0.0
        %6343 = vmatpush1.msra.mxu0 0.0
        %6344 = vmatprep.subr.mxu0 0.0
        %6345 = vmatpush1.msra.mxu0 0.0
        %6346 = vmatprep.subr.mxu0 0.0
        %6347 = vmatpush1.msra.mxu0 0.0
        %6348 = vmatprep.mubr.f32.mxu0 0.0
        %v6349 = vand.u32 %v5854, 4294901760
        %6350 = vmatmul.mubr.f32.gmra.mrb[0].mxu0 %v6349
        %v6351 = vpop.f32.mrb[0].mxu0
        %v6352 = vadd.f32 %v6273, %v6351
        %v6353 = vpop.f32.mrb[0].mxu0
        %6354 = vmatprep.mubr.f32.mxu0 0.0
        %v6355 = vand.u32 %v5857, 4294901760
        %6356 = vmatmul.mubr.f32.gmra.mrb[0].mxu0 %v6355
        %v6357 = vpop.f32.mrb[0].mxu0
        %v6358 = vadd.f32 %v6279, %v6357
        %v6359 = vpop.f32.mrb[0].mxu0
        %6360 = vdwg.mxu0
        %v6361 = vadd.f32 %v5331, %v6352
        %v6362 = vadd.f32 %v5332, %v6358
        %v6363 = vld [vmem:[%s189 + $0xa] sm:$0xff]
        %v6364 = vld [vmem:[%s189 + $0x12] sm:$0xff]
        %s6365 = scalar_lea.vmem %s0, 192
        %v6366 = vld [vmem:[%s6365] sm:$0xff]
        %v6367 = vld [vmem:[%s6365 + $0x8] sm:$0xff]
        %v6369 = vsel %vm155, %v6363, 0
        %v6372 = vsel %vm155, %v6364, 0
        %6374 = vmatprep.subr.mxu0 0.0
        %v6375 = vand.u32 %v6366, 4294901760
        %6376 = vmatpush1.msra.mxu0 %v6375
        %6377 = vmatprep.subr.mxu0 0.0
        %v6378 = vand.u32 %v6367, 4294901760
        %6379 = vmatpush1.msra.mxu0 %v6378
        %6380 = vmatprep.subr.mxu0 0.0
        %6381 = vmatpush1.msra.mxu0 0.0
        %6382 = vmatprep.subr.mxu0 0.0
        %6383 = vmatpush1.msra.mxu0 0.0
        %6384 = vmatprep.subr.mxu0 0.0
        %6385 = vmatpush1.msra.mxu0 0.0
        %6386 = vmatprep.subr.mxu0 0.0
        %6387 = vmatpush1.msra.mxu0 0.0
        %6388 = vmatprep.subr.mxu0 0.0
        %6389 = vmatpush1.msra.mxu0 0.0
        %6390 = vmatprep.subr.mxu0 0.0
        %6391 = vmatpush1.msra.mxu0 0.0
        %6392 = vmatprep.subr.mxu0 0.0
        %6393 = vmatpush1.msra.mxu0 0.0
        %6394 = vmatprep.subr.mxu0 0.0
        %6395 = vmatpush1.msra.mxu0 0.0
        %6396 = vmatprep.subr.mxu0 0.0
        %6397 = vmatpush1.msra.mxu0 0.0
        %6398 = vmatprep.subr.mxu0 0.0
        %6399 = vmatpush1.msra.mxu0 0.0
        %6400 = vmatprep.subr.mxu0 0.0
        %6401 = vmatpush1.msra.mxu0 0.0
        %6402 = vmatprep.subr.mxu0 0.0
        %6403 = vmatpush1.msra.mxu0 0.0
        %6404 = vmatprep.subr.mxu0 0.0
        %6405 = vmatpush1.msra.mxu0 0.0
        %6406 = vmatprep.subr.mxu0 0.0
        %6407 = vmatpush1.msra.mxu0 0.0
        %6408 = vmatprep.subr.mxu0 0.0
        %6409 = vmatpush1.msra.mxu0 0.0
        %6410 = vmatprep.subr.mxu0 0.0
        %6411 = vmatpush1.msra.mxu0 0.0
        %6412 = vmatprep.subr.mxu0 0.0
        %6413 = vmatpush1.msra.mxu0 0.0
        %6414 = vmatprep.subr.mxu0 0.0
        %6415 = vmatpush1.msra.mxu0 0.0
        %6416 = vmatprep.subr.mxu0 0.0
        %6417 = vmatpush1.msra.mxu0 0.0
        %6418 = vmatprep.subr.mxu0 0.0
        %6419 = vmatpush1.msra.mxu0 0.0
        %6420 = vmatprep.subr.mxu0 0.0
        %6421 = vmatpush1.msra.mxu0 0.0
        %6422 = vmatprep.subr.mxu0 0.0
        %6423 = vmatpush1.msra.mxu0 0.0
        %6424 = vmatprep.subr.mxu0 0.0
        %6425 = vmatpush1.msra.mxu0 0.0
        %6426 = vmatprep.subr.mxu0 0.0
        %6427 = vmatpush1.msra.mxu0 0.0
        %6428 = vmatprep.subr.mxu0 0.0
        %6429 = vmatpush1.msra.mxu0 0.0
        %6430 = vmatprep.subr.mxu0 0.0
        %6431 = vmatpush1.msra.mxu0 0.0
        %6432 = vmatprep.subr.mxu0 0.0
        %6433 = vmatpush1.msra.mxu0 0.0
        %6434 = vmatprep.subr.mxu0 0.0
        %6435 = vmatpush1.msra.mxu0 0.0
        %6436 = vmatprep.subr.mxu0 0.0
        %6437 = vmatpush1.msra.mxu0 0.0
        %6438 = vmatprep.subr.mxu0 0.0
        %6439 = vmatpush1.msra.mxu0 0.0
        %6440 = vmatprep.mubr.f32.mxu0 0.0
        %v6441 = vand.u32 %v6369, 4294901760
        %v6442 = vsub.f32 %v6369, %v6441
        %v6443 = vand.u32 %v6442, 4294901760
        %v6444 = vsub.f32 %v6442, %v6443
        %v6445 = vand.u32 %v6444, 4294901760
        %6446 = vmatmul.mubr.f32.gmra.mrb[0].mxu0 %v6445
        %v6447 = vpop.f32.mrb[0].mxu0
        %v6448 = vadd.f32 0.0, %v6447
        %v6449 = vpop.f32.mrb[0].mxu0
        %6450 = vmatprep.mubr.f32.mxu0 0.0
        %v6451 = vand.u32 %v6372, 4294901760
        %v6452 = vsub.f32 %v6372, %v6451
        %v6453 = vand.u32 %v6452, 4294901760
        %v6454 = vsub.f32 %v6452, %v6453
        %v6455 = vand.u32 %v6454, 4294901760
        %6456 = vmatmul.mubr.f32.gmra.mrb[0].mxu0 %v6455
        %v6457 = vpop.f32.mrb[0].mxu0
        %v6458 = vadd.f32 0.0, %v6457
        %v6459 = vpop.f32.mrb[0].mxu0
        %6460 = vdwg.mxu0
        %6461 = vmatprep.subr.mxu0 0.0
        %v6462 = vand.u32 %v6366, 4294901760
        %v6463 = vsub.f32 %v6366, %v6462
        %v6464 = vand.u32 %v6463, 4294901760
        %v6465 = vsub.f32 %v6463, %v6464
        %v6466 = vand.u32 %v6465, 4294901760
        %6467 = vmatpush1.msra.mxu0 %v6466
        %6468 = vmatprep.subr.mxu0 0.0
        %v6469 = vand.u32 %v6367, 4294901760
        %v6470 = vsub.f32 %v6367, %v6469
        %v6471 = vand.u32 %v6470, 4294901760
        %v6472 = vsub.f32 %v6470, %v6471
        %v6473 = vand.u32 %v6472, 4294901760
        %6474 = vmatpush1.msra.mxu0 %v6473
        %6475 = vmatprep.subr.mxu0 0.0
        %6476 = vmatpush1.msra.mxu0 0.0
        %6477 = vmatprep.subr.mxu0 0.0
        %6478 = vmatpush1.msra.mxu0 0.0
        %6479 = vmatprep.subr.mxu0 0.0
        %6480 = vmatpush1.msra.mxu0 0.0
        %6481 = vmatprep.subr.mxu0 0.0
        %6482 = vmatpush1.msra.mxu0 0.0
        %6483 = vmatprep.subr.mxu0 0.0
        %6484 = vmatpush1.msra.mxu0 0.0
        %6485 = vmatprep.subr.mxu0 0.0
        %6486 = vmatpush1.msra.mxu0 0.0
        %6487 = vmatprep.subr.mxu0 0.0
        %6488 = vmatpush1.msra.mxu0 0.0
        %6489 = vmatprep.subr.mxu0 0.0
        %6490 = vmatpush1.msra.mxu0 0.0
        %6491 = vmatprep.subr.mxu0 0.0
        %6492 = vmatpush1.msra.mxu0 0.0
        %6493 = vmatprep.subr.mxu0 0.0
        %6494 = vmatpush1.msra.mxu0 0.0
        %6495 = vmatprep.subr.mxu0 0.0
        %6496 = vmatpush1.msra.mxu0 0.0
        %6497 = vmatprep.subr.mxu0 0.0
        %6498 = vmatpush1.msra.mxu0 0.0
        %6499 = vmatprep.subr.mxu0 0.0
        %6500 = vmatpush1.msra.mxu0 0.0
        %6501 = vmatprep.subr.mxu0 0.0
        %6502 = vmatpush1.msra.mxu0 0.0
        %6503 = vmatprep.subr.mxu0 0.0
        %6504 = vmatpush1.msra.mxu0 0.0
        %6505 = vmatprep.subr.mxu0 0.0
        %6506 = vmatpush1.msra.mxu0 0.0
        %6507 = vmatprep.subr.mxu0 0.0
        %6508 = vmatpush1.msra.mxu0 0.0
        %6509 = vmatprep.subr.mxu0 0.0
        %6510 = vmatpush1.msra.mxu0 0.0
        %6511 = vmatprep.subr.mxu0 0.0
        %6512 = vmatpush1.msra.mxu0 0.0
        %6513 = vmatprep.subr.mxu0 0.0
        %6514 = vmatpush1.msra.mxu0 0.0
        %6515 = vmatprep.subr.mxu0 0.0
        %6516 = vmatpush1.msra.mxu0 0.0
        %6517 = vmatprep.subr.mxu0 0.0
        %6518 = vmatpush1.msra.mxu0 0.0
        %6519 = vmatprep.subr.mxu0 0.0
        %6520 = vmatpush1.msra.mxu0 0.0
        %6521 = vmatprep.subr.mxu0 0.0
        %6522 = vmatpush1.msra.mxu0 0.0
        %6523 = vmatprep.subr.mxu0 0.0
        %6524 = vmatpush1.msra.mxu0 0.0
        %6525 = vmatprep.subr.mxu0 0.0
        %6526 = vmatpush1.msra.mxu0 0.0
        %6527 = vmatprep.subr.mxu0 0.0
        %6528 = vmatpush1.msra.mxu0 0.0
        %6529 = vmatprep.subr.mxu0 0.0
        %6530 = vmatpush1.msra.mxu0 0.0
        %6531 = vmatprep.subr.mxu0 0.0
        %6532 = vmatpush1.msra.mxu0 0.0
        %6533 = vmatprep.subr.mxu0 0.0
        %6534 = vmatpush1.msra.mxu0 0.0
        %6535 = vmatprep.mubr.f32.mxu0 0.0
        %v6536 = vand.u32 %v6369, 4294901760
        %6537 = vmatmul.mubr.f32.gmra.mrb[0].mxu0 %v6536
        %v6538 = vpop.f32.mrb[0].mxu0
        %v6539 = vadd.f32 %v6448, %v6538
        %v6540 = vpop.f32.mrb[0].mxu0
        %6541 = vmatprep.mubr.f32.mxu0 0.0
        %v6542 = vand.u32 %v6372, 4294901760
        %6543 = vmatmul.mubr.f32.gmra.mrb[0].mxu0 %v6542
        %v6544 = vpop.f32.mrb[0].mxu0
        %v6545 = vadd.f32 %v6458, %v6544
        %v6546 = vpop.f32.mrb[0].mxu0
        %6547 = vdwg.mxu0
        %6548 = vmatprep.subr.mxu0 0.0
        %v6549 = vand.u32 %v6366, 4294901760
        %v6550 = vsub.f32 %v6366, %v6549
        %6551 = vmatpush1.msra.mxu0 %v6550
        %6552 = vmatprep.subr.mxu0 0.0
        %v6553 = vand.u32 %v6367, 4294901760
        %v6554 = vsub.f32 %v6367, %v6553
        %6555 = vmatpush1.msra.mxu0 %v6554
        %6556 = vmatprep.subr.mxu0 0.0
        %6557 = vmatpush1.msra.mxu0 0.0
        %6558 = vmatprep.subr.mxu0 0.0
        %6559 = vmatpush1.msra.mxu0 0.0
        %6560 = vmatprep.subr.mxu0 0.0
        %6561 = vmatpush1.msra.mxu0 0.0
        %6562 = vmatprep.subr.mxu0 0.0
        %6563 = vmatpush1.msra.mxu0 0.0
        %6564 = vmatprep.subr.mxu0 0.0
        %6565 = vmatpush1.msra.mxu0 0.0
        %6566 = vmatprep.subr.mxu0 0.0
        %6567 = vmatpush1.msra.mxu0 0.0
        %6568 = vmatprep.subr.mxu0 0.0
        %6569 = vmatpush1.msra.mxu0 0.0
        %6570 = vmatprep.subr.mxu0 0.0
        %6571 = vmatpush1.msra.mxu0 0.0
        %6572 = vmatprep.subr.mxu0 0.0
        %6573 = vmatpush1.msra.mxu0 0.0
        %6574 = vmatprep.subr.mxu0 0.0
        %6575 = vmatpush1.msra.mxu0 0.0
        %6576 = vmatprep.subr.mxu0 0.0
        %6577 = vmatpush1.msra.mxu0 0.0
        %6578 = vmatprep.subr.mxu0 0.0
        %6579 = vmatpush1.msra.mxu0 0.0
        %6580 = vmatprep.subr.mxu0 0.0
        %6581 = vmatpush1.msra.mxu0 0.0
        %6582 = vmatprep.subr.mxu0 0.0
        %6583 = vmatpush1.msra.mxu0 0.0
        %6584 = vmatprep.subr.mxu0 0.0
        %6585 = vmatpush1.msra.mxu0 0.0
        %6586 = vmatprep.subr.mxu0 0.0
        %6587 = vmatpush1.msra.mxu0 0.0
        %6588 = vmatprep.subr.mxu0 0.0
        %6589 = vmatpush1.msra.mxu0 0.0
        %6590 = vmatprep.subr.mxu0 0.0
        %6591 = vmatpush1.msra.mxu0 0.0
        %6592 = vmatprep.subr.mxu0 0.0
        %6593 = vmatpush1.msra.mxu0 0.0
        %6594 = vmatprep.subr.mxu0 0.0
        %6595 = vmatpush1.msra.mxu0 0.0
        %6596 = vmatprep.subr.mxu0 0.0
        %6597 = vmatpush1.msra.mxu0 0.0
        %6598 = vmatprep.subr.mxu0 0.0
        %6599 = vmatpush1.msra.mxu0 0.0
        %6600 = vmatprep.subr.mxu0 0.0
        %6601 = vmatpush1.msra.mxu0 0.0
        %6602 = vmatprep.subr.mxu0 0.0
        %6603 = vmatpush1.msra.mxu0 0.0
        %6604 = vmatprep.subr.mxu0 0.0
        %6605 = vmatpush1.msra.mxu0 0.0
        %6606 = vmatprep.subr.mxu0 0.0
        %6607 = vmatpush1.msra.mxu0 0.0
        %6608 = vmatprep.subr.mxu0 0.0
        %6609 = vmatpush1.msra.mxu0 0.0
        %6610 = vmatprep.subr.mxu0 0.0
        %6611 = vmatpush1.msra.mxu0 0.0
        %6612 = vmatprep.subr.mxu0 0.0
        %6613 = vmatpush1.msra.mxu0 0.0
        %6614 = vmatprep.subr.mxu0 0.0
        %6615 = vmatpush1.msra.mxu0 0.0
        %6616 = vmatprep.mubr.f32.mxu0 0.0
        %v6617 = vand.u32 %v6369, 4294901760
        %v6618 = vsub.f32 %v6369, %v6617
        %6619 = vmatmul.mubr.f32.gmra.mrb[0].mxu0 %v6618
        %v6620 = vpop.f32.mrb[0].mxu0
        %v6621 = vadd.f32 %v6539, %v6620
        %v6622 = vpop.f32.mrb[0].mxu0
        %6623 = vmatprep.mubr.f32.mxu0 0.0
        %v6624 = vand.u32 %v6372, 4294901760
        %v6625 = vsub.f32 %v6372, %v6624
        %6626 = vmatmul.mubr.f32.gmra.mrb[0].mxu0 %v6625
        %v6627 = vpop.f32.mrb[0].mxu0
        %v6628 = vadd.f32 %v6545, %v6627
        %v6629 = vpop.f32.mrb[0].mxu0
        %6630 = vdwg.mxu0
        %6631 = vmatprep.subr.mxu0 0.0
        %v6632 = vand.u32 %v6366, 4294901760
        %6633 = vmatpush1.msra.mxu0 %v6632
        %6634 = vmatprep.subr.mxu0 0.0
        %v6635 = vand.u32 %v6367, 4294901760
        %6636 = vmatpush1.msra.mxu0 %v6635
        %6637 = vmatprep.subr.mxu0 0.0
        %6638 = vmatpush1.msra.mxu0 0.0
        %6639 = vmatprep.subr.mxu0 0.0
        %6640 = vmatpush1.msra.mxu0 0.0
        %6641 = vmatprep.subr.mxu0 0.0
        %6642 = vmatpush1.msra.mxu0 0.0
        %6643 = vmatprep.subr.mxu0 0.0
        %6644 = vmatpush1.msra.mxu0 0.0
        %6645 = vmatprep.subr.mxu0 0.0
        %6646 = vmatpush1.msra.mxu0 0.0
        %6647 = vmatprep.subr.mxu0 0.0
        %6648 = vmatpush1.msra.mxu0 0.0
        %6649 = vmatprep.subr.mxu0 0.0
        %6650 = vmatpush1.msra.mxu0 0.0
        %6651 = vmatprep.subr.mxu0 0.0
        %6652 = vmatpush1.msra.mxu0 0.0
        %6653 = vmatprep.subr.mxu0 0.0
        %6654 = vmatpush1.msra.mxu0 0.0
        %6655 = vmatprep.subr.mxu0 0.0
        %6656 = vmatpush1.msra.mxu0 0.0
        %6657 = vmatprep.subr.mxu0 0.0
        %6658 = vmatpush1.msra.mxu0 0.0
        %6659 = vmatprep.subr.mxu0 0.0
        %6660 = vmatpush1.msra.mxu0 0.0
        %6661 = vmatprep.subr.mxu0 0.0
        %6662 = vmatpush1.msra.mxu0 0.0
        %6663 = vmatprep.subr.mxu0 0.0
        %6664 = vmatpush1.msra.mxu0 0.0
        %6665 = vmatprep.subr.mxu0 0.0
        %6666 = vmatpush1.msra.mxu0 0.0
        %6667 = vmatprep.subr.mxu0 0.0
        %6668 = vmatpush1.msra.mxu0 0.0
        %6669 = vmatprep.subr.mxu0 0.0
        %6670 = vmatpush1.msra.mxu0 0.0
        %6671 = vmatprep.subr.mxu0 0.0
        %6672 = vmatpush1.msra.mxu0 0.0
        %6673 = vmatprep.subr.mxu0 0.0
        %6674 = vmatpush1.msra.mxu0 0.0
        %6675 = vmatprep.subr.mxu0 0.0
        %6676 = vmatpush1.msra.mxu0 0.0
        %6677 = vmatprep.subr.mxu0 0.0
        %6678 = vmatpush1.msra.mxu0 0.0
        %6679 = vmatprep.subr.mxu0 0.0
        %6680 = vmatpush1.msra.mxu0 0.0
        %6681 = vmatprep.subr.mxu0 0.0
        %6682 = vmatpush1.msra.mxu0 0.0
        %6683 = vmatprep.subr.mxu0 0.0
        %6684 = vmatpush1.msra.mxu0 0.0
        %6685 = vmatprep.subr.mxu0 0.0
        %6686 = vmatpush1.msra.mxu0 0.0
        %6687 = vmatprep.subr.mxu0 0.0
        %6688 = vmatpush1.msra.mxu0 0.0
        %6689 = vmatprep.subr.mxu0 0.0
        %6690 = vmatpush1.msra.mxu0 0.0
        %6691 = vmatprep.subr.mxu0 0.0
        %6692 = vmatpush1.msra.mxu0 0.0
        %6693 = vmatprep.subr.mxu0 0.0
        %6694 = vmatpush1.msra.mxu0 0.0
        %6695 = vmatprep.subr.mxu0 0.0
        %6696 = vmatpush1.msra.mxu0 0.0
        %6697 = vmatprep.mubr.f32.mxu0 0.0
        %v6698 = vand.u32 %v6369, 4294901760
        %v6699 = vsub.f32 %v6369, %v6698
        %v6700 = vand.u32 %v6699, 4294901760
        %6701 = vmatmul.mubr.f32.gmra.mrb[0].mxu0 %v6700
        %v6702 = vpop.f32.mrb[0].mxu0
        %v6703 = vadd.f32 %v6621, %v6702
        %v6704 = vpop.f32.mrb[0].mxu0
        %6705 = vmatprep.mubr.f32.mxu0 0.0
        %v6706 = vand.u32 %v6372, 4294901760
        %v6707 = vsub.f32 %v6372, %v6706
        %v6708 = vand.u32 %v6707, 4294901760
        %6709 = vmatmul.mubr.f32.gmra.mrb[0].mxu0 %v6708
        %v6710 = vpop.f32.mrb[0].mxu0
        %v6711 = vadd.f32 %v6628, %v6710
        %v6712 = vpop.f32.mrb[0].mxu0
        %6713 = vdwg.mxu0
        %6714 = vmatprep.subr.mxu0 0.0
        %v6715 = vand.u32 %v6366, 4294901760
        %v6716 = vsub.f32 %v6366, %v6715
        %v6717 = vand.u32 %v6716, 4294901760
        %6718 = vmatpush1.msra.mxu0 %v6717
        %6719 = vmatprep.subr.mxu0 0.0
        %v6720 = vand.u32 %v6367, 4294901760
        %v6721 = vsub.f32 %v6367, %v6720
        %v6722 = vand.u32 %v6721, 4294901760
        %6723 = vmatpush1.msra.mxu0 %v6722
        %6724 = vmatprep.subr.mxu0 0.0
        %6725 = vmatpush1.msra.mxu0 0.0
        %6726 = vmatprep.subr.mxu0 0.0
        %6727 = vmatpush1.msra.mxu0 0.0
        %6728 = vmatprep.subr.mxu0 0.0
        %6729 = vmatpush1.msra.mxu0 0.0
        %6730 = vmatprep.subr.mxu0 0.0
        %6731 = vmatpush1.msra.mxu0 0.0
        %6732 = vmatprep.subr.mxu0 0.0
        %6733 = vmatpush1.msra.mxu0 0.0
        %6734 = vmatprep.subr.mxu0 0.0
        %6735 = vmatpush1.msra.mxu0 0.0
        %6736 = vmatprep.subr.mxu0 0.0
        %6737 = vmatpush1.msra.mxu0 0.0
        %6738 = vmatprep.subr.mxu0 0.0
        %6739 = vmatpush1.msra.mxu0 0.0
        %6740 = vmatprep.subr.mxu0 0.0
        %6741 = vmatpush1.msra.mxu0 0.0
        %6742 = vmatprep.subr.mxu0 0.0
        %6743 = vmatpush1.msra.mxu0 0.0
        %6744 = vmatprep.subr.mxu0 0.0
        %6745 = vmatpush1.msra.mxu0 0.0
        %6746 = vmatprep.subr.mxu0 0.0
        %6747 = vmatpush1.msra.mxu0 0.0
        %6748 = vmatprep.subr.mxu0 0.0
        %6749 = vmatpush1.msra.mxu0 0.0
        %6750 = vmatprep.subr.mxu0 0.0
        %6751 = vmatpush1.msra.mxu0 0.0
        %6752 = vmatprep.subr.mxu0 0.0
        %6753 = vmatpush1.msra.mxu0 0.0
        %6754 = vmatprep.subr.mxu0 0.0
        %6755 = vmatpush1.msra.mxu0 0.0
        %6756 = vmatprep.subr.mxu0 0.0
        %6757 = vmatpush1.msra.mxu0 0.0
        %6758 = vmatprep.subr.mxu0 0.0
        %6759 = vmatpush1.msra.mxu0 0.0
        %6760 = vmatprep.subr.mxu0 0.0
        %6761 = vmatpush1.msra.mxu0 0.0
        %6762 = vmatprep.subr.mxu0 0.0
        %6763 = vmatpush1.msra.mxu0 0.0
        %6764 = vmatprep.subr.mxu0 0.0
        %6765 = vmatpush1.msra.mxu0 0.0
        %6766 = vmatprep.subr.mxu0 0.0
        %6767 = vmatpush1.msra.mxu0 0.0
        %6768 = vmatprep.subr.mxu0 0.0
        %6769 = vmatpush1.msra.mxu0 0.0
        %6770 = vmatprep.subr.mxu0 0.0
        %6771 = vmatpush1.msra.mxu0 0.0
        %6772 = vmatprep.subr.mxu0 0.0
        %6773 = vmatpush1.msra.mxu0 0.0
        %6774 = vmatprep.subr.mxu0 0.0
        %6775 = vmatpush1.msra.mxu0 0.0
        %6776 = vmatprep.subr.mxu0 0.0
        %6777 = vmatpush1.msra.mxu0 0.0
        %6778 = vmatprep.subr.mxu0 0.0
        %6779 = vmatpush1.msra.mxu0 0.0
        %6780 = vmatprep.subr.mxu0 0.0
        %6781 = vmatpush1.msra.mxu0 0.0
        %6782 = vmatprep.subr.mxu0 0.0
        %6783 = vmatpush1.msra.mxu0 0.0
        %6784 = vmatprep.mubr.f32.mxu0 0.0
        %v6785 = vand.u32 %v6369, 4294901760
        %6786 = vmatmul.mubr.f32.gmra.mrb[0].mxu0 %v6785
        %v6787 = vpop.f32.mrb[0].mxu0
        %v6788 = vadd.f32 %v6703, %v6787
        %v6789 = vpop.f32.mrb[0].mxu0
        %6790 = vmatprep.mubr.f32.mxu0 0.0
        %v6791 = vand.u32 %v6372, 4294901760
        %6792 = vmatmul.mubr.f32.gmra.mrb[0].mxu0 %v6791
        %v6793 = vpop.f32.mrb[0].mxu0
        %v6794 = vadd.f32 %v6711, %v6793
        %v6795 = vpop.f32.mrb[0].mxu0
        %6796 = vdwg.mxu0
        %6797 = vmatprep.subr.mxu0 0.0
        %v6798 = vand.u32 %v6366, 4294901760
        %6799 = vmatpush1.msra.mxu0 %v6798
        %6800 = vmatprep.subr.mxu0 0.0
        %v6801 = vand.u32 %v6367, 4294901760
        %6802 = vmatpush1.msra.mxu0 %v6801
        %6803 = vmatprep.subr.mxu0 0.0
        %6804 = vmatpush1.msra.mxu0 0.0
        %6805 = vmatprep.subr.mxu0 0.0
        %6806 = vmatpush1.msra.mxu0 0.0
        %6807 = vmatprep.subr.mxu0 0.0
        %6808 = vmatpush1.msra.mxu0 0.0
        %6809 = vmatprep.subr.mxu0 0.0
        %6810 = vmatpush1.msra.mxu0 0.0
        %6811 = vmatprep.subr.mxu0 0.0
        %6812 = vmatpush1.msra.mxu0 0.0
        %6813 = vmatprep.subr.mxu0 0.0
        %6814 = vmatpush1.msra.mxu0 0.0
        %6815 = vmatprep.subr.mxu0 0.0
        %6816 = vmatpush1.msra.mxu0 0.0
        %6817 = vmatprep.subr.mxu0 0.0
        %6818 = vmatpush1.msra.mxu0 0.0
        %6819 = vmatprep.subr.mxu0 0.0
        %6820 = vmatpush1.msra.mxu0 0.0
        %6821 = vmatprep.subr.mxu0 0.0
        %6822 = vmatpush1.msra.mxu0 0.0
        %6823 = vmatprep.subr.mxu0 0.0
        %6824 = vmatpush1.msra.mxu0 0.0
        %6825 = vmatprep.subr.mxu0 0.0
        %6826 = vmatpush1.msra.mxu0 0.0
        %6827 = vmatprep.subr.mxu0 0.0
        %6828 = vmatpush1.msra.mxu0 0.0
        %6829 = vmatprep.subr.mxu0 0.0
        %6830 = vmatpush1.msra.mxu0 0.0
        %6831 = vmatprep.subr.mxu0 0.0
        %6832 = vmatpush1.msra.mxu0 0.0
        %6833 = vmatprep.subr.mxu0 0.0
        %6834 = vmatpush1.msra.mxu0 0.0
        %6835 = vmatprep.subr.mxu0 0.0
        %6836 = vmatpush1.msra.mxu0 0.0
        %6837 = vmatprep.subr.mxu0 0.0
        %6838 = vmatpush1.msra.mxu0 0.0
        %6839 = vmatprep.subr.mxu0 0.0
        %6840 = vmatpush1.msra.mxu0 0.0
        %6841 = vmatprep.subr.mxu0 0.0
        %6842 = vmatpush1.msra.mxu0 0.0
        %6843 = vmatprep.subr.mxu0 0.0
        %6844 = vmatpush1.msra.mxu0 0.0
        %6845 = vmatprep.subr.mxu0 0.0
        %6846 = vmatpush1.msra.mxu0 0.0
        %6847 = vmatprep.subr.mxu0 0.0
        %6848 = vmatpush1.msra.mxu0 0.0
        %6849 = vmatprep.subr.mxu0 0.0
        %6850 = vmatpush1.msra.mxu0 0.0
        %6851 = vmatprep.subr.mxu0 0.0
        %6852 = vmatpush1.msra.mxu0 0.0
        %6853 = vmatprep.subr.mxu0 0.0
        %6854 = vmatpush1.msra.mxu0 0.0
        %6855 = vmatprep.subr.mxu0 0.0
        %6856 = vmatpush1.msra.mxu0 0.0
        %6857 = vmatprep.subr.mxu0 0.0
        %6858 = vmatpush1.msra.mxu0 0.0
        %6859 = vmatprep.subr.mxu0 0.0
        %6860 = vmatpush1.msra.mxu0 0.0
        %6861 = vmatprep.subr.mxu0 0.0
        %6862 = vmatpush1.msra.mxu0 0.0
        %6863 = vmatprep.mubr.f32.mxu0 0.0
        %v6864 = vand.u32 %v6369, 4294901760
        %6865 = vmatmul.mubr.f32.gmra.mrb[0].mxu0 %v6864
        %v6866 = vpop.f32.mrb[0].mxu0
        %v6867 = vadd.f32 %v6788, %v6866
        %v6868 = vpop.f32.mrb[0].mxu0
        %6869 = vmatprep.mubr.f32.mxu0 0.0
        %v6870 = vand.u32 %v6372, 4294901760
        %6871 = vmatmul.mubr.f32.gmra.mrb[0].mxu0 %v6870
        %v6872 = vpop.f32.mrb[0].mxu0
        %v6873 = vadd.f32 %v6794, %v6872
        %v6874 = vpop.f32.mrb[0].mxu0
        %6875 = vdwg.mxu0
        %v6876 = vadd.f32 %v5846, %v6867
        %v6877 = vadd.f32 %v5847, %v6873
        %v6878 = vld [vmem:[%s189 + $0xb] sm:$0xff]
        %v6879 = vld [vmem:[%s189 + $0x13] sm:$0xff]
        %s6880 = scalar_lea.vmem %s0, 208
        %v6881 = vld [vmem:[%s6880] sm:$0xff]
        %v6882 = vld [vmem:[%s6880 + $0x8] sm:$0xff]
        %v6884 = vsel %vm155, %v6878, 0
        %v6887 = vsel %vm155, %v6879, 0
        %6889 = vmatprep.subr.mxu0 0.0
        %v6890 = vand.u32 %v6881, 4294901760
        %6891 = vmatpush1.msra.mxu0 %v6890
        %6892 = vmatprep.subr.mxu0 0.0
        %v6893 = vand.u32 %v6882, 4294901760
        %6894 = vmatpush1.msra.mxu0 %v6893
        %6895 = vmatprep.subr.mxu0 0.0
        %6896 = vmatpush1.msra.mxu0 0.0
        %6897 = vmatprep.subr.mxu0 0.0
        %6898 = vmatpush1.msra.mxu0 0.0
        %6899 = vmatprep.subr.mxu0 0.0
        %6900 = vmatpush1.msra.mxu0 0.0
        %6901 = vmatprep.subr.mxu0 0.0
        %6902 = vmatpush1.msra.mxu0 0.0
        %6903 = vmatprep.subr.mxu0 0.0
        %6904 = vmatpush1.msra.mxu0 0.0
        %6905 = vmatprep.subr.mxu0 0.0
        %6906 = vmatpush1.msra.mxu0 0.0
        %6907 = vmatprep.subr.mxu0 0.0
        %6908 = vmatpush1.msra.mxu0 0.0
        %6909 = vmatprep.subr.mxu0 0.0
        %6910 = vmatpush1.msra.mxu0 0.0
        %6911 = vmatprep.subr.mxu0 0.0
        %6912 = vmatpush1.msra.mxu0 0.0
        %6913 = vmatprep.subr.mxu0 0.0
        %6914 = vmatpush1.msra.mxu0 0.0
        %6915 = vmatprep.subr.mxu0 0.0
        %6916 = vmatpush1.msra.mxu0 0.0
        %6917 = vmatprep.subr.mxu0 0.0
        %6918 = vmatpush1.msra.mxu0 0.0
        %6919 = vmatprep.subr.mxu0 0.0
        %6920 = vmatpush1.msra.mxu0 0.0
        %6921 = vmatprep.subr.mxu0 0.0
        %6922 = vmatpush1.msra.mxu0 0.0
        %6923 = vmatprep.subr.mxu0 0.0
        %6924 = vmatpush1.msra.mxu0 0.0
        %6925 = vmatprep.subr.mxu0 0.0
        %6926 = vmatpush1.msra.mxu0 0.0
        %6927 = vmatprep.subr.mxu0 0.0
        %6928 = vmatpush1.msra.mxu0 0.0
        %6929 = vmatprep.subr.mxu0 0.0
        %6930 = vmatpush1.msra.mxu0 0.0
        %6931 = vmatprep.subr.mxu0 0.0
        %6932 = vmatpush1.msra.mxu0 0.0
        %6933 = vmatprep.subr.mxu0 0.0
        %6934 = vmatpush1.msra.mxu0 0.0
        %6935 = vmatprep.subr.mxu0 0.0
        %6936 = vmatpush1.msra.mxu0 0.0
        %6937 = vmatprep.subr.mxu0 0.0
        %6938 = vmatpush1.msra.mxu0 0.0
        %6939 = vmatprep.subr.mxu0 0.0
        %6940 = vmatpush1.msra.mxu0 0.0
        %6941 = vmatprep.subr.mxu0 0.0
        %6942 = vmatpush1.msra.mxu0 0.0
        %6943 = vmatprep.subr.mxu0 0.0
        %6944 = vmatpush1.msra.mxu0 0.0
        %6945 = vmatprep.subr.mxu0 0.0
        %6946 = vmatpush1.msra.mxu0 0.0
        %6947 = vmatprep.subr.mxu0 0.0
        %6948 = vmatpush1.msra.mxu0 0.0
        %6949 = vmatprep.subr.mxu0 0.0
        %6950 = vmatpush1.msra.mxu0 0.0
        %6951 = vmatprep.subr.mxu0 0.0
        %6952 = vmatpush1.msra.mxu0 0.0
        %6953 = vmatprep.subr.mxu0 0.0
        %6954 = vmatpush1.msra.mxu0 0.0
        %6955 = vmatprep.mubr.f32.mxu0 0.0
        %v6956 = vand.u32 %v6884, 4294901760
        %v6957 = vsub.f32 %v6884, %v6956
        %v6958 = vand.u32 %v6957, 4294901760
        %v6959 = vsub.f32 %v6957, %v6958
        %v6960 = vand.u32 %v6959, 4294901760
        %6961 = vmatmul.mubr.f32.gmra.mrb[0].mxu0 %v6960
        %v6962 = vpop.f32.mrb[0].mxu0
        %v6963 = vadd.f32 0.0, %v6962
        %v6964 = vpop.f32.mrb[0].mxu0
        %6965 = vmatprep.mubr.f32.mxu0 0.0
        %v6966 = vand.u32 %v6887, 4294901760
        %v6967 = vsub.f32 %v6887, %v6966
        %v6968 = vand.u32 %v6967, 4294901760
        %v6969 = vsub.f32 %v6967, %v6968
        %v6970 = vand.u32 %v6969, 4294901760
        %6971 = vmatmul.mubr.f32.gmra.mrb[0].mxu0 %v6970
        %v6972 = vpop.f32.mrb[0].mxu0
        %v6973 = vadd.f32 0.0, %v6972
        %v6974 = vpop.f32.mrb[0].mxu0
        %6975 = vdwg.mxu0
        %6976 = vmatprep.subr.mxu0 0.0
        %v6977 = vand.u32 %v6881, 4294901760
        %v6978 = vsub.f32 %v6881, %v6977
        %v6979 = vand.u32 %v6978, 4294901760
        %v6980 = vsub.f32 %v6978, %v6979
        %v6981 = vand.u32 %v6980, 4294901760
        %6982 = vmatpush1.msra.mxu0 %v6981
        %6983 = vmatprep.subr.mxu0 0.0
        %v6984 = vand.u32 %v6882, 4294901760
        %v6985 = vsub.f32 %v6882, %v6984
        %v6986 = vand.u32 %v6985, 4294901760
        %v6987 = vsub.f32 %v6985, %v6986
        %v6988 = vand.u32 %v6987, 4294901760
        %6989 = vmatpush1.msra.mxu0 %v6988
        %6990 = vmatprep.subr.mxu0 0.0
        %6991 = vmatpush1.msra.mxu0 0.0
        %6992 = vmatprep.subr.mxu0 0.0
        %6993 = vmatpush1.msra.mxu0 0.0
        %6994 = vmatprep.subr.mxu0 0.0
        %6995 = vmatpush1.msra.mxu0 0.0
        %6996 = vmatprep.subr.mxu0 0.0
        %6997 = vmatpush1.msra.mxu0 0.0
        %6998 = vmatprep.subr.mxu0 0.0
        %6999 = vmatpush1.msra.mxu0 0.0
        %7000 = vmatprep.subr.mxu0 0.0
        %7001 = vmatpush1.msra.mxu0 0.0
        %7002 = vmatprep.subr.mxu0 0.0
        %7003 = vmatpush1.msra.mxu0 0.0
        %7004 = vmatprep.subr.mxu0 0.0
        %7005 = vmatpush1.msra.mxu0 0.0
        %7006 = vmatprep.subr.mxu0 0.0
        %7007 = vmatpush1.msra.mxu0 0.0
        %7008 = vmatprep.subr.mxu0 0.0
        %7009 = vmatpush1.msra.mxu0 0.0
        %7010 = vmatprep.subr.mxu0 0.0
        %7011 = vmatpush1.msra.mxu0 0.0
        %7012 = vmatprep.subr.mxu0 0.0
        %7013 = vmatpush1.msra.mxu0 0.0
        %7014 = vmatprep.subr.mxu0 0.0
        %7015 = vmatpush1.msra.mxu0 0.0
        %7016 = vmatprep.subr.mxu0 0.0
        %7017 = vmatpush1.msra.mxu0 0.0
        %7018 = vmatprep.subr.mxu0 0.0
        %7019 = vmatpush1.msra.mxu0 0.0
        %7020 = vmatprep.subr.mxu0 0.0
        %7021 = vmatpush1.msra.mxu0 0.0
        %7022 = vmatprep.subr.mxu0 0.0
        %7023 = vmatpush1.msra.mxu0 0.0
        %7024 = vmatprep.subr.mxu0 0.0
        %7025 = vmatpush1.msra.mxu0 0.0
        %7026 = vmatprep.subr.mxu0 0.0
        %7027 = vmatpush1.msra.mxu0 0.0
        %7028 = vmatprep.subr.mxu0 0.0
        %7029 = vmatpush1.msra.mxu0 0.0
        %7030 = vmatprep.subr.mxu0 0.0
        %7031 = vmatpush1.msra.mxu0 0.0
        %7032 = vmatprep.subr.mxu0 0.0
        %7033 = vmatpush1.msra.mxu0 0.0
        %7034 = vmatprep.subr.mxu0 0.0
        %7035 = vmatpush1.msra.mxu0 0.0
        %7036 = vmatprep.subr.mxu0 0.0
        %7037 = vmatpush1.msra.mxu0 0.0
        %7038 = vmatprep.subr.mxu0 0.0
        %7039 = vmatpush1.msra.mxu0 0.0
        %7040 = vmatprep.subr.mxu0 0.0
        %7041 = vmatpush1.msra.mxu0 0.0
        %7042 = vmatprep.subr.mxu0 0.0
        %7043 = vmatpush1.msra.mxu0 0.0
        %7044 = vmatprep.subr.mxu0 0.0
        %7045 = vmatpush1.msra.mxu0 0.0
        %7046 = vmatprep.subr.mxu0 0.0
        %7047 = vmatpush1.msra.mxu0 0.0
        %7048 = vmatprep.subr.mxu0 0.0
        %7049 = vmatpush1.msra.mxu0 0.0
        %7050 = vmatprep.mubr.f32.mxu0 0.0
        %v7051 = vand.u32 %v6884, 4294901760
        %7052 = vmatmul.mubr.f32.gmra.mrb[0].mxu0 %v7051
        %v7053 = vpop.f32.mrb[0].mxu0
        %v7054 = vadd.f32 %v6963, %v7053
        %v7055 = vpop.f32.mrb[0].mxu0
        %7056 = vmatprep.mubr.f32.mxu0 0.0
        %v7057 = vand.u32 %v6887, 4294901760
        %7058 = vmatmul.mubr.f32.gmra.mrb[0].mxu0 %v7057
        %v7059 = vpop.f32.mrb[0].mxu0
        %v7060 = vadd.f32 %v6973, %v7059
        %v7061 = vpop.f32.mrb[0].mxu0
        %7062 = vdwg.mxu0
        %7063 = vmatprep.subr.mxu0 0.0
        %v7064 = vand.u32 %v6881, 4294901760
        %v7065 = vsub.f32 %v6881, %v7064
        %7066 = vmatpush1.msra.mxu0 %v7065
        %7067 = vmatprep.subr.mxu0 0.0
        %v7068 = vand.u32 %v6882, 4294901760
        %v7069 = vsub.f32 %v6882, %v7068
        %7070 = vmatpush1.msra.mxu0 %v7069
        %7071 = vmatprep.subr.mxu0 0.0
        %7072 = vmatpush1.msra.mxu0 0.0
        %7073 = vmatprep.subr.mxu0 0.0
        %7074 = vmatpush1.msra.mxu0 0.0
        %7075 = vmatprep.subr.mxu0 0.0
        %7076 = vmatpush1.msra.mxu0 0.0
        %7077 = vmatprep.subr.mxu0 0.0
        %7078 = vmatpush1.msra.mxu0 0.0
        %7079 = vmatprep.subr.mxu0 0.0
        %7080 = vmatpush1.msra.mxu0 0.0
        %7081 = vmatprep.subr.mxu0 0.0
        %7082 = vmatpush1.msra.mxu0 0.0
        %7083 = vmatprep.subr.mxu0 0.0
        %7084 = vmatpush1.msra.mxu0 0.0
        %7085 = vmatprep.subr.mxu0 0.0
        %7086 = vmatpush1.msra.mxu0 0.0
        %7087 = vmatprep.subr.mxu0 0.0
        %7088 = vmatpush1.msra.mxu0 0.0
        %7089 = vmatprep.subr.mxu0 0.0
        %7090 = vmatpush1.msra.mxu0 0.0
        %7091 = vmatprep.subr.mxu0 0.0
        %7092 = vmatpush1.msra.mxu0 0.0
        %7093 = vmatprep.subr.mxu0 0.0
        %7094 = vmatpush1.msra.mxu0 0.0
        %7095 = vmatprep.subr.mxu0 0.0
        %7096 = vmatpush1.msra.mxu0 0.0
        %7097 = vmatprep.subr.mxu0 0.0
        %7098 = vmatpush1.msra.mxu0 0.0
        %7099 = vmatprep.subr.mxu0 0.0
        %7100 = vmatpush1.msra.mxu0 0.0
        %7101 = vmatprep.subr.mxu0 0.0
        %7102 = vmatpush1.msra.mxu0 0.0
        %7103 = vmatprep.subr.mxu0 0.0
        %7104 = vmatpush1.msra.mxu0 0.0
        %7105 = vmatprep.subr.mxu0 0.0
        %7106 = vmatpush1.msra.mxu0 0.0
        %7107 = vmatprep.subr.mxu0 0.0
        %7108 = vmatpush1.msra.mxu0 0.0
        %7109 = vmatprep.subr.mxu0 0.0
        %7110 = vmatpush1.msra.mxu0 0.0
        %7111 = vmatprep.subr.mxu0 0.0
        %7112 = vmatpush1.msra.mxu0 0.0
        %7113 = vmatprep.subr.mxu0 0.0
        %7114 = vmatpush1.msra.mxu0 0.0
        %7115 = vmatprep.subr.mxu0 0.0
        %7116 = vmatpush1.msra.mxu0 0.0
        %7117 = vmatprep.subr.mxu0 0.0
        %7118 = vmatpush1.msra.mxu0 0.0
        %7119 = vmatprep.subr.mxu0 0.0
        %7120 = vmatpush1.msra.mxu0 0.0
        %7121 = vmatprep.subr.mxu0 0.0
        %7122 = vmatpush1.msra.mxu0 0.0
        %7123 = vmatprep.subr.mxu0 0.0
        %7124 = vmatpush1.msra.mxu0 0.0
        %7125 = vmatprep.subr.mxu0 0.0
        %7126 = vmatpush1.msra.mxu0 0.0
        %7127 = vmatprep.subr.mxu0 0.0
        %7128 = vmatpush1.msra.mxu0 0.0
        %7129 = vmatprep.subr.mxu0 0.0
        %7130 = vmatpush1.msra.mxu0 0.0
        %7131 = vmatprep.mubr.f32.mxu0 0.0
        %v7132 = vand.u32 %v6884, 4294901760
        %v7133 = vsub.f32 %v6884, %v7132
        %7134 = vmatmul.mubr.f32.gmra.mrb[0].mxu0 %v7133
        %v7135 = vpop.f32.mrb[0].mxu0
        %v7136 = vadd.f32 %v7054, %v7135
        %v7137 = vpop.f32.mrb[0].mxu0
        %7138 = vmatprep.mubr.f32.mxu0 0.0
        %v7139 = vand.u32 %v6887, 4294901760
        %v7140 = vsub.f32 %v6887, %v7139
        %7141 = vmatmul.mubr.f32.gmra.mrb[0].mxu0 %v7140
        %v7142 = vpop.f32.mrb[0].mxu0
        %v7143 = vadd.f32 %v7060, %v7142
        %v7144 = vpop.f32.mrb[0].mxu0
        %7145 = vdwg.mxu0
        %7146 = vmatprep.subr.mxu0 0.0
        %v7147 = vand.u32 %v6881, 4294901760
        %7148 = vmatpush1.msra.mxu0 %v7147
        %7149 = vmatprep.subr.mxu0 0.0
        %v7150 = vand.u32 %v6882, 4294901760
        %7151 = vmatpush1.msra.mxu0 %v7150
        %7152 = vmatprep.subr.mxu0 0.0
        %7153 = vmatpush1.msra.mxu0 0.0
        %7154 = vmatprep.subr.mxu0 0.0
        %7155 = vmatpush1.msra.mxu0 0.0
        %7156 = vmatprep.subr.mxu0 0.0
        %7157 = vmatpush1.msra.mxu0 0.0
        %7158 = vmatprep.subr.mxu0 0.0
        %7159 = vmatpush1.msra.mxu0 0.0
        %7160 = vmatprep.subr.mxu0 0.0
        %7161 = vmatpush1.msra.mxu0 0.0
        %7162 = vmatprep.subr.mxu0 0.0
        %7163 = vmatpush1.msra.mxu0 0.0
        %7164 = vmatprep.subr.mxu0 0.0
        %7165 = vmatpush1.msra.mxu0 0.0
        %7166 = vmatprep.subr.mxu0 0.0
        %7167 = vmatpush1.msra.mxu0 0.0
        %7168 = vmatprep.subr.mxu0 0.0
        %7169 = vmatpush1.msra.mxu0 0.0
        %7170 = vmatprep.subr.mxu0 0.0
        %7171 = vmatpush1.msra.mxu0 0.0
        %7172 = vmatprep.subr.mxu0 0.0
        %7173 = vmatpush1.msra.mxu0 0.0
        %7174 = vmatprep.subr.mxu0 0.0
        %7175 = vmatpush1.msra.mxu0 0.0
        %7176 = vmatprep.subr.mxu0 0.0
        %7177 = vmatpush1.msra.mxu0 0.0
        %7178 = vmatprep.subr.mxu0 0.0
        %7179 = vmatpush1.msra.mxu0 0.0
        %7180 = vmatprep.subr.mxu0 0.0
        %7181 = vmatpush1.msra.mxu0 0.0
        %7182 = vmatprep.subr.mxu0 0.0
        %7183 = vmatpush1.msra.mxu0 0.0
        %7184 = vmatprep.subr.mxu0 0.0
        %7185 = vmatpush1.msra.mxu0 0.0
        %7186 = vmatprep.subr.mxu0 0.0
        %7187 = vmatpush1.msra.mxu0 0.0
        %7188 = vmatprep.subr.mxu0 0.0
        %7189 = vmatpush1.msra.mxu0 0.0
        %7190 = vmatprep.subr.mxu0 0.0
        %7191 = vmatpush1.msra.mxu0 0.0
        %7192 = vmatprep.subr.mxu0 0.0
        %7193 = vmatpush1.msra.mxu0 0.0
        %7194 = vmatprep.subr.mxu0 0.0
        %7195 = vmatpush1.msra.mxu0 0.0
        %7196 = vmatprep.subr.mxu0 0.0
        %7197 = vmatpush1.msra.mxu0 0.0
        %7198 = vmatprep.subr.mxu0 0.0
        %7199 = vmatpush1.msra.mxu0 0.0
        %7200 = vmatprep.subr.mxu0 0.0
        %7201 = vmatpush1.msra.mxu0 0.0
        %7202 = vmatprep.subr.mxu0 0.0
        %7203 = vmatpush1.msra.mxu0 0.0
        %7204 = vmatprep.subr.mxu0 0.0
        %7205 = vmatpush1.msra.mxu0 0.0
        %7206 = vmatprep.subr.mxu0 0.0
        %7207 = vmatpush1.msra.mxu0 0.0
        %7208 = vmatprep.subr.mxu0 0.0
        %7209 = vmatpush1.msra.mxu0 0.0
        %7210 = vmatprep.subr.mxu0 0.0
        %7211 = vmatpush1.msra.mxu0 0.0
        %7212 = vmatprep.mubr.f32.mxu0 0.0
        %v7213 = vand.u32 %v6884, 4294901760
        %v7214 = vsub.f32 %v6884, %v7213
        %v7215 = vand.u32 %v7214, 4294901760
        %7216 = vmatmul.mubr.f32.gmra.mrb[0].mxu0 %v7215
        %v7217 = vpop.f32.mrb[0].mxu0
        %v7218 = vadd.f32 %v7136, %v7217
        %v7219 = vpop.f32.mrb[0].mxu0
        %7220 = vmatprep.mubr.f32.mxu0 0.0
        %v7221 = vand.u32 %v6887, 4294901760
        %v7222 = vsub.f32 %v6887, %v7221
        %v7223 = vand.u32 %v7222, 4294901760
        %7224 = vmatmul.mubr.f32.gmra.mrb[0].mxu0 %v7223
        %v7225 = vpop.f32.mrb[0].mxu0
        %v7226 = vadd.f32 %v7143, %v7225
        %v7227 = vpop.f32.mrb[0].mxu0
        %7228 = vdwg.mxu0
        %7229 = vmatprep.subr.mxu0 0.0
        %v7230 = vand.u32 %v6881, 4294901760
        %v7231 = vsub.f32 %v6881, %v7230
        %v7232 = vand.u32 %v7231, 4294901760
        %7233 = vmatpush1.msra.mxu0 %v7232
        %7234 = vmatprep.subr.mxu0 0.0
        %v7235 = vand.u32 %v6882, 4294901760
        %v7236 = vsub.f32 %v6882, %v7235
        %v7237 = vand.u32 %v7236, 4294901760
        %7238 = vmatpush1.msra.mxu0 %v7237
        %7239 = vmatprep.subr.mxu0 0.0
        %7240 = vmatpush1.msra.mxu0 0.0
        %7241 = vmatprep.subr.mxu0 0.0
        %7242 = vmatpush1.msra.mxu0 0.0
        %7243 = vmatprep.subr.mxu0 0.0
        %7244 = vmatpush1.msra.mxu0 0.0
        %7245 = vmatprep.subr.mxu0 0.0
        %7246 = vmatpush1.msra.mxu0 0.0
        %7247 = vmatprep.subr.mxu0 0.0
        %7248 = vmatpush1.msra.mxu0 0.0
        %7249 = vmatprep.subr.mxu0 0.0
        %7250 = vmatpush1.msra.mxu0 0.0
        %7251 = vmatprep.subr.mxu0 0.0
        %7252 = vmatpush1.msra.mxu0 0.0
        %7253 = vmatprep.subr.mxu0 0.0
        %7254 = vmatpush1.msra.mxu0 0.0
        %7255 = vmatprep.subr.mxu0 0.0
        %7256 = vmatpush1.msra.mxu0 0.0
        %7257 = vmatprep.subr.mxu0 0.0
        %7258 = vmatpush1.msra.mxu0 0.0
        %7259 = vmatprep.subr.mxu0 0.0
        %7260 = vmatpush1.msra.mxu0 0.0
        %7261 = vmatprep.subr.mxu0 0.0
        %7262 = vmatpush1.msra.mxu0 0.0
        %7263 = vmatprep.subr.mxu0 0.0
        %7264 = vmatpush1.msra.mxu0 0.0
        %7265 = vmatprep.subr.mxu0 0.0
        %7266 = vmatpush1.msra.mxu0 0.0
        %7267 = vmatprep.subr.mxu0 0.0
        %7268 = vmatpush1.msra.mxu0 0.0
        %7269 = vmatprep.subr.mxu0 0.0
        %7270 = vmatpush1.msra.mxu0 0.0
        %7271 = vmatprep.subr.mxu0 0.0
        %7272 = vmatpush1.msra.mxu0 0.0
        %7273 = vmatprep.subr.mxu0 0.0
        %7274 = vmatpush1.msra.mxu0 0.0
        %7275 = vmatprep.subr.mxu0 0.0
        %7276 = vmatpush1.msra.mxu0 0.0
        %7277 = vmatprep.subr.mxu0 0.0
        %7278 = vmatpush1.msra.mxu0 0.0
        %7279 = vmatprep.subr.mxu0 0.0
        %7280 = vmatpush1.msra.mxu0 0.0
        %7281 = vmatprep.subr.mxu0 0.0
        %7282 = vmatpush1.msra.mxu0 0.0
        %7283 = vmatprep.subr.mxu0 0.0
        %7284 = vmatpush1.msra.mxu0 0.0
        %7285 = vmatprep.subr.mxu0 0.0
        %7286 = vmatpush1.msra.mxu0 0.0
        %7287 = vmatprep.subr.mxu0 0.0
        %7288 = vmatpush1.msra.mxu0 0.0
        %7289 = vmatprep.subr.mxu0 0.0
        %7290 = vmatpush1.msra.mxu0 0.0
        %7291 = vmatprep.subr.mxu0 0.0
        %7292 = vmatpush1.msra.mxu0 0.0
        %7293 = vmatprep.subr.mxu0 0.0
        %7294 = vmatpush1.msra.mxu0 0.0
        %7295 = vmatprep.subr.mxu0 0.0
        %7296 = vmatpush1.msra.mxu0 0.0
        %7297 = vmatprep.subr.mxu0 0.0
        %7298 = vmatpush1.msra.mxu0 0.0
        %7299 = vmatprep.mubr.f32.mxu0 0.0
        %v7300 = vand.u32 %v6884, 4294901760
        %7301 = vmatmul.mubr.f32.gmra.mrb[0].mxu0 %v7300
        %v7302 = vpop.f32.mrb[0].mxu0
        %v7303 = vadd.f32 %v7218, %v7302
        %v7304 = vpop.f32.mrb[0].mxu0
        %7305 = vmatprep.mubr.f32.mxu0 0.0
        %v7306 = vand.u32 %v6887, 4294901760
        %7307 = vmatmul.mubr.f32.gmra.mrb[0].mxu0 %v7306
        %v7308 = vpop.f32.mrb[0].mxu0
        %v7309 = vadd.f32 %v7226, %v7308
        %v7310 = vpop.f32.mrb[0].mxu0
        %7311 = vdwg.mxu0
        %7312 = vmatprep.subr.mxu0 0.0
        %v7313 = vand.u32 %v6881, 4294901760
        %7314 = vmatpush1.msra.mxu0 %v7313
        %7315 = vmatprep.subr.mxu0 0.0
        %v7316 = vand.u32 %v6882, 4294901760
        %7317 = vmatpush1.msra.mxu0 %v7316
        %7318 = vmatprep.subr.mxu0 0.0
        %7319 = vmatpush1.msra.mxu0 0.0
        %7320 = vmatprep.subr.mxu0 0.0
        %7321 = vmatpush1.msra.mxu0 0.0
        %7322 = vmatprep.subr.mxu0 0.0
        %7323 = vmatpush1.msra.mxu0 0.0
        %7324 = vmatprep.subr.mxu0 0.0
        %7325 = vmatpush1.msra.mxu0 0.0
        %7326 = vmatprep.subr.mxu0 0.0
        %7327 = vmatpush1.msra.mxu0 0.0
        %7328 = vmatprep.subr.mxu0 0.0
        %7329 = vmatpush1.msra.mxu0 0.0
        %7330 = vmatprep.subr.mxu0 0.0
        %7331 = vmatpush1.msra.mxu0 0.0
        %7332 = vmatprep.subr.mxu0 0.0
        %7333 = vmatpush1.msra.mxu0 0.0
        %7334 = vmatprep.subr.mxu0 0.0
        %7335 = vmatpush1.msra.mxu0 0.0
        %7336 = vmatprep.subr.mxu0 0.0
        %7337 = vmatpush1.msra.mxu0 0.0
        %7338 = vmatprep.subr.mxu0 0.0
        %7339 = vmatpush1.msra.mxu0 0.0
        %7340 = vmatprep.subr.mxu0 0.0
        %7341 = vmatpush1.msra.mxu0 0.0
        %7342 = vmatprep.subr.mxu0 0.0
        %7343 = vmatpush1.msra.mxu0 0.0
        %7344 = vmatprep.subr.mxu0 0.0
        %7345 = vmatpush1.msra.mxu0 0.0
        %7346 = vmatprep.subr.mxu0 0.0
        %7347 = vmatpush1.msra.mxu0 0.0
        %7348 = vmatprep.subr.mxu0 0.0
        %7349 = vmatpush1.msra.mxu0 0.0
        %7350 = vmatprep.subr.mxu0 0.0
        %7351 = vmatpush1.msra.mxu0 0.0
        %7352 = vmatprep.subr.mxu0 0.0
        %7353 = vmatpush1.msra.mxu0 0.0
        %7354 = vmatprep.subr.mxu0 0.0
        %7355 = vmatpush1.msra.mxu0 0.0
        %7356 = vmatprep.subr.mxu0 0.0
        %7357 = vmatpush1.msra.mxu0 0.0
        %7358 = vmatprep.subr.mxu0 0.0
        %7359 = vmatpush1.msra.mxu0 0.0
        %7360 = vmatprep.subr.mxu0 0.0
        %7361 = vmatpush1.msra.mxu0 0.0
        %7362 = vmatprep.subr.mxu0 0.0
        %7363 = vmatpush1.msra.mxu0 0.0
        %7364 = vmatprep.subr.mxu0 0.0
        %7365 = vmatpush1.msra.mxu0 0.0
        %7366 = vmatprep.subr.mxu0 0.0
        %7367 = vmatpush1.msra.mxu0 0.0
        %7368 = vmatprep.subr.mxu0 0.0
        %7369 = vmatpush1.msra.mxu0 0.0
        %7370 = vmatprep.subr.mxu0 0.0
        %7371 = vmatpush1.msra.mxu0 0.0
        %7372 = vmatprep.subr.mxu0 0.0
        %7373 = vmatpush1.msra.mxu0 0.0
        %7374 = vmatprep.subr.mxu0 0.0
        %7375 = vmatpush1.msra.mxu0 0.0
        %7376 = vmatprep.subr.mxu0 0.0
        %7377 = vmatpush1.msra.mxu0 0.0
        %7378 = vmatprep.mubr.f32.mxu0 0.0
        %v7379 = vand.u32 %v6884, 4294901760
        %7380 = vmatmul.mubr.f32.gmra.mrb[0].mxu0 %v7379
        %v7381 = vpop.f32.mrb[0].mxu0
        %v7382 = vadd.f32 %v7303, %v7381
        %v7383 = vpop.f32.mrb[0].mxu0
        %7384 = vmatprep.mubr.f32.mxu0 0.0
        %v7385 = vand.u32 %v6887, 4294901760
        %7386 = vmatmul.mubr.f32.gmra.mrb[0].mxu0 %v7385
        %v7387 = vpop.f32.mrb[0].mxu0
        %v7388 = vadd.f32 %v7309, %v7387
        %v7389 = vpop.f32.mrb[0].mxu0
        %7390 = vdwg.mxu0
        %v7391 = vadd.f32 %v6361, %v7382
        %v7392 = vadd.f32 %v6362, %v7388
        %v7393 = vadd.f32 %v6876, %v7391
        %v7394 = vadd.f32 %v6877, %v7392
        %v7395 = vsub.f32 0.0, %v7393
        %v7396 = vsub.f32 0.0, %v7394
        %v7397 = vmul.f32 %v7395, 1.442695
        %v7398 = vpow.pop %v7397
        %v7399 = vmul.f32 %v7396, 1.442695
        %v7400 = vpow.pop %v7399
        %v7401 = vadd.f32 %v7398, 1.0
        %v7402 = vadd.f32 %v7400, 1.0
        %v7403 = vrcp.pop %v7401
        %v7404 = vmul.f32 1.0, %v7403
        %v7405 = vrcp.pop %v7402
        %v7406 = vmul.f32 1.0, %v7405
        %7407 = vst.msk [vmem:[%s136] sm:$0xff] %vm155, %v7404
        %7408 = vst.msk [vmem:[%s136 + $0x8] sm:$0xff] %vm155, %v7406
        %s7409 = sand.u32 %s71, 1
        %s7410 = scalar_lea.sflag [#allocation4], %s7409
        %s7411 = sand.u32 %s71, 1
        %s7412 = smul.addr %s7411, 16
        %s7413 = scalar_lea.vmem [#allocation3], %s7412
        // Predicated region
        $region29: #{spatial_attention.1} parent=27 // pred_check
          %p7414 = pneg %p81
        $region30: #{spatial_attention.1} parent=27 // pred_check_branch
          %7416 = sbr.rel (%p7414) target = $region32
        $region31: #{spatial_attention.1} parent=27 // pred_region
          %s7418 = ssub.s32 256, 256
          %7419 = vsyncadd %s7410, %s7418
          %s7420 = smul.addr %s16, 2
          %s7421 = smul.addr %s7420, 128
          %s7422 = scalar_lea.hbm %s2, %s7421
          %s7423 = sshll.u32 %s7413, 4
          %s7424 = int_to_ptr.vmem [resolvable:$true] %s7423
          %7429 = dma.vmem_to_hbm [thread:$0]  %s7424, 256, %s7422, %s7410, 128, 128, 8
        $region32: #{spatial_attention.1} parent=27 // pred_fallthru
          _
      $region28: #{spatial_attention.1} parent=5 // pred_fallthru
        _
      %p7430 = scmp.le.s32.totalorder 2, %s11
      // Predicated region
      $region33: #{spatial_attention.1} parent=5 // pred_check
        %p7431 = pneg %p7430
      $region34: #{spatial_attention.1} parent=5 // pred_check_branch
        %7433 = sbr.rel (%p7431) target = $region36
      $region35: #{spatial_attention.1} parent=5 // pred_region
        %s7434 = ssub.s32 %s11, 2
        // Predicated region
        $region37: #{spatial_attention.1} parent=35 // pred_check
          %p7435 = pneg %p87
        $region38: #{spatial_attention.1} parent=35 // pred_check_branch
          %7437 = sbr.rel (%p7435) target = $region40
        $region39: #{spatial_attention.1} parent=35 // pred_region
          %s7438 = sand.u32 %s72, 1
          %s7439 = scalar_lea.sflag [#allocation4], %s7438
          %s7440 = sand.u32 %s72, 1
          %s7441 = smul.addr %s7440, 16
          %s7442 = scalar_lea.vmem [#allocation3], %s7441
          %7443 = dma.done %s7439, 256
        $region40: #{spatial_attention.1} parent=35 // pred_fallthru
          _
      $region36: #{spatial_attention.1} parent=5 // pred_fallthru
        _
    $region6: #{spatial_attention.1} parent=1 // loop_footer
      %s15 = sadd.s32 1, %s11
    $region7: #{spatial_attention.1} parent=1 // loop_footer_branch
      %10 = sbr.rel target = $region3
    $region8: #{spatial_attention.1} parent=1 // loop_exit
      _
    %7444 = vsyncpa [#allocation4], 1
    %s7445 = scalar_lea.sflag [#allocation4], 1
    %7446 = vsyncpa %s7445, 1

</llo_original>
